<compile_context>
chip_gen: v5e
topology: v5e:2x2
jax: 0.10.0
libtpu: 0.0.40
codegen_flags: <defaults>
</compile_context>

<pallas_src>
import jax
import jax.numpy as jnp
from jax import lax
from jax.experimental import pallas as pl
from jax.experimental.pallas import tpu as pltpu

# ----------------------------- config ---------------------------------------
D_HIDN = 32          # config.d_hidn
N_HEAD = 4           # config.n_head
D_HEAD = 8           # config.d_head
HDH = N_HEAD * D_HEAD
D_FF = 64            # config.d_ff
N_LAYER = 2          # config.n_layer
N_ENC_SEQ = 8        # config.n_enc_seq (sequence length with cls token = 9)
I_PAD = 0            # config.i_pad
LN_EPS = 1e-12       # config.layer_norm_epsilon
SCALE = 1.0 / (D_HEAD ** 0.5)
NEG_INF = -1.0e9
LANE = 128           # lane width of the packed parameter buffer


# ------------------------- packed parameter layout ---------------------------
def _round_up(x, m):
    return ((x + m - 1) // m) * m


class _ParamLayout:
    def __init__(self):
        self.order = []
        self.offsets = {}
        self.shapes = {}
        self.total_rows = 0

    def add(self, name, rows, cols):
        assert cols <= LANE, (name, cols)
        self.order.append(name)
        self.offsets[name] = self.total_rows
        self.shapes[name] = (rows, cols)
        self.total_rows += _round_up(rows, 8)   # keep every slab sublane-aligned


def _build_layout():
    lo = _ParamLayout()
    for l in range(N_LAYER):                                   # encoder layers
        lo.add(f"e_wqkv_{l}", D_HIDN, 3 * HDH)
        lo.add(f"e_bqkv_{l}", 1, 3 * HDH)
        lo.add(f"e_wo_{l}", HDH, D_HIDN)
        lo.add(f"e_bo_{l}", 1, D_HIDN)
        lo.add(f"e_ln1_g_{l}", 1, D_HIDN)
        lo.add(f"e_ln1_b_{l}", 1, D_HIDN)
        lo.add(f"e_w1_{l}", D_HIDN, D_FF)
        lo.add(f"e_b1_{l}", 1, D_FF)
        lo.add(f"e_w2_{l}", D_FF, D_HIDN)
        lo.add(f"e_b2_{l}", 1, D_HIDN)
        lo.add(f"e_ln2_g_{l}", 1, D_HIDN)
        lo.add(f"e_ln2_b_{l}", 1, D_HIDN)
    # cross-attention K/V weights of ALL decoder layers fused into one matmul
    lo.add("d_ca_wkv_all", D_HIDN, N_LAYER * 2 * HDH)          # (32, 128)
    lo.add("d_ca_bkv_all", 1, N_LAYER * 2 * HDH)
    for l in range(N_LAYER):                                   # decoder layers
        lo.add(f"d_sa_wqkv_{l}", D_HIDN, 3 * HDH)
        lo.add(f"d_sa_bqkv_{l}", 1, 3 * HDH)
        lo.add(f"d_sa_wo_{l}", HDH, D_HIDN)
        lo.add(f"d_sa_bo_{l}", 1, D_HIDN)
        lo.add(f"d_ln1_g_{l}", 1, D_HIDN)
        lo.add(f"d_ln1_b_{l}", 1, D_HIDN)
        lo.add(f"d_ca_wq_{l}", D_HIDN, HDH)
        lo.add(f"d_ca_bq_{l}", 1, HDH)
        lo.add(f"d_ca_wo_{l}", HDH, D_HIDN)
        lo.add(f"d_ca_bo_{l}", 1, D_HIDN)
        lo.add(f"d_ln2_g_{l}", 1, D_HIDN)
        lo.add(f"d_ln2_b_{l}", 1, D_HIDN)
        lo.add(f"d_w1_{l}", D_HIDN, D_FF)
        lo.add(f"d_b1_{l}", 1, D_FF)
        lo.add(f"d_w2_{l}", D_FF, D_HIDN)
        lo.add(f"d_b2_{l}", 1, D_HIDN)
        lo.add(f"d_ln3_g_{l}", 1, D_HIDN)
        lo.add(f"d_ln3_b_{l}", 1, D_HIDN)
    return lo


_LAYOUT = _build_layout()


def _pack_params(raw):
    """Pack the raw parameter dict into one (rows, 128) f32 buffer."""
    buf = jnp.zeros((_LAYOUT.total_rows, LANE), jnp.float32)
    for name in _LAYOUT.order:
        r, c = _LAYOUT.shapes[name]
        a = jnp.asarray(raw[name], jnp.float32)
        assert a.shape == (r, c), (name, a.shape, (r, c))
        off = _LAYOUT.offsets[name]
        buf = buf.at[off:off + r, :c].set(a)
    return buf


def _param(params_ref, name):
    off = _LAYOUT.offsets[name]
    r, c = _LAYOUT.shapes[name]
    return params_ref[off:off + r, :c]          # static slice of the VMEM block


# --------------------------- in-kernel helpers -------------------------------
def _erf(x):
    # Abramowitz & Stegun 7.1.26 polynomial approximation (|err| < ~1.5e-7).
    a1, a2, a3, a4, a5 = (0.254829592, -0.284496736, 1.421413741,
                          -1.453152027, 1.061405429)
    pcoef = 0.3275911
    sign = jnp.where(x >= 0.0, 1.0, -1.0)
    ax = jnp.abs(x)
    t = 1.0 / (1.0 + pcoef * ax)
    poly = ((((a5 * t + a4) * t + a3) * t + a2) * t + a1) * t
    return sign * (1.0 - poly * jnp.exp(-ax * ax))


def _gelu(x):
    # matches torch.nn.functional.gelu (exact / erf based) closely
    return 0.5 * x * (1.0 + _erf(x * 0.7071067811865476))


# ------------------------------ fused kernel ---------------------------------
def _transformer_kernel(params_ref, x_enc_ref, x_dec_ref, bias_ref,
                        dec_out_ref, probs_ref):
    def p(name):
        return _param(params_ref, name)

    enc_bias = bias_ref[0]        # (BL, BL) additive, block-diagonal over batch
    dec_self_bias = bias_ref[1]
    dec_enc_bias = bias_ref[2]

    def attend(q2, kv2, wo, bo, bias, prob_base):
        """q2: (R, H*Dh) scaled queries; kv2: (R, 2*H*Dh) = [K | V]."""
        ctxs = []
        for h in range(N_HEAD):
            qh = q2[:, h * D_HEAD:(h + 1) * D_HEAD]
            kh = kv2[:, h * D_HEAD:(h + 1) * D_HEAD]
            vh = kv2[:, HDH + h * D_HEAD:HDH + (h + 1) * D_HEAD]
            s = lax.dot_general(qh, kh, (((1,), (1,)), ((), ())),
                                preferred_element_type=jnp.float32)     # q @ k^T
            s = s + bias
            m = jnp.max(s, axis=-1, keepdims=True)
            e = jnp.exp(s - m)
            prob = e / jnp.sum(e, axis=-1, keepdims=True)   # exact softmax
            probs_ref[prob_base + h] = prob
            ctxs.append(jnp.dot(prob, vh, preferred_element_type=jnp.float32))
        ctx = jnp.concatenate(ctxs, axis=-1)                 # (R, H*Dh) lane-dense
        return jnp.dot(ctx, wo, preferred_element_type=jnp.float32) + bo

    def layer_norm(y, g, b):
        mu = jnp.mean(y, axis=-1, keepdims=True)
        var = jnp.mean((y - mu) ** 2, axis=-1, keepdims=True)
        return (y - mu) * lax.rsqrt(var + LN_EPS) * g + b

    def ffn(x, w1, b1, w2, b2):
        h = jnp.dot(x, w1, preferred_element_type=jnp.float32) + b1
        h = _gelu(h)
        return jnp.dot(h, w2, preferred_element_type=jnp.float32) + b2

    # -------------------------------- encoder --------------------------------
    x = x_enc_ref[...]                                       # (B*L, D)
    for l in range(N_LAYER):
        qkv = jnp.dot(x, p(f"e_wqkv_{l}"),
                      preferred_element_type=jnp.float32) + p(f"e_bqkv_{l}")
        att = attend(qkv[:, :HDH], qkv[:, HDH:],
                     p(f"e_wo_{l}"), p(f"e_bo_{l}"),
                     enc_bias, (0 * N_LAYER + l) * N_HEAD)
        x = layer_norm(x + att, p(f"e_ln1_g_{l}"), p(f"e_ln1_b_{l}"))
        f = ffn(x, p(f"e_w1_{l}"), p(f"e_b1_{l}"), p(f"e_w2_{l}"), p(f"e_b2_{l}"))
        x = layer_norm(x + f, p(f"e_ln2_g_{l}"), p(f"e_ln2_b_{l}"))

    # cross-attention K/V of BOTH decoder layers from one fused matmul
    kv_all = jnp.dot(x, p("d_ca_wkv_all"),
                     preferred_element_type=jnp.float32) + p("d_ca_bkv_all")

    # -------------------------------- decoder --------------------------------
    y = x_dec_ref[...]
    for l in range(N_LAYER):
        qkv = jnp.dot(y, p(f"d_sa_wqkv_{l}"),
                      preferred_element_type=jnp.float32) + p(f"d_sa_bqkv_{l}")
        att = attend(qkv[:, :HDH], qkv[:, HDH:],
                     p(f"d_sa_wo_{l}"), p(f"d_sa_bo_{l}"),
                     dec_self_bias, (1 * N_LAYER + l) * N_HEAD)
        y = layer_norm(y + att, p(f"d_ln1_g_{l}"), p(f"d_ln1_b_{l}"))

        q2 = jnp.dot(y, p(f"d_ca_wq_{l}"),
                     preferred_element_type=jnp.float32) + p(f"d_ca_bq_{l}")
        kv_l = kv_all[:, l * 2 * HDH:(l + 1) * 2 * HDH]
        att = attend(q2, kv_l, p(f"d_ca_wo_{l}"), p(f"d_ca_bo_{l}"),
                     dec_enc_bias, (2 * N_LAYER + l) * N_HEAD)
        y = layer_norm(y + att, p(f"d_ln2_g_{l}"), p(f"d_ln2_b_{l}"))

        f = ffn(y, p(f"d_w1_{l}"), p(f"d_b1_{l}"), p(f"d_w2_{l}"), p(f"d_b2_{l}"))
        y = layer_norm(y + f, p(f"d_ln3_g_{l}"), p(f"d_ln3_b_{l}"))

    dec_out_ref[...] = y


# --------------------------- pallas_call wrapper ------------------------------
def _full_spec(shape):
    nd = len(shape)
    return pl.BlockSpec(tuple(int(s) for s in shape),
                        lambda *_, _nd=nd: (0,) * _nd)


def transformer_pallas(packed, x_enc2, x_dec2, attn_bias):
    bl = x_enc2.shape[0]
    inputs = (packed, x_enc2, x_dec2, attn_bias)
    out_shape = (
        jax.ShapeDtypeStruct((bl, D_HIDN), jnp.float32),                 # dec out
        jax.ShapeDtypeStruct((3 * N_LAYER * N_HEAD, bl, bl), jnp.float32),  # probs
    )
    return pl.pallas_call(
        _transformer_kernel,
        grid=(1,),
        in_specs=[_full_spec(a.shape) for a in inputs],
        out_specs=tuple(_full_spec(s.shape) for s in out_shape),
        out_shape=out_shape,
        compiler_params=pltpu.CompilerParams(
            dimension_semantics=("arbitrary",)),
    )(*inputs)


# ------------------------------ masks (glue) ----------------------------------
def get_attn_pad_mask(seq_q, seq_k, i_pad):
    B, Lq = seq_q.shape
    Lk = seq_k.shape[1]
    pad = (seq_k == i_pad)[:, None, :]
    return jnp.broadcast_to(pad, (B, Lq, Lk))


def get_attn_decoder_mask(seq):
    B, L = seq.shape
    tri = jnp.triu(jnp.ones((L, L), jnp.int32), k=1)
    return jnp.broadcast_to(tri[None, :, :], (B, L, L))


def _block_diag_bias(mask_bool):
    """(B, L, L) bool mask -> (B*L, B*L) additive bias; cross-batch = -1e9."""
    B, Lq, Lk = mask_bool.shape
    add = jnp.where(mask_bool, NEG_INF, 0.0).astype(jnp.float32)   # (B, Lq, Lk)
    eye = jnp.eye(B, dtype=jnp.float32)
    diag = add[:, :, None, :] * eye[:, None, :, None]              # (B, Lq, B, Lk)
    off = NEG_INF * (1.0 - eye)[:, None, :, None]
    full = diag + jnp.broadcast_to(off, (B, Lq, B, Lk))
    return full.reshape(B * Lq, B * Lk)


# ------------------------------ parameters ------------------------------------
def init_params(key):
    keys = iter(jax.random.split(key, 64))

    def nrm(shape):
        return jax.random.normal(next(keys), shape, jnp.float32) * 0.02

    ones = lambda c: jnp.ones((1, c), jnp.float32)
    zeros = lambda c: jnp.zeros((1, c), jnp.float32)

    raw = {}
    # encoder layers (scale 1/sqrt(d_head) folded into the Q weights/biases)
    for l in range(N_LAYER):
        wq, wk, wv = nrm((D_HIDN, HDH)), nrm((D_HIDN, HDH)), nrm((D_HIDN, HDH))
        raw[f"e_wqkv_{l}"] = jnp.concatenate([wq * SCALE, wk, wv], axis=1)
        raw[f"e_bqkv_{l}"] = zeros(3 * HDH)
        raw[f"e_wo_{l}"] = nrm((HDH, D_HIDN)); raw[f"e_bo_{l}"] = zeros(D_HIDN)
        raw[f"e_ln1_g_{l}"] = ones(D_HIDN);    raw[f"e_ln1_b_{l}"] = zeros(D_HIDN)
        raw[f"e_w1_{l}"] = nrm((D_HIDN, D_FF)); raw[f"e_b1_{l}"] = zeros(D_FF)
        raw[f"e_w2_{l}"] = nrm((D_FF, D_HIDN)); raw[f"e_b2_{l}"] = zeros(D_HIDN)
        raw[f"e_ln2_g_{l}"] = ones(D_HIDN);    raw[f"e_ln2_b_{l}"] = zeros(D_HIDN)

    # decoder cross-attention K/V, all layers fused along the lane dim
    kv_w, kv_b = [], []
    for l in range(N_LAYER):
        wk, wv = nrm((D_HIDN, HDH)), nrm((D_HIDN, HDH))
        kv_w.append(jnp.concatenate([wk, wv], axis=1))
        kv_b.append(zeros(2 * HDH))
    raw["d_ca_wkv_all"] = jnp.concatenate(kv_w, axis=1)
    raw["d_ca_bkv_all"] = jnp.concatenate(kv_b, axis=1)

    # decoder layers
    for l in range(N_LAYER):
        wq, wk, wv = nrm((D_HIDN, HDH)), nrm((D_HIDN, HDH)), nrm((D_HIDN, HDH))
        raw[f"d_sa_wqkv_{l}"] = jnp.concatenate([wq * SCALE, wk, wv], axis=1)
        raw[f"d_sa_bqkv_{l}"] = zeros(3 * HDH)
        raw[f"d_sa_wo_{l}"] = nrm((HDH, D_HIDN)); raw[f"d_sa_bo_{l}"] = zeros(D_HIDN)
        raw[f"d_ln1_g_{l}"] = ones(D_HIDN);       raw[f"d_ln1_b_{l}"] = zeros(D_HIDN)
        raw[f"d_ca_wq_{l}"] = nrm((D_HIDN, HDH)) * SCALE
        raw[f"d_ca_bq_{l}"] = zeros(HDH)
        raw[f"d_ca_wo_{l}"] = nrm((HDH, D_HIDN)); raw[f"d_ca_bo_{l}"] = zeros(D_HIDN)
        raw[f"d_ln2_g_{l}"] = ones(D_HIDN);       raw[f"d_ln2_b_{l}"] = zeros(D_HIDN)
        raw[f"d_w1_{l}"] = nrm((D_HIDN, D_FF));   raw[f"d_b1_{l}"] = zeros(D_FF)
        raw[f"d_w2_{l}"] = nrm((D_FF, D_HIDN));   raw[f"d_b2_{l}"] = zeros(D_HIDN)
        raw[f"d_ln3_g_{l}"] = ones(D_HIDN);       raw[f"d_ln3_b_{l}"] = zeros(D_HIDN)

    packed = _pack_params(raw)

    return {
        "packed": packed,
        "enc_cls": jax.random.normal(next(keys), (1, 1, D_HIDN), jnp.float32),
        "enc_pos": jax.random.normal(next(keys), (1, N_ENC_SEQ + 1, D_HIDN),
                                     jnp.float32),
        "dec_cls": jax.random.normal(next(keys), (1, 1, D_HIDN), jnp.float32),
        "dec_pos": jax.random.normal(next(keys), (1, N_ENC_SEQ + 1, D_HIDN),
                                     jnp.float32),
    }


# ------------------------------ forward pass ----------------------------------
def transformer_forward(params, enc_inputs, enc_inputs_embed,
                        dec_inputs, dec_inputs_embed):
    B = enc_inputs_embed.shape[0]
    L = N_ENC_SEQ + 1

    # embedding prep (cheap XLA glue): cls token + positional embedding
    cls_e = jnp.broadcast_to(params["enc_cls"], (B, 1, D_HIDN))
    x_enc = (jnp.concatenate([cls_e, enc_inputs_embed], axis=1)
             + params["enc_pos"])

    n = dec_inputs_embed.shape[1]
    cls_d = jnp.broadcast_to(params["dec_cls"], (B, 1, D_HIDN))
    x_dec = (jnp.concatenate([cls_d, dec_inputs_embed], axis=1)
             + params["dec_pos"][:, :n + 1])

    # masks -> block-diagonal additive biases over the folded (B*L) row space
    enc_mask = get_attn_pad_mask(enc_inputs, enc_inputs, I_PAD)
    dec_pad = get_attn_pad_mask(dec_inputs, dec_inputs, I_PAD).astype(jnp.int32)
    dec_tri = get_attn_decoder_mask(dec_inputs)
    dec_self_mask = (dec_pad + dec_tri) > 0
    dec_enc_mask = get_attn_pad_mask(dec_inputs, enc_inputs, I_PAD)

    attn_bias = jnp.stack([_block_diag_bias(enc_mask),
                           _block_diag_bias(dec_self_mask),
                           _block_diag_bias(dec_enc_mask)], axis=0)

    dec_out2, probs = transformer_pallas(
        params["packed"],
        x_enc.reshape(B * L, D_HIDN),
        x_dec.reshape(B * L, D_HIDN),
        attn_bias)

    dec_outputs = dec_out2.reshape(B, L, D_HIDN)
    probs = probs.reshape(3, N_LAYER, N_HEAD, B * L, B * L)

    def unpack(t):
        out = []
        for l in range(N_LAYER):
            per_b = [probs[t, l, :, b * L:(b + 1) * L, b * L:(b + 1) * L]
                     for b in range(B)]
            out.append(jnp.stack(per_b, axis=0))      # (B, H, L, L)
        return out

    return dec_outputs, unpack(0), unpack(1), unpack(2)


# ---------------------------------- main --------------------------------------
if __name__ == "__main__":
    key = jax.random.PRNGKey(0)
    kp, k1, k2 = jax.random.split(key, 3)
    params = init_params(kp)

    B = 2
    L = N_ENC_SEQ + 1  # token / mask sequences cover the cls position too

    # token-id / pad-mask sequences (a few padded positions exercise the masks)
    enc_inputs = jnp.ones((B, L), jnp.int32).at[1, -1].set(I_PAD)
    dec_inputs = jnp.ones((B, L), jnp.int32).at[1, -2:].set(I_PAD)

    # patch embeddings (cls token gets prepended inside the forward pass)
    enc_inputs_embed = jax.random.normal(k1, (B, N_ENC_SEQ, D_HIDN), jnp.float32)
    dec_inputs_embed = jax.random.normal(k2, (B, N_ENC_SEQ, D_HIDN), jnp.float32)

    fwd = jax.jit(transformer_forward)
    outs = fwd(params, enc_inputs, enc_inputs_embed, dec_inputs, dec_inputs_embed)
    jax.block_until_ready(outs)

    dec_outputs, enc_probs, dec_self_probs, dec_enc_probs = outs
    assert dec_outputs.shape == (B, L, D_HIDN)
    assert len(enc_probs) == N_LAYER and enc_probs[0].shape == (B, N_HEAD, L, L)
    assert len(dec_self_probs) == N_LAYER and dec_self_probs[0].shape == (B, N_HEAD, L, L)
    assert len(dec_enc_probs) == N_LAYER and dec_enc_probs[0].shape == (B, N_HEAD, L, L)
    assert bool(jnp.all(jnp.isfinite(dec_outputs)))
    for plist in (enc_probs, dec_self_probs, dec_enc_probs):
        for pr in plist:
            row_sums = jnp.sum(pr, axis=-1)
            assert bool(jnp.all(jnp.abs(row_sums - 1.0) < 1e-3))
    print("KERNEL_OK")
</pallas_src>

<mosaic_0001>
module attributes {stable_mosaic.version = 11 : i64} {
  func.func @_transformer_kernel(%arg0: i32, %arg1: memref<1128x128xf32, #tpu.memory_space<vmem>>, %arg2: memref<18x32xf32, #tpu.memory_space<vmem>>, %arg3: memref<18x32xf32, #tpu.memory_space<vmem>>, %arg4: memref<3x18x18xf32, #tpu.memory_space<vmem>>, %arg5: memref<18x32xf32, #tpu.memory_space<vmem>>, %arg6: memref<24x18x18xf32, #tpu.memory_space<vmem>>) attributes {dimension_semantics = [#tpu.dimension_semantics<arbitrary>], iteration_bounds = array<i64: 1>, scalar_prefetch = 0 : i64, scratch_operands = 0 : i64, tpu.core_type = #tpu.core_type<tc>, window_params = [{pipeline_mode = #tpu.pipeline_mode<synchronous>, transform_indices = @transform_0, window_bounds = array<i64: 1128, 128>}, {pipeline_mode = #tpu.pipeline_mode<synchronous>, transform_indices = @transform_1, window_bounds = array<i64: 18, 32>}, {pipeline_mode = #tpu.pipeline_mode<synchronous>, transform_indices = @transform_2, window_bounds = array<i64: 18, 32>}, {pipeline_mode = #tpu.pipeline_mode<synchronous>, transform_indices = @transform_3, window_bounds = array<i64: 3, 18, 18>}, {pipeline_mode = #tpu.pipeline_mode<synchronous>, transform_indices = @transform_4, window_bounds = array<i64: 18, 32>}, {pipeline_mode = #tpu.pipeline_mode<synchronous>, transform_indices = @transform_5, window_bounds = array<i64: 24, 18, 18>}]} {
    %c0 = arith.constant 0 : index
    %c0_0 = arith.constant 0 : index
    %c0_1 = arith.constant 0 : index
    %0 = vector.load %arg4[%c0, %c0_0, %c0_1] : memref<3x18x18xf32, #tpu.memory_space<vmem>>, vector<1x18x18xf32>
    %1 = vector.shape_cast %0 : vector<1x18x18xf32> to vector<18x18xf32>
    %c1 = arith.constant 1 : index
    %c0_2 = arith.constant 0 : index
    %c0_3 = arith.constant 0 : index
    %2 = vector.load %arg4[%c1, %c0_2, %c0_3] : memref<3x18x18xf32, #tpu.memory_space<vmem>>, vector<1x18x18xf32>
    %3 = vector.shape_cast %2 : vector<1x18x18xf32> to vector<18x18xf32>
    %c2 = arith.constant 2 : index
    %c0_4 = arith.constant 0 : index
    %c0_5 = arith.constant 0 : index
    %4 = vector.load %arg4[%c2, %c0_4, %c0_5] : memref<3x18x18xf32, #tpu.memory_space<vmem>>, vector<1x18x18xf32>
    %5 = vector.shape_cast %4 : vector<1x18x18xf32> to vector<18x18xf32>
    %c0_6 = arith.constant 0 : index
    %c0_7 = arith.constant 0 : index
    %6 = vector.load %arg2[%c0_6, %c0_7] : memref<18x32xf32, #tpu.memory_space<vmem>>, vector<18x32xf32>
    %c0_8 = arith.constant 0 : index
    %c0_9 = arith.constant 0 : index
    %7 = vector.load %arg1[%c0_8, %c0_9] : memref<1128x128xf32, #tpu.memory_space<vmem>>, vector<32x96xf32>
    %cst = arith.constant dense<0.000000e+00> : vector<18x96xf32>
    %8 = tpu.matmul %6, %7, %cst {dimension_numbers = #tpu.dot_dimension_numbers<[1], [0], [0], [1], [0, 0, 1, 1], [], []>} : vector<18x32xf32>, vector<32x96xf32>, vector<18x96xf32> -> vector<18x96xf32>
    %c32 = arith.constant 32 : index
    %c0_10 = arith.constant 0 : index
    %9 = vector.load %arg1[%c32, %c0_10] : memref<1128x128xf32, #tpu.memory_space<vmem>>, vector<1x96xf32>
    %10 = vector.broadcast %9 : vector<1x96xf32> to vector<18x96xf32>
    %11 = arith.addf %8, %10 : vector<18x96xf32>
    %12 = vector.extract_strided_slice %11 {offsets = [0, 0], sizes = [18, 32], strides = [1, 1]} : vector<18x96xf32> to vector<18x32xf32>
    %13 = vector.extract_strided_slice %11 {offsets = [0, 32], sizes = [18, 64], strides = [1, 1]} : vector<18x96xf32> to vector<18x64xf32>
    %c40 = arith.constant 40 : index
    %c0_11 = arith.constant 0 : index
    %14 = vector.load %arg1[%c40, %c0_11] : memref<1128x128xf32, #tpu.memory_space<vmem>>, vector<32x32xf32>
    %c72 = arith.constant 72 : index
    %c0_12 = arith.constant 0 : index
    %15 = vector.load %arg1[%c72, %c0_12] : memref<1128x128xf32, #tpu.memory_space<vmem>>, vector<1x32xf32>
    %16 = vector.extract_strided_slice %12 {offsets = [0, 0], sizes = [18, 8], strides = [1, 1]} : vector<18x32xf32> to vector<18x8xf32>
    %17 = vector.extract_strided_slice %13 {offsets = [0, 0], sizes = [18, 8], strides = [1, 1]} : vector<18x64xf32> to vector<18x8xf32>
    %18 = vector.extract_strided_slice %13 {offsets = [0, 32], sizes = [18, 8], strides = [1, 1]} : vector<18x64xf32> to vector<18x8xf32>
    %cst_13 = arith.constant dense<0.000000e+00> : vector<18x18xf32>
    %19 = tpu.matmul %16, %17, %cst_13 {dimension_numbers = #tpu.dot_dimension_numbers<[1], [1], [0], [0], [0, 0, 1, 0], [], []>} : vector<18x8xf32>, vector<18x8xf32>, vector<18x18xf32> -> vector<18x18xf32>
    %20 = arith.addf %19, %1 : vector<18x18xf32>
    %cst_14 = arith.constant dense<0xFF800000> : vector<18xf32>
    %21 = vector.multi_reduction <maximumf>, %20, %cst_14 [1] : vector<18x18xf32> to vector<18xf32>
    %22 = vector.shape_cast %21 : vector<18xf32> to vector<18x1xf32>
    %23 = vector.broadcast %22 : vector<18x1xf32> to vector<18x18xf32>
    %24 = arith.subf %20, %23 : vector<18x18xf32>
    %25 = math.exp %24 : vector<18x18xf32>
    %cst_15 = arith.constant dense<0.000000e+00> : vector<18xf32>
    %26 = vector.multi_reduction <add>, %25, %cst_15 [1] : vector<18x18xf32> to vector<18xf32>
    %27 = vector.shape_cast %26 : vector<18xf32> to vector<18x1xf32>
    %28 = vector.broadcast %27 : vector<18x1xf32> to vector<18x18xf32>
    %29 = arith.divf %25, %28 : vector<18x18xf32>
    %c0_16 = arith.constant 0 : index
    %c0_17 = arith.constant 0 : index
    %c0_18 = arith.constant 0 : index
    %30 = vector.load %arg6[%c0_16, %c0_17, %c0_18] : memref<24x18x18xf32, #tpu.memory_space<vmem>>, vector<1x18x18xf32>
    %31 = vector.shape_cast %30 : vector<1x18x18xf32> to vector<18x18xf32>
    %32 = vector.shape_cast %29 : vector<18x18xf32> to vector<1x18x18xf32>
    tpu.vector_store %arg6[%c0_16, %c0_17, %c0_18], %32 {strides = array<i32>} : memref<24x18x18xf32, #tpu.memory_space<vmem>>, vector<1x18x18xf32>,
    %cst_19 = arith.constant dense<0.000000e+00> : vector<18x8xf32>
    %33 = tpu.matmul %29, %18, %cst_19 {dimension_numbers = #tpu.dot_dimension_numbers<[1], [0], [0], [1], [0, 0, 1, 1], [], []>} : vector<18x18xf32>, vector<18x8xf32>, vector<18x8xf32> -> vector<18x8xf32>
    %34 = vector.extract_strided_slice %12 {offsets = [0, 8], sizes = [18, 8], strides = [1, 1]} : vector<18x32xf32> to vector<18x8xf32>
    %35 = vector.extract_strided_slice %13 {offsets = [0, 8], sizes = [18, 8], strides = [1, 1]} : vector<18x64xf32> to vector<18x8xf32>
    %36 = vector.extract_strided_slice %13 {offsets = [0, 40], sizes = [18, 8], strides = [1, 1]} : vector<18x64xf32> to vector<18x8xf32>
    %cst_20 = arith.constant dense<0.000000e+00> : vector<18x18xf32>
    %37 = tpu.matmul %34, %35, %cst_20 {dimension_numbers = #tpu.dot_dimension_numbers<[1], [1], [0], [0], [0, 0, 1, 0], [], []>} : vector<18x8xf32>, vector<18x8xf32>, vector<18x18xf32> -> vector<18x18xf32>
    %38 = arith.addf %37, %1 : vector<18x18xf32>
    %cst_21 = arith.constant dense<0xFF800000> : vector<18xf32>
    %39 = vector.multi_reduction <maximumf>, %38, %cst_21 [1] : vector<18x18xf32> to vector<18xf32>
    %40 = vector.shape_cast %39 : vector<18xf32> to vector<18x1xf32>
    %41 = vector.broadcast %40 : vector<18x1xf32> to vector<18x18xf32>
    %42 = arith.subf %38, %41 : vector<18x18xf32>
    %43 = math.exp %42 : vector<18x18xf32>
    %cst_22 = arith.constant dense<0.000000e+00> : vector<18xf32>
    %44 = vector.multi_reduction <add>, %43, %cst_22 [1] : vector<18x18xf32> to vector<18xf32>
    %45 = vector.shape_cast %44 : vector<18xf32> to vector<18x1xf32>
    %46 = vector.broadcast %45 : vector<18x1xf32> to vector<18x18xf32>
    %47 = arith.divf %43, %46 : vector<18x18xf32>
    %c1_23 = arith.constant 1 : index
    %c0_24 = arith.constant 0 : index
    %c0_25 = arith.constant 0 : index
    %48 = vector.load %arg6[%c1_23, %c0_24, %c0_25] : memref<24x18x18xf32, #tpu.memory_space<vmem>>, vector<1x18x18xf32>
    %49 = vector.shape_cast %48 : vector<1x18x18xf32> to vector<18x18xf32>
    %50 = vector.shape_cast %47 : vector<18x18xf32> to vector<1x18x18xf32>
    tpu.vector_store %arg6[%c1_23, %c0_24, %c0_25], %50 {strides = array<i32>} : memref<24x18x18xf32, #tpu.memory_space<vmem>>, vector<1x18x18xf32>,
    %cst_26 = arith.constant dense<0.000000e+00> : vector<18x8xf32>
    %51 = tpu.matmul %47, %36, %cst_26 {dimension_numbers = #tpu.dot_dimension_numbers<[1], [0], [0], [1], [0, 0, 1, 1], [], []>} : vector<18x18xf32>, vector<18x8xf32>, vector<18x8xf32> -> vector<18x8xf32>
    %52 = vector.extract_strided_slice %12 {offsets = [0, 16], sizes = [18, 8], strides = [1, 1]} : vector<18x32xf32> to vector<18x8xf32>
    %53 = vector.extract_strided_slice %13 {offsets = [0, 16], sizes = [18, 8], strides = [1, 1]} : vector<18x64xf32> to vector<18x8xf32>
    %54 = vector.extract_strided_slice %13 {offsets = [0, 48], sizes = [18, 8], strides = [1, 1]} : vector<18x64xf32> to vector<18x8xf32>
    %cst_27 = arith.constant dense<0.000000e+00> : vector<18x18xf32>
    %55 = tpu.matmul %52, %53, %cst_27 {dimension_numbers = #tpu.dot_dimension_numbers<[1], [1], [0], [0], [0, 0, 1, 0], [], []>} : vector<18x8xf32>, vector<18x8xf32>, vector<18x18xf32> -> vector<18x18xf32>
    %56 = arith.addf %55, %1 : vector<18x18xf32>
    %cst_28 = arith.constant dense<0xFF800000> : vector<18xf32>
    %57 = vector.multi_reduction <maximumf>, %56, %cst_28 [1] : vector<18x18xf32> to vector<18xf32>
    %58 = vector.shape_cast %57 : vector<18xf32> to vector<18x1xf32>
    %59 = vector.broadcast %58 : vector<18x1xf32> to vector<18x18xf32>
    %60 = arith.subf %56, %59 : vector<18x18xf32>
    %61 = math.exp %60 : vector<18x18xf32>
    %cst_29 = arith.constant dense<0.000000e+00> : vector<18xf32>
    %62 = vector.multi_reduction <add>, %61, %cst_29 [1] : vector<18x18xf32> to vector<18xf32>
    %63 = vector.shape_cast %62 : vector<18xf32> to vector<18x1xf32>
    %64 = vector.broadcast %63 : vector<18x1xf32> to vector<18x18xf32>
    %65 = arith.divf %61, %64 : vector<18x18xf32>
    %c2_30 = arith.constant 2 : index
    %c0_31 = arith.constant 0 : index
    %c0_32 = arith.constant 0 : index
    %66 = vector.load %arg6[%c2_30, %c0_31, %c0_32] : memref<24x18x18xf32, #tpu.memory_space<vmem>>, vector<1x18x18xf32>
    %67 = vector.shape_cast %66 : vector<1x18x18xf32> to vector<18x18xf32>
    %68 = vector.shape_cast %65 : vector<18x18xf32> to vector<1x18x18xf32>
    tpu.vector_store %arg6[%c2_30, %c0_31, %c0_32], %68 {strides = array<i32>} : memref<24x18x18xf32, #tpu.memory_space<vmem>>, vector<1x18x18xf32>,
    %cst_33 = arith.constant dense<0.000000e+00> : vector<18x8xf32>
    %69 = tpu.matmul %65, %54, %cst_33 {dimension_numbers = #tpu.dot_dimension_numbers<[1], [0], [0], [1], [0, 0, 1, 1], [], []>} : vector<18x18xf32>, vector<18x8xf32>, vector<18x8xf32> -> vector<18x8xf32>
    %70 = vector.extract_strided_slice %12 {offsets = [0, 24], sizes = [18, 8], strides = [1, 1]} : vector<18x32xf32> to vector<18x8xf32>
    %71 = vector.extract_strided_slice %13 {offsets = [0, 24], sizes = [18, 8], strides = [1, 1]} : vector<18x64xf32> to vector<18x8xf32>
    %72 = vector.extract_strided_slice %13 {offsets = [0, 56], sizes = [18, 8], strides = [1, 1]} : vector<18x64xf32> to vector<18x8xf32>
    %cst_34 = arith.constant dense<0.000000e+00> : vector<18x18xf32>
    %73 = tpu.matmul %70, %71, %cst_34 {dimension_numbers = #tpu.dot_dimension_numbers<[1], [1], [0], [0], [0, 0, 1, 0], [], []>} : vector<18x8xf32>, vector<18x8xf32>, vector<18x18xf32> -> vector<18x18xf32>
    %74 = arith.addf %73, %1 : vector<18x18xf32>
    %cst_35 = arith.constant dense<0xFF800000> : vector<18xf32>
    %75 = vector.multi_reduction <maximumf>, %74, %cst_35 [1] : vector<18x18xf32> to vector<18xf32>
    %76 = vector.shape_cast %75 : vector<18xf32> to vector<18x1xf32>
    %77 = vector.broadcast %76 : vector<18x1xf32> to vector<18x18xf32>
    %78 = arith.subf %74, %77 : vector<18x18xf32>
    %79 = math.exp %78 : vector<18x18xf32>
    %cst_36 = arith.constant dense<0.000000e+00> : vector<18xf32>
    %80 = vector.multi_reduction <add>, %79, %cst_36 [1] : vector<18x18xf32> to vector<18xf32>
    %81 = vector.shape_cast %80 : vector<18xf32> to vector<18x1xf32>
    %82 = vector.broadcast %81 : vector<18x1xf32> to vector<18x18xf32>
    %83 = arith.divf %79, %82 : vector<18x18xf32>
    %c3 = arith.constant 3 : index
    %c0_37 = arith.constant 0 : index
    %c0_38 = arith.constant 0 : index
    %84 = vector.load %arg6[%c3, %c0_37, %c0_38] : memref<24x18x18xf32, #tpu.memory_space<vmem>>, vector<1x18x18xf32>
    %85 = vector.shape_cast %84 : vector<1x18x18xf32> to vector<18x18xf32>
    %86 = vector.shape_cast %83 : vector<18x18xf32> to vector<1x18x18xf32>
    tpu.vector_store %arg6[%c3, %c0_37, %c0_38], %86 {strides = array<i32>} : memref<24x18x18xf32, #tpu.memory_space<vmem>>, vector<1x18x18xf32>,
    %cst_39 = arith.constant dense<0.000000e+00> : vector<18x8xf32>
    %87 = tpu.matmul %83, %72, %cst_39 {dimension_numbers = #tpu.dot_dimension_numbers<[1], [0], [0], [1], [0, 0, 1, 1], [], []>} : vector<18x18xf32>, vector<18x8xf32>, vector<18x8xf32> -> vector<18x8xf32>
    %88 = tpu.concatenate %33, %51, %69, %87 in 1 : vector<18x8xf32>, vector<18x8xf32>, vector<18x8xf32>, vector<18x8xf32> -> vector<18x32xf32>
    %cst_40 = arith.constant dense<0.000000e+00> : vector<18x32xf32>
    %89 = tpu.matmul %88, %14, %cst_40 {dimension_numbers = #tpu.dot_dimension_numbers<[1], [0], [0], [1], [0, 0, 1, 1], [], []>} : vector<18x32xf32>, vector<32x32xf32>, vector<18x32xf32> -> vector<18x32xf32>
    %90 = vector.broadcast %15 : vector<1x32xf32> to vector<18x32xf32>
    %91 = arith.addf %89, %90 : vector<18x32xf32>
    %92 = arith.addf %6, %91 : vector<18x32xf32>
    %c80 = arith.constant 80 : index
    %c0_41 = arith.constant 0 : index
    %93 = vector.load %arg1[%c80, %c0_41] : memref<1128x128xf32, #tpu.memory_space<vmem>>, vector<1x32xf32>
    %c88 = arith.constant 88 : index
    %c0_42 = arith.constant 0 : index
    %94 = vector.load %arg1[%c88, %c0_42] : memref<1128x128xf32, #tpu.memory_space<vmem>>, vector<1x32xf32>
    %cst_43 = arith.constant dense<0.000000e+00> : vector<18xf32>
    %95 = vector.multi_reduction <add>, %92, %cst_43 [1] : vector<18x32xf32> to vector<18xf32>
    %96 = vector.shape_cast %95 : vector<18xf32> to vector<18x1xf32>
    %cst_44 = arith.constant 3.200000e+01 : f32
    %97 = vector.broadcast %cst_44 : f32 to vector<18x1xf32>
    %98 = arith.divf %96, %97 : vector<18x1xf32>
    %99 = vector.broadcast %98 : vector<18x1xf32> to vector<18x32xf32>
    %100 = arith.subf %92, %99 : vector<18x32xf32>
    %101 = arith.mulf %100, %100 : vector<18x32xf32>
    %cst_45 = arith.constant dense<0.000000e+00> : vector<18xf32>
    %102 = vector.multi_reduction <add>, %101, %cst_45 [1] : vector<18x32xf32> to vector<18xf32>
    %103 = vector.shape_cast %102 : vector<18xf32> to vector<18x1xf32>
    %cst_46 = arith.constant 3.200000e+01 : f32
    %104 = vector.broadcast %cst_46 : f32 to vector<18x1xf32>
    %105 = arith.divf %103, %104 : vector<18x1xf32>
    %106 = vector.broadcast %98 : vector<18x1xf32> to vector<18x32xf32>
    %107 = arith.subf %92, %106 : vector<18x32xf32>
    %cst_47 = arith.constant 9.99999996E-13 : f32
    %108 = vector.broadcast %cst_47 : f32 to vector<18x1xf32>
    %109 = arith.addf %105, %108 : vector<18x1xf32>
    %110 = math.rsqrt %109 : vector<18x1xf32>
    %111 = vector.broadcast %110 : vector<18x1xf32> to vector<18x32xf32>
    %112 = arith.mulf %107, %111 : vector<18x32xf32>
    %113 = vector.broadcast %93 : vector<1x32xf32> to vector<18x32xf32>
    %114 = arith.mulf %112, %113 : vector<18x32xf32>
    %115 = vector.broadcast %94 : vector<1x32xf32> to vector<18x32xf32>
    %116 = arith.addf %114, %115 : vector<18x32xf32>
    %c96 = arith.constant 96 : index
    %c0_48 = arith.constant 0 : index
    %117 = vector.load %arg1[%c96, %c0_48] : memref<1128x128xf32, #tpu.memory_space<vmem>>, vector<32x64xf32>
    %c128 = arith.constant 128 : index
    %c0_49 = arith.constant 0 : index
    %118 = vector.load %arg1[%c128, %c0_49] : memref<1128x128xf32, #tpu.memory_space<vmem>>, vector<1x64xf32>
    %c136 = arith.constant 136 : index
    %c0_50 = arith.constant 0 : index
    %119 = vector.load %arg1[%c136, %c0_50] : memref<1128x128xf32, #tpu.memory_space<vmem>>, vector<64x32xf32>
    %c200 = arith.constant 200 : index
    %c0_51 = arith.constant 0 : index
    %120 = vector.load %arg1[%c200, %c0_51] : memref<1128x128xf32, #tpu.memory_space<vmem>>, vector<1x32xf32>
    %cst_52 = arith.constant dense<0.000000e+00> : vector<18x64xf32>
    %121 = tpu.matmul %116, %117, %cst_52 {dimension_numbers = #tpu.dot_dimension_numbers<[1], [0], [0], [1], [0, 0, 1, 1], [], []>} : vector<18x32xf32>, vector<32x64xf32>, vector<18x64xf32> -> vector<18x64xf32>
    %122 = vector.broadcast %118 : vector<1x64xf32> to vector<18x64xf32>
    %123 = arith.addf %121, %122 : vector<18x64xf32>
    %cst_53 = arith.constant 5.000000e-01 : f32
    %124 = vector.broadcast %cst_53 : f32 to vector<18x64xf32>
    %125 = arith.mulf %124, %123 : vector<18x64xf32>
    %cst_54 = arith.constant 0.707106769 : f32
    %126 = vector.broadcast %cst_54 : f32 to vector<18x64xf32>
    %127 = arith.mulf %123, %126 : vector<18x64xf32>
    %cst_55 = arith.constant 0.000000e+00 : f32
    %128 = vector.broadcast %cst_55 : f32 to vector<18x64xf32>
    %129 = arith.cmpf oge, %127, %128 : vector<18x64xf32>
    %cst_56 = arith.constant 1.000000e+00 : f32
    %cst_57 = arith.constant -1.000000e+00 : f32
    %130 = vector.broadcast %cst_56 : f32 to vector<18x64xf32>
    %131 = vector.broadcast %cst_57 : f32 to vector<18x64xf32>
    %132 = arith.select %129, %130, %131 : vector<18x64xi1>, vector<18x64xf32>
    %133 = math.absf %127 : vector<18x64xf32>
    %cst_58 = arith.constant 0.327591091 : f32
    %134 = vector.broadcast %cst_58 : f32 to vector<18x64xf32>
    %135 = arith.mulf %134, %133 : vector<18x64xf32>
    %cst_59 = arith.constant 1.000000e+00 : f32
    %136 = vector.broadcast %cst_59 : f32 to vector<18x64xf32>
    %137 = arith.addf %136, %135 : vector<18x64xf32>
    %cst_60 = arith.constant 1.000000e+00 : f32
    %138 = vector.broadcast %cst_60 : f32 to vector<18x64xf32>
    %139 = arith.divf %138, %137 : vector<18x64xf32>
    %cst_61 = arith.constant 1.06140542 : f32
    %140 = vector.broadcast %cst_61 : f32 to vector<18x64xf32>
    %141 = arith.mulf %140, %139 : vector<18x64xf32>
    %cst_62 = arith.constant -1.45315206 : f32
    %142 = vector.broadcast %cst_62 : f32 to vector<18x64xf32>
    %143 = arith.addf %141, %142 : vector<18x64xf32>
    %144 = arith.mulf %143, %139 : vector<18x64xf32>
    %cst_63 = arith.constant 1.42141378 : f32
    %145 = vector.broadcast %cst_63 : f32 to vector<18x64xf32>
    %146 = arith.addf %144, %145 : vector<18x64xf32>
    %147 = arith.mulf %146, %139 : vector<18x64xf32>
    %cst_64 = arith.constant -0.284496725 : f32
    %148 = vector.broadcast %cst_64 : f32 to vector<18x64xf32>
    %149 = arith.addf %147, %148 : vector<18x64xf32>
    %150 = arith.mulf %149, %139 : vector<18x64xf32>
    %cst_65 = arith.constant 0.254829586 : f32
    %151 = vector.broadcast %cst_65 : f32 to vector<18x64xf32>
    %152 = arith.addf %150, %151 : vector<18x64xf32>
    %153 = arith.mulf %152, %139 : vector<18x64xf32>
    %cst_66 = arith.constant 0.000000e+00 : f32
    %154 = vector.broadcast %cst_66 : f32 to vector<18x64xf32>
    %155 = arith.subf %154, %133 : vector<18x64xf32>
    %156 = arith.mulf %155, %133 : vector<18x64xf32>
    %157 = math.exp %156 : vector<18x64xf32>
    %158 = arith.mulf %153, %157 : vector<18x64xf32>
    %cst_67 = arith.constant 1.000000e+00 : f32
    %159 = vector.broadcast %cst_67 : f32 to vector<18x64xf32>
    %160 = arith.subf %159, %158 : vector<18x64xf32>
    %161 = arith.mulf %132, %160 : vector<18x64xf32>
    %cst_68 = arith.constant 1.000000e+00 : f32
    %162 = vector.broadcast %cst_68 : f32 to vector<18x64xf32>
    %163 = arith.addf %162, %161 : vector<18x64xf32>
    %164 = arith.mulf %125, %163 : vector<18x64xf32>
    %cst_69 = arith.constant dense<0.000000e+00> : vector<18x32xf32>
    %165 = tpu.matmul %164, %119, %cst_69 {dimension_numbers = #tpu.dot_dimension_numbers<[1], [0], [0], [1], [0, 0, 1, 1], [], []>} : vector<18x64xf32>, vector<64x32xf32>, vector<18x32xf32> -> vector<18x32xf32>
    %166 = vector.broadcast %120 : vector<1x32xf32> to vector<18x32xf32>
    %167 = arith.addf %165, %166 : vector<18x32xf32>
    %168 = arith.addf %116, %167 : vector<18x32xf32>
    %c208 = arith.constant 208 : index
    %c0_70 = arith.constant 0 : index
    %169 = vector.load %arg1[%c208, %c0_70] : memref<1128x128xf32, #tpu.memory_space<vmem>>, vector<1x32xf32>
    %c216 = arith.constant 216 : index
    %c0_71 = arith.constant 0 : index
    %170 = vector.load %arg1[%c216, %c0_71] : memref<1128x128xf32, #tpu.memory_space<vmem>>, vector<1x32xf32>
    %cst_72 = arith.constant dense<0.000000e+00> : vector<18xf32>
    %171 = vector.multi_reduction <add>, %168, %cst_72 [1] : vector<18x32xf32> to vector<18xf32>
    %172 = vector.shape_cast %171 : vector<18xf32> to vector<18x1xf32>
    %cst_73 = arith.constant 3.200000e+01 : f32
    %173 = vector.broadcast %cst_73 : f32 to vector<18x1xf32>
    %174 = arith.divf %172, %173 : vector<18x1xf32>
    %175 = vector.broadcast %174 : vector<18x1xf32> to vector<18x32xf32>
    %176 = arith.subf %168, %175 : vector<18x32xf32>
    %177 = arith.mulf %176, %176 : vector<18x32xf32>
    %cst_74 = arith.constant dense<0.000000e+00> : vector<18xf32>
    %178 = vector.multi_reduction <add>, %177, %cst_74 [1] : vector<18x32xf32> to vector<18xf32>
    %179 = vector.shape_cast %178 : vector<18xf32> to vector<18x1xf32>
    %cst_75 = arith.constant 3.200000e+01 : f32
    %180 = vector.broadcast %cst_75 : f32 to vector<18x1xf32>
    %181 = arith.divf %179, %180 : vector<18x1xf32>
    %182 = vector.broadcast %174 : vector<18x1xf32> to vector<18x32xf32>
    %183 = arith.subf %168, %182 : vector<18x32xf32>
    %cst_76 = arith.constant 9.99999996E-13 : f32
    %184 = vector.broadcast %cst_76 : f32 to vector<18x1xf32>
    %185 = arith.addf %181, %184 : vector<18x1xf32>
    %186 = math.rsqrt %185 : vector<18x1xf32>
    %187 = vector.broadcast %186 : vector<18x1xf32> to vector<18x32xf32>
    %188 = arith.mulf %183, %187 : vector<18x32xf32>
    %189 = vector.broadcast %169 : vector<1x32xf32> to vector<18x32xf32>
    %190 = arith.mulf %188, %189 : vector<18x32xf32>
    %191 = vector.broadcast %170 : vector<1x32xf32> to vector<18x32xf32>
    %192 = arith.addf %190, %191 : vector<18x32xf32>
    %c224 = arith.constant 224 : index
    %c0_77 = arith.constant 0 : index
    %193 = vector.load %arg1[%c224, %c0_77] : memref<1128x128xf32, #tpu.memory_space<vmem>>, vector<32x96xf32>
    %cst_78 = arith.constant dense<0.000000e+00> : vector<18x96xf32>
    %194 = tpu.matmul %192, %193, %cst_78 {dimension_numbers = #tpu.dot_dimension_numbers<[1], [0], [0], [1], [0, 0, 1, 1], [], []>} : vector<18x32xf32>, vector<32x96xf32>, vector<18x96xf32> -> vector<18x96xf32>
    %c256 = arith.constant 256 : index
    %c0_79 = arith.constant 0 : index
    %195 = vector.load %arg1[%c256, %c0_79] : memref<1128x128xf32, #tpu.memory_space<vmem>>, vector<1x96xf32>
    %196 = vector.broadcast %195 : vector<1x96xf32> to vector<18x96xf32>
    %197 = arith.addf %194, %196 : vector<18x96xf32>
    %198 = vector.extract_strided_slice %197 {offsets = [0, 0], sizes = [18, 32], strides = [1, 1]} : vector<18x96xf32> to vector<18x32xf32>
    %199 = vector.extract_strided_slice %197 {offsets = [0, 32], sizes = [18, 64], strides = [1, 1]} : vector<18x96xf32> to vector<18x64xf32>
    %c264 = arith.constant 264 : index
    %c0_80 = arith.constant 0 : index
    %200 = vector.load %arg1[%c264, %c0_80] : memref<1128x128xf32, #tpu.memory_space<vmem>>, vector<32x32xf32>
    %c296 = arith.constant 296 : index
    %c0_81 = arith.constant 0 : index
    %201 = vector.load %arg1[%c296, %c0_81] : memref<1128x128xf32, #tpu.memory_space<vmem>>, vector<1x32xf32>
    %202 = vector.extract_strided_slice %198 {offsets = [0, 0], sizes = [18, 8], strides = [1, 1]} : vector<18x32xf32> to vector<18x8xf32>
    %203 = vector.extract_strided_slice %199 {offsets = [0, 0], sizes = [18, 8], strides = [1, 1]} : vector<18x64xf32> to vector<18x8xf32>
    %204 = vector.extract_strided_slice %199 {offsets = [0, 32], sizes = [18, 8], strides = [1, 1]} : vector<18x64xf32> to vector<18x8xf32>
    %cst_82 = arith.constant dense<0.000000e+00> : vector<18x18xf32>
    %205 = tpu.matmul %202, %203, %cst_82 {dimension_numbers = #tpu.dot_dimension_numbers<[1], [1], [0], [0], [0, 0, 1, 0], [], []>} : vector<18x8xf32>, vector<18x8xf32>, vector<18x18xf32> -> vector<18x18xf32>
    %206 = arith.addf %205, %1 : vector<18x18xf32>
    %cst_83 = arith.constant dense<0xFF800000> : vector<18xf32>
    %207 = vector.multi_reduction <maximumf>, %206, %cst_83 [1] : vector<18x18xf32> to vector<18xf32>
    %208 = vector.shape_cast %207 : vector<18xf32> to vector<18x1xf32>
    %209 = vector.broadcast %208 : vector<18x1xf32> to vector<18x18xf32>
    %210 = arith.subf %206, %209 : vector<18x18xf32>
    %211 = math.exp %210 : vector<18x18xf32>
    %cst_84 = arith.constant dense<0.000000e+00> : vector<18xf32>
    %212 = vector.multi_reduction <add>, %211, %cst_84 [1] : vector<18x18xf32> to vector<18xf32>
    %213 = vector.shape_cast %212 : vector<18xf32> to vector<18x1xf32>
    %214 = vector.broadcast %213 : vector<18x1xf32> to vector<18x18xf32>
    %215 = arith.divf %211, %214 : vector<18x18xf32>
    %c4 = arith.constant 4 : index
    %c0_85 = arith.constant 0 : index
    %c0_86 = arith.constant 0 : index
    %216 = vector.load %arg6[%c4, %c0_85, %c0_86] : memref<24x18x18xf32, #tpu.memory_space<vmem>>, vector<1x18x18xf32>
    %217 = vector.shape_cast %216 : vector<1x18x18xf32> to vector<18x18xf32>
    %218 = vector.shape_cast %215 : vector<18x18xf32> to vector<1x18x18xf32>
    tpu.vector_store %arg6[%c4, %c0_85, %c0_86], %218 {strides = array<i32>} : memref<24x18x18xf32, #tpu.memory_space<vmem>>, vector<1x18x18xf32>,
    %cst_87 = arith.constant dense<0.000000e+00> : vector<18x8xf32>
    %219 = tpu.matmul %215, %204, %cst_87 {dimension_numbers = #tpu.dot_dimension_numbers<[1], [0], [0], [1], [0, 0, 1, 1], [], []>} : vector<18x18xf32>, vector<18x8xf32>, vector<18x8xf32> -> vector<18x8xf32>
    %220 = vector.extract_strided_slice %198 {offsets = [0, 8], sizes = [18, 8], strides = [1, 1]} : vector<18x32xf32> to vector<18x8xf32>
    %221 = vector.extract_strided_slice %199 {offsets = [0, 8], sizes = [18, 8], strides = [1, 1]} : vector<18x64xf32> to vector<18x8xf32>
    %222 = vector.extract_strided_slice %199 {offsets = [0, 40], sizes = [18, 8], strides = [1, 1]} : vector<18x64xf32> to vector<18x8xf32>
    %cst_88 = arith.constant dense<0.000000e+00> : vector<18x18xf32>
    %223 = tpu.matmul %220, %221, %cst_88 {dimension_numbers = #tpu.dot_dimension_numbers<[1], [1], [0], [0], [0, 0, 1, 0], [], []>} : vector<18x8xf32>, vector<18x8xf32>, vector<18x18xf32> -> vector<18x18xf32>
    %224 = arith.addf %223, %1 : vector<18x18xf32>
    %cst_89 = arith.constant dense<0xFF800000> : vector<18xf32>
    %225 = vector.multi_reduction <maximumf>, %224, %cst_89 [1] : vector<18x18xf32> to vector<18xf32>
    %226 = vector.shape_cast %225 : vector<18xf32> to vector<18x1xf32>
    %227 = vector.broadcast %226 : vector<18x1xf32> to vector<18x18xf32>
    %228 = arith.subf %224, %227 : vector<18x18xf32>
    %229 = math.exp %228 : vector<18x18xf32>
    %cst_90 = arith.constant dense<0.000000e+00> : vector<18xf32>
    %230 = vector.multi_reduction <add>, %229, %cst_90 [1] : vector<18x18xf32> to vector<18xf32>
    %231 = vector.shape_cast %230 : vector<18xf32> to vector<18x1xf32>
    %232 = vector.broadcast %231 : vector<18x1xf32> to vector<18x18xf32>
    %233 = arith.divf %229, %232 : vector<18x18xf32>
    %c5 = arith.constant 5 : index
    %c0_91 = arith.constant 0 : index
    %c0_92 = arith.constant 0 : index
    %234 = vector.load %arg6[%c5, %c0_91, %c0_92] : memref<24x18x18xf32, #tpu.memory_space<vmem>>, vector<1x18x18xf32>
    %235 = vector.shape_cast %234 : vector<1x18x18xf32> to vector<18x18xf32>
    %236 = vector.shape_cast %233 : vector<18x18xf32> to vector<1x18x18xf32>
    tpu.vector_store %arg6[%c5, %c0_91, %c0_92], %236 {strides = array<i32>} : memref<24x18x18xf32, #tpu.memory_space<vmem>>, vector<1x18x18xf32>,
    %cst_93 = arith.constant dense<0.000000e+00> : vector<18x8xf32>
    %237 = tpu.matmul %233, %222, %cst_93 {dimension_numbers = #tpu.dot_dimension_numbers<[1], [0], [0], [1], [0, 0, 1, 1], [], []>} : vector<18x18xf32>, vector<18x8xf32>, vector<18x8xf32> -> vector<18x8xf32>
    %238 = vector.extract_strided_slice %198 {offsets = [0, 16], sizes = [18, 8], strides = [1, 1]} : vector<18x32xf32> to vector<18x8xf32>
    %239 = vector.extract_strided_slice %199 {offsets = [0, 16], sizes = [18, 8], strides = [1, 1]} : vector<18x64xf32> to vector<18x8xf32>
    %240 = vector.extract_strided_slice %199 {offsets = [0, 48], sizes = [18, 8], strides = [1, 1]} : vector<18x64xf32> to vector<18x8xf32>
    %cst_94 = arith.constant dense<0.000000e+00> : vector<18x18xf32>
    %241 = tpu.matmul %238, %239, %cst_94 {dimension_numbers = #tpu.dot_dimension_numbers<[1], [1], [0], [0], [0, 0, 1, 0], [], []>} : vector<18x8xf32>, vector<18x8xf32>, vector<18x18xf32> -> vector<18x18xf32>
    %242 = arith.addf %241, %1 : vector<18x18xf32>
    %cst_95 = arith.constant dense<0xFF800000> : vector<18xf32>
    %243 = vector.multi_reduction <maximumf>, %242, %cst_95 [1] : vector<18x18xf32> to vector<18xf32>
    %244 = vector.shape_cast %243 : vector<18xf32> to vector<18x1xf32>
    %245 = vector.broadcast %244 : vector<18x1xf32> to vector<18x18xf32>
    %246 = arith.subf %242, %245 : vector<18x18xf32>
    %247 = math.exp %246 : vector<18x18xf32>
    %cst_96 = arith.constant dense<0.000000e+00> : vector<18xf32>
    %248 = vector.multi_reduction <add>, %247, %cst_96 [1] : vector<18x18xf32> to vector<18xf32>
    %249 = vector.shape_cast %248 : vector<18xf32> to vector<18x1xf32>
    %250 = vector.broadcast %249 : vector<18x1xf32> to vector<18x18xf32>
    %251 = arith.divf %247, %250 : vector<18x18xf32>
    %c6 = arith.constant 6 : index
    %c0_97 = arith.constant 0 : index
    %c0_98 = arith.constant 0 : index
    %252 = vector.load %arg6[%c6, %c0_97, %c0_98] : memref<24x18x18xf32, #tpu.memory_space<vmem>>, vector<1x18x18xf32>
    %253 = vector.shape_cast %252 : vector<1x18x18xf32> to vector<18x18xf32>
    %254 = vector.shape_cast %251 : vector<18x18xf32> to vector<1x18x18xf32>
    tpu.vector_store %arg6[%c6, %c0_97, %c0_98], %254 {strides = array<i32>} : memref<24x18x18xf32, #tpu.memory_space<vmem>>, vector<1x18x18xf32>,
    %cst_99 = arith.constant dense<0.000000e+00> : vector<18x8xf32>
    %255 = tpu.matmul %251, %240, %cst_99 {dimension_numbers = #tpu.dot_dimension_numbers<[1], [0], [0], [1], [0, 0, 1, 1], [], []>} : vector<18x18xf32>, vector<18x8xf32>, vector<18x8xf32> -> vector<18x8xf32>
    %256 = vector.extract_strided_slice %198 {offsets = [0, 24], sizes = [18, 8], strides = [1, 1]} : vector<18x32xf32> to vector<18x8xf32>
    %257 = vector.extract_strided_slice %199 {offsets = [0, 24], sizes = [18, 8], strides = [1, 1]} : vector<18x64xf32> to vector<18x8xf32>
    %258 = vector.extract_strided_slice %199 {offsets = [0, 56], sizes = [18, 8], strides = [1, 1]} : vector<18x64xf32> to vector<18x8xf32>
    %cst_100 = arith.constant dense<0.000000e+00> : vector<18x18xf32>
    %259 = tpu.matmul %256, %257, %cst_100 {dimension_numbers = #tpu.dot_dimension_numbers<[1], [1], [0], [0], [0, 0, 1, 0], [], []>} : vector<18x8xf32>, vector<18x8xf32>, vector<18x18xf32> -> vector<18x18xf32>
    %260 = arith.addf %259, %1 : vector<18x18xf32>
    %cst_101 = arith.constant dense<0xFF800000> : vector<18xf32>
    %261 = vector.multi_reduction <maximumf>, %260, %cst_101 [1] : vector<18x18xf32> to vector<18xf32>
    %262 = vector.shape_cast %261 : vector<18xf32> to vector<18x1xf32>
    %263 = vector.broadcast %262 : vector<18x1xf32> to vector<18x18xf32>
    %264 = arith.subf %260, %263 : vector<18x18xf32>
    %265 = math.exp %264 : vector<18x18xf32>
    %cst_102 = arith.constant dense<0.000000e+00> : vector<18xf32>
    %266 = vector.multi_reduction <add>, %265, %cst_102 [1] : vector<18x18xf32> to vector<18xf32>
    %267 = vector.shape_cast %266 : vector<18xf32> to vector<18x1xf32>
    %268 = vector.broadcast %267 : vector<18x1xf32> to vector<18x18xf32>
    %269 = arith.divf %265, %268 : vector<18x18xf32>
    %c7 = arith.constant 7 : index
    %c0_103 = arith.constant 0 : index
    %c0_104 = arith.constant 0 : index
    %270 = vector.load %arg6[%c7, %c0_103, %c0_104] : memref<24x18x18xf32, #tpu.memory_space<vmem>>, vector<1x18x18xf32>
    %271 = vector.shape_cast %270 : vector<1x18x18xf32> to vector<18x18xf32>
    %272 = vector.shape_cast %269 : vector<18x18xf32> to vector<1x18x18xf32>
    tpu.vector_store %arg6[%c7, %c0_103, %c0_104], %272 {strides = array<i32>} : memref<24x18x18xf32, #tpu.memory_space<vmem>>, vector<1x18x18xf32>,
    %cst_105 = arith.constant dense<0.000000e+00> : vector<18x8xf32>
    %273 = tpu.matmul %269, %258, %cst_105 {dimension_numbers = #tpu.dot_dimension_numbers<[1], [0], [0], [1], [0, 0, 1, 1], [], []>} : vector<18x18xf32>, vector<18x8xf32>, vector<18x8xf32> -> vector<18x8xf32>
    %274 = tpu.concatenate %219, %237, %255, %273 in 1 : vector<18x8xf32>, vector<18x8xf32>, vector<18x8xf32>, vector<18x8xf32> -> vector<18x32xf32>
    %cst_106 = arith.constant dense<0.000000e+00> : vector<18x32xf32>
    %275 = tpu.matmul %274, %200, %cst_106 {dimension_numbers = #tpu.dot_dimension_numbers<[1], [0], [0], [1], [0, 0, 1, 1], [], []>} : vector<18x32xf32>, vector<32x32xf32>, vector<18x32xf32> -> vector<18x32xf32>
    %276 = vector.broadcast %201 : vector<1x32xf32> to vector<18x32xf32>
    %277 = arith.addf %275, %276 : vector<18x32xf32>
    %278 = arith.addf %192, %277 : vector<18x32xf32>
    %c304 = arith.constant 304 : index
    %c0_107 = arith.constant 0 : index
    %279 = vector.load %arg1[%c304, %c0_107] : memref<1128x128xf32, #tpu.memory_space<vmem>>, vector<1x32xf32>
    %c312 = arith.constant 312 : index
    %c0_108 = arith.constant 0 : index
    %280 = vector.load %arg1[%c312, %c0_108] : memref<1128x128xf32, #tpu.memory_space<vmem>>, vector<1x32xf32>
    %cst_109 = arith.constant dense<0.000000e+00> : vector<18xf32>
    %281 = vector.multi_reduction <add>, %278, %cst_109 [1] : vector<18x32xf32> to vector<18xf32>
    %282 = vector.shape_cast %281 : vector<18xf32> to vector<18x1xf32>
    %cst_110 = arith.constant 3.200000e+01 : f32
    %283 = vector.broadcast %cst_110 : f32 to vector<18x1xf32>
    %284 = arith.divf %282, %283 : vector<18x1xf32>
    %285 = vector.broadcast %284 : vector<18x1xf32> to vector<18x32xf32>
    %286 = arith.subf %278, %285 : vector<18x32xf32>
    %287 = arith.mulf %286, %286 : vector<18x32xf32>
    %cst_111 = arith.constant dense<0.000000e+00> : vector<18xf32>
    %288 = vector.multi_reduction <add>, %287, %cst_111 [1] : vector<18x32xf32> to vector<18xf32>
    %289 = vector.shape_cast %288 : vector<18xf32> to vector<18x1xf32>
    %cst_112 = arith.constant 3.200000e+01 : f32
    %290 = vector.broadcast %cst_112 : f32 to vector<18x1xf32>
    %291 = arith.divf %289, %290 : vector<18x1xf32>
    %292 = vector.broadcast %284 : vector<18x1xf32> to vector<18x32xf32>
    %293 = arith.subf %278, %292 : vector<18x32xf32>
    %cst_113 = arith.constant 9.99999996E-13 : f32
    %294 = vector.broadcast %cst_113 : f32 to vector<18x1xf32>
    %295 = arith.addf %291, %294 : vector<18x1xf32>
    %296 = math.rsqrt %295 : vector<18x1xf32>
    %297 = vector.broadcast %296 : vector<18x1xf32> to vector<18x32xf32>
    %298 = arith.mulf %293, %297 : vector<18x32xf32>
    %299 = vector.broadcast %279 : vector<1x32xf32> to vector<18x32xf32>
    %300 = arith.mulf %298, %299 : vector<18x32xf32>
    %301 = vector.broadcast %280 : vector<1x32xf32> to vector<18x32xf32>
    %302 = arith.addf %300, %301 : vector<18x32xf32>
    %c320 = arith.constant 320 : index
    %c0_114 = arith.constant 0 : index
    %303 = vector.load %arg1[%c320, %c0_114] : memref<1128x128xf32, #tpu.memory_space<vmem>>, vector<32x64xf32>
    %c352 = arith.constant 352 : index
    %c0_115 = arith.constant 0 : index
    %304 = vector.load %arg1[%c352, %c0_115] : memref<1128x128xf32, #tpu.memory_space<vmem>>, vector<1x64xf32>
    %c360 = arith.constant 360 : index
    %c0_116 = arith.constant 0 : index
    %305 = vector.load %arg1[%c360, %c0_116] : memref<1128x128xf32, #tpu.memory_space<vmem>>, vector<64x32xf32>
    %c424 = arith.constant 424 : index
    %c0_117 = arith.constant 0 : index
    %306 = vector.load %arg1[%c424, %c0_117] : memref<1128x128xf32, #tpu.memory_space<vmem>>, vector<1x32xf32>
    %cst_118 = arith.constant dense<0.000000e+00> : vector<18x64xf32>
    %307 = tpu.matmul %302, %303, %cst_118 {dimension_numbers = #tpu.dot_dimension_numbers<[1], [0], [0], [1], [0, 0, 1, 1], [], []>} : vector<18x32xf32>, vector<32x64xf32>, vector<18x64xf32> -> vector<18x64xf32>
    %308 = vector.broadcast %304 : vector<1x64xf32> to vector<18x64xf32>
    %309 = arith.addf %307, %308 : vector<18x64xf32>
    %cst_119 = arith.constant 5.000000e-01 : f32
    %310 = vector.broadcast %cst_119 : f32 to vector<18x64xf32>
    %311 = arith.mulf %310, %309 : vector<18x64xf32>
    %cst_120 = arith.constant 0.707106769 : f32
    %312 = vector.broadcast %cst_120 : f32 to vector<18x64xf32>
    %313 = arith.mulf %309, %312 : vector<18x64xf32>
    %cst_121 = arith.constant 0.000000e+00 : f32
    %314 = vector.broadcast %cst_121 : f32 to vector<18x64xf32>
    %315 = arith.cmpf oge, %313, %314 : vector<18x64xf32>
    %cst_122 = arith.constant 1.000000e+00 : f32
    %cst_123 = arith.constant -1.000000e+00 : f32
    %316 = vector.broadcast %cst_122 : f32 to vector<18x64xf32>
    %317 = vector.broadcast %cst_123 : f32 to vector<18x64xf32>
    %318 = arith.select %315, %316, %317 : vector<18x64xi1>, vector<18x64xf32>
    %319 = math.absf %313 : vector<18x64xf32>
    %cst_124 = arith.constant 0.327591091 : f32
    %320 = vector.broadcast %cst_124 : f32 to vector<18x64xf32>
    %321 = arith.mulf %320, %319 : vector<18x64xf32>
    %cst_125 = arith.constant 1.000000e+00 : f32
    %322 = vector.broadcast %cst_125 : f32 to vector<18x64xf32>
    %323 = arith.addf %322, %321 : vector<18x64xf32>
    %cst_126 = arith.constant 1.000000e+00 : f32
    %324 = vector.broadcast %cst_126 : f32 to vector<18x64xf32>
    %325 = arith.divf %324, %323 : vector<18x64xf32>
    %cst_127 = arith.constant 1.06140542 : f32
    %326 = vector.broadcast %cst_127 : f32 to vector<18x64xf32>
    %327 = arith.mulf %326, %325 : vector<18x64xf32>
    %cst_128 = arith.constant -1.45315206 : f32
    %328 = vector.broadcast %cst_128 : f32 to vector<18x64xf32>
    %329 = arith.addf %327, %328 : vector<18x64xf32>
    %330 = arith.mulf %329, %325 : vector<18x64xf32>
    %cst_129 = arith.constant 1.42141378 : f32
    %331 = vector.broadcast %cst_129 : f32 to vector<18x64xf32>
    %332 = arith.addf %330, %331 : vector<18x64xf32>
    %333 = arith.mulf %332, %325 : vector<18x64xf32>
    %cst_130 = arith.constant -0.284496725 : f32
    %334 = vector.broadcast %cst_130 : f32 to vector<18x64xf32>
    %335 = arith.addf %333, %334 : vector<18x64xf32>
    %336 = arith.mulf %335, %325 : vector<18x64xf32>
    %cst_131 = arith.constant 0.254829586 : f32
    %337 = vector.broadcast %cst_131 : f32 to vector<18x64xf32>
    %338 = arith.addf %336, %337 : vector<18x64xf32>
    %339 = arith.mulf %338, %325 : vector<18x64xf32>
    %cst_132 = arith.constant 0.000000e+00 : f32
    %340 = vector.broadcast %cst_132 : f32 to vector<18x64xf32>
    %341 = arith.subf %340, %319 : vector<18x64xf32>
    %342 = arith.mulf %341, %319 : vector<18x64xf32>
    %343 = math.exp %342 : vector<18x64xf32>
    %344 = arith.mulf %339, %343 : vector<18x64xf32>
    %cst_133 = arith.constant 1.000000e+00 : f32
    %345 = vector.broadcast %cst_133 : f32 to vector<18x64xf32>
    %346 = arith.subf %345, %344 : vector<18x64xf32>
    %347 = arith.mulf %318, %346 : vector<18x64xf32>
    %cst_134 = arith.constant 1.000000e+00 : f32
    %348 = vector.broadcast %cst_134 : f32 to vector<18x64xf32>
    %349 = arith.addf %348, %347 : vector<18x64xf32>
    %350 = arith.mulf %311, %349 : vector<18x64xf32>
    %cst_135 = arith.constant dense<0.000000e+00> : vector<18x32xf32>
    %351 = tpu.matmul %350, %305, %cst_135 {dimension_numbers = #tpu.dot_dimension_numbers<[1], [0], [0], [1], [0, 0, 1, 1], [], []>} : vector<18x64xf32>, vector<64x32xf32>, vector<18x32xf32> -> vector<18x32xf32>
    %352 = vector.broadcast %306 : vector<1x32xf32> to vector<18x32xf32>
    %353 = arith.addf %351, %352 : vector<18x32xf32>
    %354 = arith.addf %302, %353 : vector<18x32xf32>
    %c432 = arith.constant 432 : index
    %c0_136 = arith.constant 0 : index
    %355 = vector.load %arg1[%c432, %c0_136] : memref<1128x128xf32, #tpu.memory_space<vmem>>, vector<1x32xf32>
    %c440 = arith.constant 440 : index
    %c0_137 = arith.constant 0 : index
    %356 = vector.load %arg1[%c440, %c0_137] : memref<1128x128xf32, #tpu.memory_space<vmem>>, vector<1x32xf32>
    %cst_138 = arith.constant dense<0.000000e+00> : vector<18xf32>
    %357 = vector.multi_reduction <add>, %354, %cst_138 [1] : vector<18x32xf32> to vector<18xf32>
    %358 = vector.shape_cast %357 : vector<18xf32> to vector<18x1xf32>
    %cst_139 = arith.constant 3.200000e+01 : f32
    %359 = vector.broadcast %cst_139 : f32 to vector<18x1xf32>
    %360 = arith.divf %358, %359 : vector<18x1xf32>
    %361 = vector.broadcast %360 : vector<18x1xf32> to vector<18x32xf32>
    %362 = arith.subf %354, %361 : vector<18x32xf32>
    %363 = arith.mulf %362, %362 : vector<18x32xf32>
    %cst_140 = arith.constant dense<0.000000e+00> : vector<18xf32>
    %364 = vector.multi_reduction <add>, %363, %cst_140 [1] : vector<18x32xf32> to vector<18xf32>
    %365 = vector.shape_cast %364 : vector<18xf32> to vector<18x1xf32>
    %cst_141 = arith.constant 3.200000e+01 : f32
    %366 = vector.broadcast %cst_141 : f32 to vector<18x1xf32>
    %367 = arith.divf %365, %366 : vector<18x1xf32>
    %368 = vector.broadcast %360 : vector<18x1xf32> to vector<18x32xf32>
    %369 = arith.subf %354, %368 : vector<18x32xf32>
    %cst_142 = arith.constant 9.99999996E-13 : f32
    %370 = vector.broadcast %cst_142 : f32 to vector<18x1xf32>
    %371 = arith.addf %367, %370 : vector<18x1xf32>
    %372 = math.rsqrt %371 : vector<18x1xf32>
    %373 = vector.broadcast %372 : vector<18x1xf32> to vector<18x32xf32>
    %374 = arith.mulf %369, %373 : vector<18x32xf32>
    %375 = vector.broadcast %355 : vector<1x32xf32> to vector<18x32xf32>
    %376 = arith.mulf %374, %375 : vector<18x32xf32>
    %377 = vector.broadcast %356 : vector<1x32xf32> to vector<18x32xf32>
    %378 = arith.addf %376, %377 : vector<18x32xf32>
    %c448 = arith.constant 448 : index
    %c0_143 = arith.constant 0 : index
    %379 = vector.load %arg1[%c448, %c0_143] : memref<1128x128xf32, #tpu.memory_space<vmem>>, vector<32x128xf32>
    %cst_144 = arith.constant dense<0.000000e+00> : vector<18x128xf32>
    %380 = tpu.matmul %378, %379, %cst_144 {dimension_numbers = #tpu.dot_dimension_numbers<[1], [0], [0], [1], [0, 0, 1, 1], [], []>} : vector<18x32xf32>, vector<32x128xf32>, vector<18x128xf32> -> vector<18x128xf32>
    %c480 = arith.constant 480 : index
    %c0_145 = arith.constant 0 : index
    %381 = vector.load %arg1[%c480, %c0_145] : memref<1128x128xf32, #tpu.memory_space<vmem>>, vector<1x128xf32>
    %382 = vector.broadcast %381 : vector<1x128xf32> to vector<18x128xf32>
    %383 = arith.addf %380, %382 : vector<18x128xf32>
    %c0_146 = arith.constant 0 : index
    %c0_147 = arith.constant 0 : index
    %384 = vector.load %arg3[%c0_146, %c0_147] : memref<18x32xf32, #tpu.memory_space<vmem>>, vector<18x32xf32>
    %c488 = arith.constant 488 : index
    %c0_148 = arith.constant 0 : index
    %385 = vector.load %arg1[%c488, %c0_148] : memref<1128x128xf32, #tpu.memory_space<vmem>>, vector<32x96xf32>
    %cst_149 = arith.constant dense<0.000000e+00> : vector<18x96xf32>
    %386 = tpu.matmul %384, %385, %cst_149 {dimension_numbers = #tpu.dot_dimension_numbers<[1], [0], [0], [1], [0, 0, 1, 1], [], []>} : vector<18x32xf32>, vector<32x96xf32>, vector<18x96xf32> -> vector<18x96xf32>
    %c520 = arith.constant 520 : index
    %c0_150 = arith.constant 0 : index
    %387 = vector.load %arg1[%c520, %c0_150] : memref<1128x128xf32, #tpu.memory_space<vmem>>, vector<1x96xf32>
    %388 = vector.broadcast %387 : vector<1x96xf32> to vector<18x96xf32>
    %389 = arith.addf %386, %388 : vector<18x96xf32>
    %390 = vector.extract_strided_slice %389 {offsets = [0, 0], sizes = [18, 32], strides = [1, 1]} : vector<18x96xf32> to vector<18x32xf32>
    %391 = vector.extract_strided_slice %389 {offsets = [0, 32], sizes = [18, 64], strides = [1, 1]} : vector<18x96xf32> to vector<18x64xf32>
    %c528 = arith.constant 528 : index
    %c0_151 = arith.constant 0 : index
    %392 = vector.load %arg1[%c528, %c0_151] : memref<1128x128xf32, #tpu.memory_space<vmem>>, vector<32x32xf32>
    %c560 = arith.constant 560 : index
    %c0_152 = arith.constant 0 : index
    %393 = vector.load %arg1[%c560, %c0_152] : memref<1128x128xf32, #tpu.memory_space<vmem>>, vector<1x32xf32>
    %394 = vector.extract_strided_slice %390 {offsets = [0, 0], sizes = [18, 8], strides = [1, 1]} : vector<18x32xf32> to vector<18x8xf32>
    %395 = vector.extract_strided_slice %391 {offsets = [0, 0], sizes = [18, 8], strides = [1, 1]} : vector<18x64xf32> to vector<18x8xf32>
    %396 = vector.extract_strided_slice %391 {offsets = [0, 32], sizes = [18, 8], strides = [1, 1]} : vector<18x64xf32> to vector<18x8xf32>
    %cst_153 = arith.constant dense<0.000000e+00> : vector<18x18xf32>
    %397 = tpu.matmul %394, %395, %cst_153 {dimension_numbers = #tpu.dot_dimension_numbers<[1], [1], [0], [0], [0, 0, 1, 0], [], []>} : vector<18x8xf32>, vector<18x8xf32>, vector<18x18xf32> -> vector<18x18xf32>
    %398 = arith.addf %397, %3 : vector<18x18xf32>
    %cst_154 = arith.constant dense<0xFF800000> : vector<18xf32>
    %399 = vector.multi_reduction <maximumf>, %398, %cst_154 [1] : vector<18x18xf32> to vector<18xf32>
    %400 = vector.shape_cast %399 : vector<18xf32> to vector<18x1xf32>
    %401 = vector.broadcast %400 : vector<18x1xf32> to vector<18x18xf32>
    %402 = arith.subf %398, %401 : vector<18x18xf32>
    %403 = math.exp %402 : vector<18x18xf32>
    %cst_155 = arith.constant dense<0.000000e+00> : vector<18xf32>
    %404 = vector.multi_reduction <add>, %403, %cst_155 [1] : vector<18x18xf32> to vector<18xf32>
    %405 = vector.shape_cast %404 : vector<18xf32> to vector<18x1xf32>
    %406 = vector.broadcast %405 : vector<18x1xf32> to vector<18x18xf32>
    %407 = arith.divf %403, %406 : vector<18x18xf32>
    %c8 = arith.constant 8 : index
    %c0_156 = arith.constant 0 : index
    %c0_157 = arith.constant 0 : index
    %408 = vector.load %arg6[%c8, %c0_156, %c0_157] : memref<24x18x18xf32, #tpu.memory_space<vmem>>, vector<1x18x18xf32>
    %409 = vector.shape_cast %408 : vector<1x18x18xf32> to vector<18x18xf32>
    %410 = vector.shape_cast %407 : vector<18x18xf32> to vector<1x18x18xf32>
    tpu.vector_store %arg6[%c8, %c0_156, %c0_157], %410 {strides = array<i32>} : memref<24x18x18xf32, #tpu.memory_space<vmem>>, vector<1x18x18xf32>,
    %cst_158 = arith.constant dense<0.000000e+00> : vector<18x8xf32>
    %411 = tpu.matmul %407, %396, %cst_158 {dimension_numbers = #tpu.dot_dimension_numbers<[1], [0], [0], [1], [0, 0, 1, 1], [], []>} : vector<18x18xf32>, vector<18x8xf32>, vector<18x8xf32> -> vector<18x8xf32>
    %412 = vector.extract_strided_slice %390 {offsets = [0, 8], sizes = [18, 8], strides = [1, 1]} : vector<18x32xf32> to vector<18x8xf32>
    %413 = vector.extract_strided_slice %391 {offsets = [0, 8], sizes = [18, 8], strides = [1, 1]} : vector<18x64xf32> to vector<18x8xf32>
    %414 = vector.extract_strided_slice %391 {offsets = [0, 40], sizes = [18, 8], strides = [1, 1]} : vector<18x64xf32> to vector<18x8xf32>
    %cst_159 = arith.constant dense<0.000000e+00> : vector<18x18xf32>
    %415 = tpu.matmul %412, %413, %cst_159 {dimension_numbers = #tpu.dot_dimension_numbers<[1], [1], [0], [0], [0, 0, 1, 0], [], []>} : vector<18x8xf32>, vector<18x8xf32>, vector<18x18xf32> -> vector<18x18xf32>
    %416 = arith.addf %415, %3 : vector<18x18xf32>
    %cst_160 = arith.constant dense<0xFF800000> : vector<18xf32>
    %417 = vector.multi_reduction <maximumf>, %416, %cst_160 [1] : vector<18x18xf32> to vector<18xf32>
    %418 = vector.shape_cast %417 : vector<18xf32> to vector<18x1xf32>
    %419 = vector.broadcast %418 : vector<18x1xf32> to vector<18x18xf32>
    %420 = arith.subf %416, %419 : vector<18x18xf32>
    %421 = math.exp %420 : vector<18x18xf32>
    %cst_161 = arith.constant dense<0.000000e+00> : vector<18xf32>
    %422 = vector.multi_reduction <add>, %421, %cst_161 [1] : vector<18x18xf32> to vector<18xf32>
    %423 = vector.shape_cast %422 : vector<18xf32> to vector<18x1xf32>
    %424 = vector.broadcast %423 : vector<18x1xf32> to vector<18x18xf32>
    %425 = arith.divf %421, %424 : vector<18x18xf32>
    %c9 = arith.constant 9 : index
    %c0_162 = arith.constant 0 : index
    %c0_163 = arith.constant 0 : index
    %426 = vector.load %arg6[%c9, %c0_162, %c0_163] : memref<24x18x18xf32, #tpu.memory_space<vmem>>, vector<1x18x18xf32>
    %427 = vector.shape_cast %426 : vector<1x18x18xf32> to vector<18x18xf32>
    %428 = vector.shape_cast %425 : vector<18x18xf32> to vector<1x18x18xf32>
    tpu.vector_store %arg6[%c9, %c0_162, %c0_163], %428 {strides = array<i32>} : memref<24x18x18xf32, #tpu.memory_space<vmem>>, vector<1x18x18xf32>,
    %cst_164 = arith.constant dense<0.000000e+00> : vector<18x8xf32>
    %429 = tpu.matmul %425, %414, %cst_164 {dimension_numbers = #tpu.dot_dimension_numbers<[1], [0], [0], [1], [0, 0, 1, 1], [], []>} : vector<18x18xf32>, vector<18x8xf32>, vector<18x8xf32> -> vector<18x8xf32>
    %430 = vector.extract_strided_slice %390 {offsets = [0, 16], sizes = [18, 8], strides = [1, 1]} : vector<18x32xf32> to vector<18x8xf32>
    %431 = vector.extract_strided_slice %391 {offsets = [0, 16], sizes = [18, 8], strides = [1, 1]} : vector<18x64xf32> to vector<18x8xf32>
    %432 = vector.extract_strided_slice %391 {offsets = [0, 48], sizes = [18, 8], strides = [1, 1]} : vector<18x64xf32> to vector<18x8xf32>
    %cst_165 = arith.constant dense<0.000000e+00> : vector<18x18xf32>
    %433 = tpu.matmul %430, %431, %cst_165 {dimension_numbers = #tpu.dot_dimension_numbers<[1], [1], [0], [0], [0, 0, 1, 0], [], []>} : vector<18x8xf32>, vector<18x8xf32>, vector<18x18xf32> -> vector<18x18xf32>
    %434 = arith.addf %433, %3 : vector<18x18xf32>
    %cst_166 = arith.constant dense<0xFF800000> : vector<18xf32>
    %435 = vector.multi_reduction <maximumf>, %434, %cst_166 [1] : vector<18x18xf32> to vector<18xf32>
    %436 = vector.shape_cast %435 : vector<18xf32> to vector<18x1xf32>
    %437 = vector.broadcast %436 : vector<18x1xf32> to vector<18x18xf32>
    %438 = arith.subf %434, %437 : vector<18x18xf32>
    %439 = math.exp %438 : vector<18x18xf32>
    %cst_167 = arith.constant dense<0.000000e+00> : vector<18xf32>
    %440 = vector.multi_reduction <add>, %439, %cst_167 [1] : vector<18x18xf32> to vector<18xf32>
    %441 = vector.shape_cast %440 : vector<18xf32> to vector<18x1xf32>
    %442 = vector.broadcast %441 : vector<18x1xf32> to vector<18x18xf32>
    %443 = arith.divf %439, %442 : vector<18x18xf32>
    %c10 = arith.constant 10 : index
    %c0_168 = arith.constant 0 : index
    %c0_169 = arith.constant 0 : index
    %444 = vector.load %arg6[%c10, %c0_168, %c0_169] : memref<24x18x18xf32, #tpu.memory_space<vmem>>, vector<1x18x18xf32>
    %445 = vector.shape_cast %444 : vector<1x18x18xf32> to vector<18x18xf32>
    %446 = vector.shape_cast %443 : vector<18x18xf32> to vector<1x18x18xf32>
    tpu.vector_store %arg6[%c10, %c0_168, %c0_169], %446 {strides = array<i32>} : memref<24x18x18xf32, #tpu.memory_space<vmem>>, vector<1x18x18xf32>,
    %cst_170 = arith.constant dense<0.000000e+00> : vector<18x8xf32>
    %447 = tpu.matmul %443, %432, %cst_170 {dimension_numbers = #tpu.dot_dimension_numbers<[1], [0], [0], [1], [0, 0, 1, 1], [], []>} : vector<18x18xf32>, vector<18x8xf32>, vector<18x8xf32> -> vector<18x8xf32>
    %448 = vector.extract_strided_slice %390 {offsets = [0, 24], sizes = [18, 8], strides = [1, 1]} : vector<18x32xf32> to vector<18x8xf32>
    %449 = vector.extract_strided_slice %391 {offsets = [0, 24], sizes = [18, 8], strides = [1, 1]} : vector<18x64xf32> to vector<18x8xf32>
    %450 = vector.extract_strided_slice %391 {offsets = [0, 56], sizes = [18, 8], strides = [1, 1]} : vector<18x64xf32> to vector<18x8xf32>
    %cst_171 = arith.constant dense<0.000000e+00> : vector<18x18xf32>
    %451 = tpu.matmul %448, %449, %cst_171 {dimension_numbers = #tpu.dot_dimension_numbers<[1], [1], [0], [0], [0, 0, 1, 0], [], []>} : vector<18x8xf32>, vector<18x8xf32>, vector<18x18xf32> -> vector<18x18xf32>
    %452 = arith.addf %451, %3 : vector<18x18xf32>
    %cst_172 = arith.constant dense<0xFF800000> : vector<18xf32>
    %453 = vector.multi_reduction <maximumf>, %452, %cst_172 [1] : vector<18x18xf32> to vector<18xf32>
    %454 = vector.shape_cast %453 : vector<18xf32> to vector<18x1xf32>
    %455 = vector.broadcast %454 : vector<18x1xf32> to vector<18x18xf32>
    %456 = arith.subf %452, %455 : vector<18x18xf32>
    %457 = math.exp %456 : vector<18x18xf32>
    %cst_173 = arith.constant dense<0.000000e+00> : vector<18xf32>
    %458 = vector.multi_reduction <add>, %457, %cst_173 [1] : vector<18x18xf32> to vector<18xf32>
    %459 = vector.shape_cast %458 : vector<18xf32> to vector<18x1xf32>
    %460 = vector.broadcast %459 : vector<18x1xf32> to vector<18x18xf32>
    %461 = arith.divf %457, %460 : vector<18x18xf32>
    %c11 = arith.constant 11 : index
    %c0_174 = arith.constant 0 : index
    %c0_175 = arith.constant 0 : index
    %462 = vector.load %arg6[%c11, %c0_174, %c0_175] : memref<24x18x18xf32, #tpu.memory_space<vmem>>, vector<1x18x18xf32>
    %463 = vector.shape_cast %462 : vector<1x18x18xf32> to vector<18x18xf32>
    %464 = vector.shape_cast %461 : vector<18x18xf32> to vector<1x18x18xf32>
    tpu.vector_store %arg6[%c11, %c0_174, %c0_175], %464 {strides = array<i32>} : memref<24x18x18xf32, #tpu.memory_space<vmem>>, vector<1x18x18xf32>,
    %cst_176 = arith.constant dense<0.000000e+00> : vector<18x8xf32>
    %465 = tpu.matmul %461, %450, %cst_176 {dimension_numbers = #tpu.dot_dimension_numbers<[1], [0], [0], [1], [0, 0, 1, 1], [], []>} : vector<18x18xf32>, vector<18x8xf32>, vector<18x8xf32> -> vector<18x8xf32>
    %466 = tpu.concatenate %411, %429, %447, %465 in 1 : vector<18x8xf32>, vector<18x8xf32>, vector<18x8xf32>, vector<18x8xf32> -> vector<18x32xf32>
    %cst_177 = arith.constant dense<0.000000e+00> : vector<18x32xf32>
    %467 = tpu.matmul %466, %392, %cst_177 {dimension_numbers = #tpu.dot_dimension_numbers<[1], [0], [0], [1], [0, 0, 1, 1], [], []>} : vector<18x32xf32>, vector<32x32xf32>, vector<18x32xf32> -> vector<18x32xf32>
    %468 = vector.broadcast %393 : vector<1x32xf32> to vector<18x32xf32>
    %469 = arith.addf %467, %468 : vector<18x32xf32>
    %470 = arith.addf %384, %469 : vector<18x32xf32>
    %c568 = arith.constant 568 : index
    %c0_178 = arith.constant 0 : index
    %471 = vector.load %arg1[%c568, %c0_178] : memref<1128x128xf32, #tpu.memory_space<vmem>>, vector<1x32xf32>
    %c576 = arith.constant 576 : index
    %c0_179 = arith.constant 0 : index
    %472 = vector.load %arg1[%c576, %c0_179] : memref<1128x128xf32, #tpu.memory_space<vmem>>, vector<1x32xf32>
    %cst_180 = arith.constant dense<0.000000e+00> : vector<18xf32>
    %473 = vector.multi_reduction <add>, %470, %cst_180 [1] : vector<18x32xf32> to vector<18xf32>
    %474 = vector.shape_cast %473 : vector<18xf32> to vector<18x1xf32>
    %cst_181 = arith.constant 3.200000e+01 : f32
    %475 = vector.broadcast %cst_181 : f32 to vector<18x1xf32>
    %476 = arith.divf %474, %475 : vector<18x1xf32>
    %477 = vector.broadcast %476 : vector<18x1xf32> to vector<18x32xf32>
    %478 = arith.subf %470, %477 : vector<18x32xf32>
    %479 = arith.mulf %478, %478 : vector<18x32xf32>
    %cst_182 = arith.constant dense<0.000000e+00> : vector<18xf32>
    %480 = vector.multi_reduction <add>, %479, %cst_182 [1] : vector<18x32xf32> to vector<18xf32>
    %481 = vector.shape_cast %480 : vector<18xf32> to vector<18x1xf32>
    %cst_183 = arith.constant 3.200000e+01 : f32
    %482 = vector.broadcast %cst_183 : f32 to vector<18x1xf32>
    %483 = arith.divf %481, %482 : vector<18x1xf32>
    %484 = vector.broadcast %476 : vector<18x1xf32> to vector<18x32xf32>
    %485 = arith.subf %470, %484 : vector<18x32xf32>
    %cst_184 = arith.constant 9.99999996E-13 : f32
    %486 = vector.broadcast %cst_184 : f32 to vector<18x1xf32>
    %487 = arith.addf %483, %486 : vector<18x1xf32>
    %488 = math.rsqrt %487 : vector<18x1xf32>
    %489 = vector.broadcast %488 : vector<18x1xf32> to vector<18x32xf32>
    %490 = arith.mulf %485, %489 : vector<18x32xf32>
    %491 = vector.broadcast %471 : vector<1x32xf32> to vector<18x32xf32>
    %492 = arith.mulf %490, %491 : vector<18x32xf32>
    %493 = vector.broadcast %472 : vector<1x32xf32> to vector<18x32xf32>
    %494 = arith.addf %492, %493 : vector<18x32xf32>
    %c584 = arith.constant 584 : index
    %c0_185 = arith.constant 0 : index
    %495 = vector.load %arg1[%c584, %c0_185] : memref<1128x128xf32, #tpu.memory_space<vmem>>, vector<32x32xf32>
    %cst_186 = arith.constant dense<0.000000e+00> : vector<18x32xf32>
    %496 = tpu.matmul %494, %495, %cst_186 {dimension_numbers = #tpu.dot_dimension_numbers<[1], [0], [0], [1], [0, 0, 1, 1], [], []>} : vector<18x32xf32>, vector<32x32xf32>, vector<18x32xf32> -> vector<18x32xf32>
    %c616 = arith.constant 616 : index
    %c0_187 = arith.constant 0 : index
    %497 = vector.load %arg1[%c616, %c0_187] : memref<1128x128xf32, #tpu.memory_space<vmem>>, vector<1x32xf32>
    %498 = vector.broadcast %497 : vector<1x32xf32> to vector<18x32xf32>
    %499 = arith.addf %496, %498 : vector<18x32xf32>
    %500 = vector.extract_strided_slice %383 {offsets = [0, 0], sizes = [18, 64], strides = [1, 1]} : vector<18x128xf32> to vector<18x64xf32>
    %c624 = arith.constant 624 : index
    %c0_188 = arith.constant 0 : index
    %501 = vector.load %arg1[%c624, %c0_188] : memref<1128x128xf32, #tpu.memory_space<vmem>>, vector<32x32xf32>
    %c656 = arith.constant 656 : index
    %c0_189 = arith.constant 0 : index
    %502 = vector.load %arg1[%c656, %c0_189] : memref<1128x128xf32, #tpu.memory_space<vmem>>, vector<1x32xf32>
    %503 = vector.extract_strided_slice %499 {offsets = [0, 0], sizes = [18, 8], strides = [1, 1]} : vector<18x32xf32> to vector<18x8xf32>
    %504 = vector.extract_strided_slice %500 {offsets = [0, 0], sizes = [18, 8], strides = [1, 1]} : vector<18x64xf32> to vector<18x8xf32>
    %505 = vector.extract_strided_slice %500 {offsets = [0, 32], sizes = [18, 8], strides = [1, 1]} : vector<18x64xf32> to vector<18x8xf32>
    %cst_190 = arith.constant dense<0.000000e+00> : vector<18x18xf32>
    %506 = tpu.matmul %503, %504, %cst_190 {dimension_numbers = #tpu.dot_dimension_numbers<[1], [1], [0], [0], [0, 0, 1, 0], [], []>} : vector<18x8xf32>, vector<18x8xf32>, vector<18x18xf32> -> vector<18x18xf32>
    %507 = arith.addf %506, %5 : vector<18x18xf32>
    %cst_191 = arith.constant dense<0xFF800000> : vector<18xf32>
    %508 = vector.multi_reduction <maximumf>, %507, %cst_191 [1] : vector<18x18xf32> to vector<18xf32>
    %509 = vector.shape_cast %508 : vector<18xf32> to vector<18x1xf32>
    %510 = vector.broadcast %509 : vector<18x1xf32> to vector<18x18xf32>
    %511 = arith.subf %507, %510 : vector<18x18xf32>
    %512 = math.exp %511 : vector<18x18xf32>
    %cst_192 = arith.constant dense<0.000000e+00> : vector<18xf32>
    %513 = vector.multi_reduction <add>, %512, %cst_192 [1] : vector<18x18xf32> to vector<18xf32>
    %514 = vector.shape_cast %513 : vector<18xf32> to vector<18x1xf32>
    %515 = vector.broadcast %514 : vector<18x1xf32> to vector<18x18xf32>
    %516 = arith.divf %512, %515 : vector<18x18xf32>
    %c16 = arith.constant 16 : index
    %c0_193 = arith.constant 0 : index
    %c0_194 = arith.constant 0 : index
    %517 = vector.load %arg6[%c16, %c0_193, %c0_194] : memref<24x18x18xf32, #tpu.memory_space<vmem>>, vector<1x18x18xf32>
    %518 = vector.shape_cast %517 : vector<1x18x18xf32> to vector<18x18xf32>
    %519 = vector.shape_cast %516 : vector<18x18xf32> to vector<1x18x18xf32>
    tpu.vector_store %arg6[%c16, %c0_193, %c0_194], %519 {strides = array<i32>} : memref<24x18x18xf32, #tpu.memory_space<vmem>>, vector<1x18x18xf32>,
    %cst_195 = arith.constant dense<0.000000e+00> : vector<18x8xf32>
    %520 = tpu.matmul %516, %505, %cst_195 {dimension_numbers = #tpu.dot_dimension_numbers<[1], [0], [0], [1], [0, 0, 1, 1], [], []>} : vector<18x18xf32>, vector<18x8xf32>, vector<18x8xf32> -> vector<18x8xf32>
    %521 = vector.extract_strided_slice %499 {offsets = [0, 8], sizes = [18, 8], strides = [1, 1]} : vector<18x32xf32> to vector<18x8xf32>
    %522 = vector.extract_strided_slice %500 {offsets = [0, 8], sizes = [18, 8], strides = [1, 1]} : vector<18x64xf32> to vector<18x8xf32>
    %523 = vector.extract_strided_slice %500 {offsets = [0, 40], sizes = [18, 8], strides = [1, 1]} : vector<18x64xf32> to vector<18x8xf32>
    %cst_196 = arith.constant dense<0.000000e+00> : vector<18x18xf32>
    %524 = tpu.matmul %521, %522, %cst_196 {dimension_numbers = #tpu.dot_dimension_numbers<[1], [1], [0], [0], [0, 0, 1, 0], [], []>} : vector<18x8xf32>, vector<18x8xf32>, vector<18x18xf32> -> vector<18x18xf32>
    %525 = arith.addf %524, %5 : vector<18x18xf32>
    %cst_197 = arith.constant dense<0xFF800000> : vector<18xf32>
    %526 = vector.multi_reduction <maximumf>, %525, %cst_197 [1] : vector<18x18xf32> to vector<18xf32>
    %527 = vector.shape_cast %526 : vector<18xf32> to vector<18x1xf32>
    %528 = vector.broadcast %527 : vector<18x1xf32> to vector<18x18xf32>
    %529 = arith.subf %525, %528 : vector<18x18xf32>
    %530 = math.exp %529 : vector<18x18xf32>
    %cst_198 = arith.constant dense<0.000000e+00> : vector<18xf32>
    %531 = vector.multi_reduction <add>, %530, %cst_198 [1] : vector<18x18xf32> to vector<18xf32>
    %532 = vector.shape_cast %531 : vector<18xf32> to vector<18x1xf32>
    %533 = vector.broadcast %532 : vector<18x1xf32> to vector<18x18xf32>
    %534 = arith.divf %530, %533 : vector<18x18xf32>
    %c17 = arith.constant 17 : index
    %c0_199 = arith.constant 0 : index
    %c0_200 = arith.constant 0 : index
    %535 = vector.load %arg6[%c17, %c0_199, %c0_200] : memref<24x18x18xf32, #tpu.memory_space<vmem>>, vector<1x18x18xf32>
    %536 = vector.shape_cast %535 : vector<1x18x18xf32> to vector<18x18xf32>
    %537 = vector.shape_cast %534 : vector<18x18xf32> to vector<1x18x18xf32>
    tpu.vector_store %arg6[%c17, %c0_199, %c0_200], %537 {strides = array<i32>} : memref<24x18x18xf32, #tpu.memory_space<vmem>>, vector<1x18x18xf32>,
    %cst_201 = arith.constant dense<0.000000e+00> : vector<18x8xf32>
    %538 = tpu.matmul %534, %523, %cst_201 {dimension_numbers = #tpu.dot_dimension_numbers<[1], [0], [0], [1], [0, 0, 1, 1], [], []>} : vector<18x18xf32>, vector<18x8xf32>, vector<18x8xf32> -> vector<18x8xf32>
    %539 = vector.extract_strided_slice %499 {offsets = [0, 16], sizes = [18, 8], strides = [1, 1]} : vector<18x32xf32> to vector<18x8xf32>
    %540 = vector.extract_strided_slice %500 {offsets = [0, 16], sizes = [18, 8], strides = [1, 1]} : vector<18x64xf32> to vector<18x8xf32>
    %541 = vector.extract_strided_slice %500 {offsets = [0, 48], sizes = [18, 8], strides = [1, 1]} : vector<18x64xf32> to vector<18x8xf32>
    %cst_202 = arith.constant dense<0.000000e+00> : vector<18x18xf32>
    %542 = tpu.matmul %539, %540, %cst_202 {dimension_numbers = #tpu.dot_dimension_numbers<[1], [1], [0], [0], [0, 0, 1, 0], [], []>} : vector<18x8xf32>, vector<18x8xf32>, vector<18x18xf32> -> vector<18x18xf32>
    %543 = arith.addf %542, %5 : vector<18x18xf32>
    %cst_203 = arith.constant dense<0xFF800000> : vector<18xf32>
    %544 = vector.multi_reduction <maximumf>, %543, %cst_203 [1] : vector<18x18xf32> to vector<18xf32>
    %545 = vector.shape_cast %544 : vector<18xf32> to vector<18x1xf32>
    %546 = vector.broadcast %545 : vector<18x1xf32> to vector<18x18xf32>
    %547 = arith.subf %543, %546 : vector<18x18xf32>
    %548 = math.exp %547 : vector<18x18xf32>
    %cst_204 = arith.constant dense<0.000000e+00> : vector<18xf32>
    %549 = vector.multi_reduction <add>, %548, %cst_204 [1] : vector<18x18xf32> to vector<18xf32>
    %550 = vector.shape_cast %549 : vector<18xf32> to vector<18x1xf32>
    %551 = vector.broadcast %550 : vector<18x1xf32> to vector<18x18xf32>
    %552 = arith.divf %548, %551 : vector<18x18xf32>
    %c18 = arith.constant 18 : index
    %c0_205 = arith.constant 0 : index
    %c0_206 = arith.constant 0 : index
    %553 = vector.load %arg6[%c18, %c0_205, %c0_206] : memref<24x18x18xf32, #tpu.memory_space<vmem>>, vector<1x18x18xf32>
    %554 = vector.shape_cast %553 : vector<1x18x18xf32> to vector<18x18xf32>
    %555 = vector.shape_cast %552 : vector<18x18xf32> to vector<1x18x18xf32>
    tpu.vector_store %arg6[%c18, %c0_205, %c0_206], %555 {strides = array<i32>} : memref<24x18x18xf32, #tpu.memory_space<vmem>>, vector<1x18x18xf32>,
    %cst_207 = arith.constant dense<0.000000e+00> : vector<18x8xf32>
    %556 = tpu.matmul %552, %541, %cst_207 {dimension_numbers = #tpu.dot_dimension_numbers<[1], [0], [0], [1], [0, 0, 1, 1], [], []>} : vector<18x18xf32>, vector<18x8xf32>, vector<18x8xf32> -> vector<18x8xf32>
    %557 = vector.extract_strided_slice %499 {offsets = [0, 24], sizes = [18, 8], strides = [1, 1]} : vector<18x32xf32> to vector<18x8xf32>
    %558 = vector.extract_strided_slice %500 {offsets = [0, 24], sizes = [18, 8], strides = [1, 1]} : vector<18x64xf32> to vector<18x8xf32>
    %559 = vector.extract_strided_slice %500 {offsets = [0, 56], sizes = [18, 8], strides = [1, 1]} : vector<18x64xf32> to vector<18x8xf32>
    %cst_208 = arith.constant dense<0.000000e+00> : vector<18x18xf32>
    %560 = tpu.matmul %557, %558, %cst_208 {dimension_numbers = #tpu.dot_dimension_numbers<[1], [1], [0], [0], [0, 0, 1, 0], [], []>} : vector<18x8xf32>, vector<18x8xf32>, vector<18x18xf32> -> vector<18x18xf32>
    %561 = arith.addf %560, %5 : vector<18x18xf32>
    %cst_209 = arith.constant dense<0xFF800000> : vector<18xf32>
    %562 = vector.multi_reduction <maximumf>, %561, %cst_209 [1] : vector<18x18xf32> to vector<18xf32>
    %563 = vector.shape_cast %562 : vector<18xf32> to vector<18x1xf32>
    %564 = vector.broadcast %563 : vector<18x1xf32> to vector<18x18xf32>
    %565 = arith.subf %561, %564 : vector<18x18xf32>
    %566 = math.exp %565 : vector<18x18xf32>
    %cst_210 = arith.constant dense<0.000000e+00> : vector<18xf32>
    %567 = vector.multi_reduction <add>, %566, %cst_210 [1] : vector<18x18xf32> to vector<18xf32>
    %568 = vector.shape_cast %567 : vector<18xf32> to vector<18x1xf32>
    %569 = vector.broadcast %568 : vector<18x1xf32> to vector<18x18xf32>
    %570 = arith.divf %566, %569 : vector<18x18xf32>
    %c19 = arith.constant 19 : index
    %c0_211 = arith.constant 0 : index
    %c0_212 = arith.constant 0 : index
    %571 = vector.load %arg6[%c19, %c0_211, %c0_212] : memref<24x18x18xf32, #tpu.memory_space<vmem>>, vector<1x18x18xf32>
    %572 = vector.shape_cast %571 : vector<1x18x18xf32> to vector<18x18xf32>
    %573 = vector.shape_cast %570 : vector<18x18xf32> to vector<1x18x18xf32>
    tpu.vector_store %arg6[%c19, %c0_211, %c0_212], %573 {strides = array<i32>} : memref<24x18x18xf32, #tpu.memory_space<vmem>>, vector<1x18x18xf32>,
    %cst_213 = arith.constant dense<0.000000e+00> : vector<18x8xf32>
    %574 = tpu.matmul %570, %559, %cst_213 {dimension_numbers = #tpu.dot_dimension_numbers<[1], [0], [0], [1], [0, 0, 1, 1], [], []>} : vector<18x18xf32>, vector<18x8xf32>, vector<18x8xf32> -> vector<18x8xf32>
    %575 = tpu.concatenate %520, %538, %556, %574 in 1 : vector<18x8xf32>, vector<18x8xf32>, vector<18x8xf32>, vector<18x8xf32> -> vector<18x32xf32>
    %cst_214 = arith.constant dense<0.000000e+00> : vector<18x32xf32>
    %576 = tpu.matmul %575, %501, %cst_214 {dimension_numbers = #tpu.dot_dimension_numbers<[1], [0], [0], [1], [0, 0, 1, 1], [], []>} : vector<18x32xf32>, vector<32x32xf32>, vector<18x32xf32> -> vector<18x32xf32>
    %577 = vector.broadcast %502 : vector<1x32xf32> to vector<18x32xf32>
    %578 = arith.addf %576, %577 : vector<18x32xf32>
    %579 = arith.addf %494, %578 : vector<18x32xf32>
    %c664 = arith.constant 664 : index
    %c0_215 = arith.constant 0 : index
    %580 = vector.load %arg1[%c664, %c0_215] : memref<1128x128xf32, #tpu.memory_space<vmem>>, vector<1x32xf32>
    %c672 = arith.constant 672 : index
    %c0_216 = arith.constant 0 : index
    %581 = vector.load %arg1[%c672, %c0_216] : memref<1128x128xf32, #tpu.memory_space<vmem>>, vector<1x32xf32>
    %cst_217 = arith.constant dense<0.000000e+00> : vector<18xf32>
    %582 = vector.multi_reduction <add>, %579, %cst_217 [1] : vector<18x32xf32> to vector<18xf32>
    %583 = vector.shape_cast %582 : vector<18xf32> to vector<18x1xf32>
    %cst_218 = arith.constant 3.200000e+01 : f32
    %584 = vector.broadcast %cst_218 : f32 to vector<18x1xf32>
    %585 = arith.divf %583, %584 : vector<18x1xf32>
    %586 = vector.broadcast %585 : vector<18x1xf32> to vector<18x32xf32>
    %587 = arith.subf %579, %586 : vector<18x32xf32>
    %588 = arith.mulf %587, %587 : vector<18x32xf32>
    %cst_219 = arith.constant dense<0.000000e+00> : vector<18xf32>
    %589 = vector.multi_reduction <add>, %588, %cst_219 [1] : vector<18x32xf32> to vector<18xf32>
    %590 = vector.shape_cast %589 : vector<18xf32> to vector<18x1xf32>
    %cst_220 = arith.constant 3.200000e+01 : f32
    %591 = vector.broadcast %cst_220 : f32 to vector<18x1xf32>
    %592 = arith.divf %590, %591 : vector<18x1xf32>
    %593 = vector.broadcast %585 : vector<18x1xf32> to vector<18x32xf32>
    %594 = arith.subf %579, %593 : vector<18x32xf32>
    %cst_221 = arith.constant 9.99999996E-13 : f32
    %595 = vector.broadcast %cst_221 : f32 to vector<18x1xf32>
    %596 = arith.addf %592, %595 : vector<18x1xf32>
    %597 = math.rsqrt %596 : vector<18x1xf32>
    %598 = vector.broadcast %597 : vector<18x1xf32> to vector<18x32xf32>
    %599 = arith.mulf %594, %598 : vector<18x32xf32>
    %600 = vector.broadcast %580 : vector<1x32xf32> to vector<18x32xf32>
    %601 = arith.mulf %599, %600 : vector<18x32xf32>
    %602 = vector.broadcast %581 : vector<1x32xf32> to vector<18x32xf32>
    %603 = arith.addf %601, %602 : vector<18x32xf32>
    %c680 = arith.constant 680 : index
    %c0_222 = arith.constant 0 : index
    %604 = vector.load %arg1[%c680, %c0_222] : memref<1128x128xf32, #tpu.memory_space<vmem>>, vector<32x64xf32>
    %c712 = arith.constant 712 : index
    %c0_223 = arith.constant 0 : index
    %605 = vector.load %arg1[%c712, %c0_223] : memref<1128x128xf32, #tpu.memory_space<vmem>>, vector<1x64xf32>
    %c720 = arith.constant 720 : index
    %c0_224 = arith.constant 0 : index
    %606 = vector.load %arg1[%c720, %c0_224] : memref<1128x128xf32, #tpu.memory_space<vmem>>, vector<64x32xf32>
    %c784 = arith.constant 784 : index
    %c0_225 = arith.constant 0 : index
    %607 = vector.load %arg1[%c784, %c0_225] : memref<1128x128xf32, #tpu.memory_space<vmem>>, vector<1x32xf32>
    %cst_226 = arith.constant dense<0.000000e+00> : vector<18x64xf32>
    %608 = tpu.matmul %603, %604, %cst_226 {dimension_numbers = #tpu.dot_dimension_numbers<[1], [0], [0], [1], [0, 0, 1, 1], [], []>} : vector<18x32xf32>, vector<32x64xf32>, vector<18x64xf32> -> vector<18x64xf32>
    %609 = vector.broadcast %605 : vector<1x64xf32> to vector<18x64xf32>
    %610 = arith.addf %608, %609 : vector<18x64xf32>
    %cst_227 = arith.constant 5.000000e-01 : f32
    %611 = vector.broadcast %cst_227 : f32 to vector<18x64xf32>
    %612 = arith.mulf %611, %610 : vector<18x64xf32>
    %cst_228 = arith.constant 0.707106769 : f32
    %613 = vector.broadcast %cst_228 : f32 to vector<18x64xf32>
    %614 = arith.mulf %610, %613 : vector<18x64xf32>
    %cst_229 = arith.constant 0.000000e+00 : f32
    %615 = vector.broadcast %cst_229 : f32 to vector<18x64xf32>
    %616 = arith.cmpf oge, %614, %615 : vector<18x64xf32>
    %cst_230 = arith.constant 1.000000e+00 : f32
    %cst_231 = arith.constant -1.000000e+00 : f32
    %617 = vector.broadcast %cst_230 : f32 to vector<18x64xf32>
    %618 = vector.broadcast %cst_231 : f32 to vector<18x64xf32>
    %619 = arith.select %616, %617, %618 : vector<18x64xi1>, vector<18x64xf32>
    %620 = math.absf %614 : vector<18x64xf32>
    %cst_232 = arith.constant 0.327591091 : f32
    %621 = vector.broadcast %cst_232 : f32 to vector<18x64xf32>
    %622 = arith.mulf %621, %620 : vector<18x64xf32>
    %cst_233 = arith.constant 1.000000e+00 : f32
    %623 = vector.broadcast %cst_233 : f32 to vector<18x64xf32>
    %624 = arith.addf %623, %622 : vector<18x64xf32>
    %cst_234 = arith.constant 1.000000e+00 : f32
    %625 = vector.broadcast %cst_234 : f32 to vector<18x64xf32>
    %626 = arith.divf %625, %624 : vector<18x64xf32>
    %cst_235 = arith.constant 1.06140542 : f32
    %627 = vector.broadcast %cst_235 : f32 to vector<18x64xf32>
    %628 = arith.mulf %627, %626 : vector<18x64xf32>
    %cst_236 = arith.constant -1.45315206 : f32
    %629 = vector.broadcast %cst_236 : f32 to vector<18x64xf32>
    %630 = arith.addf %628, %629 : vector<18x64xf32>
    %631 = arith.mulf %630, %626 : vector<18x64xf32>
    %cst_237 = arith.constant 1.42141378 : f32
    %632 = vector.broadcast %cst_237 : f32 to vector<18x64xf32>
    %633 = arith.addf %631, %632 : vector<18x64xf32>
    %634 = arith.mulf %633, %626 : vector<18x64xf32>
    %cst_238 = arith.constant -0.284496725 : f32
    %635 = vector.broadcast %cst_238 : f32 to vector<18x64xf32>
    %636 = arith.addf %634, %635 : vector<18x64xf32>
    %637 = arith.mulf %636, %626 : vector<18x64xf32>
    %cst_239 = arith.constant 0.254829586 : f32
    %638 = vector.broadcast %cst_239 : f32 to vector<18x64xf32>
    %639 = arith.addf %637, %638 : vector<18x64xf32>
    %640 = arith.mulf %639, %626 : vector<18x64xf32>
    %cst_240 = arith.constant 0.000000e+00 : f32
    %641 = vector.broadcast %cst_240 : f32 to vector<18x64xf32>
    %642 = arith.subf %641, %620 : vector<18x64xf32>
    %643 = arith.mulf %642, %620 : vector<18x64xf32>
    %644 = math.exp %643 : vector<18x64xf32>
    %645 = arith.mulf %640, %644 : vector<18x64xf32>
    %cst_241 = arith.constant 1.000000e+00 : f32
    %646 = vector.broadcast %cst_241 : f32 to vector<18x64xf32>
    %647 = arith.subf %646, %645 : vector<18x64xf32>
    %648 = arith.mulf %619, %647 : vector<18x64xf32>
    %cst_242 = arith.constant 1.000000e+00 : f32
    %649 = vector.broadcast %cst_242 : f32 to vector<18x64xf32>
    %650 = arith.addf %649, %648 : vector<18x64xf32>
    %651 = arith.mulf %612, %650 : vector<18x64xf32>
    %cst_243 = arith.constant dense<0.000000e+00> : vector<18x32xf32>
    %652 = tpu.matmul %651, %606, %cst_243 {dimension_numbers = #tpu.dot_dimension_numbers<[1], [0], [0], [1], [0, 0, 1, 1], [], []>} : vector<18x64xf32>, vector<64x32xf32>, vector<18x32xf32> -> vector<18x32xf32>
    %653 = vector.broadcast %607 : vector<1x32xf32> to vector<18x32xf32>
    %654 = arith.addf %652, %653 : vector<18x32xf32>
    %655 = arith.addf %603, %654 : vector<18x32xf32>
    %c792 = arith.constant 792 : index
    %c0_244 = arith.constant 0 : index
    %656 = vector.load %arg1[%c792, %c0_244] : memref<1128x128xf32, #tpu.memory_space<vmem>>, vector<1x32xf32>
    %c800 = arith.constant 800 : index
    %c0_245 = arith.constant 0 : index
    %657 = vector.load %arg1[%c800, %c0_245] : memref<1128x128xf32, #tpu.memory_space<vmem>>, vector<1x32xf32>
    %cst_246 = arith.constant dense<0.000000e+00> : vector<18xf32>
    %658 = vector.multi_reduction <add>, %655, %cst_246 [1] : vector<18x32xf32> to vector<18xf32>
    %659 = vector.shape_cast %658 : vector<18xf32> to vector<18x1xf32>
    %cst_247 = arith.constant 3.200000e+01 : f32
    %660 = vector.broadcast %cst_247 : f32 to vector<18x1xf32>
    %661 = arith.divf %659, %660 : vector<18x1xf32>
    %662 = vector.broadcast %661 : vector<18x1xf32> to vector<18x32xf32>
    %663 = arith.subf %655, %662 : vector<18x32xf32>
    %664 = arith.mulf %663, %663 : vector<18x32xf32>
    %cst_248 = arith.constant dense<0.000000e+00> : vector<18xf32>
    %665 = vector.multi_reduction <add>, %664, %cst_248 [1] : vector<18x32xf32> to vector<18xf32>
    %666 = vector.shape_cast %665 : vector<18xf32> to vector<18x1xf32>
    %cst_249 = arith.constant 3.200000e+01 : f32
    %667 = vector.broadcast %cst_249 : f32 to vector<18x1xf32>
    %668 = arith.divf %666, %667 : vector<18x1xf32>
    %669 = vector.broadcast %661 : vector<18x1xf32> to vector<18x32xf32>
    %670 = arith.subf %655, %669 : vector<18x32xf32>
    %cst_250 = arith.constant 9.99999996E-13 : f32
    %671 = vector.broadcast %cst_250 : f32 to vector<18x1xf32>
    %672 = arith.addf %668, %671 : vector<18x1xf32>
    %673 = math.rsqrt %672 : vector<18x1xf32>
    %674 = vector.broadcast %673 : vector<18x1xf32> to vector<18x32xf32>
    %675 = arith.mulf %670, %674 : vector<18x32xf32>
    %676 = vector.broadcast %656 : vector<1x32xf32> to vector<18x32xf32>
    %677 = arith.mulf %675, %676 : vector<18x32xf32>
    %678 = vector.broadcast %657 : vector<1x32xf32> to vector<18x32xf32>
    %679 = arith.addf %677, %678 : vector<18x32xf32>
    %c808 = arith.constant 808 : index
    %c0_251 = arith.constant 0 : index
    %680 = vector.load %arg1[%c808, %c0_251] : memref<1128x128xf32, #tpu.memory_space<vmem>>, vector<32x96xf32>
    %cst_252 = arith.constant dense<0.000000e+00> : vector<18x96xf32>
    %681 = tpu.matmul %679, %680, %cst_252 {dimension_numbers = #tpu.dot_dimension_numbers<[1], [0], [0], [1], [0, 0, 1, 1], [], []>} : vector<18x32xf32>, vector<32x96xf32>, vector<18x96xf32> -> vector<18x96xf32>
    %c840 = arith.constant 840 : index
    %c0_253 = arith.constant 0 : index
    %682 = vector.load %arg1[%c840, %c0_253] : memref<1128x128xf32, #tpu.memory_space<vmem>>, vector<1x96xf32>
    %683 = vector.broadcast %682 : vector<1x96xf32> to vector<18x96xf32>
    %684 = arith.addf %681, %683 : vector<18x96xf32>
    %685 = vector.extract_strided_slice %684 {offsets = [0, 0], sizes = [18, 32], strides = [1, 1]} : vector<18x96xf32> to vector<18x32xf32>
    %686 = vector.extract_strided_slice %684 {offsets = [0, 32], sizes = [18, 64], strides = [1, 1]} : vector<18x96xf32> to vector<18x64xf32>
    %c848 = arith.constant 848 : index
    %c0_254 = arith.constant 0 : index
    %687 = vector.load %arg1[%c848, %c0_254] : memref<1128x128xf32, #tpu.memory_space<vmem>>, vector<32x32xf32>
    %c880 = arith.constant 880 : index
    %c0_255 = arith.constant 0 : index
    %688 = vector.load %arg1[%c880, %c0_255] : memref<1128x128xf32, #tpu.memory_space<vmem>>, vector<1x32xf32>
    %689 = vector.extract_strided_slice %685 {offsets = [0, 0], sizes = [18, 8], strides = [1, 1]} : vector<18x32xf32> to vector<18x8xf32>
    %690 = vector.extract_strided_slice %686 {offsets = [0, 0], sizes = [18, 8], strides = [1, 1]} : vector<18x64xf32> to vector<18x8xf32>
    %691 = vector.extract_strided_slice %686 {offsets = [0, 32], sizes = [18, 8], strides = [1, 1]} : vector<18x64xf32> to vector<18x8xf32>
    %cst_256 = arith.constant dense<0.000000e+00> : vector<18x18xf32>
    %692 = tpu.matmul %689, %690, %cst_256 {dimension_numbers = #tpu.dot_dimension_numbers<[1], [1], [0], [0], [0, 0, 1, 0], [], []>} : vector<18x8xf32>, vector<18x8xf32>, vector<18x18xf32> -> vector<18x18xf32>
    %693 = arith.addf %692, %3 : vector<18x18xf32>
    %cst_257 = arith.constant dense<0xFF800000> : vector<18xf32>
    %694 = vector.multi_reduction <maximumf>, %693, %cst_257 [1] : vector<18x18xf32> to vector<18xf32>
    %695 = vector.shape_cast %694 : vector<18xf32> to vector<18x1xf32>
    %696 = vector.broadcast %695 : vector<18x1xf32> to vector<18x18xf32>
    %697 = arith.subf %693, %696 : vector<18x18xf32>
    %698 = math.exp %697 : vector<18x18xf32>
    %cst_258 = arith.constant dense<0.000000e+00> : vector<18xf32>
    %699 = vector.multi_reduction <add>, %698, %cst_258 [1] : vector<18x18xf32> to vector<18xf32>
    %700 = vector.shape_cast %699 : vector<18xf32> to vector<18x1xf32>
    %701 = vector.broadcast %700 : vector<18x1xf32> to vector<18x18xf32>
    %702 = arith.divf %698, %701 : vector<18x18xf32>
    %c12 = arith.constant 12 : index
    %c0_259 = arith.constant 0 : index
    %c0_260 = arith.constant 0 : index
    %703 = vector.load %arg6[%c12, %c0_259, %c0_260] : memref<24x18x18xf32, #tpu.memory_space<vmem>>, vector<1x18x18xf32>
    %704 = vector.shape_cast %703 : vector<1x18x18xf32> to vector<18x18xf32>
    %705 = vector.shape_cast %702 : vector<18x18xf32> to vector<1x18x18xf32>
    tpu.vector_store %arg6[%c12, %c0_259, %c0_260], %705 {strides = array<i32>} : memref<24x18x18xf32, #tpu.memory_space<vmem>>, vector<1x18x18xf32>,
    %cst_261 = arith.constant dense<0.000000e+00> : vector<18x8xf32>
    %706 = tpu.matmul %702, %691, %cst_261 {dimension_numbers = #tpu.dot_dimension_numbers<[1], [0], [0], [1], [0, 0, 1, 1], [], []>} : vector<18x18xf32>, vector<18x8xf32>, vector<18x8xf32> -> vector<18x8xf32>
    %707 = vector.extract_strided_slice %685 {offsets = [0, 8], sizes = [18, 8], strides = [1, 1]} : vector<18x32xf32> to vector<18x8xf32>
    %708 = vector.extract_strided_slice %686 {offsets = [0, 8], sizes = [18, 8], strides = [1, 1]} : vector<18x64xf32> to vector<18x8xf32>
    %709 = vector.extract_strided_slice %686 {offsets = [0, 40], sizes = [18, 8], strides = [1, 1]} : vector<18x64xf32> to vector<18x8xf32>
    %cst_262 = arith.constant dense<0.000000e+00> : vector<18x18xf32>
    %710 = tpu.matmul %707, %708, %cst_262 {dimension_numbers = #tpu.dot_dimension_numbers<[1], [1], [0], [0], [0, 0, 1, 0], [], []>} : vector<18x8xf32>, vector<18x8xf32>, vector<18x18xf32> -> vector<18x18xf32>
    %711 = arith.addf %710, %3 : vector<18x18xf32>
    %cst_263 = arith.constant dense<0xFF800000> : vector<18xf32>
    %712 = vector.multi_reduction <maximumf>, %711, %cst_263 [1] : vector<18x18xf32> to vector<18xf32>
    %713 = vector.shape_cast %712 : vector<18xf32> to vector<18x1xf32>
    %714 = vector.broadcast %713 : vector<18x1xf32> to vector<18x18xf32>
    %715 = arith.subf %711, %714 : vector<18x18xf32>
    %716 = math.exp %715 : vector<18x18xf32>
    %cst_264 = arith.constant dense<0.000000e+00> : vector<18xf32>
    %717 = vector.multi_reduction <add>, %716, %cst_264 [1] : vector<18x18xf32> to vector<18xf32>
    %718 = vector.shape_cast %717 : vector<18xf32> to vector<18x1xf32>
    %719 = vector.broadcast %718 : vector<18x1xf32> to vector<18x18xf32>
    %720 = arith.divf %716, %719 : vector<18x18xf32>
    %c13 = arith.constant 13 : index
    %c0_265 = arith.constant 0 : index
    %c0_266 = arith.constant 0 : index
    %721 = vector.load %arg6[%c13, %c0_265, %c0_266] : memref<24x18x18xf32, #tpu.memory_space<vmem>>, vector<1x18x18xf32>
    %722 = vector.shape_cast %721 : vector<1x18x18xf32> to vector<18x18xf32>
    %723 = vector.shape_cast %720 : vector<18x18xf32> to vector<1x18x18xf32>
    tpu.vector_store %arg6[%c13, %c0_265, %c0_266], %723 {strides = array<i32>} : memref<24x18x18xf32, #tpu.memory_space<vmem>>, vector<1x18x18xf32>,
    %cst_267 = arith.constant dense<0.000000e+00> : vector<18x8xf32>
    %724 = tpu.matmul %720, %709, %cst_267 {dimension_numbers = #tpu.dot_dimension_numbers<[1], [0], [0], [1], [0, 0, 1, 1], [], []>} : vector<18x18xf32>, vector<18x8xf32>, vector<18x8xf32> -> vector<18x8xf32>
    %725 = vector.extract_strided_slice %685 {offsets = [0, 16], sizes = [18, 8], strides = [1, 1]} : vector<18x32xf32> to vector<18x8xf32>
    %726 = vector.extract_strided_slice %686 {offsets = [0, 16], sizes = [18, 8], strides = [1, 1]} : vector<18x64xf32> to vector<18x8xf32>
    %727 = vector.extract_strided_slice %686 {offsets = [0, 48], sizes = [18, 8], strides = [1, 1]} : vector<18x64xf32> to vector<18x8xf32>
    %cst_268 = arith.constant dense<0.000000e+00> : vector<18x18xf32>
    %728 = tpu.matmul %725, %726, %cst_268 {dimension_numbers = #tpu.dot_dimension_numbers<[1], [1], [0], [0], [0, 0, 1, 0], [], []>} : vector<18x8xf32>, vector<18x8xf32>, vector<18x18xf32> -> vector<18x18xf32>
    %729 = arith.addf %728, %3 : vector<18x18xf32>
    %cst_269 = arith.constant dense<0xFF800000> : vector<18xf32>
    %730 = vector.multi_reduction <maximumf>, %729, %cst_269 [1] : vector<18x18xf32> to vector<18xf32>
    %731 = vector.shape_cast %730 : vector<18xf32> to vector<18x1xf32>
    %732 = vector.broadcast %731 : vector<18x1xf32> to vector<18x18xf32>
    %733 = arith.subf %729, %732 : vector<18x18xf32>
    %734 = math.exp %733 : vector<18x18xf32>
    %cst_270 = arith.constant dense<0.000000e+00> : vector<18xf32>
    %735 = vector.multi_reduction <add>, %734, %cst_270 [1] : vector<18x18xf32> to vector<18xf32>
    %736 = vector.shape_cast %735 : vector<18xf32> to vector<18x1xf32>
    %737 = vector.broadcast %736 : vector<18x1xf32> to vector<18x18xf32>
    %738 = arith.divf %734, %737 : vector<18x18xf32>
    %c14 = arith.constant 14 : index
    %c0_271 = arith.constant 0 : index
    %c0_272 = arith.constant 0 : index
    %739 = vector.load %arg6[%c14, %c0_271, %c0_272] : memref<24x18x18xf32, #tpu.memory_space<vmem>>, vector<1x18x18xf32>
    %740 = vector.shape_cast %739 : vector<1x18x18xf32> to vector<18x18xf32>
    %741 = vector.shape_cast %738 : vector<18x18xf32> to vector<1x18x18xf32>
    tpu.vector_store %arg6[%c14, %c0_271, %c0_272], %741 {strides = array<i32>} : memref<24x18x18xf32, #tpu.memory_space<vmem>>, vector<1x18x18xf32>,
    %cst_273 = arith.constant dense<0.000000e+00> : vector<18x8xf32>
    %742 = tpu.matmul %738, %727, %cst_273 {dimension_numbers = #tpu.dot_dimension_numbers<[1], [0], [0], [1], [0, 0, 1, 1], [], []>} : vector<18x18xf32>, vector<18x8xf32>, vector<18x8xf32> -> vector<18x8xf32>
    %743 = vector.extract_strided_slice %685 {offsets = [0, 24], sizes = [18, 8], strides = [1, 1]} : vector<18x32xf32> to vector<18x8xf32>
    %744 = vector.extract_strided_slice %686 {offsets = [0, 24], sizes = [18, 8], strides = [1, 1]} : vector<18x64xf32> to vector<18x8xf32>
    %745 = vector.extract_strided_slice %686 {offsets = [0, 56], sizes = [18, 8], strides = [1, 1]} : vector<18x64xf32> to vector<18x8xf32>
    %cst_274 = arith.constant dense<0.000000e+00> : vector<18x18xf32>
    %746 = tpu.matmul %743, %744, %cst_274 {dimension_numbers = #tpu.dot_dimension_numbers<[1], [1], [0], [0], [0, 0, 1, 0], [], []>} : vector<18x8xf32>, vector<18x8xf32>, vector<18x18xf32> -> vector<18x18xf32>
    %747 = arith.addf %746, %3 : vector<18x18xf32>
    %cst_275 = arith.constant dense<0xFF800000> : vector<18xf32>
    %748 = vector.multi_reduction <maximumf>, %747, %cst_275 [1] : vector<18x18xf32> to vector<18xf32>
    %749 = vector.shape_cast %748 : vector<18xf32> to vector<18x1xf32>
    %750 = vector.broadcast %749 : vector<18x1xf32> to vector<18x18xf32>
    %751 = arith.subf %747, %750 : vector<18x18xf32>
    %752 = math.exp %751 : vector<18x18xf32>
    %cst_276 = arith.constant dense<0.000000e+00> : vector<18xf32>
    %753 = vector.multi_reduction <add>, %752, %cst_276 [1] : vector<18x18xf32> to vector<18xf32>
    %754 = vector.shape_cast %753 : vector<18xf32> to vector<18x1xf32>
    %755 = vector.broadcast %754 : vector<18x1xf32> to vector<18x18xf32>
    %756 = arith.divf %752, %755 : vector<18x18xf32>
    %c15 = arith.constant 15 : index
    %c0_277 = arith.constant 0 : index
    %c0_278 = arith.constant 0 : index
    %757 = vector.load %arg6[%c15, %c0_277, %c0_278] : memref<24x18x18xf32, #tpu.memory_space<vmem>>, vector<1x18x18xf32>
    %758 = vector.shape_cast %757 : vector<1x18x18xf32> to vector<18x18xf32>
    %759 = vector.shape_cast %756 : vector<18x18xf32> to vector<1x18x18xf32>
    tpu.vector_store %arg6[%c15, %c0_277, %c0_278], %759 {strides = array<i32>} : memref<24x18x18xf32, #tpu.memory_space<vmem>>, vector<1x18x18xf32>,
    %cst_279 = arith.constant dense<0.000000e+00> : vector<18x8xf32>
    %760 = tpu.matmul %756, %745, %cst_279 {dimension_numbers = #tpu.dot_dimension_numbers<[1], [0], [0], [1], [0, 0, 1, 1], [], []>} : vector<18x18xf32>, vector<18x8xf32>, vector<18x8xf32> -> vector<18x8xf32>
    %761 = tpu.concatenate %706, %724, %742, %760 in 1 : vector<18x8xf32>, vector<18x8xf32>, vector<18x8xf32>, vector<18x8xf32> -> vector<18x32xf32>
    %cst_280 = arith.constant dense<0.000000e+00> : vector<18x32xf32>
    %762 = tpu.matmul %761, %687, %cst_280 {dimension_numbers = #tpu.dot_dimension_numbers<[1], [0], [0], [1], [0, 0, 1, 1], [], []>} : vector<18x32xf32>, vector<32x32xf32>, vector<18x32xf32> -> vector<18x32xf32>
    %763 = vector.broadcast %688 : vector<1x32xf32> to vector<18x32xf32>
    %764 = arith.addf %762, %763 : vector<18x32xf32>
    %765 = arith.addf %679, %764 : vector<18x32xf32>
    %c888 = arith.constant 888 : index
    %c0_281 = arith.constant 0 : index
    %766 = vector.load %arg1[%c888, %c0_281] : memref<1128x128xf32, #tpu.memory_space<vmem>>, vector<1x32xf32>
    %c896 = arith.constant 896 : index
    %c0_282 = arith.constant 0 : index
    %767 = vector.load %arg1[%c896, %c0_282] : memref<1128x128xf32, #tpu.memory_space<vmem>>, vector<1x32xf32>
    %cst_283 = arith.constant dense<0.000000e+00> : vector<18xf32>
    %768 = vector.multi_reduction <add>, %765, %cst_283 [1] : vector<18x32xf32> to vector<18xf32>
    %769 = vector.shape_cast %768 : vector<18xf32> to vector<18x1xf32>
    %cst_284 = arith.constant 3.200000e+01 : f32
    %770 = vector.broadcast %cst_284 : f32 to vector<18x1xf32>
    %771 = arith.divf %769, %770 : vector<18x1xf32>
    %772 = vector.broadcast %771 : vector<18x1xf32> to vector<18x32xf32>
    %773 = arith.subf %765, %772 : vector<18x32xf32>
    %774 = arith.mulf %773, %773 : vector<18x32xf32>
    %cst_285 = arith.constant dense<0.000000e+00> : vector<18xf32>
    %775 = vector.multi_reduction <add>, %774, %cst_285 [1] : vector<18x32xf32> to vector<18xf32>
    %776 = vector.shape_cast %775 : vector<18xf32> to vector<18x1xf32>
    %cst_286 = arith.constant 3.200000e+01 : f32
    %777 = vector.broadcast %cst_286 : f32 to vector<18x1xf32>
    %778 = arith.divf %776, %777 : vector<18x1xf32>
    %779 = vector.broadcast %771 : vector<18x1xf32> to vector<18x32xf32>
    %780 = arith.subf %765, %779 : vector<18x32xf32>
    %cst_287 = arith.constant 9.99999996E-13 : f32
    %781 = vector.broadcast %cst_287 : f32 to vector<18x1xf32>
    %782 = arith.addf %778, %781 : vector<18x1xf32>
    %783 = math.rsqrt %782 : vector<18x1xf32>
    %784 = vector.broadcast %783 : vector<18x1xf32> to vector<18x32xf32>
    %785 = arith.mulf %780, %784 : vector<18x32xf32>
    %786 = vector.broadcast %766 : vector<1x32xf32> to vector<18x32xf32>
    %787 = arith.mulf %785, %786 : vector<18x32xf32>
    %788 = vector.broadcast %767 : vector<1x32xf32> to vector<18x32xf32>
    %789 = arith.addf %787, %788 : vector<18x32xf32>
    %c904 = arith.constant 904 : index
    %c0_288 = arith.constant 0 : index
    %790 = vector.load %arg1[%c904, %c0_288] : memref<1128x128xf32, #tpu.memory_space<vmem>>, vector<32x32xf32>
    %cst_289 = arith.constant dense<0.000000e+00> : vector<18x32xf32>
    %791 = tpu.matmul %789, %790, %cst_289 {dimension_numbers = #tpu.dot_dimension_numbers<[1], [0], [0], [1], [0, 0, 1, 1], [], []>} : vector<18x32xf32>, vector<32x32xf32>, vector<18x32xf32> -> vector<18x32xf32>
    %c936 = arith.constant 936 : index
    %c0_290 = arith.constant 0 : index
    %792 = vector.load %arg1[%c936, %c0_290] : memref<1128x128xf32, #tpu.memory_space<vmem>>, vector<1x32xf32>
    %793 = vector.broadcast %792 : vector<1x32xf32> to vector<18x32xf32>
    %794 = arith.addf %791, %793 : vector<18x32xf32>
    %795 = vector.extract_strided_slice %383 {offsets = [0, 64], sizes = [18, 64], strides = [1, 1]} : vector<18x128xf32> to vector<18x64xf32>
    %c944 = arith.constant 944 : index
    %c0_291 = arith.constant 0 : index
    %796 = vector.load %arg1[%c944, %c0_291] : memref<1128x128xf32, #tpu.memory_space<vmem>>, vector<32x32xf32>
    %c976 = arith.constant 976 : index
    %c0_292 = arith.constant 0 : index
    %797 = vector.load %arg1[%c976, %c0_292] : memref<1128x128xf32, #tpu.memory_space<vmem>>, vector<1x32xf32>
    %798 = vector.extract_strided_slice %794 {offsets = [0, 0], sizes = [18, 8], strides = [1, 1]} : vector<18x32xf32> to vector<18x8xf32>
    %799 = vector.extract_strided_slice %795 {offsets = [0, 0], sizes = [18, 8], strides = [1, 1]} : vector<18x64xf32> to vector<18x8xf32>
    %800 = vector.extract_strided_slice %795 {offsets = [0, 32], sizes = [18, 8], strides = [1, 1]} : vector<18x64xf32> to vector<18x8xf32>
    %cst_293 = arith.constant dense<0.000000e+00> : vector<18x18xf32>
    %801 = tpu.matmul %798, %799, %cst_293 {dimension_numbers = #tpu.dot_dimension_numbers<[1], [1], [0], [0], [0, 0, 1, 0], [], []>} : vector<18x8xf32>, vector<18x8xf32>, vector<18x18xf32> -> vector<18x18xf32>
    %802 = arith.addf %801, %5 : vector<18x18xf32>
    %cst_294 = arith.constant dense<0xFF800000> : vector<18xf32>
    %803 = vector.multi_reduction <maximumf>, %802, %cst_294 [1] : vector<18x18xf32> to vector<18xf32>
    %804 = vector.shape_cast %803 : vector<18xf32> to vector<18x1xf32>
    %805 = vector.broadcast %804 : vector<18x1xf32> to vector<18x18xf32>
    %806 = arith.subf %802, %805 : vector<18x18xf32>
    %807 = math.exp %806 : vector<18x18xf32>
    %cst_295 = arith.constant dense<0.000000e+00> : vector<18xf32>
    %808 = vector.multi_reduction <add>, %807, %cst_295 [1] : vector<18x18xf32> to vector<18xf32>
    %809 = vector.shape_cast %808 : vector<18xf32> to vector<18x1xf32>
    %810 = vector.broadcast %809 : vector<18x1xf32> to vector<18x18xf32>
    %811 = arith.divf %807, %810 : vector<18x18xf32>
    %c20 = arith.constant 20 : index
    %c0_296 = arith.constant 0 : index
    %c0_297 = arith.constant 0 : index
    %812 = vector.load %arg6[%c20, %c0_296, %c0_297] : memref<24x18x18xf32, #tpu.memory_space<vmem>>, vector<1x18x18xf32>
    %813 = vector.shape_cast %812 : vector<1x18x18xf32> to vector<18x18xf32>
    %814 = vector.shape_cast %811 : vector<18x18xf32> to vector<1x18x18xf32>
    tpu.vector_store %arg6[%c20, %c0_296, %c0_297], %814 {strides = array<i32>} : memref<24x18x18xf32, #tpu.memory_space<vmem>>, vector<1x18x18xf32>,
    %cst_298 = arith.constant dense<0.000000e+00> : vector<18x8xf32>
    %815 = tpu.matmul %811, %800, %cst_298 {dimension_numbers = #tpu.dot_dimension_numbers<[1], [0], [0], [1], [0, 0, 1, 1], [], []>} : vector<18x18xf32>, vector<18x8xf32>, vector<18x8xf32> -> vector<18x8xf32>
    %816 = vector.extract_strided_slice %794 {offsets = [0, 8], sizes = [18, 8], strides = [1, 1]} : vector<18x32xf32> to vector<18x8xf32>
    %817 = vector.extract_strided_slice %795 {offsets = [0, 8], sizes = [18, 8], strides = [1, 1]} : vector<18x64xf32> to vector<18x8xf32>
    %818 = vector.extract_strided_slice %795 {offsets = [0, 40], sizes = [18, 8], strides = [1, 1]} : vector<18x64xf32> to vector<18x8xf32>
    %cst_299 = arith.constant dense<0.000000e+00> : vector<18x18xf32>
    %819 = tpu.matmul %816, %817, %cst_299 {dimension_numbers = #tpu.dot_dimension_numbers<[1], [1], [0], [0], [0, 0, 1, 0], [], []>} : vector<18x8xf32>, vector<18x8xf32>, vector<18x18xf32> -> vector<18x18xf32>
    %820 = arith.addf %819, %5 : vector<18x18xf32>
    %cst_300 = arith.constant dense<0xFF800000> : vector<18xf32>
    %821 = vector.multi_reduction <maximumf>, %820, %cst_300 [1] : vector<18x18xf32> to vector<18xf32>
    %822 = vector.shape_cast %821 : vector<18xf32> to vector<18x1xf32>
    %823 = vector.broadcast %822 : vector<18x1xf32> to vector<18x18xf32>
    %824 = arith.subf %820, %823 : vector<18x18xf32>
    %825 = math.exp %824 : vector<18x18xf32>
    %cst_301 = arith.constant dense<0.000000e+00> : vector<18xf32>
    %826 = vector.multi_reduction <add>, %825, %cst_301 [1] : vector<18x18xf32> to vector<18xf32>
    %827 = vector.shape_cast %826 : vector<18xf32> to vector<18x1xf32>
    %828 = vector.broadcast %827 : vector<18x1xf32> to vector<18x18xf32>
    %829 = arith.divf %825, %828 : vector<18x18xf32>
    %c21 = arith.constant 21 : index
    %c0_302 = arith.constant 0 : index
    %c0_303 = arith.constant 0 : index
    %830 = vector.load %arg6[%c21, %c0_302, %c0_303] : memref<24x18x18xf32, #tpu.memory_space<vmem>>, vector<1x18x18xf32>
    %831 = vector.shape_cast %830 : vector<1x18x18xf32> to vector<18x18xf32>
    %832 = vector.shape_cast %829 : vector<18x18xf32> to vector<1x18x18xf32>
    tpu.vector_store %arg6[%c21, %c0_302, %c0_303], %832 {strides = array<i32>} : memref<24x18x18xf32, #tpu.memory_space<vmem>>, vector<1x18x18xf32>,
    %cst_304 = arith.constant dense<0.000000e+00> : vector<18x8xf32>
    %833 = tpu.matmul %829, %818, %cst_304 {dimension_numbers = #tpu.dot_dimension_numbers<[1], [0], [0], [1], [0, 0, 1, 1], [], []>} : vector<18x18xf32>, vector<18x8xf32>, vector<18x8xf32> -> vector<18x8xf32>
    %834 = vector.extract_strided_slice %794 {offsets = [0, 16], sizes = [18, 8], strides = [1, 1]} : vector<18x32xf32> to vector<18x8xf32>
    %835 = vector.extract_strided_slice %795 {offsets = [0, 16], sizes = [18, 8], strides = [1, 1]} : vector<18x64xf32> to vector<18x8xf32>
    %836 = vector.extract_strided_slice %795 {offsets = [0, 48], sizes = [18, 8], strides = [1, 1]} : vector<18x64xf32> to vector<18x8xf32>
    %cst_305 = arith.constant dense<0.000000e+00> : vector<18x18xf32>
    %837 = tpu.matmul %834, %835, %cst_305 {dimension_numbers = #tpu.dot_dimension_numbers<[1], [1], [0], [0], [0, 0, 1, 0], [], []>} : vector<18x8xf32>, vector<18x8xf32>, vector<18x18xf32> -> vector<18x18xf32>
    %838 = arith.addf %837, %5 : vector<18x18xf32>
    %cst_306 = arith.constant dense<0xFF800000> : vector<18xf32>
    %839 = vector.multi_reduction <maximumf>, %838, %cst_306 [1] : vector<18x18xf32> to vector<18xf32>
    %840 = vector.shape_cast %839 : vector<18xf32> to vector<18x1xf32>
    %841 = vector.broadcast %840 : vector<18x1xf32> to vector<18x18xf32>
    %842 = arith.subf %838, %841 : vector<18x18xf32>
    %843 = math.exp %842 : vector<18x18xf32>
    %cst_307 = arith.constant dense<0.000000e+00> : vector<18xf32>
    %844 = vector.multi_reduction <add>, %843, %cst_307 [1] : vector<18x18xf32> to vector<18xf32>
    %845 = vector.shape_cast %844 : vector<18xf32> to vector<18x1xf32>
    %846 = vector.broadcast %845 : vector<18x1xf32> to vector<18x18xf32>
    %847 = arith.divf %843, %846 : vector<18x18xf32>
    %c22 = arith.constant 22 : index
    %c0_308 = arith.constant 0 : index
    %c0_309 = arith.constant 0 : index
    %848 = vector.load %arg6[%c22, %c0_308, %c0_309] : memref<24x18x18xf32, #tpu.memory_space<vmem>>, vector<1x18x18xf32>
    %849 = vector.shape_cast %848 : vector<1x18x18xf32> to vector<18x18xf32>
    %850 = vector.shape_cast %847 : vector<18x18xf32> to vector<1x18x18xf32>
    tpu.vector_store %arg6[%c22, %c0_308, %c0_309], %850 {strides = array<i32>} : memref<24x18x18xf32, #tpu.memory_space<vmem>>, vector<1x18x18xf32>,
    %cst_310 = arith.constant dense<0.000000e+00> : vector<18x8xf32>
    %851 = tpu.matmul %847, %836, %cst_310 {dimension_numbers = #tpu.dot_dimension_numbers<[1], [0], [0], [1], [0, 0, 1, 1], [], []>} : vector<18x18xf32>, vector<18x8xf32>, vector<18x8xf32> -> vector<18x8xf32>
    %852 = vector.extract_strided_slice %794 {offsets = [0, 24], sizes = [18, 8], strides = [1, 1]} : vector<18x32xf32> to vector<18x8xf32>
    %853 = vector.extract_strided_slice %795 {offsets = [0, 24], sizes = [18, 8], strides = [1, 1]} : vector<18x64xf32> to vector<18x8xf32>
    %854 = vector.extract_strided_slice %795 {offsets = [0, 56], sizes = [18, 8], strides = [1, 1]} : vector<18x64xf32> to vector<18x8xf32>
    %cst_311 = arith.constant dense<0.000000e+00> : vector<18x18xf32>
    %855 = tpu.matmul %852, %853, %cst_311 {dimension_numbers = #tpu.dot_dimension_numbers<[1], [1], [0], [0], [0, 0, 1, 0], [], []>} : vector<18x8xf32>, vector<18x8xf32>, vector<18x18xf32> -> vector<18x18xf32>
    %856 = arith.addf %855, %5 : vector<18x18xf32>
    %cst_312 = arith.constant dense<0xFF800000> : vector<18xf32>
    %857 = vector.multi_reduction <maximumf>, %856, %cst_312 [1] : vector<18x18xf32> to vector<18xf32>
    %858 = vector.shape_cast %857 : vector<18xf32> to vector<18x1xf32>
    %859 = vector.broadcast %858 : vector<18x1xf32> to vector<18x18xf32>
    %860 = arith.subf %856, %859 : vector<18x18xf32>
    %861 = math.exp %860 : vector<18x18xf32>
    %cst_313 = arith.constant dense<0.000000e+00> : vector<18xf32>
    %862 = vector.multi_reduction <add>, %861, %cst_313 [1] : vector<18x18xf32> to vector<18xf32>
    %863 = vector.shape_cast %862 : vector<18xf32> to vector<18x1xf32>
    %864 = vector.broadcast %863 : vector<18x1xf32> to vector<18x18xf32>
    %865 = arith.divf %861, %864 : vector<18x18xf32>
    %c23 = arith.constant 23 : index
    %c0_314 = arith.constant 0 : index
    %c0_315 = arith.constant 0 : index
    %866 = vector.load %arg6[%c23, %c0_314, %c0_315] : memref<24x18x18xf32, #tpu.memory_space<vmem>>, vector<1x18x18xf32>
    %867 = vector.shape_cast %866 : vector<1x18x18xf32> to vector<18x18xf32>
    %868 = vector.shape_cast %865 : vector<18x18xf32> to vector<1x18x18xf32>
    tpu.vector_store %arg6[%c23, %c0_314, %c0_315], %868 {strides = array<i32>} : memref<24x18x18xf32, #tpu.memory_space<vmem>>, vector<1x18x18xf32>,
    %cst_316 = arith.constant dense<0.000000e+00> : vector<18x8xf32>
    %869 = tpu.matmul %865, %854, %cst_316 {dimension_numbers = #tpu.dot_dimension_numbers<[1], [0], [0], [1], [0, 0, 1, 1], [], []>} : vector<18x18xf32>, vector<18x8xf32>, vector<18x8xf32> -> vector<18x8xf32>
    %870 = tpu.concatenate %815, %833, %851, %869 in 1 : vector<18x8xf32>, vector<18x8xf32>, vector<18x8xf32>, vector<18x8xf32> -> vector<18x32xf32>
    %cst_317 = arith.constant dense<0.000000e+00> : vector<18x32xf32>
    %871 = tpu.matmul %870, %796, %cst_317 {dimension_numbers = #tpu.dot_dimension_numbers<[1], [0], [0], [1], [0, 0, 1, 1], [], []>} : vector<18x32xf32>, vector<32x32xf32>, vector<18x32xf32> -> vector<18x32xf32>
    %872 = vector.broadcast %797 : vector<1x32xf32> to vector<18x32xf32>
    %873 = arith.addf %871, %872 : vector<18x32xf32>
    %874 = arith.addf %789, %873 : vector<18x32xf32>
    %c984 = arith.constant 984 : index
    %c0_318 = arith.constant 0 : index
    %875 = vector.load %arg1[%c984, %c0_318] : memref<1128x128xf32, #tpu.memory_space<vmem>>, vector<1x32xf32>
    %c992 = arith.constant 992 : index
    %c0_319 = arith.constant 0 : index
    %876 = vector.load %arg1[%c992, %c0_319] : memref<1128x128xf32, #tpu.memory_space<vmem>>, vector<1x32xf32>
    %cst_320 = arith.constant dense<0.000000e+00> : vector<18xf32>
    %877 = vector.multi_reduction <add>, %874, %cst_320 [1] : vector<18x32xf32> to vector<18xf32>
    %878 = vector.shape_cast %877 : vector<18xf32> to vector<18x1xf32>
    %cst_321 = arith.constant 3.200000e+01 : f32
    %879 = vector.broadcast %cst_321 : f32 to vector<18x1xf32>
    %880 = arith.divf %878, %879 : vector<18x1xf32>
    %881 = vector.broadcast %880 : vector<18x1xf32> to vector<18x32xf32>
    %882 = arith.subf %874, %881 : vector<18x32xf32>
    %883 = arith.mulf %882, %882 : vector<18x32xf32>
    %cst_322 = arith.constant dense<0.000000e+00> : vector<18xf32>
    %884 = vector.multi_reduction <add>, %883, %cst_322 [1] : vector<18x32xf32> to vector<18xf32>
    %885 = vector.shape_cast %884 : vector<18xf32> to vector<18x1xf32>
    %cst_323 = arith.constant 3.200000e+01 : f32
    %886 = vector.broadcast %cst_323 : f32 to vector<18x1xf32>
    %887 = arith.divf %885, %886 : vector<18x1xf32>
    %888 = vector.broadcast %880 : vector<18x1xf32> to vector<18x32xf32>
    %889 = arith.subf %874, %888 : vector<18x32xf32>
    %cst_324 = arith.constant 9.99999996E-13 : f32
    %890 = vector.broadcast %cst_324 : f32 to vector<18x1xf32>
    %891 = arith.addf %887, %890 : vector<18x1xf32>
    %892 = math.rsqrt %891 : vector<18x1xf32>
    %893 = vector.broadcast %892 : vector<18x1xf32> to vector<18x32xf32>
    %894 = arith.mulf %889, %893 : vector<18x32xf32>
    %895 = vector.broadcast %875 : vector<1x32xf32> to vector<18x32xf32>
    %896 = arith.mulf %894, %895 : vector<18x32xf32>
    %897 = vector.broadcast %876 : vector<1x32xf32> to vector<18x32xf32>
    %898 = arith.addf %896, %897 : vector<18x32xf32>
    %c1000 = arith.constant 1000 : index
    %c0_325 = arith.constant 0 : index
    %899 = vector.load %arg1[%c1000, %c0_325] : memref<1128x128xf32, #tpu.memory_space<vmem>>, vector<32x64xf32>
    %c1032 = arith.constant 1032 : index
    %c0_326 = arith.constant 0 : index
    %900 = vector.load %arg1[%c1032, %c0_326] : memref<1128x128xf32, #tpu.memory_space<vmem>>, vector<1x64xf32>
    %c1040 = arith.constant 1040 : index
    %c0_327 = arith.constant 0 : index
    %901 = vector.load %arg1[%c1040, %c0_327] : memref<1128x128xf32, #tpu.memory_space<vmem>>, vector<64x32xf32>
    %c1104 = arith.constant 1104 : index
    %c0_328 = arith.constant 0 : index
    %902 = vector.load %arg1[%c1104, %c0_328] : memref<1128x128xf32, #tpu.memory_space<vmem>>, vector<1x32xf32>
    %cst_329 = arith.constant dense<0.000000e+00> : vector<18x64xf32>
    %903 = tpu.matmul %898, %899, %cst_329 {dimension_numbers = #tpu.dot_dimension_numbers<[1], [0], [0], [1], [0, 0, 1, 1], [], []>} : vector<18x32xf32>, vector<32x64xf32>, vector<18x64xf32> -> vector<18x64xf32>
    %904 = vector.broadcast %900 : vector<1x64xf32> to vector<18x64xf32>
    %905 = arith.addf %903, %904 : vector<18x64xf32>
    %cst_330 = arith.constant 5.000000e-01 : f32
    %906 = vector.broadcast %cst_330 : f32 to vector<18x64xf32>
    %907 = arith.mulf %906, %905 : vector<18x64xf32>
    %cst_331 = arith.constant 0.707106769 : f32
    %908 = vector.broadcast %cst_331 : f32 to vector<18x64xf32>
    %909 = arith.mulf %905, %908 : vector<18x64xf32>
    %cst_332 = arith.constant 0.000000e+00 : f32
    %910 = vector.broadcast %cst_332 : f32 to vector<18x64xf32>
    %911 = arith.cmpf oge, %909, %910 : vector<18x64xf32>
    %cst_333 = arith.constant 1.000000e+00 : f32
    %cst_334 = arith.constant -1.000000e+00 : f32
    %912 = vector.broadcast %cst_333 : f32 to vector<18x64xf32>
    %913 = vector.broadcast %cst_334 : f32 to vector<18x64xf32>
    %914 = arith.select %911, %912, %913 : vector<18x64xi1>, vector<18x64xf32>
    %915 = math.absf %909 : vector<18x64xf32>
    %cst_335 = arith.constant 0.327591091 : f32
    %916 = vector.broadcast %cst_335 : f32 to vector<18x64xf32>
    %917 = arith.mulf %916, %915 : vector<18x64xf32>
    %cst_336 = arith.constant 1.000000e+00 : f32
    %918 = vector.broadcast %cst_336 : f32 to vector<18x64xf32>
    %919 = arith.addf %918, %917 : vector<18x64xf32>
    %cst_337 = arith.constant 1.000000e+00 : f32
    %920 = vector.broadcast %cst_337 : f32 to vector<18x64xf32>
    %921 = arith.divf %920, %919 : vector<18x64xf32>
    %cst_338 = arith.constant 1.06140542 : f32
    %922 = vector.broadcast %cst_338 : f32 to vector<18x64xf32>
    %923 = arith.mulf %922, %921 : vector<18x64xf32>
    %cst_339 = arith.constant -1.45315206 : f32
    %924 = vector.broadcast %cst_339 : f32 to vector<18x64xf32>
    %925 = arith.addf %923, %924 : vector<18x64xf32>
    %926 = arith.mulf %925, %921 : vector<18x64xf32>
    %cst_340 = arith.constant 1.42141378 : f32
    %927 = vector.broadcast %cst_340 : f32 to vector<18x64xf32>
    %928 = arith.addf %926, %927 : vector<18x64xf32>
    %929 = arith.mulf %928, %921 : vector<18x64xf32>
    %cst_341 = arith.constant -0.284496725 : f32
    %930 = vector.broadcast %cst_341 : f32 to vector<18x64xf32>
    %931 = arith.addf %929, %930 : vector<18x64xf32>
    %932 = arith.mulf %931, %921 : vector<18x64xf32>
    %cst_342 = arith.constant 0.254829586 : f32
    %933 = vector.broadcast %cst_342 : f32 to vector<18x64xf32>
    %934 = arith.addf %932, %933 : vector<18x64xf32>
    %935 = arith.mulf %934, %921 : vector<18x64xf32>
    %cst_343 = arith.constant 0.000000e+00 : f32
    %936 = vector.broadcast %cst_343 : f32 to vector<18x64xf32>
    %937 = arith.subf %936, %915 : vector<18x64xf32>
    %938 = arith.mulf %937, %915 : vector<18x64xf32>
    %939 = math.exp %938 : vector<18x64xf32>
    %940 = arith.mulf %935, %939 : vector<18x64xf32>
    %cst_344 = arith.constant 1.000000e+00 : f32
    %941 = vector.broadcast %cst_344 : f32 to vector<18x64xf32>
    %942 = arith.subf %941, %940 : vector<18x64xf32>
    %943 = arith.mulf %914, %942 : vector<18x64xf32>
    %cst_345 = arith.constant 1.000000e+00 : f32
    %944 = vector.broadcast %cst_345 : f32 to vector<18x64xf32>
    %945 = arith.addf %944, %943 : vector<18x64xf32>
    %946 = arith.mulf %907, %945 : vector<18x64xf32>
    %cst_346 = arith.constant dense<0.000000e+00> : vector<18x32xf32>
    %947 = tpu.matmul %946, %901, %cst_346 {dimension_numbers = #tpu.dot_dimension_numbers<[1], [0], [0], [1], [0, 0, 1, 1], [], []>} : vector<18x64xf32>, vector<64x32xf32>, vector<18x32xf32> -> vector<18x32xf32>
    %948 = vector.broadcast %902 : vector<1x32xf32> to vector<18x32xf32>
    %949 = arith.addf %947, %948 : vector<18x32xf32>
    %950 = arith.addf %898, %949 : vector<18x32xf32>
    %c1112 = arith.constant 1112 : index
    %c0_347 = arith.constant 0 : index
    %951 = vector.load %arg1[%c1112, %c0_347] : memref<1128x128xf32, #tpu.memory_space<vmem>>, vector<1x32xf32>
    %c1120 = arith.constant 1120 : index
    %c0_348 = arith.constant 0 : index
    %952 = vector.load %arg1[%c1120, %c0_348] : memref<1128x128xf32, #tpu.memory_space<vmem>>, vector<1x32xf32>
    %cst_349 = arith.constant dense<0.000000e+00> : vector<18xf32>
    %953 = vector.multi_reduction <add>, %950, %cst_349 [1] : vector<18x32xf32> to vector<18xf32>
    %954 = vector.shape_cast %953 : vector<18xf32> to vector<18x1xf32>
    %cst_350 = arith.constant 3.200000e+01 : f32
    %955 = vector.broadcast %cst_350 : f32 to vector<18x1xf32>
    %956 = arith.divf %954, %955 : vector<18x1xf32>
    %957 = vector.broadcast %956 : vector<18x1xf32> to vector<18x32xf32>
    %958 = arith.subf %950, %957 : vector<18x32xf32>
    %959 = arith.mulf %958, %958 : vector<18x32xf32>
    %cst_351 = arith.constant dense<0.000000e+00> : vector<18xf32>
    %960 = vector.multi_reduction <add>, %959, %cst_351 [1] : vector<18x32xf32> to vector<18xf32>
    %961 = vector.shape_cast %960 : vector<18xf32> to vector<18x1xf32>
    %cst_352 = arith.constant 3.200000e+01 : f32
    %962 = vector.broadcast %cst_352 : f32 to vector<18x1xf32>
    %963 = arith.divf %961, %962 : vector<18x1xf32>
    %964 = vector.broadcast %956 : vector<18x1xf32> to vector<18x32xf32>
    %965 = arith.subf %950, %964 : vector<18x32xf32>
    %cst_353 = arith.constant 9.99999996E-13 : f32
    %966 = vector.broadcast %cst_353 : f32 to vector<18x1xf32>
    %967 = arith.addf %963, %966 : vector<18x1xf32>
    %968 = math.rsqrt %967 : vector<18x1xf32>
    %969 = vector.broadcast %968 : vector<18x1xf32> to vector<18x32xf32>
    %970 = arith.mulf %965, %969 : vector<18x32xf32>
    %971 = vector.broadcast %951 : vector<1x32xf32> to vector<18x32xf32>
    %972 = arith.mulf %970, %971 : vector<18x32xf32>
    %973 = vector.broadcast %952 : vector<1x32xf32> to vector<18x32xf32>
    %974 = arith.addf %972, %973 : vector<18x32xf32>
    %c0_354 = arith.constant 0 : index
    %c0_355 = arith.constant 0 : index
    %975 = vector.load %arg5[%c0_354, %c0_355] : memref<18x32xf32, #tpu.memory_space<vmem>>, vector<18x32xf32>
    tpu.vector_store %arg5[%c0_354, %c0_355], %974 {strides = array<i32>} : memref<18x32xf32, #tpu.memory_space<vmem>>, vector<18x32xf32>,
    return
  }
  func.func @transform_0(%arg0: i32) -> (i32, i32) {
    %c0_i32 = arith.constant 0 : i32
    %c0_i32_0 = arith.constant 0 : i32
    %c0_i32_1 = arith.constant 0 : i32
    return %c0_i32, %c0_i32_0 : i32, i32
  }
  func.func @transform_1(%arg0: i32) -> (i32, i32) {
    %c0_i32 = arith.constant 0 : i32
    %c0_i32_0 = arith.constant 0 : i32
    %c0_i32_1 = arith.constant 0 : i32
    return %c0_i32, %c0_i32_0 : i32, i32
  }
  func.func @transform_2(%arg0: i32) -> (i32, i32) {
    %c0_i32 = arith.constant 0 : i32
    %c0_i32_0 = arith.constant 0 : i32
    %c0_i32_1 = arith.constant 0 : i32
    return %c0_i32, %c0_i32_0 : i32, i32
  }
  func.func @transform_3(%arg0: i32) -> (i32, i32, i32) {
    %c0_i32 = arith.constant 0 : i32
    %c0_i32_0 = arith.constant 0 : i32
    %c0_i32_1 = arith.constant 0 : i32
    %c0_i32_2 = arith.constant 0 : i32
    return %c0_i32, %c0_i32_0, %c0_i32_1 : i32, i32, i32
  }
  func.func @transform_4(%arg0: i32) -> (i32, i32) {
    %c0_i32 = arith.constant 0 : i32
    %c0_i32_0 = arith.constant 0 : i32
    %c0_i32_1 = arith.constant 0 : i32
    return %c0_i32, %c0_i32_0 : i32, i32
  }
  func.func @transform_5(%arg0: i32) -> (i32, i32, i32) {
    %c0_i32 = arith.constant 0 : i32
    %c0_i32_0 = arith.constant 0 : i32
    %c0_i32_1 = arith.constant 0 : i32
    %c0_i32_2 = arith.constant 0 : i32
    return %c0_i32, %c0_i32_0, %c0_i32_1 : i32, i32, i32
  }
}

</mosaic_0001>

<llo_original>
// kernel: transformer_forward.1
$region0: #{transformer_forward.1}
  #allocation0 [shape = 'u32[]', space=smem, size = 0x4, offset = 0x4, fixed_abs, tag = 'smem constant byte address 0x4 - core index']
  #allocation1 [shape = 'u32[72,128]{1,0:T(1,128)}', space=vmem, size = 0x9000, scoped, tag = 'internal scratch']
  %s0 = inlined_call_operand.hbm [shape: f32[1128,128], index: 0, kind: input, shape index: {}]
  %s1 = inlined_call_operand.vmem [shape: f32[18,32], index: 1, kind: input, shape index: {}]
  %s2 = inlined_call_operand.vmem [shape: f32[18,32], index: 2, kind: input, shape index: {}]
  %s3 = inlined_call_operand.vmem [shape: f32[3,18,18], index: 3, kind: input, shape index: {}]
  %s4 = inlined_call_operand.vmem [shape: f32[18,32], index: 4, kind: output, shape index: {0}]
  %s5 = inlined_call_operand.vmem [shape: f32[24,18,18], index: 5, kind: output, shape index: {1}]
  %6 = xla_tuple %s4, %s5
  %s7 = sld [smem:[#allocation0]]
  $region38: #{transformer_forward.1} parent=0
    _
  %s9 = ssub.s32 1, %s7
  %s10 = scalar_select 0, %s9, %s7
  $region1: #{transformer_forward.1} parent=0
    #allocation2 [shape = 'u8[577536]{0}', space=vmem, size = 0x8d000, scoped, tag = 'input window, operand 0, single buffered']
    #allocation3 [shape = 's32[1]{0}', space=sflag, size = 0x4, scoped, tag = 'scoped memory for transformer_forward.1']
    %11 = vsyncpa [#allocation3], 0
    // Predicated region
    $region2: #{transformer_forward.1} parent=1 // pred_check
      _
    $region3: #{transformer_forward.1} parent=1 // pred_check_branch
      %13 = sbr.rel (0) target = $region5
    $region4: #{transformer_forward.1} parent=1 // pred_region
      %15 = vsyncadd [#allocation3], 0
      %s16 = sshll.u32 %s0, 4
      %s17 = int_to_ptr.hbm [resolvable:$true] %s16
      %s18 = sshll.u32 [#allocation2], 4
      %s19 = int_to_ptr.vmem [resolvable:$true] %s18
      %24 = dma.hbm_to_vmem [thread:$0]  %s17, 18048, %s19, [#allocation3], 128, 128, 8
    $region5: #{transformer_forward.1} parent=1 // pred_fallthru
      _
    // Predicated region
    $region6: #{transformer_forward.1} parent=1 // pred_check
      _
    $region7: #{transformer_forward.1} parent=1 // pred_check_branch
      %26 = sbr.rel (0) target = $region9
    $region8: #{transformer_forward.1} parent=1 // pred_region
      _
    $region9: #{transformer_forward.1} parent=1 // pred_fallthru
      _
    // Predicated region
    $region10: #{transformer_forward.1} parent=1 // pred_check
      _
    $region11: #{transformer_forward.1} parent=1 // pred_check_branch
      %28 = sbr.rel (0) target = $region13
    $region12: #{transformer_forward.1} parent=1 // pred_region
      _
    $region13: #{transformer_forward.1} parent=1 // pred_fallthru
      _
    // Predicated region
    $region14: #{transformer_forward.1} parent=1 // pred_check
      _
    $region15: #{transformer_forward.1} parent=1 // pred_check_branch
      %30 = sbr.rel (0) target = $region17
    $region16: #{transformer_forward.1} parent=1 // pred_region
      _
    $region17: #{transformer_forward.1} parent=1 // pred_fallthru
      _
    // Predicated region
    $region18: #{transformer_forward.1} parent=1 // pred_check
      _
    $region19: #{transformer_forward.1} parent=1 // pred_check_branch
      %32 = sbr.rel (0) target = $region21
    $region20: #{transformer_forward.1} parent=1 // pred_region
      %34 = dma.done [#allocation3], 18048
    $region21: #{transformer_forward.1} parent=1 // pred_fallthru
      _
    %v35 = vld [vmem:[%s3] sm:$0xff]
    %v36 = vld [vmem:[%s3 + $0x8] sm:$0xff]
    %v37 = vld [vmem:[%s3 + $0x10] sm:$0x3]
    %s38 = scalar_lea.vmem %s3, 24
    %v39 = vld [vmem:[%s38] sm:$0xff]
    %v40 = vld [vmem:[%s38 + $0x8] sm:$0xff]
    %v41 = vld [vmem:[%s38 + $0x10] sm:$0x3]
    %s42 = scalar_lea.vmem %s3, 48
    %v43 = vld [vmem:[%s42] sm:$0xff]
    %v44 = vld [vmem:[%s42 + $0x8] sm:$0xff]
    %v45 = vld [vmem:[%s42 + $0x10] sm:$0x3]
    %v46 = vld [vmem:[%s1] sm:$0xff]
    %v47 = vld [vmem:[%s1 + $0x8] sm:$0xff]
    %v48 = vld [vmem:[%s1 + $0x10] sm:$0x3]
    %v49 = vld [vmem:[#allocation2] sm:$0xff]
    %v50 = vld [vmem:[#allocation2 + $0x8] sm:$0xff]
    %v51 = vld [vmem:[#allocation2 + $0x10] sm:$0xff]
    %v52 = vld [vmem:[#allocation2 + $0x18] sm:$0xff]
    %v53 = vld [vmem:[#allocation2 + $0x20] sm:$0x1]
    %v54 = vperm.slane %v53, 0
    %vm55 = vcmask 261120
    %v57 = vsel %vm55, %v46, 0
    %v60 = vsel %vm55, %v47, 0
    %v63 = vsel %vm55, %v48, 0
    %65 = vmatpush.msra.mxu0 0.0
    %66 = vmatpush.msra.mxu0 0.0
    %67 = vmatpush.msra.mxu0 0.0
    %68 = vmatpush.msra.mxu0 0.0
    %69 = vmatpush.msra.mxu0 0.0
    %70 = vmatpush.msra.mxu0 0.0
    %71 = vmatpush.msra.mxu0 0.0
    %72 = vmatpush.msra.mxu0 0.0
    %73 = vmatpush.msra.mxu0 0.0
    %74 = vmatpush.msra.mxu0 0.0
    %75 = vmatpush.msra.mxu0 0.0
    %76 = vmatpush.msra.mxu0 0.0
    %77 = vmatpush.msra.mxu0 %v52
    %78 = vmatpush.msra.mxu0 %v51
    %79 = vmatpush.msra.mxu0 %v50
    %80 = vmatpush.msra.mxu0 %v49
    %81 = vmatmul.f32.gmra.mxu0 %v57
    %v82 = vpop.f32.mrf.mxu0
    %v83 = vadd.f32 %v54, %v82
    %84 = vmatmul.f32.gmra.mxu0 %v60
    %v85 = vpop.f32.mrf.mxu0
    %v86 = vadd.f32 %v54, %v85
    %87 = vmatmul.f32.gmra.mxu0 %v63
    %v88 = vpop.f32.mrf.mxu0
    %v89 = vadd.f32 %v54, %v88
    %90 = vdwg.mxu0
    %v91 = vld [vmem:[#allocation2 + $0x28] sm:$0xff]
    %v92 = vld [vmem:[#allocation2 + $0x30] sm:$0xff]
    %v93 = vld [vmem:[#allocation2 + $0x38] sm:$0xff]
    %v94 = vld [vmem:[#allocation2 + $0x40] sm:$0xff]
    %v95 = vld [vmem:[#allocation2 + $0x48] sm:$0x1]
    %99 = vrot.lane.b32.xlu0 %v83, 96
    %v100 = vpop.permute.xlu0 %99
    %101 = vrot.lane.b32.xlu0 %v86, 96
    %v102 = vpop.permute.xlu0 %101
    %103 = vrot.lane.b32.xlu0 %v89, 96
    %v104 = vpop.permute.xlu0 %103
    %vm105 = vcmask 64512
    %v106 = vsel %vm105, %v83, 0
    %v108 = vsel %vm105, %v86, 0
    %v110 = vsel %vm105, %v89, 0
    %v112 = vsel %vm105, %v100, 0
    %v114 = vsel %vm105, %v102, 0
    %v116 = vsel %vm105, %v104, 0
    %118 = vmatpush.xpose.msra.mxu0 0.0
    %119 = vmatpush.xpose.msra.mxu0 0.0
    %120 = vmatpush.xpose.msra.mxu0 0.0
    %121 = vmatpush.xpose.msra.mxu0 0.0
    %122 = vmatpush.xpose.msra.mxu0 0.0
    %123 = vmatpush.xpose.msra.mxu0 0.0
    %124 = vmatpush.xpose.msra.mxu0 0.0
    %125 = vmatpush.xpose.msra.mxu0 0.0
    %126 = vmatpush.xpose.msra.mxu0 0.0
    %127 = vmatpush.xpose.msra.mxu0 0.0
    %128 = vmatpush.xpose.msra.mxu0 0.0
    %129 = vmatpush.xpose.msra.mxu0 0.0
    %130 = vmatpush.xpose.msra.mxu0 0.0
    %131 = vmatpush.xpose.msra.mxu0 %v116
    %132 = vmatpush.xpose.msra.mxu0 %v114
    %133 = vmatpush.xpose.msra.mxu0 %v112
    %134 = vmatmul.f32.gmra.mxu0 %v106
    %v135 = vpop.f32.mrf.mxu0
    %v136 = vadd.f32 %v35, %v135
    %137 = vmatmul.f32.gmra.mxu0 %v108
    %v138 = vpop.f32.mrf.mxu0
    %v139 = vadd.f32 %v36, %v138
    %140 = vmatmul.f32.gmra.mxu0 %v110
    %v141 = vpop.f32.mrf.mxu0
    %v142 = vadd.f32 %v37, %v141
    %143 = vdwg.mxu0
    %vm144 = vcmask 146432
    %v145 = vsel %vm144, %v136, -inf
    %146 = vmax.xlane.f32.xlu0 %v145
    %v147 = vpop.xlane.xlu0 %146
    %v148 = vsel %vm144, %v139, -inf
    %149 = vmax.xlane.f32.xlu0 %v148
    %v150 = vpop.xlane.xlu0 %149
    %vm151 = vcmask 140288
    %v152 = vsel %vm151, %v142, -inf
    %153 = vmax.xlane.f32.xlu0 %v152
    %v154 = vpop.xlane.xlu0 %153
    %v155 = vsub.f32 %v136, %v147
    %v156 = vsub.f32 %v139, %v150
    %v157 = vsub.f32 %v142, %v154
    %v158 = vmul.f32 %v155, 1.442695
    %v159 = vpow.pop %v158
    %v160 = vmul.f32 %v156, 1.442695
    %v161 = vpow.pop %v160
    %v162 = vmul.f32 %v157, 1.442695
    %v163 = vpow.pop %v162
    %v164 = vsel %vm144, %v159, 0.0
    %165 = vadd.xlane.f32.xlu0 %v164
    %v166 = vpop.xlane.xlu0 %165
    %v167 = vsel %vm144, %v161, 0.0
    %168 = vadd.xlane.f32.xlu0 %v167
    %v169 = vpop.xlane.xlu0 %168
    %v170 = vsel %vm151, %v163, 0.0
    %171 = vadd.xlane.f32.xlu0 %v170
    %v172 = vpop.xlane.xlu0 %171
    %v173 = vrcp.pop %v166
    %v174 = vmul.f32 %v166, %v173
    %v175 = vsub.f32 1.0, %v174
    %v176 = vmul.f32 %v173, %v175
    %v177 = vadd.f32 %v173, %v176
    %vm178 = vweird.f32 %v166
    %vm179 = vweird.f32 %v173
    %vm180 = vmor %vm178, %vm179
    %v181 = vsel %vm180, %v173, %v177
    %v182 = vand.u32 2147483647, %v166
    %vm183 = vcmp.eq.f32.partialorder %v182, 8.507059e+37
    %v184 = vand.u32 %v166, 2147483648
    %v185 = vor.u32 1.1754944e-38, %v184
    %v186 = vsel %vm183, %v185, %v181
    %v187 = vmul.f32 %v159, %v186
    %v188 = vrcp.pop %v169
    %v189 = vmul.f32 %v169, %v188
    %v190 = vsub.f32 1.0, %v189
    %v191 = vmul.f32 %v188, %v190
    %v192 = vadd.f32 %v188, %v191
    %vm193 = vweird.f32 %v169
    %vm194 = vweird.f32 %v188
    %vm195 = vmor %vm193, %vm194
    %v196 = vsel %vm195, %v188, %v192
    %v197 = vand.u32 2147483647, %v169
    %vm198 = vcmp.eq.f32.partialorder %v197, 8.507059e+37
    %v199 = vand.u32 %v169, 2147483648
    %v200 = vor.u32 1.1754944e-38, %v199
    %v201 = vsel %vm198, %v200, %v196
    %v202 = vmul.f32 %v161, %v201
    %v203 = vrcp.pop %v172
    %v204 = vmul.f32 %v172, %v203
    %v205 = vsub.f32 1.0, %v204
    %v206 = vmul.f32 %v203, %v205
    %v207 = vadd.f32 %v203, %v206
    %vm208 = vweird.f32 %v172
    %vm209 = vweird.f32 %v203
    %vm210 = vmor %vm208, %vm209
    %v211 = vsel %vm210, %v203, %v207
    %v212 = vand.u32 2147483647, %v172
    %vm213 = vcmp.eq.f32.partialorder %v212, 8.507059e+37
    %v214 = vand.u32 %v172, 2147483648
    %v215 = vor.u32 1.1754944e-38, %v214
    %v216 = vsel %vm213, %v215, %v211
    %v217 = vmul.f32 %v163, %v216
    %218 = vst.msk [vmem:[%s5] sm:$0xff] %vm144, %v187
    %219 = vst.msk [vmem:[%s5 + $0x8] sm:$0xff] %vm144, %v202
    %220 = vst.msk [vmem:[%s5 + $0x10] sm:$0x3] %vm151, %v217
    %221 = vrot.lane.b32.xlu0 %v83, 64
    %v222 = vpop.permute.xlu0 %221
    %223 = vrot.lane.b32.xlu0 %v86, 64
    %v224 = vpop.permute.xlu0 %223
    %225 = vrot.lane.b32.xlu0 %v89, 64
    %v226 = vpop.permute.xlu0 %225
    %v230 = vsel %vm144, %v187, 0
    %v233 = vsel %vm144, %v202, 0
    %v236 = vsel %vm144, %v217, 0
    %vm238 = vcmask 1041408
    %v239 = vsel %vm238, %v226, 0
    %241 = vmatpush.msra.mxu0 0.0
    %242 = vmatpush.msra.mxu0 0.0
    %243 = vmatpush.msra.mxu0 0.0
    %244 = vmatpush.msra.mxu0 0.0
    %245 = vmatpush.msra.mxu0 0.0
    %246 = vmatpush.msra.mxu0 0.0
    %247 = vmatpush.msra.mxu0 0.0
    %248 = vmatpush.msra.mxu0 0.0
    %249 = vmatpush.msra.mxu0 0.0
    %250 = vmatpush.msra.mxu0 0.0
    %251 = vmatpush.msra.mxu0 0.0
    %252 = vmatpush.msra.mxu0 0.0
    %253 = vmatpush.msra.mxu0 0.0
    %254 = vmatpush.msra.mxu0 %v239
    %255 = vmatpush.msra.mxu0 %v224
    %256 = vmatpush.msra.mxu0 %v222
    %257 = vmatmul.f32.gmra.mxu0 %v230
    %v258 = vpop.f32.mrf.mxu0
    %v259 = vadd.f32 0.0, %v258
    %260 = vmatmul.f32.gmra.mxu0 %v233
    %v261 = vpop.f32.mrf.mxu0
    %v262 = vadd.f32 0.0, %v261
    %263 = vmatmul.f32.gmra.mxu0 %v236
    %v264 = vpop.f32.mrf.mxu0
    %v265 = vadd.f32 0.0, %v264
    %266 = vdwg.mxu0
    %267 = vrot.lane.b32.xlu0 %v83, 120
    %v268 = vpop.permute.xlu0 %267
    %269 = vrot.lane.b32.xlu0 %v86, 120
    %v270 = vpop.permute.xlu0 %269
    %271 = vrot.lane.b32.xlu0 %v89, 120
    %v272 = vpop.permute.xlu0 %271
    %273 = vrot.lane.b32.xlu0 %v83, 88
    %v274 = vpop.permute.xlu0 %273
    %275 = vrot.lane.b32.xlu0 %v86, 88
    %v276 = vpop.permute.xlu0 %275
    %277 = vrot.lane.b32.xlu0 %v89, 88
    %v278 = vpop.permute.xlu0 %277
    %v279 = vsel %vm105, %v268, 0
    %v281 = vsel %vm105, %v270, 0
    %v283 = vsel %vm105, %v272, 0
    %v285 = vsel %vm105, %v274, 0
    %v287 = vsel %vm105, %v276, 0
    %v289 = vsel %vm105, %v278, 0
    %291 = vmatpush.xpose.msra.mxu0 0.0
    %292 = vmatpush.xpose.msra.mxu0 0.0
    %293 = vmatpush.xpose.msra.mxu0 0.0
    %294 = vmatpush.xpose.msra.mxu0 0.0
    %295 = vmatpush.xpose.msra.mxu0 0.0
    %296 = vmatpush.xpose.msra.mxu0 0.0
    %297 = vmatpush.xpose.msra.mxu0 0.0
    %298 = vmatpush.xpose.msra.mxu0 0.0
    %299 = vmatpush.xpose.msra.mxu0 0.0
    %300 = vmatpush.xpose.msra.mxu0 0.0
    %301 = vmatpush.xpose.msra.mxu0 0.0
    %302 = vmatpush.xpose.msra.mxu0 0.0
    %303 = vmatpush.xpose.msra.mxu0 0.0
    %304 = vmatpush.xpose.msra.mxu0 %v289
    %305 = vmatpush.xpose.msra.mxu0 %v287
    %306 = vmatpush.xpose.msra.mxu0 %v285
    %307 = vmatmul.f32.gmra.mxu0 %v279
    %v308 = vpop.f32.mrf.mxu0
    %v309 = vadd.f32 %v35, %v308
    %310 = vmatmul.f32.gmra.mxu0 %v281
    %v311 = vpop.f32.mrf.mxu0
    %v312 = vadd.f32 %v36, %v311
    %313 = vmatmul.f32.gmra.mxu0 %v283
    %v314 = vpop.f32.mrf.mxu0
    %v315 = vadd.f32 %v37, %v314
    %316 = vdwg.mxu0
    %v317 = vsel %vm144, %v309, -inf
    %318 = vmax.xlane.f32.xlu0 %v317
    %v319 = vpop.xlane.xlu0 %318
    %v320 = vsel %vm144, %v312, -inf
    %321 = vmax.xlane.f32.xlu0 %v320
    %v322 = vpop.xlane.xlu0 %321
    %v323 = vsel %vm151, %v315, -inf
    %324 = vmax.xlane.f32.xlu0 %v323
    %v325 = vpop.xlane.xlu0 %324
    %v326 = vsub.f32 %v309, %v319
    %v327 = vsub.f32 %v312, %v322
    %v328 = vsub.f32 %v315, %v325
    %v329 = vmul.f32 %v326, 1.442695
    %v330 = vpow.pop %v329
    %v331 = vmul.f32 %v327, 1.442695
    %v332 = vpow.pop %v331
    %v333 = vmul.f32 %v328, 1.442695
    %v334 = vpow.pop %v333
    %v335 = vsel %vm144, %v330, 0.0
    %336 = vadd.xlane.f32.xlu0 %v335
    %v337 = vpop.xlane.xlu0 %336
    %v338 = vsel %vm144, %v332, 0.0
    %339 = vadd.xlane.f32.xlu0 %v338
    %v340 = vpop.xlane.xlu0 %339
    %v341 = vsel %vm151, %v334, 0.0
    %342 = vadd.xlane.f32.xlu0 %v341
    %v343 = vpop.xlane.xlu0 %342
    %v344 = vrcp.pop %v337
    %v345 = vmul.f32 %v337, %v344
    %v346 = vsub.f32 1.0, %v345
    %v347 = vmul.f32 %v344, %v346
    %v348 = vadd.f32 %v344, %v347
    %vm349 = vweird.f32 %v337
    %vm350 = vweird.f32 %v344
    %vm351 = vmor %vm349, %vm350
    %v352 = vsel %vm351, %v344, %v348
    %v353 = vand.u32 2147483647, %v337
    %vm354 = vcmp.eq.f32.partialorder %v353, 8.507059e+37
    %v355 = vand.u32 %v337, 2147483648
    %v356 = vor.u32 1.1754944e-38, %v355
    %v357 = vsel %vm354, %v356, %v352
    %v358 = vmul.f32 %v330, %v357
    %v359 = vrcp.pop %v340
    %v360 = vmul.f32 %v340, %v359
    %v361 = vsub.f32 1.0, %v360
    %v362 = vmul.f32 %v359, %v361
    %v363 = vadd.f32 %v359, %v362
    %vm364 = vweird.f32 %v340
    %vm365 = vweird.f32 %v359
    %vm366 = vmor %vm364, %vm365
    %v367 = vsel %vm366, %v359, %v363
    %v368 = vand.u32 2147483647, %v340
    %vm369 = vcmp.eq.f32.partialorder %v368, 8.507059e+37
    %v370 = vand.u32 %v340, 2147483648
    %v371 = vor.u32 1.1754944e-38, %v370
    %v372 = vsel %vm369, %v371, %v367
    %v373 = vmul.f32 %v332, %v372
    %v374 = vrcp.pop %v343
    %v375 = vmul.f32 %v343, %v374
    %v376 = vsub.f32 1.0, %v375
    %v377 = vmul.f32 %v374, %v376
    %v378 = vadd.f32 %v374, %v377
    %vm379 = vweird.f32 %v343
    %vm380 = vweird.f32 %v374
    %vm381 = vmor %vm379, %vm380
    %v382 = vsel %vm381, %v374, %v378
    %v383 = vand.u32 2147483647, %v343
    %vm384 = vcmp.eq.f32.partialorder %v383, 8.507059e+37
    %v385 = vand.u32 %v343, 2147483648
    %v386 = vor.u32 1.1754944e-38, %v385
    %v387 = vsel %vm384, %v386, %v382
    %v388 = vmul.f32 %v334, %v387
    %s389 = scalar_lea.vmem %s5, 24
    %390 = vst.msk [vmem:[%s389] sm:$0xff] %vm144, %v358
    %391 = vst.msk [vmem:[%s389 + $0x8] sm:$0xff] %vm144, %v373
    %392 = vst.msk [vmem:[%s389 + $0x10] sm:$0x3] %vm151, %v388
    %393 = vrot.lane.b32.xlu0 %v83, 56
    %v394 = vpop.permute.xlu0 %393
    %395 = vrot.lane.b32.xlu0 %v86, 56
    %v396 = vpop.permute.xlu0 %395
    %397 = vrot.lane.b32.xlu0 %v89, 56
    %v398 = vpop.permute.xlu0 %397
    %v402 = vsel %vm144, %v358, 0
    %v405 = vsel %vm144, %v373, 0
    %v408 = vsel %vm144, %v388, 0
    %v410 = vsel %vm238, %v398, 0
    %412 = vmatpush.msra.mxu0 0.0
    %413 = vmatpush.msra.mxu0 0.0
    %414 = vmatpush.msra.mxu0 0.0
    %415 = vmatpush.msra.mxu0 0.0
    %416 = vmatpush.msra.mxu0 0.0
    %417 = vmatpush.msra.mxu0 0.0
    %418 = vmatpush.msra.mxu0 0.0
    %419 = vmatpush.msra.mxu0 0.0
    %420 = vmatpush.msra.mxu0 0.0
    %421 = vmatpush.msra.mxu0 0.0
    %422 = vmatpush.msra.mxu0 0.0
    %423 = vmatpush.msra.mxu0 0.0
    %424 = vmatpush.msra.mxu0 0.0
    %425 = vmatpush.msra.mxu0 %v410
    %426 = vmatpush.msra.mxu0 %v396
    %427 = vmatpush.msra.mxu0 %v394
    %428 = vmatmul.f32.gmra.mxu0 %v402
    %v429 = vpop.f32.mrf.mxu0
    %v430 = vadd.f32 0.0, %v429
    %431 = vmatmul.f32.gmra.mxu0 %v405
    %v432 = vpop.f32.mrf.mxu0
    %v433 = vadd.f32 0.0, %v432
    %434 = vmatmul.f32.gmra.mxu0 %v408
    %v435 = vpop.f32.mrf.mxu0
    %v436 = vadd.f32 0.0, %v435
    %437 = vdwg.mxu0
    %438 = vrot.lane.b32.xlu0 %v83, 112
    %v439 = vpop.permute.xlu0 %438
    %440 = vrot.lane.b32.xlu0 %v86, 112
    %v441 = vpop.permute.xlu0 %440
    %442 = vrot.lane.b32.xlu0 %v89, 112
    %v443 = vpop.permute.xlu0 %442
    %444 = vrot.lane.b32.xlu0 %v83, 80
    %v445 = vpop.permute.xlu0 %444
    %446 = vrot.lane.b32.xlu0 %v86, 80
    %v447 = vpop.permute.xlu0 %446
    %448 = vrot.lane.b32.xlu0 %v89, 80
    %v449 = vpop.permute.xlu0 %448
    %v450 = vsel %vm105, %v439, 0
    %v452 = vsel %vm105, %v441, 0
    %v454 = vsel %vm105, %v443, 0
    %v456 = vsel %vm105, %v445, 0
    %v458 = vsel %vm105, %v447, 0
    %v460 = vsel %vm105, %v449, 0
    %462 = vmatpush.xpose.msra.mxu0 0.0
    %463 = vmatpush.xpose.msra.mxu0 0.0
    %464 = vmatpush.xpose.msra.mxu0 0.0
    %465 = vmatpush.xpose.msra.mxu0 0.0
    %466 = vmatpush.xpose.msra.mxu0 0.0
    %467 = vmatpush.xpose.msra.mxu0 0.0
    %468 = vmatpush.xpose.msra.mxu0 0.0
    %469 = vmatpush.xpose.msra.mxu0 0.0
    %470 = vmatpush.xpose.msra.mxu0 0.0
    %471 = vmatpush.xpose.msra.mxu0 0.0
    %472 = vmatpush.xpose.msra.mxu0 0.0
    %473 = vmatpush.xpose.msra.mxu0 0.0
    %474 = vmatpush.xpose.msra.mxu0 0.0
    %475 = vmatpush.xpose.msra.mxu0 %v460
    %476 = vmatpush.xpose.msra.mxu0 %v458
    %477 = vmatpush.xpose.msra.mxu0 %v456
    %478 = vmatmul.f32.gmra.mxu0 %v450
    %v479 = vpop.f32.mrf.mxu0
    %v480 = vadd.f32 %v35, %v479
    %481 = vmatmul.f32.gmra.mxu0 %v452
    %v482 = vpop.f32.mrf.mxu0
    %v483 = vadd.f32 %v36, %v482
    %484 = vmatmul.f32.gmra.mxu0 %v454
    %v485 = vpop.f32.mrf.mxu0
    %v486 = vadd.f32 %v37, %v485
    %487 = vdwg.mxu0
    %v488 = vsel %vm144, %v480, -inf
    %489 = vmax.xlane.f32.xlu0 %v488
    %v490 = vpop.xlane.xlu0 %489
    %v491 = vsel %vm144, %v483, -inf
    %492 = vmax.xlane.f32.xlu0 %v491
    %v493 = vpop.xlane.xlu0 %492
    %v494 = vsel %vm151, %v486, -inf
    %495 = vmax.xlane.f32.xlu0 %v494
    %v496 = vpop.xlane.xlu0 %495
    %v497 = vsub.f32 %v480, %v490
    %v498 = vsub.f32 %v483, %v493
    %v499 = vsub.f32 %v486, %v496
    %v500 = vmul.f32 %v497, 1.442695
    %v501 = vpow.pop %v500
    %v502 = vmul.f32 %v498, 1.442695
    %v503 = vpow.pop %v502
    %v504 = vmul.f32 %v499, 1.442695
    %v505 = vpow.pop %v504
    %v506 = vsel %vm144, %v501, 0.0
    %507 = vadd.xlane.f32.xlu0 %v506
    %v508 = vpop.xlane.xlu0 %507
    %v509 = vsel %vm144, %v503, 0.0
    %510 = vadd.xlane.f32.xlu0 %v509
    %v511 = vpop.xlane.xlu0 %510
    %v512 = vsel %vm151, %v505, 0.0
    %513 = vadd.xlane.f32.xlu0 %v512
    %v514 = vpop.xlane.xlu0 %513
    %v515 = vrcp.pop %v508
    %v516 = vmul.f32 %v508, %v515
    %v517 = vsub.f32 1.0, %v516
    %v518 = vmul.f32 %v515, %v517
    %v519 = vadd.f32 %v515, %v518
    %vm520 = vweird.f32 %v508
    %vm521 = vweird.f32 %v515
    %vm522 = vmor %vm520, %vm521
    %v523 = vsel %vm522, %v515, %v519
    %v524 = vand.u32 2147483647, %v508
    %vm525 = vcmp.eq.f32.partialorder %v524, 8.507059e+37
    %v526 = vand.u32 %v508, 2147483648
    %v527 = vor.u32 1.1754944e-38, %v526
    %v528 = vsel %vm525, %v527, %v523
    %v529 = vmul.f32 %v501, %v528
    %v530 = vrcp.pop %v511
    %v531 = vmul.f32 %v511, %v530
    %v532 = vsub.f32 1.0, %v531
    %v533 = vmul.f32 %v530, %v532
    %v534 = vadd.f32 %v530, %v533
    %vm535 = vweird.f32 %v511
    %vm536 = vweird.f32 %v530
    %vm537 = vmor %vm535, %vm536
    %v538 = vsel %vm537, %v530, %v534
    %v539 = vand.u32 2147483647, %v511
    %vm540 = vcmp.eq.f32.partialorder %v539, 8.507059e+37
    %v541 = vand.u32 %v511, 2147483648
    %v542 = vor.u32 1.1754944e-38, %v541
    %v543 = vsel %vm540, %v542, %v538
    %v544 = vmul.f32 %v503, %v543
    %v545 = vrcp.pop %v514
    %v546 = vmul.f32 %v514, %v545
    %v547 = vsub.f32 1.0, %v546
    %v548 = vmul.f32 %v545, %v547
    %v549 = vadd.f32 %v545, %v548
    %vm550 = vweird.f32 %v514
    %vm551 = vweird.f32 %v545
    %vm552 = vmor %vm550, %vm551
    %v553 = vsel %vm552, %v545, %v549
    %v554 = vand.u32 2147483647, %v514
    %vm555 = vcmp.eq.f32.partialorder %v554, 8.507059e+37
    %v556 = vand.u32 %v514, 2147483648
    %v557 = vor.u32 1.1754944e-38, %v556
    %v558 = vsel %vm555, %v557, %v553
    %v559 = vmul.f32 %v505, %v558
    %s560 = scalar_lea.vmem %s5, 48
    %561 = vst.msk [vmem:[%s560] sm:$0xff] %vm144, %v529
    %562 = vst.msk [vmem:[%s560 + $0x8] sm:$0xff] %vm144, %v544
    %563 = vst.msk [vmem:[%s560 + $0x10] sm:$0x3] %vm151, %v559
    %564 = vrot.lane.b32.xlu0 %v83, 48
    %v565 = vpop.permute.xlu0 %564
    %566 = vrot.lane.b32.xlu0 %v86, 48
    %v567 = vpop.permute.xlu0 %566
    %568 = vrot.lane.b32.xlu0 %v89, 48
    %v569 = vpop.permute.xlu0 %568
    %v573 = vsel %vm144, %v529, 0
    %v576 = vsel %vm144, %v544, 0
    %v579 = vsel %vm144, %v559, 0
    %v581 = vsel %vm238, %v569, 0
    %583 = vmatpush.msra.mxu0 0.0
    %584 = vmatpush.msra.mxu0 0.0
    %585 = vmatpush.msra.mxu0 0.0
    %586 = vmatpush.msra.mxu0 0.0
    %587 = vmatpush.msra.mxu0 0.0
    %588 = vmatpush.msra.mxu0 0.0
    %589 = vmatpush.msra.mxu0 0.0
    %590 = vmatpush.msra.mxu0 0.0
    %591 = vmatpush.msra.mxu0 0.0
    %592 = vmatpush.msra.mxu0 0.0
    %593 = vmatpush.msra.mxu0 0.0
    %594 = vmatpush.msra.mxu0 0.0
    %595 = vmatpush.msra.mxu0 0.0
    %596 = vmatpush.msra.mxu0 %v581
    %597 = vmatpush.msra.mxu0 %v567
    %598 = vmatpush.msra.mxu0 %v565
    %599 = vmatmul.f32.gmra.mxu0 %v573
    %v600 = vpop.f32.mrf.mxu0
    %v601 = vadd.f32 0.0, %v600
    %602 = vmatmul.f32.gmra.mxu0 %v576
    %v603 = vpop.f32.mrf.mxu0
    %v604 = vadd.f32 0.0, %v603
    %605 = vmatmul.f32.gmra.mxu0 %v579
    %v606 = vpop.f32.mrf.mxu0
    %v607 = vadd.f32 0.0, %v606
    %608 = vdwg.mxu0
    %609 = vrot.lane.b32.xlu0 %v83, 104
    %v610 = vpop.permute.xlu0 %609
    %611 = vrot.lane.b32.xlu0 %v86, 104
    %v612 = vpop.permute.xlu0 %611
    %613 = vrot.lane.b32.xlu0 %v89, 104
    %v614 = vpop.permute.xlu0 %613
    %615 = vrot.lane.b32.xlu0 %v83, 72
    %v616 = vpop.permute.xlu0 %615
    %617 = vrot.lane.b32.xlu0 %v86, 72
    %v618 = vpop.permute.xlu0 %617
    %619 = vrot.lane.b32.xlu0 %v89, 72
    %v620 = vpop.permute.xlu0 %619
    %v621 = vsel %vm105, %v610, 0
    %v623 = vsel %vm105, %v612, 0
    %v625 = vsel %vm105, %v614, 0
    %v627 = vsel %vm105, %v616, 0
    %v629 = vsel %vm105, %v618, 0
    %v631 = vsel %vm105, %v620, 0
    %633 = vmatpush.xpose.msra.mxu0 0.0
    %634 = vmatpush.xpose.msra.mxu0 0.0
    %635 = vmatpush.xpose.msra.mxu0 0.0
    %636 = vmatpush.xpose.msra.mxu0 0.0
    %637 = vmatpush.xpose.msra.mxu0 0.0
    %638 = vmatpush.xpose.msra.mxu0 0.0
    %639 = vmatpush.xpose.msra.mxu0 0.0
    %640 = vmatpush.xpose.msra.mxu0 0.0
    %641 = vmatpush.xpose.msra.mxu0 0.0
    %642 = vmatpush.xpose.msra.mxu0 0.0
    %643 = vmatpush.xpose.msra.mxu0 0.0
    %644 = vmatpush.xpose.msra.mxu0 0.0
    %645 = vmatpush.xpose.msra.mxu0 0.0
    %646 = vmatpush.xpose.msra.mxu0 %v631
    %647 = vmatpush.xpose.msra.mxu0 %v629
    %648 = vmatpush.xpose.msra.mxu0 %v627
    %649 = vmatmul.f32.gmra.mxu0 %v621
    %v650 = vpop.f32.mrf.mxu0
    %v651 = vadd.f32 %v35, %v650
    %652 = vmatmul.f32.gmra.mxu0 %v623
    %v653 = vpop.f32.mrf.mxu0
    %v654 = vadd.f32 %v36, %v653
    %655 = vmatmul.f32.gmra.mxu0 %v625
    %v656 = vpop.f32.mrf.mxu0
    %v657 = vadd.f32 %v37, %v656
    %658 = vdwg.mxu0
    %v659 = vsel %vm144, %v651, -inf
    %660 = vmax.xlane.f32.xlu0 %v659
    %v661 = vpop.xlane.xlu0 %660
    %v662 = vsel %vm144, %v654, -inf
    %663 = vmax.xlane.f32.xlu0 %v662
    %v664 = vpop.xlane.xlu0 %663
    %v665 = vsel %vm151, %v657, -inf
    %666 = vmax.xlane.f32.xlu0 %v665
    %v667 = vpop.xlane.xlu0 %666
    %v668 = vsub.f32 %v651, %v661
    %v669 = vsub.f32 %v654, %v664
    %v670 = vsub.f32 %v657, %v667
    %v671 = vmul.f32 %v668, 1.442695
    %v672 = vpow.pop %v671
    %v673 = vmul.f32 %v669, 1.442695
    %v674 = vpow.pop %v673
    %v675 = vmul.f32 %v670, 1.442695
    %v676 = vpow.pop %v675
    %v677 = vsel %vm144, %v672, 0.0
    %678 = vadd.xlane.f32.xlu0 %v677
    %v679 = vpop.xlane.xlu0 %678
    %v680 = vsel %vm144, %v674, 0.0
    %681 = vadd.xlane.f32.xlu0 %v680
    %v682 = vpop.xlane.xlu0 %681
    %v683 = vsel %vm151, %v676, 0.0
    %684 = vadd.xlane.f32.xlu0 %v683
    %v685 = vpop.xlane.xlu0 %684
    %v686 = vrcp.pop %v679
    %v687 = vmul.f32 %v679, %v686
    %v688 = vsub.f32 1.0, %v687
    %v689 = vmul.f32 %v686, %v688
    %v690 = vadd.f32 %v686, %v689
    %vm691 = vweird.f32 %v679
    %vm692 = vweird.f32 %v686
    %vm693 = vmor %vm691, %vm692
    %v694 = vsel %vm693, %v686, %v690
    %v695 = vand.u32 2147483647, %v679
    %vm696 = vcmp.eq.f32.partialorder %v695, 8.507059e+37
    %v697 = vand.u32 %v679, 2147483648
    %v698 = vor.u32 1.1754944e-38, %v697
    %v699 = vsel %vm696, %v698, %v694
    %v700 = vmul.f32 %v672, %v699
    %v701 = vrcp.pop %v682
    %v702 = vmul.f32 %v682, %v701
    %v703 = vsub.f32 1.0, %v702
    %v704 = vmul.f32 %v701, %v703
    %v705 = vadd.f32 %v701, %v704
    %vm706 = vweird.f32 %v682
    %vm707 = vweird.f32 %v701
    %vm708 = vmor %vm706, %vm707
    %v709 = vsel %vm708, %v701, %v705
    %v710 = vand.u32 2147483647, %v682
    %vm711 = vcmp.eq.f32.partialorder %v710, 8.507059e+37
    %v712 = vand.u32 %v682, 2147483648
    %v713 = vor.u32 1.1754944e-38, %v712
    %v714 = vsel %vm711, %v713, %v709
    %v715 = vmul.f32 %v674, %v714
    %v716 = vrcp.pop %v685
    %v717 = vmul.f32 %v685, %v716
    %v718 = vsub.f32 1.0, %v717
    %v719 = vmul.f32 %v716, %v718
    %v720 = vadd.f32 %v716, %v719
    %vm721 = vweird.f32 %v685
    %vm722 = vweird.f32 %v716
    %vm723 = vmor %vm721, %vm722
    %v724 = vsel %vm723, %v716, %v720
    %v725 = vand.u32 2147483647, %v685
    %vm726 = vcmp.eq.f32.partialorder %v725, 8.507059e+37
    %v727 = vand.u32 %v685, 2147483648
    %v728 = vor.u32 1.1754944e-38, %v727
    %v729 = vsel %vm726, %v728, %v724
    %v730 = vmul.f32 %v676, %v729
    %s731 = scalar_lea.vmem %s5, 72
    %732 = vst.msk [vmem:[%s731] sm:$0xff] %vm144, %v700
    %733 = vst.msk [vmem:[%s731 + $0x8] sm:$0xff] %vm144, %v715
    %734 = vst.msk [vmem:[%s731 + $0x10] sm:$0x3] %vm151, %v730
    %735 = vrot.lane.b32.xlu0 %v83, 40
    %v736 = vpop.permute.xlu0 %735
    %737 = vrot.lane.b32.xlu0 %v86, 40
    %v738 = vpop.permute.xlu0 %737
    %739 = vrot.lane.b32.xlu0 %v89, 40
    %v740 = vpop.permute.xlu0 %739
    %v744 = vsel %vm144, %v700, 0
    %v747 = vsel %vm144, %v715, 0
    %v750 = vsel %vm144, %v730, 0
    %v752 = vsel %vm238, %v740, 0
    %754 = vmatpush.msra.mxu0 0.0
    %755 = vmatpush.msra.mxu0 0.0
    %756 = vmatpush.msra.mxu0 0.0
    %757 = vmatpush.msra.mxu0 0.0
    %758 = vmatpush.msra.mxu0 0.0
    %759 = vmatpush.msra.mxu0 0.0
    %760 = vmatpush.msra.mxu0 0.0
    %761 = vmatpush.msra.mxu0 0.0
    %762 = vmatpush.msra.mxu0 0.0
    %763 = vmatpush.msra.mxu0 0.0
    %764 = vmatpush.msra.mxu0 0.0
    %765 = vmatpush.msra.mxu0 0.0
    %766 = vmatpush.msra.mxu0 0.0
    %767 = vmatpush.msra.mxu0 %v752
    %768 = vmatpush.msra.mxu0 %v738
    %769 = vmatpush.msra.mxu0 %v736
    %770 = vmatmul.f32.gmra.mxu0 %v744
    %v771 = vpop.f32.mrf.mxu0
    %v772 = vadd.f32 0.0, %v771
    %773 = vmatmul.f32.gmra.mxu0 %v747
    %v774 = vpop.f32.mrf.mxu0
    %v775 = vadd.f32 0.0, %v774
    %776 = vmatmul.f32.gmra.mxu0 %v750
    %v777 = vpop.f32.mrf.mxu0
    %v778 = vadd.f32 0.0, %v777
    %779 = vdwg.mxu0
    %783 = vrot.lane.b32.xlu0 %v430, 8
    %v784 = vpop.permute.xlu0 %783
    %785 = vrot.lane.b32.xlu0 %v433, 8
    %v786 = vpop.permute.xlu0 %785
    %787 = vrot.lane.b32.xlu0 %v436, 8
    %v788 = vpop.permute.xlu0 %787
    %795 = vrot.lane.b32.xlu0 %v601, 16
    %v796 = vpop.permute.xlu0 %795
    %797 = vrot.lane.b32.xlu0 %v604, 16
    %v798 = vpop.permute.xlu0 %797
    %799 = vrot.lane.b32.xlu0 %v607, 16
    %v800 = vpop.permute.xlu0 %799
    %807 = vrot.lane.b32.xlu0 %v772, 24
    %v808 = vpop.permute.xlu0 %807
    %809 = vrot.lane.b32.xlu0 %v775, 24
    %v810 = vpop.permute.xlu0 %809
    %811 = vrot.lane.b32.xlu0 %v778, 24
    %v812 = vpop.permute.xlu0 %811
    %v816 = vsel %vm105, %v259, %v784
    %v817 = vsel %vm105, %v262, %v786
    %v818 = vsel %vm105, %v265, %v788
    %vm819 = vcmask 130048
    %v820 = vsel %vm819, %v816, %v796
    %v821 = vsel %vm819, %v817, %v798
    %v822 = vsel %vm819, %v818, %v800
    %vm823 = vcmask 195584
    %v824 = vsel %vm823, %v820, %v808
    %v825 = vsel %vm823, %v821, %v810
    %v826 = vsel %vm823, %v822, %v812
    %v827 = vperm.slane %v95, 0
    %v829 = vsel %vm55, %v824, 0
    %v832 = vsel %vm55, %v825, 0
    %v835 = vsel %vm55, %v826, 0
    %837 = vmatpush.msra.mxu0 0.0
    %838 = vmatpush.msra.mxu0 0.0
    %839 = vmatpush.msra.mxu0 0.0
    %840 = vmatpush.msra.mxu0 0.0
    %841 = vmatpush.msra.mxu0 0.0
    %842 = vmatpush.msra.mxu0 0.0
    %843 = vmatpush.msra.mxu0 0.0
    %844 = vmatpush.msra.mxu0 0.0
    %845 = vmatpush.msra.mxu0 0.0
    %846 = vmatpush.msra.mxu0 0.0
    %847 = vmatpush.msra.mxu0 0.0
    %848 = vmatpush.msra.mxu0 0.0
    %849 = vmatpush.msra.mxu0 %v94
    %850 = vmatpush.msra.mxu0 %v93
    %851 = vmatpush.msra.mxu0 %v92
    %852 = vmatpush.msra.mxu0 %v91
    %853 = vmatmul.f32.gmra.mxu0 %v829
    %v854 = vpop.f32.mrf.mxu0
    %v855 = vadd.f32 %v827, %v854
    %856 = vmatmul.f32.gmra.mxu0 %v832
    %v857 = vpop.f32.mrf.mxu0
    %v858 = vadd.f32 %v827, %v857
    %859 = vmatmul.f32.gmra.mxu0 %v835
    %v860 = vpop.f32.mrf.mxu0
    %v861 = vadd.f32 %v827, %v860
    %862 = vdwg.mxu0
    %v863 = vadd.f32 %v46, %v855
    %v864 = vadd.f32 %v47, %v858
    %v865 = vadd.f32 %v48, %v861
    %v866 = vld [vmem:[#allocation2 + $0x50] sm:$0x1]
    %v867 = vld [vmem:[#allocation2 + $0x58] sm:$0x1]
    %v868 = vsel %vm55, %v863, 0.0
    %869 = vadd.xlane.f32.xlu0 %v868
    %v870 = vpop.xlane.xlu0 %869
    %v871 = vsel %vm55, %v864, 0.0
    %872 = vadd.xlane.f32.xlu0 %v871
    %v873 = vpop.xlane.xlu0 %872
    %vm874 = vcmask 254976
    %v875 = vsel %vm874, %v865, 0.0
    %876 = vadd.xlane.f32.xlu0 %v875
    %v877 = vpop.xlane.xlu0 %876
    %v878 = vrcp.pop 32.0
    %v879 = vmul.f32 32.0, %v878
    %v880 = vsub.f32 1.0, %v879
    %v881 = vmul.f32 %v878, %v880
    %v882 = vadd.f32 %v878, %v881
    %vm883 = vweird.f32 %v878
    %v884 = vsel %vm883, %v878, %v882
    %v885 = vmul.f32 %v870, %v884
    %v886 = vmul.f32 %v873, %v884
    %v887 = vmul.f32 %v877, %v884
    %v888 = vsub.f32 %v863, %v885
    %v889 = vsub.f32 %v864, %v886
    %v890 = vsub.f32 %v865, %v887
    %v891 = vmul.f32 %v888, %v888
    %v892 = vmul.f32 %v889, %v889
    %v893 = vmul.f32 %v890, %v890
    %v894 = vsel %vm55, %v891, 0.0
    %895 = vadd.xlane.f32.xlu0 %v894
    %v896 = vpop.xlane.xlu0 %895
    %v897 = vsel %vm55, %v892, 0.0
    %898 = vadd.xlane.f32.xlu0 %v897
    %v899 = vpop.xlane.xlu0 %898
    %v900 = vsel %vm874, %v893, 0.0
    %901 = vadd.xlane.f32.xlu0 %v900
    %v902 = vpop.xlane.xlu0 %901
    %v903 = vmul.f32 %v896, %v884
    %v904 = vmul.f32 %v899, %v884
    %v905 = vmul.f32 %v902, %v884
    %v906 = vadd.f32 %v903, 1e-12
    %v907 = vadd.f32 %v904, 1e-12
    %v908 = vadd.f32 %v905, 1e-12
    %v909 = vrsqrt.pop %v906
    %v910 = vmul.f32 %v909, %v906
    %v911 = vmul.f32 %v910, %v909
    %v912 = vmul.f32 0.5, %v911
    %v913 = vsub.f32 1.5, %v912
    %v914 = vmul.f32 %v909, %v913
    %vm915 = vweird.f32 %v906
    %vm916 = vweird.f32 %v909
    %vm917 = vmor %vm915, %vm916
    %v918 = vsel %vm917, %v909, %v914
    %v919 = vrsqrt.pop %v907
    %v920 = vmul.f32 %v919, %v907
    %v921 = vmul.f32 %v920, %v919
    %v922 = vmul.f32 0.5, %v921
    %v923 = vsub.f32 1.5, %v922
    %v924 = vmul.f32 %v919, %v923
    %vm925 = vweird.f32 %v907
    %vm926 = vweird.f32 %v919
    %vm927 = vmor %vm925, %vm926
    %v928 = vsel %vm927, %v919, %v924
    %v929 = vrsqrt.pop %v908
    %v930 = vmul.f32 %v929, %v908
    %v931 = vmul.f32 %v930, %v929
    %v932 = vmul.f32 0.5, %v931
    %v933 = vsub.f32 1.5, %v932
    %v934 = vmul.f32 %v929, %v933
    %vm935 = vweird.f32 %v908
    %vm936 = vweird.f32 %v929
    %vm937 = vmor %vm935, %vm936
    %v938 = vsel %vm937, %v929, %v934
    %v939 = vmul.f32 %v888, %v918
    %v940 = vmul.f32 %v889, %v928
    %v941 = vmul.f32 %v890, %v938
    %v942 = vperm.slane %v866, 0
    %v943 = vmul.f32 %v939, %v942
    %v944 = vmul.f32 %v940, %v942
    %v945 = vmul.f32 %v941, %v942
    %v946 = vperm.slane %v867, 0
    %v947 = vadd.f32 %v943, %v946
    %v948 = vadd.f32 %v944, %v946
    %v949 = vadd.f32 %v945, %v946
    %v950 = vld [vmem:[#allocation2 + $0x60] sm:$0xff]
    %v951 = vld [vmem:[#allocation2 + $0x68] sm:$0xff]
    %v952 = vld [vmem:[#allocation2 + $0x70] sm:$0xff]
    %v953 = vld [vmem:[#allocation2 + $0x78] sm:$0xff]
    %v954 = vld [vmem:[#allocation2 + $0x80] sm:$0x1]
    %v955 = vld [vmem:[#allocation2 + $0x88] sm:$0xff]
    %v956 = vld [vmem:[#allocation2 + $0x90] sm:$0xff]
    %v957 = vld [vmem:[#allocation2 + $0x98] sm:$0xff]
    %v958 = vld [vmem:[#allocation2 + $0xa0] sm:$0xff]
    %v959 = vld [vmem:[#allocation2 + $0xa8] sm:$0xff]
    %v960 = vld [vmem:[#allocation2 + $0xb0] sm:$0xff]
    %v961 = vld [vmem:[#allocation2 + $0xb8] sm:$0xff]
    %v962 = vld [vmem:[#allocation2 + $0xc0] sm:$0xff]
    %v963 = vld [vmem:[#allocation2 + $0xc8] sm:$0x1]
    %v964 = vperm.slane %v954, 0
    %v966 = vsel %vm55, %v947, 0
    %v969 = vsel %vm55, %v948, 0
    %v972 = vsel %vm55, %v949, 0
    %974 = vmatpush.msra.mxu0 0.0
    %975 = vmatpush.msra.mxu0 0.0
    %976 = vmatpush.msra.mxu0 0.0
    %977 = vmatpush.msra.mxu0 0.0
    %978 = vmatpush.msra.mxu0 0.0
    %979 = vmatpush.msra.mxu0 0.0
    %980 = vmatpush.msra.mxu0 0.0
    %981 = vmatpush.msra.mxu0 0.0
    %982 = vmatpush.msra.mxu0 0.0
    %983 = vmatpush.msra.mxu0 0.0
    %984 = vmatpush.msra.mxu0 0.0
    %985 = vmatpush.msra.mxu0 0.0
    %986 = vmatpush.msra.mxu0 %v953
    %987 = vmatpush.msra.mxu0 %v952
    %988 = vmatpush.msra.mxu0 %v951
    %989 = vmatpush.msra.mxu0 %v950
    %990 = vmatmul.f32.gmra.mxu0 %v966
    %v991 = vpop.f32.mrf.mxu0
    %v992 = vadd.f32 %v964, %v991
    %993 = vmatmul.f32.gmra.mxu0 %v969
    %v994 = vpop.f32.mrf.mxu0
    %v995 = vadd.f32 %v964, %v994
    %996 = vmatmul.f32.gmra.mxu0 %v972
    %v997 = vpop.f32.mrf.mxu0
    %v998 = vadd.f32 %v964, %v997
    %999 = vdwg.mxu0
    %v1000 = vmul.f32 %v992, 0.5
    %v1001 = vmul.f32 %v995, 0.5
    %v1002 = vmul.f32 %v998, 0.5
    %v1003 = vmul.f32 %v992, 0.70710677
    %v1004 = vmul.f32 %v995, 0.70710677
    %v1005 = vmul.f32 %v998, 0.70710677
    %vm1006 = vcmp.ge.f32.partialorder %v1003, 0.0
    %vm1007 = vcmp.ge.f32.partialorder %v1004, 0.0
    %vm1008 = vcmp.ge.f32.partialorder %v1005, 0.0
    %v1009 = vsel %vm1006, 1.0, -1.0
    %v1010 = vsel %vm1007, 1.0, -1.0
    %v1011 = vsel %vm1008, 1.0, -1.0
    %v1012 = vand.u32 2147483647, %v1003
    %v1013 = vand.u32 2147483647, %v1004
    %v1014 = vand.u32 2147483647, %v1005
    %v1015 = vmul.f32 %v1012, 0.3275911
    %v1016 = vmul.f32 %v1013, 0.3275911
    %v1017 = vmul.f32 %v1014, 0.3275911
    %v1018 = vadd.f32 %v1015, 1.0
    %v1019 = vadd.f32 %v1016, 1.0
    %v1020 = vadd.f32 %v1017, 1.0
    %v1021 = vrcp.pop %v1018
    %v1022 = vmul.f32 %v1018, %v1021
    %v1023 = vsub.f32 1.0, %v1022
    %v1024 = vmul.f32 %v1021, %v1023
    %v1025 = vadd.f32 %v1021, %v1024
    %vm1026 = vweird.f32 %v1018
    %vm1027 = vweird.f32 %v1021
    %vm1028 = vmor %vm1026, %vm1027
    %v1029 = vsel %vm1028, %v1021, %v1025
    %v1030 = vand.u32 2147483647, %v1018
    %vm1031 = vcmp.eq.f32.partialorder %v1030, 8.507059e+37
    %v1032 = vand.u32 %v1018, 2147483648
    %v1033 = vor.u32 1.1754944e-38, %v1032
    %v1034 = vsel %vm1031, %v1033, %v1029
    %v1035 = vmul.f32 1.0, %v1034
    %v1036 = vrcp.pop %v1019
    %v1037 = vmul.f32 %v1019, %v1036
    %v1038 = vsub.f32 1.0, %v1037
    %v1039 = vmul.f32 %v1036, %v1038
    %v1040 = vadd.f32 %v1036, %v1039
    %vm1041 = vweird.f32 %v1019
    %vm1042 = vweird.f32 %v1036
    %vm1043 = vmor %vm1041, %vm1042
    %v1044 = vsel %vm1043, %v1036, %v1040
    %v1045 = vand.u32 2147483647, %v1019
    %vm1046 = vcmp.eq.f32.partialorder %v1045, 8.507059e+37
    %v1047 = vand.u32 %v1019, 2147483648
    %v1048 = vor.u32 1.1754944e-38, %v1047
    %v1049 = vsel %vm1046, %v1048, %v1044
    %v1050 = vmul.f32 1.0, %v1049
    %v1051 = vrcp.pop %v1020
    %v1052 = vmul.f32 %v1020, %v1051
    %v1053 = vsub.f32 1.0, %v1052
    %v1054 = vmul.f32 %v1051, %v1053
    %v1055 = vadd.f32 %v1051, %v1054
    %vm1056 = vweird.f32 %v1020
    %vm1057 = vweird.f32 %v1051
    %vm1058 = vmor %vm1056, %vm1057
    %v1059 = vsel %vm1058, %v1051, %v1055
    %v1060 = vand.u32 2147483647, %v1020
    %vm1061 = vcmp.eq.f32.partialorder %v1060, 8.507059e+37
    %v1062 = vand.u32 %v1020, 2147483648
    %v1063 = vor.u32 1.1754944e-38, %v1062
    %v1064 = vsel %vm1061, %v1063, %v1059
    %v1065 = vmul.f32 1.0, %v1064
    %v1066 = vmul.f32 %v1035, 1.0614054
    %v1067 = vmul.f32 %v1050, 1.0614054
    %v1068 = vmul.f32 %v1065, 1.0614054
    %v1069 = vadd.f32 %v1066, -1.4531521
    %v1070 = vadd.f32 %v1067, -1.4531521
    %v1071 = vadd.f32 %v1068, -1.4531521
    %v1072 = vmul.f32 %v1069, %v1035
    %v1073 = vmul.f32 %v1070, %v1050
    %v1074 = vmul.f32 %v1071, %v1065
    %v1075 = vadd.f32 %v1072, 1.4214138
    %v1076 = vadd.f32 %v1073, 1.4214138
    %v1077 = vadd.f32 %v1074, 1.4214138
    %v1078 = vmul.f32 %v1075, %v1035
    %v1079 = vmul.f32 %v1076, %v1050
    %v1080 = vmul.f32 %v1077, %v1065
    %v1081 = vadd.f32 %v1078, -0.28449672
    %v1082 = vadd.f32 %v1079, -0.28449672
    %v1083 = vadd.f32 %v1080, -0.28449672
    %v1084 = vmul.f32 %v1081, %v1035
    %v1085 = vmul.f32 %v1082, %v1050
    %v1086 = vmul.f32 %v1083, %v1065
    %v1087 = vadd.f32 %v1084, 0.2548296
    %v1088 = vadd.f32 %v1085, 0.2548296
    %v1089 = vadd.f32 %v1086, 0.2548296
    %v1090 = vmul.f32 %v1087, %v1035
    %v1091 = vmul.f32 %v1088, %v1050
    %v1092 = vmul.f32 %v1089, %v1065
    %v1093 = vsub.f32 0.0, %v1012
    %v1094 = vsub.f32 0.0, %v1013
    %v1095 = vsub.f32 0.0, %v1014
    %v1096 = vmul.f32 %v1093, %v1012
    %v1097 = vmul.f32 %v1094, %v1013
    %v1098 = vmul.f32 %v1095, %v1014
    %v1099 = vmul.f32 %v1096, 1.442695
    %v1100 = vpow.pop %v1099
    %v1101 = vmul.f32 %v1097, 1.442695
    %v1102 = vpow.pop %v1101
    %v1103 = vmul.f32 %v1098, 1.442695
    %v1104 = vpow.pop %v1103
    %v1105 = vmul.f32 %v1090, %v1100
    %v1106 = vmul.f32 %v1091, %v1102
    %v1107 = vmul.f32 %v1092, %v1104
    %v1108 = vsub.f32 1.0, %v1105
    %v1109 = vsub.f32 1.0, %v1106
    %v1110 = vsub.f32 1.0, %v1107
    %v1111 = vmul.f32 %v1009, %v1108
    %v1112 = vmul.f32 %v1010, %v1109
    %v1113 = vmul.f32 %v1011, %v1110
    %v1114 = vadd.f32 %v1111, 1.0
    %v1115 = vadd.f32 %v1112, 1.0
    %v1116 = vadd.f32 %v1113, 1.0
    %v1117 = vmul.f32 %v1000, %v1114
    %v1118 = vmul.f32 %v1001, %v1115
    %v1119 = vmul.f32 %v1002, %v1116
    %v1120 = vperm.slane %v963, 0
    %vm1121 = vcmask 523264
    %v1123 = vsel %vm1121, %v1117, 0
    %v1126 = vsel %vm1121, %v1118, 0
    %v1129 = vsel %vm1121, %v1119, 0
    %1131 = vmatpush.msra.mxu0 0.0
    %1132 = vmatpush.msra.mxu0 0.0
    %1133 = vmatpush.msra.mxu0 0.0
    %1134 = vmatpush.msra.mxu0 0.0
    %1135 = vmatpush.msra.mxu0 0.0
    %1136 = vmatpush.msra.mxu0 0.0
    %1137 = vmatpush.msra.mxu0 0.0
    %1138 = vmatpush.msra.mxu0 0.0
    %1139 = vmatpush.msra.mxu0 %v962
    %1140 = vmatpush.msra.mxu0 %v961
    %1141 = vmatpush.msra.mxu0 %v960
    %1142 = vmatpush.msra.mxu0 %v959
    %1143 = vmatpush.msra.mxu0 %v958
    %1144 = vmatpush.msra.mxu0 %v957
    %1145 = vmatpush.msra.mxu0 %v956
    %1146 = vmatpush.msra.mxu0 %v955
    %1147 = vmatmul.f32.gmra.mxu0 %v1123
    %v1148 = vpop.f32.mrf.mxu0
    %v1149 = vadd.f32 %v1120, %v1148
    %1150 = vmatmul.f32.gmra.mxu0 %v1126
    %v1151 = vpop.f32.mrf.mxu0
    %v1152 = vadd.f32 %v1120, %v1151
    %1153 = vmatmul.f32.gmra.mxu0 %v1129
    %v1154 = vpop.f32.mrf.mxu0
    %v1155 = vadd.f32 %v1120, %v1154
    %1156 = vdwg.mxu0
    %v1157 = vadd.f32 %v947, %v1149
    %v1158 = vadd.f32 %v948, %v1152
    %v1159 = vadd.f32 %v949, %v1155
    %v1160 = vld [vmem:[#allocation2 + $0xd0] sm:$0x1]
    %v1161 = vld [vmem:[#allocation2 + $0xd8] sm:$0x1]
    %v1162 = vsel %vm55, %v1157, 0.0
    %1163 = vadd.xlane.f32.xlu0 %v1162
    %v1164 = vpop.xlane.xlu0 %1163
    %v1165 = vsel %vm55, %v1158, 0.0
    %1166 = vadd.xlane.f32.xlu0 %v1165
    %v1167 = vpop.xlane.xlu0 %1166
    %v1168 = vsel %vm874, %v1159, 0.0
    %1169 = vadd.xlane.f32.xlu0 %v1168
    %v1170 = vpop.xlane.xlu0 %1169
    %v1171 = vmul.f32 %v1164, %v884
    %v1172 = vmul.f32 %v1167, %v884
    %v1173 = vmul.f32 %v1170, %v884
    %v1174 = vsub.f32 %v1157, %v1171
    %v1175 = vsub.f32 %v1158, %v1172
    %v1176 = vsub.f32 %v1159, %v1173
    %v1177 = vmul.f32 %v1174, %v1174
    %v1178 = vmul.f32 %v1175, %v1175
    %v1179 = vmul.f32 %v1176, %v1176
    %v1180 = vsel %vm55, %v1177, 0.0
    %1181 = vadd.xlane.f32.xlu0 %v1180
    %v1182 = vpop.xlane.xlu0 %1181
    %v1183 = vsel %vm55, %v1178, 0.0
    %1184 = vadd.xlane.f32.xlu0 %v1183
    %v1185 = vpop.xlane.xlu0 %1184
    %v1186 = vsel %vm874, %v1179, 0.0
    %1187 = vadd.xlane.f32.xlu0 %v1186
    %v1188 = vpop.xlane.xlu0 %1187
    %v1189 = vmul.f32 %v1182, %v884
    %v1190 = vmul.f32 %v1185, %v884
    %v1191 = vmul.f32 %v1188, %v884
    %v1192 = vadd.f32 %v1189, 1e-12
    %v1193 = vadd.f32 %v1190, 1e-12
    %v1194 = vadd.f32 %v1191, 1e-12
    %v1195 = vrsqrt.pop %v1192
    %v1196 = vmul.f32 %v1195, %v1192
    %v1197 = vmul.f32 %v1196, %v1195
    %v1198 = vmul.f32 0.5, %v1197
    %v1199 = vsub.f32 1.5, %v1198
    %v1200 = vmul.f32 %v1195, %v1199
    %vm1201 = vweird.f32 %v1192
    %vm1202 = vweird.f32 %v1195
    %vm1203 = vmor %vm1201, %vm1202
    %v1204 = vsel %vm1203, %v1195, %v1200
    %v1205 = vrsqrt.pop %v1193
    %v1206 = vmul.f32 %v1205, %v1193
    %v1207 = vmul.f32 %v1206, %v1205
    %v1208 = vmul.f32 0.5, %v1207
    %v1209 = vsub.f32 1.5, %v1208
    %v1210 = vmul.f32 %v1205, %v1209
    %vm1211 = vweird.f32 %v1193
    %vm1212 = vweird.f32 %v1205
    %vm1213 = vmor %vm1211, %vm1212
    %v1214 = vsel %vm1213, %v1205, %v1210
    %v1215 = vrsqrt.pop %v1194
    %v1216 = vmul.f32 %v1215, %v1194
    %v1217 = vmul.f32 %v1216, %v1215
    %v1218 = vmul.f32 0.5, %v1217
    %v1219 = vsub.f32 1.5, %v1218
    %v1220 = vmul.f32 %v1215, %v1219
    %vm1221 = vweird.f32 %v1194
    %vm1222 = vweird.f32 %v1215
    %vm1223 = vmor %vm1221, %vm1222
    %v1224 = vsel %vm1223, %v1215, %v1220
    %v1225 = vmul.f32 %v1174, %v1204
    %v1226 = vmul.f32 %v1175, %v1214
    %v1227 = vmul.f32 %v1176, %v1224
    %v1228 = vperm.slane %v1160, 0
    %v1229 = vmul.f32 %v1225, %v1228
    %v1230 = vmul.f32 %v1226, %v1228
    %v1231 = vmul.f32 %v1227, %v1228
    %v1232 = vperm.slane %v1161, 0
    %v1233 = vadd.f32 %v1229, %v1232
    %v1234 = vadd.f32 %v1230, %v1232
    %v1235 = vadd.f32 %v1231, %v1232
    %v1236 = vld [vmem:[#allocation2 + $0xe0] sm:$0xff]
    %v1237 = vld [vmem:[#allocation2 + $0xe8] sm:$0xff]
    %v1238 = vld [vmem:[#allocation2 + $0xf0] sm:$0xff]
    %v1239 = vld [vmem:[#allocation2 + $0xf8] sm:$0xff]
    %v1240 = vld [vmem:[#allocation2 + $0x100] sm:$0x1]
    %v1241 = vperm.slane %v1240, 0
    %v1243 = vsel %vm55, %v1233, 0
    %v1246 = vsel %vm55, %v1234, 0
    %v1249 = vsel %vm55, %v1235, 0
    %1251 = vmatpush.msra.mxu0 0.0
    %1252 = vmatpush.msra.mxu0 0.0
    %1253 = vmatpush.msra.mxu0 0.0
    %1254 = vmatpush.msra.mxu0 0.0
    %1255 = vmatpush.msra.mxu0 0.0
    %1256 = vmatpush.msra.mxu0 0.0
    %1257 = vmatpush.msra.mxu0 0.0
    %1258 = vmatpush.msra.mxu0 0.0
    %1259 = vmatpush.msra.mxu0 0.0
    %1260 = vmatpush.msra.mxu0 0.0
    %1261 = vmatpush.msra.mxu0 0.0
    %1262 = vmatpush.msra.mxu0 0.0
    %1263 = vmatpush.msra.mxu0 %v1239
    %1264 = vmatpush.msra.mxu0 %v1238
    %1265 = vmatpush.msra.mxu0 %v1237
    %1266 = vmatpush.msra.mxu0 %v1236
    %1267 = vmatmul.f32.gmra.mxu0 %v1243
    %v1268 = vpop.f32.mrf.mxu0
    %v1269 = vadd.f32 %v1241, %v1268
    %1270 = vmatmul.f32.gmra.mxu0 %v1246
    %v1271 = vpop.f32.mrf.mxu0
    %v1272 = vadd.f32 %v1241, %v1271
    %1273 = vmatmul.f32.gmra.mxu0 %v1249
    %v1274 = vpop.f32.mrf.mxu0
    %v1275 = vadd.f32 %v1241, %v1274
    %1276 = vdwg.mxu0
    %v1277 = vld [vmem:[#allocation2 + $0x108] sm:$0xff]
    %v1278 = vld [vmem:[#allocation2 + $0x110] sm:$0xff]
    %v1279 = vld [vmem:[#allocation2 + $0x118] sm:$0xff]
    %v1280 = vld [vmem:[#allocation2 + $0x120] sm:$0xff]
    %v1281 = vld [vmem:[#allocation2 + $0x128] sm:$0x1]
    %1285 = vrot.lane.b32.xlu0 %v1269, 96
    %v1286 = vpop.permute.xlu0 %1285
    %1287 = vrot.lane.b32.xlu0 %v1272, 96
    %v1288 = vpop.permute.xlu0 %1287
    %1289 = vrot.lane.b32.xlu0 %v1275, 96
    %v1290 = vpop.permute.xlu0 %1289
    %v1291 = vsel %vm105, %v1269, 0
    %v1293 = vsel %vm105, %v1272, 0
    %v1295 = vsel %vm105, %v1275, 0
    %v1297 = vsel %vm105, %v1286, 0
    %v1299 = vsel %vm105, %v1288, 0
    %v1301 = vsel %vm105, %v1290, 0
    %1303 = vmatpush.xpose.msra.mxu0 0.0
    %1304 = vmatpush.xpose.msra.mxu0 0.0
    %1305 = vmatpush.xpose.msra.mxu0 0.0
    %1306 = vmatpush.xpose.msra.mxu0 0.0
    %1307 = vmatpush.xpose.msra.mxu0 0.0
    %1308 = vmatpush.xpose.msra.mxu0 0.0
    %1309 = vmatpush.xpose.msra.mxu0 0.0
    %1310 = vmatpush.xpose.msra.mxu0 0.0
    %1311 = vmatpush.xpose.msra.mxu0 0.0
    %1312 = vmatpush.xpose.msra.mxu0 0.0
    %1313 = vmatpush.xpose.msra.mxu0 0.0
    %1314 = vmatpush.xpose.msra.mxu0 0.0
    %1315 = vmatpush.xpose.msra.mxu0 0.0
    %1316 = vmatpush.xpose.msra.mxu0 %v1301
    %1317 = vmatpush.xpose.msra.mxu0 %v1299
    %1318 = vmatpush.xpose.msra.mxu0 %v1297
    %1319 = vmatmul.f32.gmra.mxu0 %v1291
    %v1320 = vpop.f32.mrf.mxu0
    %v1321 = vadd.f32 %v35, %v1320
    %1322 = vmatmul.f32.gmra.mxu0 %v1293
    %v1323 = vpop.f32.mrf.mxu0
    %v1324 = vadd.f32 %v36, %v1323
    %1325 = vmatmul.f32.gmra.mxu0 %v1295
    %v1326 = vpop.f32.mrf.mxu0
    %v1327 = vadd.f32 %v37, %v1326
    %1328 = vdwg.mxu0
    %v1329 = vsel %vm144, %v1321, -inf
    %1330 = vmax.xlane.f32.xlu0 %v1329
    %v1331 = vpop.xlane.xlu0 %1330
    %v1332 = vsel %vm144, %v1324, -inf
    %1333 = vmax.xlane.f32.xlu0 %v1332
    %v1334 = vpop.xlane.xlu0 %1333
    %v1335 = vsel %vm151, %v1327, -inf
    %1336 = vmax.xlane.f32.xlu0 %v1335
    %v1337 = vpop.xlane.xlu0 %1336
    %v1338 = vsub.f32 %v1321, %v1331
    %v1339 = vsub.f32 %v1324, %v1334
    %v1340 = vsub.f32 %v1327, %v1337
    %v1341 = vmul.f32 %v1338, 1.442695
    %v1342 = vpow.pop %v1341
    %v1343 = vmul.f32 %v1339, 1.442695
    %v1344 = vpow.pop %v1343
    %v1345 = vmul.f32 %v1340, 1.442695
    %v1346 = vpow.pop %v1345
    %v1347 = vsel %vm144, %v1342, 0.0
    %1348 = vadd.xlane.f32.xlu0 %v1347
    %v1349 = vpop.xlane.xlu0 %1348
    %v1350 = vsel %vm144, %v1344, 0.0
    %1351 = vadd.xlane.f32.xlu0 %v1350
    %v1352 = vpop.xlane.xlu0 %1351
    %v1353 = vsel %vm151, %v1346, 0.0
    %1354 = vadd.xlane.f32.xlu0 %v1353
    %v1355 = vpop.xlane.xlu0 %1354
    %v1356 = vrcp.pop %v1349
    %v1357 = vmul.f32 %v1349, %v1356
    %v1358 = vsub.f32 1.0, %v1357
    %v1359 = vmul.f32 %v1356, %v1358
    %v1360 = vadd.f32 %v1356, %v1359
    %vm1361 = vweird.f32 %v1349
    %vm1362 = vweird.f32 %v1356
    %vm1363 = vmor %vm1361, %vm1362
    %v1364 = vsel %vm1363, %v1356, %v1360
    %v1365 = vand.u32 2147483647, %v1349
    %vm1366 = vcmp.eq.f32.partialorder %v1365, 8.507059e+37
    %v1367 = vand.u32 %v1349, 2147483648
    %v1368 = vor.u32 1.1754944e-38, %v1367
    %v1369 = vsel %vm1366, %v1368, %v1364
    %v1370 = vmul.f32 %v1342, %v1369
    %v1371 = vrcp.pop %v1352
    %v1372 = vmul.f32 %v1352, %v1371
    %v1373 = vsub.f32 1.0, %v1372
    %v1374 = vmul.f32 %v1371, %v1373
    %v1375 = vadd.f32 %v1371, %v1374
    %vm1376 = vweird.f32 %v1352
    %vm1377 = vweird.f32 %v1371
    %vm1378 = vmor %vm1376, %vm1377
    %v1379 = vsel %vm1378, %v1371, %v1375
    %v1380 = vand.u32 2147483647, %v1352
    %vm1381 = vcmp.eq.f32.partialorder %v1380, 8.507059e+37
    %v1382 = vand.u32 %v1352, 2147483648
    %v1383 = vor.u32 1.1754944e-38, %v1382
    %v1384 = vsel %vm1381, %v1383, %v1379
    %v1385 = vmul.f32 %v1344, %v1384
    %v1386 = vrcp.pop %v1355
    %v1387 = vmul.f32 %v1355, %v1386
    %v1388 = vsub.f32 1.0, %v1387
    %v1389 = vmul.f32 %v1386, %v1388
    %v1390 = vadd.f32 %v1386, %v1389
    %vm1391 = vweird.f32 %v1355
    %vm1392 = vweird.f32 %v1386
    %vm1393 = vmor %vm1391, %vm1392
    %v1394 = vsel %vm1393, %v1386, %v1390
    %v1395 = vand.u32 2147483647, %v1355
    %vm1396 = vcmp.eq.f32.partialorder %v1395, 8.507059e+37
    %v1397 = vand.u32 %v1355, 2147483648
    %v1398 = vor.u32 1.1754944e-38, %v1397
    %v1399 = vsel %vm1396, %v1398, %v1394
    %v1400 = vmul.f32 %v1346, %v1399
    %s1401 = scalar_lea.vmem %s5, 96
    %1402 = vst.msk [vmem:[%s1401] sm:$0xff] %vm144, %v1370
    %1403 = vst.msk [vmem:[%s1401 + $0x8] sm:$0xff] %vm144, %v1385
    %1404 = vst.msk [vmem:[%s1401 + $0x10] sm:$0x3] %vm151, %v1400
    %1405 = vrot.lane.b32.xlu0 %v1269, 64
    %v1406 = vpop.permute.xlu0 %1405
    %1407 = vrot.lane.b32.xlu0 %v1272, 64
    %v1408 = vpop.permute.xlu0 %1407
    %1409 = vrot.lane.b32.xlu0 %v1275, 64
    %v1410 = vpop.permute.xlu0 %1409
    %v1414 = vsel %vm144, %v1370, 0
    %v1417 = vsel %vm144, %v1385, 0
    %v1420 = vsel %vm144, %v1400, 0
    %v1422 = vsel %vm238, %v1410, 0
    %1424 = vmatpush.msra.mxu0 0.0
    %1425 = vmatpush.msra.mxu0 0.0
    %1426 = vmatpush.msra.mxu0 0.0
    %1427 = vmatpush.msra.mxu0 0.0
    %1428 = vmatpush.msra.mxu0 0.0
    %1429 = vmatpush.msra.mxu0 0.0
    %1430 = vmatpush.msra.mxu0 0.0
    %1431 = vmatpush.msra.mxu0 0.0
    %1432 = vmatpush.msra.mxu0 0.0
    %1433 = vmatpush.msra.mxu0 0.0
    %1434 = vmatpush.msra.mxu0 0.0
    %1435 = vmatpush.msra.mxu0 0.0
    %1436 = vmatpush.msra.mxu0 0.0
    %1437 = vmatpush.msra.mxu0 %v1422
    %1438 = vmatpush.msra.mxu0 %v1408
    %1439 = vmatpush.msra.mxu0 %v1406
    %1440 = vmatmul.f32.gmra.mxu0 %v1414
    %v1441 = vpop.f32.mrf.mxu0
    %v1442 = vadd.f32 0.0, %v1441
    %1443 = vmatmul.f32.gmra.mxu0 %v1417
    %v1444 = vpop.f32.mrf.mxu0
    %v1445 = vadd.f32 0.0, %v1444
    %1446 = vmatmul.f32.gmra.mxu0 %v1420
    %v1447 = vpop.f32.mrf.mxu0
    %v1448 = vadd.f32 0.0, %v1447
    %1449 = vdwg.mxu0
    %1450 = vrot.lane.b32.xlu0 %v1269, 120
    %v1451 = vpop.permute.xlu0 %1450
    %1452 = vrot.lane.b32.xlu0 %v1272, 120
    %v1453 = vpop.permute.xlu0 %1452
    %1454 = vrot.lane.b32.xlu0 %v1275, 120
    %v1455 = vpop.permute.xlu0 %1454
    %1456 = vrot.lane.b32.xlu0 %v1269, 88
    %v1457 = vpop.permute.xlu0 %1456
    %1458 = vrot.lane.b32.xlu0 %v1272, 88
    %v1459 = vpop.permute.xlu0 %1458
    %1460 = vrot.lane.b32.xlu0 %v1275, 88
    %v1461 = vpop.permute.xlu0 %1460
    %v1462 = vsel %vm105, %v1451, 0
    %v1464 = vsel %vm105, %v1453, 0
    %v1466 = vsel %vm105, %v1455, 0
    %v1468 = vsel %vm105, %v1457, 0
    %v1470 = vsel %vm105, %v1459, 0
    %v1472 = vsel %vm105, %v1461, 0
    %1474 = vmatpush.xpose.msra.mxu0 0.0
    %1475 = vmatpush.xpose.msra.mxu0 0.0
    %1476 = vmatpush.xpose.msra.mxu0 0.0
    %1477 = vmatpush.xpose.msra.mxu0 0.0
    %1478 = vmatpush.xpose.msra.mxu0 0.0
    %1479 = vmatpush.xpose.msra.mxu0 0.0
    %1480 = vmatpush.xpose.msra.mxu0 0.0
    %1481 = vmatpush.xpose.msra.mxu0 0.0
    %1482 = vmatpush.xpose.msra.mxu0 0.0
    %1483 = vmatpush.xpose.msra.mxu0 0.0
    %1484 = vmatpush.xpose.msra.mxu0 0.0
    %1485 = vmatpush.xpose.msra.mxu0 0.0
    %1486 = vmatpush.xpose.msra.mxu0 0.0
    %1487 = vmatpush.xpose.msra.mxu0 %v1472
    %1488 = vmatpush.xpose.msra.mxu0 %v1470
    %1489 = vmatpush.xpose.msra.mxu0 %v1468
    %1490 = vmatmul.f32.gmra.mxu0 %v1462
    %v1491 = vpop.f32.mrf.mxu0
    %v1492 = vadd.f32 %v35, %v1491
    %1493 = vmatmul.f32.gmra.mxu0 %v1464
    %v1494 = vpop.f32.mrf.mxu0
    %v1495 = vadd.f32 %v36, %v1494
    %1496 = vmatmul.f32.gmra.mxu0 %v1466
    %v1497 = vpop.f32.mrf.mxu0
    %v1498 = vadd.f32 %v37, %v1497
    %1499 = vdwg.mxu0
    %v1500 = vsel %vm144, %v1492, -inf
    %1501 = vmax.xlane.f32.xlu0 %v1500
    %v1502 = vpop.xlane.xlu0 %1501
    %v1503 = vsel %vm144, %v1495, -inf
    %1504 = vmax.xlane.f32.xlu0 %v1503
    %v1505 = vpop.xlane.xlu0 %1504
    %v1506 = vsel %vm151, %v1498, -inf
    %1507 = vmax.xlane.f32.xlu0 %v1506
    %v1508 = vpop.xlane.xlu0 %1507
    %v1509 = vsub.f32 %v1492, %v1502
    %v1510 = vsub.f32 %v1495, %v1505
    %v1511 = vsub.f32 %v1498, %v1508
    %v1512 = vmul.f32 %v1509, 1.442695
    %v1513 = vpow.pop %v1512
    %v1514 = vmul.f32 %v1510, 1.442695
    %v1515 = vpow.pop %v1514
    %v1516 = vmul.f32 %v1511, 1.442695
    %v1517 = vpow.pop %v1516
    %v1518 = vsel %vm144, %v1513, 0.0
    %1519 = vadd.xlane.f32.xlu0 %v1518
    %v1520 = vpop.xlane.xlu0 %1519
    %v1521 = vsel %vm144, %v1515, 0.0
    %1522 = vadd.xlane.f32.xlu0 %v1521
    %v1523 = vpop.xlane.xlu0 %1522
    %v1524 = vsel %vm151, %v1517, 0.0
    %1525 = vadd.xlane.f32.xlu0 %v1524
    %v1526 = vpop.xlane.xlu0 %1525
    %v1527 = vrcp.pop %v1520
    %v1528 = vmul.f32 %v1520, %v1527
    %v1529 = vsub.f32 1.0, %v1528
    %v1530 = vmul.f32 %v1527, %v1529
    %v1531 = vadd.f32 %v1527, %v1530
    %vm1532 = vweird.f32 %v1520
    %vm1533 = vweird.f32 %v1527
    %vm1534 = vmor %vm1532, %vm1533
    %v1535 = vsel %vm1534, %v1527, %v1531
    %v1536 = vand.u32 2147483647, %v1520
    %vm1537 = vcmp.eq.f32.partialorder %v1536, 8.507059e+37
    %v1538 = vand.u32 %v1520, 2147483648
    %v1539 = vor.u32 1.1754944e-38, %v1538
    %v1540 = vsel %vm1537, %v1539, %v1535
    %v1541 = vmul.f32 %v1513, %v1540
    %v1542 = vrcp.pop %v1523
    %v1543 = vmul.f32 %v1523, %v1542
    %v1544 = vsub.f32 1.0, %v1543
    %v1545 = vmul.f32 %v1542, %v1544
    %v1546 = vadd.f32 %v1542, %v1545
    %vm1547 = vweird.f32 %v1523
    %vm1548 = vweird.f32 %v1542
    %vm1549 = vmor %vm1547, %vm1548
    %v1550 = vsel %vm1549, %v1542, %v1546
    %v1551 = vand.u32 2147483647, %v1523
    %vm1552 = vcmp.eq.f32.partialorder %v1551, 8.507059e+37
    %v1553 = vand.u32 %v1523, 2147483648
    %v1554 = vor.u32 1.1754944e-38, %v1553
    %v1555 = vsel %vm1552, %v1554, %v1550
    %v1556 = vmul.f32 %v1515, %v1555
    %v1557 = vrcp.pop %v1526
    %v1558 = vmul.f32 %v1526, %v1557
    %v1559 = vsub.f32 1.0, %v1558
    %v1560 = vmul.f32 %v1557, %v1559
    %v1561 = vadd.f32 %v1557, %v1560
    %vm1562 = vweird.f32 %v1526
    %vm1563 = vweird.f32 %v1557
    %vm1564 = vmor %vm1562, %vm1563
    %v1565 = vsel %vm1564, %v1557, %v1561
    %v1566 = vand.u32 2147483647, %v1526
    %vm1567 = vcmp.eq.f32.partialorder %v1566, 8.507059e+37
    %v1568 = vand.u32 %v1526, 2147483648
    %v1569 = vor.u32 1.1754944e-38, %v1568
    %v1570 = vsel %vm1567, %v1569, %v1565
    %v1571 = vmul.f32 %v1517, %v1570
    %s1572 = scalar_lea.vmem %s5, 120
    %1573 = vst.msk [vmem:[%s1572] sm:$0xff] %vm144, %v1541
    %1574 = vst.msk [vmem:[%s1572 + $0x8] sm:$0xff] %vm144, %v1556
    %1575 = vst.msk [vmem:[%s1572 + $0x10] sm:$0x3] %vm151, %v1571
    %1576 = vrot.lane.b32.xlu0 %v1269, 56
    %v1577 = vpop.permute.xlu0 %1576
    %1578 = vrot.lane.b32.xlu0 %v1272, 56
    %v1579 = vpop.permute.xlu0 %1578
    %1580 = vrot.lane.b32.xlu0 %v1275, 56
    %v1581 = vpop.permute.xlu0 %1580
    %v1585 = vsel %vm144, %v1541, 0
    %v1588 = vsel %vm144, %v1556, 0
    %v1591 = vsel %vm144, %v1571, 0
    %v1593 = vsel %vm238, %v1581, 0
    %1595 = vmatpush.msra.mxu0 0.0
    %1596 = vmatpush.msra.mxu0 0.0
    %1597 = vmatpush.msra.mxu0 0.0
    %1598 = vmatpush.msra.mxu0 0.0
    %1599 = vmatpush.msra.mxu0 0.0
    %1600 = vmatpush.msra.mxu0 0.0
    %1601 = vmatpush.msra.mxu0 0.0
    %1602 = vmatpush.msra.mxu0 0.0
    %1603 = vmatpush.msra.mxu0 0.0
    %1604 = vmatpush.msra.mxu0 0.0
    %1605 = vmatpush.msra.mxu0 0.0
    %1606 = vmatpush.msra.mxu0 0.0
    %1607 = vmatpush.msra.mxu0 0.0
    %1608 = vmatpush.msra.mxu0 %v1593
    %1609 = vmatpush.msra.mxu0 %v1579
    %1610 = vmatpush.msra.mxu0 %v1577
    %1611 = vmatmul.f32.gmra.mxu0 %v1585
    %v1612 = vpop.f32.mrf.mxu0
    %v1613 = vadd.f32 0.0, %v1612
    %1614 = vmatmul.f32.gmra.mxu0 %v1588
    %v1615 = vpop.f32.mrf.mxu0
    %v1616 = vadd.f32 0.0, %v1615
    %1617 = vmatmul.f32.gmra.mxu0 %v1591
    %v1618 = vpop.f32.mrf.mxu0
    %v1619 = vadd.f32 0.0, %v1618
    %1620 = vdwg.mxu0
    %1621 = vrot.lane.b32.xlu0 %v1269, 112
    %v1622 = vpop.permute.xlu0 %1621
    %1623 = vrot.lane.b32.xlu0 %v1272, 112
    %v1624 = vpop.permute.xlu0 %1623
    %1625 = vrot.lane.b32.xlu0 %v1275, 112
    %v1626 = vpop.permute.xlu0 %1625
    %1627 = vrot.lane.b32.xlu0 %v1269, 80
    %v1628 = vpop.permute.xlu0 %1627
    %1629 = vrot.lane.b32.xlu0 %v1272, 80
    %v1630 = vpop.permute.xlu0 %1629
    %1631 = vrot.lane.b32.xlu0 %v1275, 80
    %v1632 = vpop.permute.xlu0 %1631
    %v1633 = vsel %vm105, %v1622, 0
    %v1635 = vsel %vm105, %v1624, 0
    %v1637 = vsel %vm105, %v1626, 0
    %v1639 = vsel %vm105, %v1628, 0
    %v1641 = vsel %vm105, %v1630, 0
    %v1643 = vsel %vm105, %v1632, 0
    %1645 = vmatpush.xpose.msra.mxu0 0.0
    %1646 = vmatpush.xpose.msra.mxu0 0.0
    %1647 = vmatpush.xpose.msra.mxu0 0.0
    %1648 = vmatpush.xpose.msra.mxu0 0.0
    %1649 = vmatpush.xpose.msra.mxu0 0.0
    %1650 = vmatpush.xpose.msra.mxu0 0.0
    %1651 = vmatpush.xpose.msra.mxu0 0.0
    %1652 = vmatpush.xpose.msra.mxu0 0.0
    %1653 = vmatpush.xpose.msra.mxu0 0.0
    %1654 = vmatpush.xpose.msra.mxu0 0.0
    %1655 = vmatpush.xpose.msra.mxu0 0.0
    %1656 = vmatpush.xpose.msra.mxu0 0.0
    %1657 = vmatpush.xpose.msra.mxu0 0.0
    %1658 = vmatpush.xpose.msra.mxu0 %v1643
    %1659 = vmatpush.xpose.msra.mxu0 %v1641
    %1660 = vmatpush.xpose.msra.mxu0 %v1639
    %1661 = vmatmul.f32.gmra.mxu0 %v1633
    %v1662 = vpop.f32.mrf.mxu0
    %v1663 = vadd.f32 %v35, %v1662
    %1664 = vmatmul.f32.gmra.mxu0 %v1635
    %v1665 = vpop.f32.mrf.mxu0
    %v1666 = vadd.f32 %v36, %v1665
    %1667 = vmatmul.f32.gmra.mxu0 %v1637
    %v1668 = vpop.f32.mrf.mxu0
    %v1669 = vadd.f32 %v37, %v1668
    %1670 = vdwg.mxu0
    %v1671 = vsel %vm144, %v1663, -inf
    %1672 = vmax.xlane.f32.xlu0 %v1671
    %v1673 = vpop.xlane.xlu0 %1672
    %v1674 = vsel %vm144, %v1666, -inf
    %1675 = vmax.xlane.f32.xlu0 %v1674
    %v1676 = vpop.xlane.xlu0 %1675
    %v1677 = vsel %vm151, %v1669, -inf
    %1678 = vmax.xlane.f32.xlu0 %v1677
    %v1679 = vpop.xlane.xlu0 %1678
    %v1680 = vsub.f32 %v1663, %v1673
    %v1681 = vsub.f32 %v1666, %v1676
    %v1682 = vsub.f32 %v1669, %v1679
    %v1683 = vmul.f32 %v1680, 1.442695
    %v1684 = vpow.pop %v1683
    %v1685 = vmul.f32 %v1681, 1.442695
    %v1686 = vpow.pop %v1685
    %v1687 = vmul.f32 %v1682, 1.442695
    %v1688 = vpow.pop %v1687
    %v1689 = vsel %vm144, %v1684, 0.0
    %1690 = vadd.xlane.f32.xlu0 %v1689
    %v1691 = vpop.xlane.xlu0 %1690
    %v1692 = vsel %vm144, %v1686, 0.0
    %1693 = vadd.xlane.f32.xlu0 %v1692
    %v1694 = vpop.xlane.xlu0 %1693
    %v1695 = vsel %vm151, %v1688, 0.0
    %1696 = vadd.xlane.f32.xlu0 %v1695
    %v1697 = vpop.xlane.xlu0 %1696
    %v1698 = vrcp.pop %v1691
    %v1699 = vmul.f32 %v1691, %v1698
    %v1700 = vsub.f32 1.0, %v1699
    %v1701 = vmul.f32 %v1698, %v1700
    %v1702 = vadd.f32 %v1698, %v1701
    %vm1703 = vweird.f32 %v1691
    %vm1704 = vweird.f32 %v1698
    %vm1705 = vmor %vm1703, %vm1704
    %v1706 = vsel %vm1705, %v1698, %v1702
    %v1707 = vand.u32 2147483647, %v1691
    %vm1708 = vcmp.eq.f32.partialorder %v1707, 8.507059e+37
    %v1709 = vand.u32 %v1691, 2147483648
    %v1710 = vor.u32 1.1754944e-38, %v1709
    %v1711 = vsel %vm1708, %v1710, %v1706
    %v1712 = vmul.f32 %v1684, %v1711
    %v1713 = vrcp.pop %v1694
    %v1714 = vmul.f32 %v1694, %v1713
    %v1715 = vsub.f32 1.0, %v1714
    %v1716 = vmul.f32 %v1713, %v1715
    %v1717 = vadd.f32 %v1713, %v1716
    %vm1718 = vweird.f32 %v1694
    %vm1719 = vweird.f32 %v1713
    %vm1720 = vmor %vm1718, %vm1719
    %v1721 = vsel %vm1720, %v1713, %v1717
    %v1722 = vand.u32 2147483647, %v1694
    %vm1723 = vcmp.eq.f32.partialorder %v1722, 8.507059e+37
    %v1724 = vand.u32 %v1694, 2147483648
    %v1725 = vor.u32 1.1754944e-38, %v1724
    %v1726 = vsel %vm1723, %v1725, %v1721
    %v1727 = vmul.f32 %v1686, %v1726
    %v1728 = vrcp.pop %v1697
    %v1729 = vmul.f32 %v1697, %v1728
    %v1730 = vsub.f32 1.0, %v1729
    %v1731 = vmul.f32 %v1728, %v1730
    %v1732 = vadd.f32 %v1728, %v1731
    %vm1733 = vweird.f32 %v1697
    %vm1734 = vweird.f32 %v1728
    %vm1735 = vmor %vm1733, %vm1734
    %v1736 = vsel %vm1735, %v1728, %v1732
    %v1737 = vand.u32 2147483647, %v1697
    %vm1738 = vcmp.eq.f32.partialorder %v1737, 8.507059e+37
    %v1739 = vand.u32 %v1697, 2147483648
    %v1740 = vor.u32 1.1754944e-38, %v1739
    %v1741 = vsel %vm1738, %v1740, %v1736
    %v1742 = vmul.f32 %v1688, %v1741
    %s1743 = scalar_lea.vmem %s5, 144
    %1744 = vst.msk [vmem:[%s1743] sm:$0xff] %vm144, %v1712
    %1745 = vst.msk [vmem:[%s1743 + $0x8] sm:$0xff] %vm144, %v1727
    %1746 = vst.msk [vmem:[%s1743 + $0x10] sm:$0x3] %vm151, %v1742
    %1747 = vrot.lane.b32.xlu0 %v1269, 48
    %v1748 = vpop.permute.xlu0 %1747
    %1749 = vrot.lane.b32.xlu0 %v1272, 48
    %v1750 = vpop.permute.xlu0 %1749
    %1751 = vrot.lane.b32.xlu0 %v1275, 48
    %v1752 = vpop.permute.xlu0 %1751
    %v1756 = vsel %vm144, %v1712, 0
    %v1759 = vsel %vm144, %v1727, 0
    %v1762 = vsel %vm144, %v1742, 0
    %v1764 = vsel %vm238, %v1752, 0
    %1766 = vmatpush.msra.mxu0 0.0
    %1767 = vmatpush.msra.mxu0 0.0
    %1768 = vmatpush.msra.mxu0 0.0
    %1769 = vmatpush.msra.mxu0 0.0
    %1770 = vmatpush.msra.mxu0 0.0
    %1771 = vmatpush.msra.mxu0 0.0
    %1772 = vmatpush.msra.mxu0 0.0
    %1773 = vmatpush.msra.mxu0 0.0
    %1774 = vmatpush.msra.mxu0 0.0
    %1775 = vmatpush.msra.mxu0 0.0
    %1776 = vmatpush.msra.mxu0 0.0
    %1777 = vmatpush.msra.mxu0 0.0
    %1778 = vmatpush.msra.mxu0 0.0
    %1779 = vmatpush.msra.mxu0 %v1764
    %1780 = vmatpush.msra.mxu0 %v1750
    %1781 = vmatpush.msra.mxu0 %v1748
    %1782 = vmatmul.f32.gmra.mxu0 %v1756
    %v1783 = vpop.f32.mrf.mxu0
    %v1784 = vadd.f32 0.0, %v1783
    %1785 = vmatmul.f32.gmra.mxu0 %v1759
    %v1786 = vpop.f32.mrf.mxu0
    %v1787 = vadd.f32 0.0, %v1786
    %1788 = vmatmul.f32.gmra.mxu0 %v1762
    %v1789 = vpop.f32.mrf.mxu0
    %v1790 = vadd.f32 0.0, %v1789
    %1791 = vdwg.mxu0
    %1792 = vrot.lane.b32.xlu0 %v1269, 104
    %v1793 = vpop.permute.xlu0 %1792
    %1794 = vrot.lane.b32.xlu0 %v1272, 104
    %v1795 = vpop.permute.xlu0 %1794
    %1796 = vrot.lane.b32.xlu0 %v1275, 104
    %v1797 = vpop.permute.xlu0 %1796
    %1798 = vrot.lane.b32.xlu0 %v1269, 72
    %v1799 = vpop.permute.xlu0 %1798
    %1800 = vrot.lane.b32.xlu0 %v1272, 72
    %v1801 = vpop.permute.xlu0 %1800
    %1802 = vrot.lane.b32.xlu0 %v1275, 72
    %v1803 = vpop.permute.xlu0 %1802
    %v1804 = vsel %vm105, %v1793, 0
    %v1806 = vsel %vm105, %v1795, 0
    %v1808 = vsel %vm105, %v1797, 0
    %v1810 = vsel %vm105, %v1799, 0
    %v1812 = vsel %vm105, %v1801, 0
    %v1814 = vsel %vm105, %v1803, 0
    %1816 = vmatpush.xpose.msra.mxu0 0.0
    %1817 = vmatpush.xpose.msra.mxu0 0.0
    %1818 = vmatpush.xpose.msra.mxu0 0.0
    %1819 = vmatpush.xpose.msra.mxu0 0.0
    %1820 = vmatpush.xpose.msra.mxu0 0.0
    %1821 = vmatpush.xpose.msra.mxu0 0.0
    %1822 = vmatpush.xpose.msra.mxu0 0.0
    %1823 = vmatpush.xpose.msra.mxu0 0.0
    %1824 = vmatpush.xpose.msra.mxu0 0.0
    %1825 = vmatpush.xpose.msra.mxu0 0.0
    %1826 = vmatpush.xpose.msra.mxu0 0.0
    %1827 = vmatpush.xpose.msra.mxu0 0.0
    %1828 = vmatpush.xpose.msra.mxu0 0.0
    %1829 = vmatpush.xpose.msra.mxu0 %v1814
    %1830 = vmatpush.xpose.msra.mxu0 %v1812
    %1831 = vmatpush.xpose.msra.mxu0 %v1810
    %1832 = vmatmul.f32.gmra.mxu0 %v1804
    %v1833 = vpop.f32.mrf.mxu0
    %v1834 = vadd.f32 %v35, %v1833
    %1835 = vmatmul.f32.gmra.mxu0 %v1806
    %v1836 = vpop.f32.mrf.mxu0
    %v1837 = vadd.f32 %v36, %v1836
    %1838 = vmatmul.f32.gmra.mxu0 %v1808
    %v1839 = vpop.f32.mrf.mxu0
    %v1840 = vadd.f32 %v37, %v1839
    %1841 = vdwg.mxu0
    %v1842 = vsel %vm144, %v1834, -inf
    %1843 = vmax.xlane.f32.xlu0 %v1842
    %v1844 = vpop.xlane.xlu0 %1843
    %v1845 = vsel %vm144, %v1837, -inf
    %1846 = vmax.xlane.f32.xlu0 %v1845
    %v1847 = vpop.xlane.xlu0 %1846
    %v1848 = vsel %vm151, %v1840, -inf
    %1849 = vmax.xlane.f32.xlu0 %v1848
    %v1850 = vpop.xlane.xlu0 %1849
    %v1851 = vsub.f32 %v1834, %v1844
    %v1852 = vsub.f32 %v1837, %v1847
    %v1853 = vsub.f32 %v1840, %v1850
    %v1854 = vmul.f32 %v1851, 1.442695
    %v1855 = vpow.pop %v1854
    %v1856 = vmul.f32 %v1852, 1.442695
    %v1857 = vpow.pop %v1856
    %v1858 = vmul.f32 %v1853, 1.442695
    %v1859 = vpow.pop %v1858
    %v1860 = vsel %vm144, %v1855, 0.0
    %1861 = vadd.xlane.f32.xlu0 %v1860
    %v1862 = vpop.xlane.xlu0 %1861
    %v1863 = vsel %vm144, %v1857, 0.0
    %1864 = vadd.xlane.f32.xlu0 %v1863
    %v1865 = vpop.xlane.xlu0 %1864
    %v1866 = vsel %vm151, %v1859, 0.0
    %1867 = vadd.xlane.f32.xlu0 %v1866
    %v1868 = vpop.xlane.xlu0 %1867
    %v1869 = vrcp.pop %v1862
    %v1870 = vmul.f32 %v1862, %v1869
    %v1871 = vsub.f32 1.0, %v1870
    %v1872 = vmul.f32 %v1869, %v1871
    %v1873 = vadd.f32 %v1869, %v1872
    %vm1874 = vweird.f32 %v1862
    %vm1875 = vweird.f32 %v1869
    %vm1876 = vmor %vm1874, %vm1875
    %v1877 = vsel %vm1876, %v1869, %v1873
    %v1878 = vand.u32 2147483647, %v1862
    %vm1879 = vcmp.eq.f32.partialorder %v1878, 8.507059e+37
    %v1880 = vand.u32 %v1862, 2147483648
    %v1881 = vor.u32 1.1754944e-38, %v1880
    %v1882 = vsel %vm1879, %v1881, %v1877
    %v1883 = vmul.f32 %v1855, %v1882
    %v1884 = vrcp.pop %v1865
    %v1885 = vmul.f32 %v1865, %v1884
    %v1886 = vsub.f32 1.0, %v1885
    %v1887 = vmul.f32 %v1884, %v1886
    %v1888 = vadd.f32 %v1884, %v1887
    %vm1889 = vweird.f32 %v1865
    %vm1890 = vweird.f32 %v1884
    %vm1891 = vmor %vm1889, %vm1890
    %v1892 = vsel %vm1891, %v1884, %v1888
    %v1893 = vand.u32 2147483647, %v1865
    %vm1894 = vcmp.eq.f32.partialorder %v1893, 8.507059e+37
    %v1895 = vand.u32 %v1865, 2147483648
    %v1896 = vor.u32 1.1754944e-38, %v1895
    %v1897 = vsel %vm1894, %v1896, %v1892
    %v1898 = vmul.f32 %v1857, %v1897
    %v1899 = vrcp.pop %v1868
    %v1900 = vmul.f32 %v1868, %v1899
    %v1901 = vsub.f32 1.0, %v1900
    %v1902 = vmul.f32 %v1899, %v1901
    %v1903 = vadd.f32 %v1899, %v1902
    %vm1904 = vweird.f32 %v1868
    %vm1905 = vweird.f32 %v1899
    %vm1906 = vmor %vm1904, %vm1905
    %v1907 = vsel %vm1906, %v1899, %v1903
    %v1908 = vand.u32 2147483647, %v1868
    %vm1909 = vcmp.eq.f32.partialorder %v1908, 8.507059e+37
    %v1910 = vand.u32 %v1868, 2147483648
    %v1911 = vor.u32 1.1754944e-38, %v1910
    %v1912 = vsel %vm1909, %v1911, %v1907
    %v1913 = vmul.f32 %v1859, %v1912
    %s1914 = scalar_lea.vmem %s5, 168
    %1915 = vst.msk [vmem:[%s1914] sm:$0xff] %vm144, %v1883
    %1916 = vst.msk [vmem:[%s1914 + $0x8] sm:$0xff] %vm144, %v1898
    %1917 = vst.msk [vmem:[%s1914 + $0x10] sm:$0x3] %vm151, %v1913
    %1918 = vrot.lane.b32.xlu0 %v1269, 40
    %v1919 = vpop.permute.xlu0 %1918
    %1920 = vrot.lane.b32.xlu0 %v1272, 40
    %v1921 = vpop.permute.xlu0 %1920
    %1922 = vrot.lane.b32.xlu0 %v1275, 40
    %v1923 = vpop.permute.xlu0 %1922
    %v1927 = vsel %vm144, %v1883, 0
    %v1930 = vsel %vm144, %v1898, 0
    %v1933 = vsel %vm144, %v1913, 0
    %v1935 = vsel %vm238, %v1923, 0
    %1937 = vmatpush.msra.mxu0 0.0
    %1938 = vmatpush.msra.mxu0 0.0
    %1939 = vmatpush.msra.mxu0 0.0
    %1940 = vmatpush.msra.mxu0 0.0
    %1941 = vmatpush.msra.mxu0 0.0
    %1942 = vmatpush.msra.mxu0 0.0
    %1943 = vmatpush.msra.mxu0 0.0
    %1944 = vmatpush.msra.mxu0 0.0
    %1945 = vmatpush.msra.mxu0 0.0
    %1946 = vmatpush.msra.mxu0 0.0
    %1947 = vmatpush.msra.mxu0 0.0
    %1948 = vmatpush.msra.mxu0 0.0
    %1949 = vmatpush.msra.mxu0 0.0
    %1950 = vmatpush.msra.mxu0 %v1935
    %1951 = vmatpush.msra.mxu0 %v1921
    %1952 = vmatpush.msra.mxu0 %v1919
    %1953 = vmatmul.f32.gmra.mxu0 %v1927
    %v1954 = vpop.f32.mrf.mxu0
    %v1955 = vadd.f32 0.0, %v1954
    %1956 = vmatmul.f32.gmra.mxu0 %v1930
    %v1957 = vpop.f32.mrf.mxu0
    %v1958 = vadd.f32 0.0, %v1957
    %1959 = vmatmul.f32.gmra.mxu0 %v1933
    %v1960 = vpop.f32.mrf.mxu0
    %v1961 = vadd.f32 0.0, %v1960
    %1962 = vdwg.mxu0
    %1966 = vrot.lane.b32.xlu0 %v1613, 8
    %v1967 = vpop.permute.xlu0 %1966
    %1968 = vrot.lane.b32.xlu0 %v1616, 8
    %v1969 = vpop.permute.xlu0 %1968
    %1970 = vrot.lane.b32.xlu0 %v1619, 8
    %v1971 = vpop.permute.xlu0 %1970
    %1978 = vrot.lane.b32.xlu0 %v1784, 16
    %v1979 = vpop.permute.xlu0 %1978
    %1980 = vrot.lane.b32.xlu0 %v1787, 16
    %v1981 = vpop.permute.xlu0 %1980
    %1982 = vrot.lane.b32.xlu0 %v1790, 16
    %v1983 = vpop.permute.xlu0 %1982
    %1990 = vrot.lane.b32.xlu0 %v1955, 24
    %v1991 = vpop.permute.xlu0 %1990
    %1992 = vrot.lane.b32.xlu0 %v1958, 24
    %v1993 = vpop.permute.xlu0 %1992
    %1994 = vrot.lane.b32.xlu0 %v1961, 24
    %v1995 = vpop.permute.xlu0 %1994
    %v1999 = vsel %vm105, %v1442, %v1967
    %v2000 = vsel %vm105, %v1445, %v1969
    %v2001 = vsel %vm105, %v1448, %v1971
    %v2002 = vsel %vm819, %v1999, %v1979
    %v2003 = vsel %vm819, %v2000, %v1981
    %v2004 = vsel %vm819, %v2001, %v1983
    %v2005 = vsel %vm823, %v2002, %v1991
    %v2006 = vsel %vm823, %v2003, %v1993
    %v2007 = vsel %vm823, %v2004, %v1995
    %v2008 = vperm.slane %v1281, 0
    %v2010 = vsel %vm55, %v2005, 0
    %v2013 = vsel %vm55, %v2006, 0
    %v2016 = vsel %vm55, %v2007, 0
    %2018 = vmatpush.msra.mxu0 0.0
    %2019 = vmatpush.msra.mxu0 0.0
    %2020 = vmatpush.msra.mxu0 0.0
    %2021 = vmatpush.msra.mxu0 0.0
    %2022 = vmatpush.msra.mxu0 0.0
    %2023 = vmatpush.msra.mxu0 0.0
    %2024 = vmatpush.msra.mxu0 0.0
    %2025 = vmatpush.msra.mxu0 0.0
    %2026 = vmatpush.msra.mxu0 0.0
    %2027 = vmatpush.msra.mxu0 0.0
    %2028 = vmatpush.msra.mxu0 0.0
    %2029 = vmatpush.msra.mxu0 0.0
    %2030 = vmatpush.msra.mxu0 %v1280
    %2031 = vmatpush.msra.mxu0 %v1279
    %2032 = vmatpush.msra.mxu0 %v1278
    %2033 = vmatpush.msra.mxu0 %v1277
    %2034 = vmatmul.f32.gmra.mxu0 %v2010
    %v2035 = vpop.f32.mrf.mxu0
    %v2036 = vadd.f32 %v2008, %v2035
    %2037 = vmatmul.f32.gmra.mxu0 %v2013
    %v2038 = vpop.f32.mrf.mxu0
    %v2039 = vadd.f32 %v2008, %v2038
    %2040 = vmatmul.f32.gmra.mxu0 %v2016
    %v2041 = vpop.f32.mrf.mxu0
    %v2042 = vadd.f32 %v2008, %v2041
    %2043 = vdwg.mxu0
    %v2044 = vadd.f32 %v1233, %v2036
    %v2045 = vadd.f32 %v1234, %v2039
    %v2046 = vadd.f32 %v1235, %v2042
    %v2047 = vld [vmem:[#allocation2 + $0x130] sm:$0x1]
    %v2048 = vld [vmem:[#allocation2 + $0x138] sm:$0x1]
    %v2049 = vsel %vm55, %v2044, 0.0
    %2050 = vadd.xlane.f32.xlu0 %v2049
    %v2051 = vpop.xlane.xlu0 %2050
    %v2052 = vsel %vm55, %v2045, 0.0
    %2053 = vadd.xlane.f32.xlu0 %v2052
    %v2054 = vpop.xlane.xlu0 %2053
    %v2055 = vsel %vm874, %v2046, 0.0
    %2056 = vadd.xlane.f32.xlu0 %v2055
    %v2057 = vpop.xlane.xlu0 %2056
    %v2058 = vmul.f32 %v2051, %v884
    %v2059 = vmul.f32 %v2054, %v884
    %v2060 = vmul.f32 %v2057, %v884
    %v2061 = vsub.f32 %v2044, %v2058
    %v2062 = vsub.f32 %v2045, %v2059
    %v2063 = vsub.f32 %v2046, %v2060
    %v2064 = vmul.f32 %v2061, %v2061
    %v2065 = vmul.f32 %v2062, %v2062
    %v2066 = vmul.f32 %v2063, %v2063
    %v2067 = vsel %vm55, %v2064, 0.0
    %2068 = vadd.xlane.f32.xlu0 %v2067
    %v2069 = vpop.xlane.xlu0 %2068
    %v2070 = vsel %vm55, %v2065, 0.0
    %2071 = vadd.xlane.f32.xlu0 %v2070
    %v2072 = vpop.xlane.xlu0 %2071
    %v2073 = vsel %vm874, %v2066, 0.0
    %2074 = vadd.xlane.f32.xlu0 %v2073
    %v2075 = vpop.xlane.xlu0 %2074
    %v2076 = vmul.f32 %v2069, %v884
    %v2077 = vmul.f32 %v2072, %v884
    %v2078 = vmul.f32 %v2075, %v884
    %v2079 = vadd.f32 %v2076, 1e-12
    %v2080 = vadd.f32 %v2077, 1e-12
    %v2081 = vadd.f32 %v2078, 1e-12
    %v2082 = vrsqrt.pop %v2079
    %v2083 = vmul.f32 %v2082, %v2079
    %v2084 = vmul.f32 %v2083, %v2082
    %v2085 = vmul.f32 0.5, %v2084
    %v2086 = vsub.f32 1.5, %v2085
    %v2087 = vmul.f32 %v2082, %v2086
    %vm2088 = vweird.f32 %v2079
    %vm2089 = vweird.f32 %v2082
    %vm2090 = vmor %vm2088, %vm2089
    %v2091 = vsel %vm2090, %v2082, %v2087
    %v2092 = vrsqrt.pop %v2080
    %v2093 = vmul.f32 %v2092, %v2080
    %v2094 = vmul.f32 %v2093, %v2092
    %v2095 = vmul.f32 0.5, %v2094
    %v2096 = vsub.f32 1.5, %v2095
    %v2097 = vmul.f32 %v2092, %v2096
    %vm2098 = vweird.f32 %v2080
    %vm2099 = vweird.f32 %v2092
    %vm2100 = vmor %vm2098, %vm2099
    %v2101 = vsel %vm2100, %v2092, %v2097
    %v2102 = vrsqrt.pop %v2081
    %v2103 = vmul.f32 %v2102, %v2081
    %v2104 = vmul.f32 %v2103, %v2102
    %v2105 = vmul.f32 0.5, %v2104
    %v2106 = vsub.f32 1.5, %v2105
    %v2107 = vmul.f32 %v2102, %v2106
    %vm2108 = vweird.f32 %v2081
    %vm2109 = vweird.f32 %v2102
    %vm2110 = vmor %vm2108, %vm2109
    %v2111 = vsel %vm2110, %v2102, %v2107
    %v2112 = vmul.f32 %v2061, %v2091
    %v2113 = vmul.f32 %v2062, %v2101
    %v2114 = vmul.f32 %v2063, %v2111
    %v2115 = vperm.slane %v2047, 0
    %v2116 = vmul.f32 %v2112, %v2115
    %v2117 = vmul.f32 %v2113, %v2115
    %v2118 = vmul.f32 %v2114, %v2115
    %v2119 = vperm.slane %v2048, 0
    %v2120 = vadd.f32 %v2116, %v2119
    %v2121 = vadd.f32 %v2117, %v2119
    %v2122 = vadd.f32 %v2118, %v2119
    %v2123 = vld [vmem:[#allocation2 + $0x140] sm:$0xff]
    %v2124 = vld [vmem:[#allocation2 + $0x148] sm:$0xff]
    %v2125 = vld [vmem:[#allocation2 + $0x150] sm:$0xff]
    %v2126 = vld [vmem:[#allocation2 + $0x158] sm:$0xff]
    %v2127 = vld [vmem:[#allocation2 + $0x160] sm:$0x1]
    %v2128 = vld [vmem:[#allocation2 + $0x168] sm:$0xff]
    %v2129 = vld [vmem:[#allocation2 + $0x170] sm:$0xff]
    %v2130 = vld [vmem:[#allocation2 + $0x178] sm:$0xff]
    %v2131 = vld [vmem:[#allocation2 + $0x180] sm:$0xff]
    %v2132 = vld [vmem:[#allocation2 + $0x188] sm:$0xff]
    %v2133 = vld [vmem:[#allocation2 + $0x190] sm:$0xff]
    %v2134 = vld [vmem:[#allocation2 + $0x198] sm:$0xff]
    %v2135 = vld [vmem:[#allocation2 + $0x1a0] sm:$0xff]
    %v2136 = vld [vmem:[#allocation2 + $0x1a8] sm:$0x1]
    %v2137 = vperm.slane %v2127, 0
    %v2139 = vsel %vm55, %v2120, 0
    %v2142 = vsel %vm55, %v2121, 0
    %v2145 = vsel %vm55, %v2122, 0
    %2147 = vmatpush.msra.mxu0 0.0
    %2148 = vmatpush.msra.mxu0 0.0
    %2149 = vmatpush.msra.mxu0 0.0
    %2150 = vmatpush.msra.mxu0 0.0
    %2151 = vmatpush.msra.mxu0 0.0
    %2152 = vmatpush.msra.mxu0 0.0
    %2153 = vmatpush.msra.mxu0 0.0
    %2154 = vmatpush.msra.mxu0 0.0
    %2155 = vmatpush.msra.mxu0 0.0
    %2156 = vmatpush.msra.mxu0 0.0
    %2157 = vmatpush.msra.mxu0 0.0
    %2158 = vmatpush.msra.mxu0 0.0
    %2159 = vmatpush.msra.mxu0 %v2126
    %2160 = vmatpush.msra.mxu0 %v2125
    %2161 = vmatpush.msra.mxu0 %v2124
    %2162 = vmatpush.msra.mxu0 %v2123
    %2163 = vmatmul.f32.gmra.mxu0 %v2139
    %v2164 = vpop.f32.mrf.mxu0
    %v2165 = vadd.f32 %v2137, %v2164
    %2166 = vmatmul.f32.gmra.mxu0 %v2142
    %v2167 = vpop.f32.mrf.mxu0
    %v2168 = vadd.f32 %v2137, %v2167
    %2169 = vmatmul.f32.gmra.mxu0 %v2145
    %v2170 = vpop.f32.mrf.mxu0
    %v2171 = vadd.f32 %v2137, %v2170
    %2172 = vdwg.mxu0
    %v2173 = vmul.f32 %v2165, 0.5
    %v2174 = vmul.f32 %v2168, 0.5
    %v2175 = vmul.f32 %v2171, 0.5
    %v2176 = vmul.f32 %v2165, 0.70710677
    %v2177 = vmul.f32 %v2168, 0.70710677
    %v2178 = vmul.f32 %v2171, 0.70710677
    %vm2179 = vcmp.ge.f32.partialorder %v2176, 0.0
    %vm2180 = vcmp.ge.f32.partialorder %v2177, 0.0
    %vm2181 = vcmp.ge.f32.partialorder %v2178, 0.0
    %v2182 = vsel %vm2179, 1.0, -1.0
    %v2183 = vsel %vm2180, 1.0, -1.0
    %v2184 = vsel %vm2181, 1.0, -1.0
    %v2185 = vand.u32 2147483647, %v2176
    %v2186 = vand.u32 2147483647, %v2177
    %v2187 = vand.u32 2147483647, %v2178
    %v2188 = vmul.f32 %v2185, 0.3275911
    %v2189 = vmul.f32 %v2186, 0.3275911
    %v2190 = vmul.f32 %v2187, 0.3275911
    %v2191 = vadd.f32 %v2188, 1.0
    %v2192 = vadd.f32 %v2189, 1.0
    %v2193 = vadd.f32 %v2190, 1.0
    %v2194 = vrcp.pop %v2191
    %v2195 = vmul.f32 %v2191, %v2194
    %v2196 = vsub.f32 1.0, %v2195
    %v2197 = vmul.f32 %v2194, %v2196
    %v2198 = vadd.f32 %v2194, %v2197
    %vm2199 = vweird.f32 %v2191
    %vm2200 = vweird.f32 %v2194
    %vm2201 = vmor %vm2199, %vm2200
    %v2202 = vsel %vm2201, %v2194, %v2198
    %v2203 = vand.u32 2147483647, %v2191
    %vm2204 = vcmp.eq.f32.partialorder %v2203, 8.507059e+37
    %v2205 = vand.u32 %v2191, 2147483648
    %v2206 = vor.u32 1.1754944e-38, %v2205
    %v2207 = vsel %vm2204, %v2206, %v2202
    %v2208 = vmul.f32 1.0, %v2207
    %v2209 = vrcp.pop %v2192
    %v2210 = vmul.f32 %v2192, %v2209
    %v2211 = vsub.f32 1.0, %v2210
    %v2212 = vmul.f32 %v2209, %v2211
    %v2213 = vadd.f32 %v2209, %v2212
    %vm2214 = vweird.f32 %v2192
    %vm2215 = vweird.f32 %v2209
    %vm2216 = vmor %vm2214, %vm2215
    %v2217 = vsel %vm2216, %v2209, %v2213
    %v2218 = vand.u32 2147483647, %v2192
    %vm2219 = vcmp.eq.f32.partialorder %v2218, 8.507059e+37
    %v2220 = vand.u32 %v2192, 2147483648
    %v2221 = vor.u32 1.1754944e-38, %v2220
    %v2222 = vsel %vm2219, %v2221, %v2217
    %v2223 = vmul.f32 1.0, %v2222
    %v2224 = vrcp.pop %v2193
    %v2225 = vmul.f32 %v2193, %v2224
    %v2226 = vsub.f32 1.0, %v2225
    %v2227 = vmul.f32 %v2224, %v2226
    %v2228 = vadd.f32 %v2224, %v2227
    %vm2229 = vweird.f32 %v2193
    %vm2230 = vweird.f32 %v2224
    %vm2231 = vmor %vm2229, %vm2230
    %v2232 = vsel %vm2231, %v2224, %v2228
    %v2233 = vand.u32 2147483647, %v2193
    %vm2234 = vcmp.eq.f32.partialorder %v2233, 8.507059e+37
    %v2235 = vand.u32 %v2193, 2147483648
    %v2236 = vor.u32 1.1754944e-38, %v2235
    %v2237 = vsel %vm2234, %v2236, %v2232
    %v2238 = vmul.f32 1.0, %v2237
    %v2239 = vmul.f32 %v2208, 1.0614054
    %v2240 = vmul.f32 %v2223, 1.0614054
    %v2241 = vmul.f32 %v2238, 1.0614054
    %v2242 = vadd.f32 %v2239, -1.4531521
    %v2243 = vadd.f32 %v2240, -1.4531521
    %v2244 = vadd.f32 %v2241, -1.4531521
    %v2245 = vmul.f32 %v2242, %v2208
    %v2246 = vmul.f32 %v2243, %v2223
    %v2247 = vmul.f32 %v2244, %v2238
    %v2248 = vadd.f32 %v2245, 1.4214138
    %v2249 = vadd.f32 %v2246, 1.4214138
    %v2250 = vadd.f32 %v2247, 1.4214138
    %v2251 = vmul.f32 %v2248, %v2208
    %v2252 = vmul.f32 %v2249, %v2223
    %v2253 = vmul.f32 %v2250, %v2238
    %v2254 = vadd.f32 %v2251, -0.28449672
    %v2255 = vadd.f32 %v2252, -0.28449672
    %v2256 = vadd.f32 %v2253, -0.28449672
    %v2257 = vmul.f32 %v2254, %v2208
    %v2258 = vmul.f32 %v2255, %v2223
    %v2259 = vmul.f32 %v2256, %v2238
    %v2260 = vadd.f32 %v2257, 0.2548296
    %v2261 = vadd.f32 %v2258, 0.2548296
    %v2262 = vadd.f32 %v2259, 0.2548296
    %v2263 = vmul.f32 %v2260, %v2208
    %v2264 = vmul.f32 %v2261, %v2223
    %v2265 = vmul.f32 %v2262, %v2238
    %v2266 = vsub.f32 0.0, %v2185
    %v2267 = vsub.f32 0.0, %v2186
    %v2268 = vsub.f32 0.0, %v2187
    %v2269 = vmul.f32 %v2266, %v2185
    %v2270 = vmul.f32 %v2267, %v2186
    %v2271 = vmul.f32 %v2268, %v2187
    %v2272 = vmul.f32 %v2269, 1.442695
    %v2273 = vpow.pop %v2272
    %v2274 = vmul.f32 %v2270, 1.442695
    %v2275 = vpow.pop %v2274
    %v2276 = vmul.f32 %v2271, 1.442695
    %v2277 = vpow.pop %v2276
    %v2278 = vmul.f32 %v2263, %v2273
    %v2279 = vmul.f32 %v2264, %v2275
    %v2280 = vmul.f32 %v2265, %v2277
    %v2281 = vsub.f32 1.0, %v2278
    %v2282 = vsub.f32 1.0, %v2279
    %v2283 = vsub.f32 1.0, %v2280
    %v2284 = vmul.f32 %v2182, %v2281
    %v2285 = vmul.f32 %v2183, %v2282
    %v2286 = vmul.f32 %v2184, %v2283
    %v2287 = vadd.f32 %v2284, 1.0
    %v2288 = vadd.f32 %v2285, 1.0
    %v2289 = vadd.f32 %v2286, 1.0
    %v2290 = vmul.f32 %v2173, %v2287
    %v2291 = vmul.f32 %v2174, %v2288
    %v2292 = vmul.f32 %v2175, %v2289
    %v2293 = vperm.slane %v2136, 0
    %v2295 = vsel %vm1121, %v2290, 0
    %v2298 = vsel %vm1121, %v2291, 0
    %v2301 = vsel %vm1121, %v2292, 0
    %2303 = vmatpush.msra.mxu0 0.0
    %2304 = vmatpush.msra.mxu0 0.0
    %2305 = vmatpush.msra.mxu0 0.0
    %2306 = vmatpush.msra.mxu0 0.0
    %2307 = vmatpush.msra.mxu0 0.0
    %2308 = vmatpush.msra.mxu0 0.0
    %2309 = vmatpush.msra.mxu0 0.0
    %2310 = vmatpush.msra.mxu0 0.0
    %2311 = vmatpush.msra.mxu0 %v2135
    %2312 = vmatpush.msra.mxu0 %v2134
    %2313 = vmatpush.msra.mxu0 %v2133
    %2314 = vmatpush.msra.mxu0 %v2132
    %2315 = vmatpush.msra.mxu0 %v2131
    %2316 = vmatpush.msra.mxu0 %v2130
    %2317 = vmatpush.msra.mxu0 %v2129
    %2318 = vmatpush.msra.mxu0 %v2128
    %2319 = vmatmul.f32.gmra.mxu0 %v2295
    %v2320 = vpop.f32.mrf.mxu0
    %v2321 = vadd.f32 %v2293, %v2320
    %2322 = vmatmul.f32.gmra.mxu0 %v2298
    %v2323 = vpop.f32.mrf.mxu0
    %v2324 = vadd.f32 %v2293, %v2323
    %2325 = vmatmul.f32.gmra.mxu0 %v2301
    %v2326 = vpop.f32.mrf.mxu0
    %v2327 = vadd.f32 %v2293, %v2326
    %2328 = vdwg.mxu0
    %v2329 = vadd.f32 %v2120, %v2321
    %v2330 = vadd.f32 %v2121, %v2324
    %v2331 = vadd.f32 %v2122, %v2327
    %v2332 = vld [vmem:[#allocation2 + $0x1b0] sm:$0x1]
    %v2333 = vld [vmem:[#allocation2 + $0x1b8] sm:$0x1]
    %v2334 = vsel %vm55, %v2329, 0.0
    %2335 = vadd.xlane.f32.xlu0 %v2334
    %v2336 = vpop.xlane.xlu0 %2335
    %v2337 = vsel %vm55, %v2330, 0.0
    %2338 = vadd.xlane.f32.xlu0 %v2337
    %v2339 = vpop.xlane.xlu0 %2338
    %v2340 = vsel %vm874, %v2331, 0.0
    %2341 = vadd.xlane.f32.xlu0 %v2340
    %v2342 = vpop.xlane.xlu0 %2341
    %v2343 = vmul.f32 %v2336, %v884
    %v2344 = vmul.f32 %v2339, %v884
    %v2345 = vmul.f32 %v2342, %v884
    %v2346 = vsub.f32 %v2329, %v2343
    %v2347 = vsub.f32 %v2330, %v2344
    %v2348 = vsub.f32 %v2331, %v2345
    %v2349 = vmul.f32 %v2346, %v2346
    %v2350 = vmul.f32 %v2347, %v2347
    %v2351 = vmul.f32 %v2348, %v2348
    %v2352 = vsel %vm55, %v2349, 0.0
    %2353 = vadd.xlane.f32.xlu0 %v2352
    %v2354 = vpop.xlane.xlu0 %2353
    %v2355 = vsel %vm55, %v2350, 0.0
    %2356 = vadd.xlane.f32.xlu0 %v2355
    %v2357 = vpop.xlane.xlu0 %2356
    %v2358 = vsel %vm874, %v2351, 0.0
    %2359 = vadd.xlane.f32.xlu0 %v2358
    %v2360 = vpop.xlane.xlu0 %2359
    %v2361 = vmul.f32 %v2354, %v884
    %v2362 = vmul.f32 %v2357, %v884
    %v2363 = vmul.f32 %v2360, %v884
    %v2364 = vadd.f32 %v2361, 1e-12
    %v2365 = vadd.f32 %v2362, 1e-12
    %v2366 = vadd.f32 %v2363, 1e-12
    %v2367 = vrsqrt.pop %v2364
    %v2368 = vmul.f32 %v2367, %v2364
    %v2369 = vmul.f32 %v2368, %v2367
    %v2370 = vmul.f32 0.5, %v2369
    %v2371 = vsub.f32 1.5, %v2370
    %v2372 = vmul.f32 %v2367, %v2371
    %vm2373 = vweird.f32 %v2364
    %vm2374 = vweird.f32 %v2367
    %vm2375 = vmor %vm2373, %vm2374
    %v2376 = vsel %vm2375, %v2367, %v2372
    %v2377 = vrsqrt.pop %v2365
    %v2378 = vmul.f32 %v2377, %v2365
    %v2379 = vmul.f32 %v2378, %v2377
    %v2380 = vmul.f32 0.5, %v2379
    %v2381 = vsub.f32 1.5, %v2380
    %v2382 = vmul.f32 %v2377, %v2381
    %vm2383 = vweird.f32 %v2365
    %vm2384 = vweird.f32 %v2377
    %vm2385 = vmor %vm2383, %vm2384
    %v2386 = vsel %vm2385, %v2377, %v2382
    %v2387 = vrsqrt.pop %v2366
    %v2388 = vmul.f32 %v2387, %v2366
    %v2389 = vmul.f32 %v2388, %v2387
    %v2390 = vmul.f32 0.5, %v2389
    %v2391 = vsub.f32 1.5, %v2390
    %v2392 = vmul.f32 %v2387, %v2391
    %vm2393 = vweird.f32 %v2366
    %vm2394 = vweird.f32 %v2387
    %vm2395 = vmor %vm2393, %vm2394
    %v2396 = vsel %vm2395, %v2387, %v2392
    %v2397 = vmul.f32 %v2346, %v2376
    %v2398 = vmul.f32 %v2347, %v2386
    %v2399 = vmul.f32 %v2348, %v2396
    %v2400 = vperm.slane %v2332, 0
    %v2401 = vmul.f32 %v2397, %v2400
    %v2402 = vmul.f32 %v2398, %v2400
    %v2403 = vmul.f32 %v2399, %v2400
    %v2404 = vperm.slane %v2333, 0
    %v2405 = vadd.f32 %v2401, %v2404
    %v2406 = vadd.f32 %v2402, %v2404
    %v2407 = vadd.f32 %v2403, %v2404
    %v2408 = vld [vmem:[#allocation2 + $0x1c0] sm:$0xff]
    %v2409 = vld [vmem:[#allocation2 + $0x1c8] sm:$0xff]
    %v2410 = vld [vmem:[#allocation2 + $0x1d0] sm:$0xff]
    %v2411 = vld [vmem:[#allocation2 + $0x1d8] sm:$0xff]
    %v2412 = vld [vmem:[#allocation2 + $0x1e0] sm:$0x1]
    %v2413 = vperm.slane %v2412, 0
    %v2415 = vsel %vm55, %v2405, 0
    %v2418 = vsel %vm55, %v2406, 0
    %v2421 = vsel %vm55, %v2407, 0
    %2423 = vmatpush.msra.mxu0 0.0
    %2424 = vmatpush.msra.mxu0 0.0
    %2425 = vmatpush.msra.mxu0 0.0
    %2426 = vmatpush.msra.mxu0 0.0
    %2427 = vmatpush.msra.mxu0 0.0
    %2428 = vmatpush.msra.mxu0 0.0
    %2429 = vmatpush.msra.mxu0 0.0
    %2430 = vmatpush.msra.mxu0 0.0
    %2431 = vmatpush.msra.mxu0 0.0
    %2432 = vmatpush.msra.mxu0 0.0
    %2433 = vmatpush.msra.mxu0 0.0
    %2434 = vmatpush.msra.mxu0 0.0
    %2435 = vmatpush.msra.mxu0 %v2411
    %2436 = vmatpush.msra.mxu0 %v2410
    %2437 = vmatpush.msra.mxu0 %v2409
    %2438 = vmatpush.msra.mxu0 %v2408
    %2439 = vmatmul.f32.gmra.mxu0 %v2415
    %v2440 = vpop.f32.mrf.mxu0
    %v2441 = vadd.f32 %v2413, %v2440
    %2442 = vmatmul.f32.gmra.mxu0 %v2418
    %v2443 = vpop.f32.mrf.mxu0
    %v2444 = vadd.f32 %v2413, %v2443
    %2445 = vmatmul.f32.gmra.mxu0 %v2421
    %v2446 = vpop.f32.mrf.mxu0
    %v2447 = vadd.f32 %v2413, %v2446
    %2448 = vdwg.mxu0
    %v2449 = vld [vmem:[%s2] sm:$0xff]
    %v2450 = vld [vmem:[%s2 + $0x8] sm:$0xff]
    %v2451 = vld [vmem:[%s2 + $0x10] sm:$0x3]
    %v2452 = vld [vmem:[#allocation2 + $0x1e8] sm:$0xff]
    %v2453 = vld [vmem:[#allocation2 + $0x1f0] sm:$0xff]
    %v2454 = vld [vmem:[#allocation2 + $0x1f8] sm:$0xff]
    %v2455 = vld [vmem:[#allocation2 + $0x200] sm:$0xff]
    %v2456 = vld [vmem:[#allocation2 + $0x208] sm:$0x1]
    %v2457 = vperm.slane %v2456, 0
    %v2459 = vsel %vm55, %v2449, 0
    %v2462 = vsel %vm55, %v2450, 0
    %v2465 = vsel %vm55, %v2451, 0
    %2467 = vmatpush.msra.mxu0 0.0
    %2468 = vmatpush.msra.mxu0 0.0
    %2469 = vmatpush.msra.mxu0 0.0
    %2470 = vmatpush.msra.mxu0 0.0
    %2471 = vmatpush.msra.mxu0 0.0
    %2472 = vmatpush.msra.mxu0 0.0
    %2473 = vmatpush.msra.mxu0 0.0
    %2474 = vmatpush.msra.mxu0 0.0
    %2475 = vmatpush.msra.mxu0 0.0
    %2476 = vmatpush.msra.mxu0 0.0
    %2477 = vmatpush.msra.mxu0 0.0
    %2478 = vmatpush.msra.mxu0 0.0
    %2479 = vmatpush.msra.mxu0 %v2455
    %2480 = vmatpush.msra.mxu0 %v2454
    %2481 = vmatpush.msra.mxu0 %v2453
    %2482 = vmatpush.msra.mxu0 %v2452
    %2483 = vmatmul.f32.gmra.mxu0 %v2459
    %v2484 = vpop.f32.mrf.mxu0
    %v2485 = vadd.f32 %v2457, %v2484
    %2486 = vmatmul.f32.gmra.mxu0 %v2462
    %v2487 = vpop.f32.mrf.mxu0
    %v2488 = vadd.f32 %v2457, %v2487
    %2489 = vmatmul.f32.gmra.mxu0 %v2465
    %v2490 = vpop.f32.mrf.mxu0
    %v2491 = vadd.f32 %v2457, %v2490
    %2492 = vdwg.mxu0
    %v2493 = vld [vmem:[#allocation2 + $0x210] sm:$0xff]
    %v2494 = vld [vmem:[#allocation2 + $0x218] sm:$0xff]
    %v2495 = vld [vmem:[#allocation2 + $0x220] sm:$0xff]
    %v2496 = vld [vmem:[#allocation2 + $0x228] sm:$0xff]
    %v2497 = vld [vmem:[#allocation2 + $0x230] sm:$0x1]
    %2501 = vrot.lane.b32.xlu0 %v2485, 96
    %v2502 = vpop.permute.xlu0 %2501
    %2503 = vrot.lane.b32.xlu0 %v2488, 96
    %v2504 = vpop.permute.xlu0 %2503
    %2505 = vrot.lane.b32.xlu0 %v2491, 96
    %v2506 = vpop.permute.xlu0 %2505
    %v2507 = vsel %vm105, %v2485, 0
    %v2509 = vsel %vm105, %v2488, 0
    %v2511 = vsel %vm105, %v2491, 0
    %v2513 = vsel %vm105, %v2502, 0
    %v2515 = vsel %vm105, %v2504, 0
    %v2517 = vsel %vm105, %v2506, 0
    %2519 = vmatpush.xpose.msra.mxu0 0.0
    %2520 = vmatpush.xpose.msra.mxu0 0.0
    %2521 = vmatpush.xpose.msra.mxu0 0.0
    %2522 = vmatpush.xpose.msra.mxu0 0.0
    %2523 = vmatpush.xpose.msra.mxu0 0.0
    %2524 = vmatpush.xpose.msra.mxu0 0.0
    %2525 = vmatpush.xpose.msra.mxu0 0.0
    %2526 = vmatpush.xpose.msra.mxu0 0.0
    %2527 = vmatpush.xpose.msra.mxu0 0.0
    %2528 = vmatpush.xpose.msra.mxu0 0.0
    %2529 = vmatpush.xpose.msra.mxu0 0.0
    %2530 = vmatpush.xpose.msra.mxu0 0.0
    %2531 = vmatpush.xpose.msra.mxu0 0.0
    %2532 = vmatpush.xpose.msra.mxu0 %v2517
    %2533 = vmatpush.xpose.msra.mxu0 %v2515
    %2534 = vmatpush.xpose.msra.mxu0 %v2513
    %2535 = vmatmul.f32.gmra.mxu0 %v2507
    %v2536 = vpop.f32.mrf.mxu0
    %v2537 = vadd.f32 %v39, %v2536
    %2538 = vmatmul.f32.gmra.mxu0 %v2509
    %v2539 = vpop.f32.mrf.mxu0
    %v2540 = vadd.f32 %v40, %v2539
    %2541 = vmatmul.f32.gmra.mxu0 %v2511
    %v2542 = vpop.f32.mrf.mxu0
    %v2543 = vadd.f32 %v41, %v2542
    %2544 = vdwg.mxu0
    %v2545 = vsel %vm144, %v2537, -inf
    %2546 = vmax.xlane.f32.xlu0 %v2545
    %v2547 = vpop.xlane.xlu0 %2546
    %v2548 = vsel %vm144, %v2540, -inf
    %2549 = vmax.xlane.f32.xlu0 %v2548
    %v2550 = vpop.xlane.xlu0 %2549
    %v2551 = vsel %vm151, %v2543, -inf
    %2552 = vmax.xlane.f32.xlu0 %v2551
    %v2553 = vpop.xlane.xlu0 %2552
    %v2554 = vsub.f32 %v2537, %v2547
    %v2555 = vsub.f32 %v2540, %v2550
    %v2556 = vsub.f32 %v2543, %v2553
    %v2557 = vmul.f32 %v2554, 1.442695
    %v2558 = vpow.pop %v2557
    %v2559 = vmul.f32 %v2555, 1.442695
    %v2560 = vpow.pop %v2559
    %v2561 = vmul.f32 %v2556, 1.442695
    %v2562 = vpow.pop %v2561
    %v2563 = vsel %vm144, %v2558, 0.0
    %2564 = vadd.xlane.f32.xlu0 %v2563
    %v2565 = vpop.xlane.xlu0 %2564
    %v2566 = vsel %vm144, %v2560, 0.0
    %2567 = vadd.xlane.f32.xlu0 %v2566
    %v2568 = vpop.xlane.xlu0 %2567
    %v2569 = vsel %vm151, %v2562, 0.0
    %2570 = vadd.xlane.f32.xlu0 %v2569
    %v2571 = vpop.xlane.xlu0 %2570
    %v2572 = vrcp.pop %v2565
    %v2573 = vmul.f32 %v2565, %v2572
    %v2574 = vsub.f32 1.0, %v2573
    %v2575 = vmul.f32 %v2572, %v2574
    %v2576 = vadd.f32 %v2572, %v2575
    %vm2577 = vweird.f32 %v2565
    %vm2578 = vweird.f32 %v2572
    %vm2579 = vmor %vm2577, %vm2578
    %v2580 = vsel %vm2579, %v2572, %v2576
    %v2581 = vand.u32 2147483647, %v2565
    %vm2582 = vcmp.eq.f32.partialorder %v2581, 8.507059e+37
    %v2583 = vand.u32 %v2565, 2147483648
    %v2584 = vor.u32 1.1754944e-38, %v2583
    %v2585 = vsel %vm2582, %v2584, %v2580
    %v2586 = vmul.f32 %v2558, %v2585
    %v2587 = vrcp.pop %v2568
    %v2588 = vmul.f32 %v2568, %v2587
    %v2589 = vsub.f32 1.0, %v2588
    %v2590 = vmul.f32 %v2587, %v2589
    %v2591 = vadd.f32 %v2587, %v2590
    %vm2592 = vweird.f32 %v2568
    %vm2593 = vweird.f32 %v2587
    %vm2594 = vmor %vm2592, %vm2593
    %v2595 = vsel %vm2594, %v2587, %v2591
    %v2596 = vand.u32 2147483647, %v2568
    %vm2597 = vcmp.eq.f32.partialorder %v2596, 8.507059e+37
    %v2598 = vand.u32 %v2568, 2147483648
    %v2599 = vor.u32 1.1754944e-38, %v2598
    %v2600 = vsel %vm2597, %v2599, %v2595
    %v2601 = vmul.f32 %v2560, %v2600
    %v2602 = vrcp.pop %v2571
    %v2603 = vmul.f32 %v2571, %v2602
    %v2604 = vsub.f32 1.0, %v2603
    %v2605 = vmul.f32 %v2602, %v2604
    %v2606 = vadd.f32 %v2602, %v2605
    %vm2607 = vweird.f32 %v2571
    %vm2608 = vweird.f32 %v2602
    %vm2609 = vmor %vm2607, %vm2608
    %v2610 = vsel %vm2609, %v2602, %v2606
    %v2611 = vand.u32 2147483647, %v2571
    %vm2612 = vcmp.eq.f32.partialorder %v2611, 8.507059e+37
    %v2613 = vand.u32 %v2571, 2147483648
    %v2614 = vor.u32 1.1754944e-38, %v2613
    %v2615 = vsel %vm2612, %v2614, %v2610
    %v2616 = vmul.f32 %v2562, %v2615
    %s2617 = scalar_lea.vmem %s5, 192
    %2618 = vst.msk [vmem:[%s2617] sm:$0xff] %vm144, %v2586
    %2619 = vst.msk [vmem:[%s2617 + $0x8] sm:$0xff] %vm144, %v2601
    %2620 = vst.msk [vmem:[%s2617 + $0x10] sm:$0x3] %vm151, %v2616
    %2621 = vrot.lane.b32.xlu0 %v2485, 64
    %v2622 = vpop.permute.xlu0 %2621
    %2623 = vrot.lane.b32.xlu0 %v2488, 64
    %v2624 = vpop.permute.xlu0 %2623
    %2625 = vrot.lane.b32.xlu0 %v2491, 64
    %v2626 = vpop.permute.xlu0 %2625
    %v2630 = vsel %vm144, %v2586, 0
    %v2633 = vsel %vm144, %v2601, 0
    %v2636 = vsel %vm144, %v2616, 0
    %v2638 = vsel %vm238, %v2626, 0
    %2640 = vmatpush.msra.mxu0 0.0
    %2641 = vmatpush.msra.mxu0 0.0
    %2642 = vmatpush.msra.mxu0 0.0
    %2643 = vmatpush.msra.mxu0 0.0
    %2644 = vmatpush.msra.mxu0 0.0
    %2645 = vmatpush.msra.mxu0 0.0
    %2646 = vmatpush.msra.mxu0 0.0
    %2647 = vmatpush.msra.mxu0 0.0
    %2648 = vmatpush.msra.mxu0 0.0
    %2649 = vmatpush.msra.mxu0 0.0
    %2650 = vmatpush.msra.mxu0 0.0
    %2651 = vmatpush.msra.mxu0 0.0
    %2652 = vmatpush.msra.mxu0 0.0
    %2653 = vmatpush.msra.mxu0 %v2638
    %2654 = vmatpush.msra.mxu0 %v2624
    %2655 = vmatpush.msra.mxu0 %v2622
    %2656 = vmatmul.f32.gmra.mxu0 %v2630
    %v2657 = vpop.f32.mrf.mxu0
    %v2658 = vadd.f32 0.0, %v2657
    %2659 = vmatmul.f32.gmra.mxu0 %v2633
    %v2660 = vpop.f32.mrf.mxu0
    %v2661 = vadd.f32 0.0, %v2660
    %2662 = vmatmul.f32.gmra.mxu0 %v2636
    %v2663 = vpop.f32.mrf.mxu0
    %v2664 = vadd.f32 0.0, %v2663
    %2665 = vdwg.mxu0
    %2666 = vrot.lane.b32.xlu0 %v2485, 120
    %v2667 = vpop.permute.xlu0 %2666
    %2668 = vrot.lane.b32.xlu0 %v2488, 120
    %v2669 = vpop.permute.xlu0 %2668
    %2670 = vrot.lane.b32.xlu0 %v2491, 120
    %v2671 = vpop.permute.xlu0 %2670
    %2672 = vrot.lane.b32.xlu0 %v2485, 88
    %v2673 = vpop.permute.xlu0 %2672
    %2674 = vrot.lane.b32.xlu0 %v2488, 88
    %v2675 = vpop.permute.xlu0 %2674
    %2676 = vrot.lane.b32.xlu0 %v2491, 88
    %v2677 = vpop.permute.xlu0 %2676
    %v2678 = vsel %vm105, %v2667, 0
    %v2680 = vsel %vm105, %v2669, 0
    %v2682 = vsel %vm105, %v2671, 0
    %v2684 = vsel %vm105, %v2673, 0
    %v2686 = vsel %vm105, %v2675, 0
    %v2688 = vsel %vm105, %v2677, 0
    %2690 = vmatpush.xpose.msra.mxu0 0.0
    %2691 = vmatpush.xpose.msra.mxu0 0.0
    %2692 = vmatpush.xpose.msra.mxu0 0.0
    %2693 = vmatpush.xpose.msra.mxu0 0.0
    %2694 = vmatpush.xpose.msra.mxu0 0.0
    %2695 = vmatpush.xpose.msra.mxu0 0.0
    %2696 = vmatpush.xpose.msra.mxu0 0.0
    %2697 = vmatpush.xpose.msra.mxu0 0.0
    %2698 = vmatpush.xpose.msra.mxu0 0.0
    %2699 = vmatpush.xpose.msra.mxu0 0.0
    %2700 = vmatpush.xpose.msra.mxu0 0.0
    %2701 = vmatpush.xpose.msra.mxu0 0.0
    %2702 = vmatpush.xpose.msra.mxu0 0.0
    %2703 = vmatpush.xpose.msra.mxu0 %v2688
    %2704 = vmatpush.xpose.msra.mxu0 %v2686
    %2705 = vmatpush.xpose.msra.mxu0 %v2684
    %2706 = vmatmul.f32.gmra.mxu0 %v2678
    %v2707 = vpop.f32.mrf.mxu0
    %v2708 = vadd.f32 %v39, %v2707
    %2709 = vmatmul.f32.gmra.mxu0 %v2680
    %v2710 = vpop.f32.mrf.mxu0
    %v2711 = vadd.f32 %v40, %v2710
    %2712 = vmatmul.f32.gmra.mxu0 %v2682
    %v2713 = vpop.f32.mrf.mxu0
    %v2714 = vadd.f32 %v41, %v2713
    %2715 = vdwg.mxu0
    %v2716 = vsel %vm144, %v2708, -inf
    %2717 = vmax.xlane.f32.xlu0 %v2716
    %v2718 = vpop.xlane.xlu0 %2717
    %v2719 = vsel %vm144, %v2711, -inf
    %2720 = vmax.xlane.f32.xlu0 %v2719
    %v2721 = vpop.xlane.xlu0 %2720
    %v2722 = vsel %vm151, %v2714, -inf
    %2723 = vmax.xlane.f32.xlu0 %v2722
    %v2724 = vpop.xlane.xlu0 %2723
    %v2725 = vsub.f32 %v2708, %v2718
    %v2726 = vsub.f32 %v2711, %v2721
    %v2727 = vsub.f32 %v2714, %v2724
    %v2728 = vmul.f32 %v2725, 1.442695
    %v2729 = vpow.pop %v2728
    %v2730 = vmul.f32 %v2726, 1.442695
    %v2731 = vpow.pop %v2730
    %v2732 = vmul.f32 %v2727, 1.442695
    %v2733 = vpow.pop %v2732
    %v2734 = vsel %vm144, %v2729, 0.0
    %2735 = vadd.xlane.f32.xlu0 %v2734
    %v2736 = vpop.xlane.xlu0 %2735
    %v2737 = vsel %vm144, %v2731, 0.0
    %2738 = vadd.xlane.f32.xlu0 %v2737
    %v2739 = vpop.xlane.xlu0 %2738
    %v2740 = vsel %vm151, %v2733, 0.0
    %2741 = vadd.xlane.f32.xlu0 %v2740
    %v2742 = vpop.xlane.xlu0 %2741
    %v2743 = vrcp.pop %v2736
    %v2744 = vmul.f32 %v2736, %v2743
    %v2745 = vsub.f32 1.0, %v2744
    %v2746 = vmul.f32 %v2743, %v2745
    %v2747 = vadd.f32 %v2743, %v2746
    %vm2748 = vweird.f32 %v2736
    %vm2749 = vweird.f32 %v2743
    %vm2750 = vmor %vm2748, %vm2749
    %v2751 = vsel %vm2750, %v2743, %v2747
    %v2752 = vand.u32 2147483647, %v2736
    %vm2753 = vcmp.eq.f32.partialorder %v2752, 8.507059e+37
    %v2754 = vand.u32 %v2736, 2147483648
    %v2755 = vor.u32 1.1754944e-38, %v2754
    %v2756 = vsel %vm2753, %v2755, %v2751
    %v2757 = vmul.f32 %v2729, %v2756
    %v2758 = vrcp.pop %v2739
    %v2759 = vmul.f32 %v2739, %v2758
    %v2760 = vsub.f32 1.0, %v2759
    %v2761 = vmul.f32 %v2758, %v2760
    %v2762 = vadd.f32 %v2758, %v2761
    %vm2763 = vweird.f32 %v2739
    %vm2764 = vweird.f32 %v2758
    %vm2765 = vmor %vm2763, %vm2764
    %v2766 = vsel %vm2765, %v2758, %v2762
    %v2767 = vand.u32 2147483647, %v2739
    %vm2768 = vcmp.eq.f32.partialorder %v2767, 8.507059e+37
    %v2769 = vand.u32 %v2739, 2147483648
    %v2770 = vor.u32 1.1754944e-38, %v2769
    %v2771 = vsel %vm2768, %v2770, %v2766
    %v2772 = vmul.f32 %v2731, %v2771
    %v2773 = vrcp.pop %v2742
    %v2774 = vmul.f32 %v2742, %v2773
    %v2775 = vsub.f32 1.0, %v2774
    %v2776 = vmul.f32 %v2773, %v2775
    %v2777 = vadd.f32 %v2773, %v2776
    %vm2778 = vweird.f32 %v2742
    %vm2779 = vweird.f32 %v2773
    %vm2780 = vmor %vm2778, %vm2779
    %v2781 = vsel %vm2780, %v2773, %v2777
    %v2782 = vand.u32 2147483647, %v2742
    %vm2783 = vcmp.eq.f32.partialorder %v2782, 8.507059e+37
    %v2784 = vand.u32 %v2742, 2147483648
    %v2785 = vor.u32 1.1754944e-38, %v2784
    %v2786 = vsel %vm2783, %v2785, %v2781
    %v2787 = vmul.f32 %v2733, %v2786
    %s2788 = scalar_lea.vmem %s5, 216
    %2789 = vst.msk [vmem:[%s2788] sm:$0xff] %vm144, %v2757
    %2790 = vst.msk [vmem:[%s2788 + $0x8] sm:$0xff] %vm144, %v2772
    %2791 = vst.msk [vmem:[%s2788 + $0x10] sm:$0x3] %vm151, %v2787
    %2792 = vrot.lane.b32.xlu0 %v2485, 56
    %v2793 = vpop.permute.xlu0 %2792
    %2794 = vrot.lane.b32.xlu0 %v2488, 56
    %v2795 = vpop.permute.xlu0 %2794
    %2796 = vrot.lane.b32.xlu0 %v2491, 56
    %v2797 = vpop.permute.xlu0 %2796
    %v2801 = vsel %vm144, %v2757, 0
    %v2804 = vsel %vm144, %v2772, 0
    %v2807 = vsel %vm144, %v2787, 0
    %v2809 = vsel %vm238, %v2797, 0
    %2811 = vmatpush.msra.mxu0 0.0
    %2812 = vmatpush.msra.mxu0 0.0
    %2813 = vmatpush.msra.mxu0 0.0
    %2814 = vmatpush.msra.mxu0 0.0
    %2815 = vmatpush.msra.mxu0 0.0
    %2816 = vmatpush.msra.mxu0 0.0
    %2817 = vmatpush.msra.mxu0 0.0
    %2818 = vmatpush.msra.mxu0 0.0
    %2819 = vmatpush.msra.mxu0 0.0
    %2820 = vmatpush.msra.mxu0 0.0
    %2821 = vmatpush.msra.mxu0 0.0
    %2822 = vmatpush.msra.mxu0 0.0
    %2823 = vmatpush.msra.mxu0 0.0
    %2824 = vmatpush.msra.mxu0 %v2809
    %2825 = vmatpush.msra.mxu0 %v2795
    %2826 = vmatpush.msra.mxu0 %v2793
    %2827 = vmatmul.f32.gmra.mxu0 %v2801
    %v2828 = vpop.f32.mrf.mxu0
    %v2829 = vadd.f32 0.0, %v2828
    %2830 = vmatmul.f32.gmra.mxu0 %v2804
    %v2831 = vpop.f32.mrf.mxu0
    %v2832 = vadd.f32 0.0, %v2831
    %2833 = vmatmul.f32.gmra.mxu0 %v2807
    %v2834 = vpop.f32.mrf.mxu0
    %v2835 = vadd.f32 0.0, %v2834
    %2836 = vdwg.mxu0
    %2837 = vrot.lane.b32.xlu0 %v2485, 112
    %v2838 = vpop.permute.xlu0 %2837
    %2839 = vrot.lane.b32.xlu0 %v2488, 112
    %v2840 = vpop.permute.xlu0 %2839
    %2841 = vrot.lane.b32.xlu0 %v2491, 112
    %v2842 = vpop.permute.xlu0 %2841
    %2843 = vrot.lane.b32.xlu0 %v2485, 80
    %v2844 = vpop.permute.xlu0 %2843
    %2845 = vrot.lane.b32.xlu0 %v2488, 80
    %v2846 = vpop.permute.xlu0 %2845
    %2847 = vrot.lane.b32.xlu0 %v2491, 80
    %v2848 = vpop.permute.xlu0 %2847
    %v2849 = vsel %vm105, %v2838, 0
    %v2851 = vsel %vm105, %v2840, 0
    %v2853 = vsel %vm105, %v2842, 0
    %v2855 = vsel %vm105, %v2844, 0
    %v2857 = vsel %vm105, %v2846, 0
    %v2859 = vsel %vm105, %v2848, 0
    %2861 = vmatpush.xpose.msra.mxu0 0.0
    %2862 = vmatpush.xpose.msra.mxu0 0.0
    %2863 = vmatpush.xpose.msra.mxu0 0.0
    %2864 = vmatpush.xpose.msra.mxu0 0.0
    %2865 = vmatpush.xpose.msra.mxu0 0.0
    %2866 = vmatpush.xpose.msra.mxu0 0.0
    %2867 = vmatpush.xpose.msra.mxu0 0.0
    %2868 = vmatpush.xpose.msra.mxu0 0.0
    %2869 = vmatpush.xpose.msra.mxu0 0.0
    %2870 = vmatpush.xpose.msra.mxu0 0.0
    %2871 = vmatpush.xpose.msra.mxu0 0.0
    %2872 = vmatpush.xpose.msra.mxu0 0.0
    %2873 = vmatpush.xpose.msra.mxu0 0.0
    %2874 = vmatpush.xpose.msra.mxu0 %v2859
    %2875 = vmatpush.xpose.msra.mxu0 %v2857
    %2876 = vmatpush.xpose.msra.mxu0 %v2855
    %2877 = vmatmul.f32.gmra.mxu0 %v2849
    %v2878 = vpop.f32.mrf.mxu0
    %v2879 = vadd.f32 %v39, %v2878
    %2880 = vmatmul.f32.gmra.mxu0 %v2851
    %v2881 = vpop.f32.mrf.mxu0
    %v2882 = vadd.f32 %v40, %v2881
    %2883 = vmatmul.f32.gmra.mxu0 %v2853
    %v2884 = vpop.f32.mrf.mxu0
    %v2885 = vadd.f32 %v41, %v2884
    %2886 = vdwg.mxu0
    %v2887 = vsel %vm144, %v2879, -inf
    %2888 = vmax.xlane.f32.xlu0 %v2887
    %v2889 = vpop.xlane.xlu0 %2888
    %v2890 = vsel %vm144, %v2882, -inf
    %2891 = vmax.xlane.f32.xlu0 %v2890
    %v2892 = vpop.xlane.xlu0 %2891
    %v2893 = vsel %vm151, %v2885, -inf
    %2894 = vmax.xlane.f32.xlu0 %v2893
    %v2895 = vpop.xlane.xlu0 %2894
    %v2896 = vsub.f32 %v2879, %v2889
    %v2897 = vsub.f32 %v2882, %v2892
    %v2898 = vsub.f32 %v2885, %v2895
    %v2899 = vmul.f32 %v2896, 1.442695
    %v2900 = vpow.pop %v2899
    %v2901 = vmul.f32 %v2897, 1.442695
    %v2902 = vpow.pop %v2901
    %v2903 = vmul.f32 %v2898, 1.442695
    %v2904 = vpow.pop %v2903
    %v2905 = vsel %vm144, %v2900, 0.0
    %2906 = vadd.xlane.f32.xlu0 %v2905
    %v2907 = vpop.xlane.xlu0 %2906
    %v2908 = vsel %vm144, %v2902, 0.0
    %2909 = vadd.xlane.f32.xlu0 %v2908
    %v2910 = vpop.xlane.xlu0 %2909
    %v2911 = vsel %vm151, %v2904, 0.0
    %2912 = vadd.xlane.f32.xlu0 %v2911
    %v2913 = vpop.xlane.xlu0 %2912
    %v2914 = vrcp.pop %v2907
    %v2915 = vmul.f32 %v2907, %v2914
    %v2916 = vsub.f32 1.0, %v2915
    %v2917 = vmul.f32 %v2914, %v2916
    %v2918 = vadd.f32 %v2914, %v2917
    %vm2919 = vweird.f32 %v2907
    %vm2920 = vweird.f32 %v2914
    %vm2921 = vmor %vm2919, %vm2920
    %v2922 = vsel %vm2921, %v2914, %v2918
    %v2923 = vand.u32 2147483647, %v2907
    %vm2924 = vcmp.eq.f32.partialorder %v2923, 8.507059e+37
    %v2925 = vand.u32 %v2907, 2147483648
    %v2926 = vor.u32 1.1754944e-38, %v2925
    %v2927 = vsel %vm2924, %v2926, %v2922
    %v2928 = vmul.f32 %v2900, %v2927
    %v2929 = vrcp.pop %v2910
    %v2930 = vmul.f32 %v2910, %v2929
    %v2931 = vsub.f32 1.0, %v2930
    %v2932 = vmul.f32 %v2929, %v2931
    %v2933 = vadd.f32 %v2929, %v2932
    %vm2934 = vweird.f32 %v2910
    %vm2935 = vweird.f32 %v2929
    %vm2936 = vmor %vm2934, %vm2935
    %v2937 = vsel %vm2936, %v2929, %v2933
    %v2938 = vand.u32 2147483647, %v2910
    %vm2939 = vcmp.eq.f32.partialorder %v2938, 8.507059e+37
    %v2940 = vand.u32 %v2910, 2147483648
    %v2941 = vor.u32 1.1754944e-38, %v2940
    %v2942 = vsel %vm2939, %v2941, %v2937
    %v2943 = vmul.f32 %v2902, %v2942
    %v2944 = vrcp.pop %v2913
    %v2945 = vmul.f32 %v2913, %v2944
    %v2946 = vsub.f32 1.0, %v2945
    %v2947 = vmul.f32 %v2944, %v2946
    %v2948 = vadd.f32 %v2944, %v2947
    %vm2949 = vweird.f32 %v2913
    %vm2950 = vweird.f32 %v2944
    %vm2951 = vmor %vm2949, %vm2950
    %v2952 = vsel %vm2951, %v2944, %v2948
    %v2953 = vand.u32 2147483647, %v2913
    %vm2954 = vcmp.eq.f32.partialorder %v2953, 8.507059e+37
    %v2955 = vand.u32 %v2913, 2147483648
    %v2956 = vor.u32 1.1754944e-38, %v2955
    %v2957 = vsel %vm2954, %v2956, %v2952
    %v2958 = vmul.f32 %v2904, %v2957
    %s2959 = scalar_lea.vmem %s5, 240
    %2960 = vst.msk [vmem:[%s2959] sm:$0xff] %vm144, %v2928
    %2961 = vst.msk [vmem:[%s2959 + $0x8] sm:$0xff] %vm144, %v2943
    %2962 = vst.msk [vmem:[%s2959 + $0x10] sm:$0x3] %vm151, %v2958
    %2963 = vrot.lane.b32.xlu0 %v2485, 48
    %v2964 = vpop.permute.xlu0 %2963
    %2965 = vrot.lane.b32.xlu0 %v2488, 48
    %v2966 = vpop.permute.xlu0 %2965
    %2967 = vrot.lane.b32.xlu0 %v2491, 48
    %v2968 = vpop.permute.xlu0 %2967
    %v2972 = vsel %vm144, %v2928, 0
    %v2975 = vsel %vm144, %v2943, 0
    %v2978 = vsel %vm144, %v2958, 0
    %v2980 = vsel %vm238, %v2968, 0
    %2982 = vmatpush.msra.mxu0 0.0
    %2983 = vmatpush.msra.mxu0 0.0
    %2984 = vmatpush.msra.mxu0 0.0
    %2985 = vmatpush.msra.mxu0 0.0
    %2986 = vmatpush.msra.mxu0 0.0
    %2987 = vmatpush.msra.mxu0 0.0
    %2988 = vmatpush.msra.mxu0 0.0
    %2989 = vmatpush.msra.mxu0 0.0
    %2990 = vmatpush.msra.mxu0 0.0
    %2991 = vmatpush.msra.mxu0 0.0
    %2992 = vmatpush.msra.mxu0 0.0
    %2993 = vmatpush.msra.mxu0 0.0
    %2994 = vmatpush.msra.mxu0 0.0
    %2995 = vmatpush.msra.mxu0 %v2980
    %2996 = vmatpush.msra.mxu0 %v2966
    %2997 = vmatpush.msra.mxu0 %v2964
    %2998 = vmatmul.f32.gmra.mxu0 %v2972
    %v2999 = vpop.f32.mrf.mxu0
    %v3000 = vadd.f32 0.0, %v2999
    %3001 = vmatmul.f32.gmra.mxu0 %v2975
    %v3002 = vpop.f32.mrf.mxu0
    %v3003 = vadd.f32 0.0, %v3002
    %3004 = vmatmul.f32.gmra.mxu0 %v2978
    %v3005 = vpop.f32.mrf.mxu0
    %v3006 = vadd.f32 0.0, %v3005
    %3007 = vdwg.mxu0
    %3008 = vrot.lane.b32.xlu0 %v2485, 104
    %v3009 = vpop.permute.xlu0 %3008
    %3010 = vrot.lane.b32.xlu0 %v2488, 104
    %v3011 = vpop.permute.xlu0 %3010
    %3012 = vrot.lane.b32.xlu0 %v2491, 104
    %v3013 = vpop.permute.xlu0 %3012
    %3014 = vrot.lane.b32.xlu0 %v2485, 72
    %v3015 = vpop.permute.xlu0 %3014
    %3016 = vrot.lane.b32.xlu0 %v2488, 72
    %v3017 = vpop.permute.xlu0 %3016
    %3018 = vrot.lane.b32.xlu0 %v2491, 72
    %v3019 = vpop.permute.xlu0 %3018
    %v3020 = vsel %vm105, %v3009, 0
    %v3022 = vsel %vm105, %v3011, 0
    %v3024 = vsel %vm105, %v3013, 0
    %v3026 = vsel %vm105, %v3015, 0
    %v3028 = vsel %vm105, %v3017, 0
    %v3030 = vsel %vm105, %v3019, 0
    %3032 = vmatpush.xpose.msra.mxu0 0.0
    %3033 = vmatpush.xpose.msra.mxu0 0.0
    %3034 = vmatpush.xpose.msra.mxu0 0.0
    %3035 = vmatpush.xpose.msra.mxu0 0.0
    %3036 = vmatpush.xpose.msra.mxu0 0.0
    %3037 = vmatpush.xpose.msra.mxu0 0.0
    %3038 = vmatpush.xpose.msra.mxu0 0.0
    %3039 = vmatpush.xpose.msra.mxu0 0.0
    %3040 = vmatpush.xpose.msra.mxu0 0.0
    %3041 = vmatpush.xpose.msra.mxu0 0.0
    %3042 = vmatpush.xpose.msra.mxu0 0.0
    %3043 = vmatpush.xpose.msra.mxu0 0.0
    %3044 = vmatpush.xpose.msra.mxu0 0.0
    %3045 = vmatpush.xpose.msra.mxu0 %v3030
    %3046 = vmatpush.xpose.msra.mxu0 %v3028
    %3047 = vmatpush.xpose.msra.mxu0 %v3026
    %3048 = vmatmul.f32.gmra.mxu0 %v3020
    %v3049 = vpop.f32.mrf.mxu0
    %v3050 = vadd.f32 %v39, %v3049
    %3051 = vmatmul.f32.gmra.mxu0 %v3022
    %v3052 = vpop.f32.mrf.mxu0
    %v3053 = vadd.f32 %v40, %v3052
    %3054 = vmatmul.f32.gmra.mxu0 %v3024
    %v3055 = vpop.f32.mrf.mxu0
    %v3056 = vadd.f32 %v41, %v3055
    %3057 = vdwg.mxu0
    %v3058 = vsel %vm144, %v3050, -inf
    %3059 = vmax.xlane.f32.xlu0 %v3058
    %v3060 = vpop.xlane.xlu0 %3059
    %v3061 = vsel %vm144, %v3053, -inf
    %3062 = vmax.xlane.f32.xlu0 %v3061
    %v3063 = vpop.xlane.xlu0 %3062
    %v3064 = vsel %vm151, %v3056, -inf
    %3065 = vmax.xlane.f32.xlu0 %v3064
    %v3066 = vpop.xlane.xlu0 %3065
    %v3067 = vsub.f32 %v3050, %v3060
    %v3068 = vsub.f32 %v3053, %v3063
    %v3069 = vsub.f32 %v3056, %v3066
    %v3070 = vmul.f32 %v3067, 1.442695
    %v3071 = vpow.pop %v3070
    %v3072 = vmul.f32 %v3068, 1.442695
    %v3073 = vpow.pop %v3072
    %v3074 = vmul.f32 %v3069, 1.442695
    %v3075 = vpow.pop %v3074
    %v3076 = vsel %vm144, %v3071, 0.0
    %3077 = vadd.xlane.f32.xlu0 %v3076
    %v3078 = vpop.xlane.xlu0 %3077
    %v3079 = vsel %vm144, %v3073, 0.0
    %3080 = vadd.xlane.f32.xlu0 %v3079
    %v3081 = vpop.xlane.xlu0 %3080
    %v3082 = vsel %vm151, %v3075, 0.0
    %3083 = vadd.xlane.f32.xlu0 %v3082
    %v3084 = vpop.xlane.xlu0 %3083
    %v3085 = vrcp.pop %v3078
    %v3086 = vmul.f32 %v3078, %v3085
    %v3087 = vsub.f32 1.0, %v3086
    %v3088 = vmul.f32 %v3085, %v3087
    %v3089 = vadd.f32 %v3085, %v3088
    %vm3090 = vweird.f32 %v3078
    %vm3091 = vweird.f32 %v3085
    %vm3092 = vmor %vm3090, %vm3091
    %v3093 = vsel %vm3092, %v3085, %v3089
    %v3094 = vand.u32 2147483647, %v3078
    %vm3095 = vcmp.eq.f32.partialorder %v3094, 8.507059e+37
    %v3096 = vand.u32 %v3078, 2147483648
    %v3097 = vor.u32 1.1754944e-38, %v3096
    %v3098 = vsel %vm3095, %v3097, %v3093
    %v3099 = vmul.f32 %v3071, %v3098
    %v3100 = vrcp.pop %v3081
    %v3101 = vmul.f32 %v3081, %v3100
    %v3102 = vsub.f32 1.0, %v3101
    %v3103 = vmul.f32 %v3100, %v3102
    %v3104 = vadd.f32 %v3100, %v3103
    %vm3105 = vweird.f32 %v3081
    %vm3106 = vweird.f32 %v3100
    %vm3107 = vmor %vm3105, %vm3106
    %v3108 = vsel %vm3107, %v3100, %v3104
    %v3109 = vand.u32 2147483647, %v3081
    %vm3110 = vcmp.eq.f32.partialorder %v3109, 8.507059e+37
    %v3111 = vand.u32 %v3081, 2147483648
    %v3112 = vor.u32 1.1754944e-38, %v3111
    %v3113 = vsel %vm3110, %v3112, %v3108
    %v3114 = vmul.f32 %v3073, %v3113
    %v3115 = vrcp.pop %v3084
    %v3116 = vmul.f32 %v3084, %v3115
    %v3117 = vsub.f32 1.0, %v3116
    %v3118 = vmul.f32 %v3115, %v3117
    %v3119 = vadd.f32 %v3115, %v3118
    %vm3120 = vweird.f32 %v3084
    %vm3121 = vweird.f32 %v3115
    %vm3122 = vmor %vm3120, %vm3121
    %v3123 = vsel %vm3122, %v3115, %v3119
    %v3124 = vand.u32 2147483647, %v3084
    %vm3125 = vcmp.eq.f32.partialorder %v3124, 8.507059e+37
    %v3126 = vand.u32 %v3084, 2147483648
    %v3127 = vor.u32 1.1754944e-38, %v3126
    %v3128 = vsel %vm3125, %v3127, %v3123
    %v3129 = vmul.f32 %v3075, %v3128
    %s3130 = scalar_lea.vmem %s5, 264
    %3131 = vst.msk [vmem:[%s3130] sm:$0xff] %vm144, %v3099
    %3132 = vst.msk [vmem:[%s3130 + $0x8] sm:$0xff] %vm144, %v3114
    %3133 = vst.msk [vmem:[%s3130 + $0x10] sm:$0x3] %vm151, %v3129
    %3134 = vrot.lane.b32.xlu0 %v2485, 40
    %v3135 = vpop.permute.xlu0 %3134
    %3136 = vrot.lane.b32.xlu0 %v2488, 40
    %v3137 = vpop.permute.xlu0 %3136
    %3138 = vrot.lane.b32.xlu0 %v2491, 40
    %v3139 = vpop.permute.xlu0 %3138
    %v3143 = vsel %vm144, %v3099, 0
    %v3146 = vsel %vm144, %v3114, 0
    %v3149 = vsel %vm144, %v3129, 0
    %v3151 = vsel %vm238, %v3139, 0
    %3153 = vmatpush.msra.mxu0 0.0
    %3154 = vmatpush.msra.mxu0 0.0
    %3155 = vmatpush.msra.mxu0 0.0
    %3156 = vmatpush.msra.mxu0 0.0
    %3157 = vmatpush.msra.mxu0 0.0
    %3158 = vmatpush.msra.mxu0 0.0
    %3159 = vmatpush.msra.mxu0 0.0
    %3160 = vmatpush.msra.mxu0 0.0
    %3161 = vmatpush.msra.mxu0 0.0
    %3162 = vmatpush.msra.mxu0 0.0
    %3163 = vmatpush.msra.mxu0 0.0
    %3164 = vmatpush.msra.mxu0 0.0
    %3165 = vmatpush.msra.mxu0 0.0
    %3166 = vmatpush.msra.mxu0 %v3151
    %3167 = vmatpush.msra.mxu0 %v3137
    %3168 = vmatpush.msra.mxu0 %v3135
    %3169 = vmatmul.f32.gmra.mxu0 %v3143
    %v3170 = vpop.f32.mrf.mxu0
    %v3171 = vadd.f32 0.0, %v3170
    %3172 = vmatmul.f32.gmra.mxu0 %v3146
    %v3173 = vpop.f32.mrf.mxu0
    %v3174 = vadd.f32 0.0, %v3173
    %3175 = vmatmul.f32.gmra.mxu0 %v3149
    %v3176 = vpop.f32.mrf.mxu0
    %v3177 = vadd.f32 0.0, %v3176
    %3178 = vdwg.mxu0
    %3182 = vrot.lane.b32.xlu0 %v2829, 8
    %v3183 = vpop.permute.xlu0 %3182
    %3184 = vrot.lane.b32.xlu0 %v2832, 8
    %v3185 = vpop.permute.xlu0 %3184
    %3186 = vrot.lane.b32.xlu0 %v2835, 8
    %v3187 = vpop.permute.xlu0 %3186
    %3194 = vrot.lane.b32.xlu0 %v3000, 16
    %v3195 = vpop.permute.xlu0 %3194
    %3196 = vrot.lane.b32.xlu0 %v3003, 16
    %v3197 = vpop.permute.xlu0 %3196
    %3198 = vrot.lane.b32.xlu0 %v3006, 16
    %v3199 = vpop.permute.xlu0 %3198
    %3206 = vrot.lane.b32.xlu0 %v3171, 24
    %v3207 = vpop.permute.xlu0 %3206
    %3208 = vrot.lane.b32.xlu0 %v3174, 24
    %v3209 = vpop.permute.xlu0 %3208
    %3210 = vrot.lane.b32.xlu0 %v3177, 24
    %v3211 = vpop.permute.xlu0 %3210
    %v3215 = vsel %vm105, %v2658, %v3183
    %v3216 = vsel %vm105, %v2661, %v3185
    %v3217 = vsel %vm105, %v2664, %v3187
    %v3218 = vsel %vm819, %v3215, %v3195
    %v3219 = vsel %vm819, %v3216, %v3197
    %v3220 = vsel %vm819, %v3217, %v3199
    %v3221 = vsel %vm823, %v3218, %v3207
    %v3222 = vsel %vm823, %v3219, %v3209
    %v3223 = vsel %vm823, %v3220, %v3211
    %v3224 = vperm.slane %v2497, 0
    %v3226 = vsel %vm55, %v3221, 0
    %v3229 = vsel %vm55, %v3222, 0
    %v3232 = vsel %vm55, %v3223, 0
    %3234 = vmatpush.msra.mxu0 0.0
    %3235 = vmatpush.msra.mxu0 0.0
    %3236 = vmatpush.msra.mxu0 0.0
    %3237 = vmatpush.msra.mxu0 0.0
    %3238 = vmatpush.msra.mxu0 0.0
    %3239 = vmatpush.msra.mxu0 0.0
    %3240 = vmatpush.msra.mxu0 0.0
    %3241 = vmatpush.msra.mxu0 0.0
    %3242 = vmatpush.msra.mxu0 0.0
    %3243 = vmatpush.msra.mxu0 0.0
    %3244 = vmatpush.msra.mxu0 0.0
    %3245 = vmatpush.msra.mxu0 0.0
    %3246 = vmatpush.msra.mxu0 %v2496
    %3247 = vmatpush.msra.mxu0 %v2495
    %3248 = vmatpush.msra.mxu0 %v2494
    %3249 = vmatpush.msra.mxu0 %v2493
    %3250 = vmatmul.f32.gmra.mxu0 %v3226
    %v3251 = vpop.f32.mrf.mxu0
    %v3252 = vadd.f32 %v3224, %v3251
    %3253 = vmatmul.f32.gmra.mxu0 %v3229
    %v3254 = vpop.f32.mrf.mxu0
    %v3255 = vadd.f32 %v3224, %v3254
    %3256 = vmatmul.f32.gmra.mxu0 %v3232
    %v3257 = vpop.f32.mrf.mxu0
    %v3258 = vadd.f32 %v3224, %v3257
    %3259 = vdwg.mxu0
    %v3260 = vadd.f32 %v2449, %v3252
    %v3261 = vadd.f32 %v2450, %v3255
    %v3262 = vadd.f32 %v2451, %v3258
    %v3263 = vld [vmem:[#allocation2 + $0x238] sm:$0x1]
    %v3264 = vld [vmem:[#allocation2 + $0x240] sm:$0x1]
    %v3265 = vsel %vm55, %v3260, 0.0
    %3266 = vadd.xlane.f32.xlu0 %v3265
    %v3267 = vpop.xlane.xlu0 %3266
    %v3268 = vsel %vm55, %v3261, 0.0
    %3269 = vadd.xlane.f32.xlu0 %v3268
    %v3270 = vpop.xlane.xlu0 %3269
    %v3271 = vsel %vm874, %v3262, 0.0
    %3272 = vadd.xlane.f32.xlu0 %v3271
    %v3273 = vpop.xlane.xlu0 %3272
    %v3274 = vmul.f32 %v3267, %v884
    %v3275 = vmul.f32 %v3270, %v884
    %v3276 = vmul.f32 %v3273, %v884
    %v3277 = vsub.f32 %v3260, %v3274
    %v3278 = vsub.f32 %v3261, %v3275
    %v3279 = vsub.f32 %v3262, %v3276
    %v3280 = vmul.f32 %v3277, %v3277
    %v3281 = vmul.f32 %v3278, %v3278
    %v3282 = vmul.f32 %v3279, %v3279
    %v3283 = vsel %vm55, %v3280, 0.0
    %3284 = vadd.xlane.f32.xlu0 %v3283
    %v3285 = vpop.xlane.xlu0 %3284
    %v3286 = vsel %vm55, %v3281, 0.0
    %3287 = vadd.xlane.f32.xlu0 %v3286
    %v3288 = vpop.xlane.xlu0 %3287
    %v3289 = vsel %vm874, %v3282, 0.0
    %3290 = vadd.xlane.f32.xlu0 %v3289
    %v3291 = vpop.xlane.xlu0 %3290
    %v3292 = vmul.f32 %v3285, %v884
    %v3293 = vmul.f32 %v3288, %v884
    %v3294 = vmul.f32 %v3291, %v884
    %v3295 = vadd.f32 %v3292, 1e-12
    %v3296 = vadd.f32 %v3293, 1e-12
    %v3297 = vadd.f32 %v3294, 1e-12
    %v3298 = vrsqrt.pop %v3295
    %v3299 = vmul.f32 %v3298, %v3295
    %v3300 = vmul.f32 %v3299, %v3298
    %v3301 = vmul.f32 0.5, %v3300
    %v3302 = vsub.f32 1.5, %v3301
    %v3303 = vmul.f32 %v3298, %v3302
    %vm3304 = vweird.f32 %v3295
    %vm3305 = vweird.f32 %v3298
    %vm3306 = vmor %vm3304, %vm3305
    %v3307 = vsel %vm3306, %v3298, %v3303
    %v3308 = vrsqrt.pop %v3296
    %v3309 = vmul.f32 %v3308, %v3296
    %v3310 = vmul.f32 %v3309, %v3308
    %v3311 = vmul.f32 0.5, %v3310
    %v3312 = vsub.f32 1.5, %v3311
    %v3313 = vmul.f32 %v3308, %v3312
    %vm3314 = vweird.f32 %v3296
    %vm3315 = vweird.f32 %v3308
    %vm3316 = vmor %vm3314, %vm3315
    %v3317 = vsel %vm3316, %v3308, %v3313
    %v3318 = vrsqrt.pop %v3297
    %v3319 = vmul.f32 %v3318, %v3297
    %v3320 = vmul.f32 %v3319, %v3318
    %v3321 = vmul.f32 0.5, %v3320
    %v3322 = vsub.f32 1.5, %v3321
    %v3323 = vmul.f32 %v3318, %v3322
    %vm3324 = vweird.f32 %v3297
    %vm3325 = vweird.f32 %v3318
    %vm3326 = vmor %vm3324, %vm3325
    %v3327 = vsel %vm3326, %v3318, %v3323
    %v3328 = vmul.f32 %v3277, %v3307
    %v3329 = vmul.f32 %v3278, %v3317
    %v3330 = vmul.f32 %v3279, %v3327
    %v3331 = vperm.slane %v3263, 0
    %v3332 = vmul.f32 %v3328, %v3331
    %v3333 = vmul.f32 %v3329, %v3331
    %v3334 = vmul.f32 %v3330, %v3331
    %v3335 = vperm.slane %v3264, 0
    %v3336 = vadd.f32 %v3332, %v3335
    %v3337 = vadd.f32 %v3333, %v3335
    %v3338 = vadd.f32 %v3334, %v3335
    %v3339 = vld [vmem:[#allocation2 + $0x248] sm:$0xff]
    %v3340 = vld [vmem:[#allocation2 + $0x250] sm:$0xff]
    %v3341 = vld [vmem:[#allocation2 + $0x258] sm:$0xff]
    %v3342 = vld [vmem:[#allocation2 + $0x260] sm:$0xff]
    %v3343 = vld [vmem:[#allocation2 + $0x268] sm:$0x1]
    %v3344 = vperm.slane %v3343, 0
    %v3346 = vsel %vm55, %v3336, 0
    %v3349 = vsel %vm55, %v3337, 0
    %v3352 = vsel %vm55, %v3338, 0
    %3354 = vmatpush.msra.mxu0 0.0
    %3355 = vmatpush.msra.mxu0 0.0
    %3356 = vmatpush.msra.mxu0 0.0
    %3357 = vmatpush.msra.mxu0 0.0
    %3358 = vmatpush.msra.mxu0 0.0
    %3359 = vmatpush.msra.mxu0 0.0
    %3360 = vmatpush.msra.mxu0 0.0
    %3361 = vmatpush.msra.mxu0 0.0
    %3362 = vmatpush.msra.mxu0 0.0
    %3363 = vmatpush.msra.mxu0 0.0
    %3364 = vmatpush.msra.mxu0 0.0
    %3365 = vmatpush.msra.mxu0 0.0
    %3366 = vmatpush.msra.mxu0 %v3342
    %3367 = vmatpush.msra.mxu0 %v3341
    %3368 = vmatpush.msra.mxu0 %v3340
    %3369 = vmatpush.msra.mxu0 %v3339
    %3370 = vmatmul.f32.gmra.mxu0 %v3346
    %v3371 = vpop.f32.mrf.mxu0
    %v3372 = vadd.f32 %v3344, %v3371
    %3373 = vmatmul.f32.gmra.mxu0 %v3349
    %v3374 = vpop.f32.mrf.mxu0
    %v3375 = vadd.f32 %v3344, %v3374
    %3376 = vmatmul.f32.gmra.mxu0 %v3352
    %v3377 = vpop.f32.mrf.mxu0
    %v3378 = vadd.f32 %v3344, %v3377
    %3379 = vdwg.mxu0
    %v3380 = vld [vmem:[#allocation2 + $0x270] sm:$0xff]
    %v3381 = vld [vmem:[#allocation2 + $0x278] sm:$0xff]
    %v3382 = vld [vmem:[#allocation2 + $0x280] sm:$0xff]
    %v3383 = vld [vmem:[#allocation2 + $0x288] sm:$0xff]
    %v3384 = vld [vmem:[#allocation2 + $0x290] sm:$0x1]
    %v3386 = vsel %vm105, %v3372, 0
    %v3389 = vsel %vm105, %v3375, 0
    %v3392 = vsel %vm105, %v3378, 0
    %v3395 = vsel %vm105, %v2441, 0
    %v3398 = vsel %vm105, %v2444, 0
    %v3401 = vsel %vm105, %v2447, 0
    %3403 = vmatpush.xpose.msra.mxu0 0.0
    %3404 = vmatpush.xpose.msra.mxu0 0.0
    %3405 = vmatpush.xpose.msra.mxu0 0.0
    %3406 = vmatpush.xpose.msra.mxu0 0.0
    %3407 = vmatpush.xpose.msra.mxu0 0.0
    %3408 = vmatpush.xpose.msra.mxu0 0.0
    %3409 = vmatpush.xpose.msra.mxu0 0.0
    %3410 = vmatpush.xpose.msra.mxu0 0.0
    %3411 = vmatpush.xpose.msra.mxu0 0.0
    %3412 = vmatpush.xpose.msra.mxu0 0.0
    %3413 = vmatpush.xpose.msra.mxu0 0.0
    %3414 = vmatpush.xpose.msra.mxu0 0.0
    %3415 = vmatpush.xpose.msra.mxu0 0.0
    %3416 = vmatpush.xpose.msra.mxu0 %v3401
    %3417 = vmatpush.xpose.msra.mxu0 %v3398
    %3418 = vmatpush.xpose.msra.mxu0 %v3395
    %3419 = vmatmul.f32.gmra.mxu0 %v3386
    %v3420 = vpop.f32.mrf.mxu0
    %v3421 = vadd.f32 %v43, %v3420
    %3422 = vmatmul.f32.gmra.mxu0 %v3389
    %v3423 = vpop.f32.mrf.mxu0
    %v3424 = vadd.f32 %v44, %v3423
    %3425 = vmatmul.f32.gmra.mxu0 %v3392
    %v3426 = vpop.f32.mrf.mxu0
    %v3427 = vadd.f32 %v45, %v3426
    %3428 = vdwg.mxu0
    %v3429 = vsel %vm144, %v3421, -inf
    %3430 = vmax.xlane.f32.xlu0 %v3429
    %v3431 = vpop.xlane.xlu0 %3430
    %v3432 = vsel %vm144, %v3424, -inf
    %3433 = vmax.xlane.f32.xlu0 %v3432
    %v3434 = vpop.xlane.xlu0 %3433
    %v3435 = vsel %vm151, %v3427, -inf
    %3436 = vmax.xlane.f32.xlu0 %v3435
    %v3437 = vpop.xlane.xlu0 %3436
    %v3438 = vsub.f32 %v3421, %v3431
    %v3439 = vsub.f32 %v3424, %v3434
    %v3440 = vsub.f32 %v3427, %v3437
    %v3441 = vmul.f32 %v3438, 1.442695
    %v3442 = vpow.pop %v3441
    %v3443 = vmul.f32 %v3439, 1.442695
    %v3444 = vpow.pop %v3443
    %v3445 = vmul.f32 %v3440, 1.442695
    %v3446 = vpow.pop %v3445
    %v3447 = vsel %vm144, %v3442, 0.0
    %3448 = vadd.xlane.f32.xlu0 %v3447
    %v3449 = vpop.xlane.xlu0 %3448
    %v3450 = vsel %vm144, %v3444, 0.0
    %3451 = vadd.xlane.f32.xlu0 %v3450
    %v3452 = vpop.xlane.xlu0 %3451
    %v3453 = vsel %vm151, %v3446, 0.0
    %3454 = vadd.xlane.f32.xlu0 %v3453
    %v3455 = vpop.xlane.xlu0 %3454
    %v3456 = vrcp.pop %v3449
    %v3457 = vmul.f32 %v3449, %v3456
    %v3458 = vsub.f32 1.0, %v3457
    %v3459 = vmul.f32 %v3456, %v3458
    %v3460 = vadd.f32 %v3456, %v3459
    %vm3461 = vweird.f32 %v3449
    %vm3462 = vweird.f32 %v3456
    %vm3463 = vmor %vm3461, %vm3462
    %v3464 = vsel %vm3463, %v3456, %v3460
    %v3465 = vand.u32 2147483647, %v3449
    %vm3466 = vcmp.eq.f32.partialorder %v3465, 8.507059e+37
    %v3467 = vand.u32 %v3449, 2147483648
    %v3468 = vor.u32 1.1754944e-38, %v3467
    %v3469 = vsel %vm3466, %v3468, %v3464
    %v3470 = vmul.f32 %v3442, %v3469
    %v3471 = vrcp.pop %v3452
    %v3472 = vmul.f32 %v3452, %v3471
    %v3473 = vsub.f32 1.0, %v3472
    %v3474 = vmul.f32 %v3471, %v3473
    %v3475 = vadd.f32 %v3471, %v3474
    %vm3476 = vweird.f32 %v3452
    %vm3477 = vweird.f32 %v3471
    %vm3478 = vmor %vm3476, %vm3477
    %v3479 = vsel %vm3478, %v3471, %v3475
    %v3480 = vand.u32 2147483647, %v3452
    %vm3481 = vcmp.eq.f32.partialorder %v3480, 8.507059e+37
    %v3482 = vand.u32 %v3452, 2147483648
    %v3483 = vor.u32 1.1754944e-38, %v3482
    %v3484 = vsel %vm3481, %v3483, %v3479
    %v3485 = vmul.f32 %v3444, %v3484
    %v3486 = vrcp.pop %v3455
    %v3487 = vmul.f32 %v3455, %v3486
    %v3488 = vsub.f32 1.0, %v3487
    %v3489 = vmul.f32 %v3486, %v3488
    %v3490 = vadd.f32 %v3486, %v3489
    %vm3491 = vweird.f32 %v3455
    %vm3492 = vweird.f32 %v3486
    %vm3493 = vmor %vm3491, %vm3492
    %v3494 = vsel %vm3493, %v3486, %v3490
    %v3495 = vand.u32 2147483647, %v3455
    %vm3496 = vcmp.eq.f32.partialorder %v3495, 8.507059e+37
    %v3497 = vand.u32 %v3455, 2147483648
    %v3498 = vor.u32 1.1754944e-38, %v3497
    %v3499 = vsel %vm3496, %v3498, %v3494
    %v3500 = vmul.f32 %v3446, %v3499
    %s3501 = scalar_lea.vmem %s5, 384
    %3502 = vst.msk [vmem:[%s3501] sm:$0xff] %vm144, %v3470
    %3503 = vst.msk [vmem:[%s3501 + $0x8] sm:$0xff] %vm144, %v3485
    %3504 = vst.msk [vmem:[%s3501 + $0x10] sm:$0x3] %vm151, %v3500
    %3505 = vrot.lane.b32.xlu0 %v2441, 96
    %v3506 = vpop.permute.xlu0 %3505
    %3507 = vrot.lane.b32.xlu0 %v2444, 96
    %v3508 = vpop.permute.xlu0 %3507
    %3509 = vrot.lane.b32.xlu0 %v2447, 96
    %v3510 = vpop.permute.xlu0 %3509
    %v3514 = vsel %vm144, %v3470, 0
    %v3517 = vsel %vm144, %v3485, 0
    %v3520 = vsel %vm144, %v3500, 0
    %v3522 = vsel %vm238, %v3510, 0
    %3524 = vmatpush.msra.mxu0 0.0
    %3525 = vmatpush.msra.mxu0 0.0
    %3526 = vmatpush.msra.mxu0 0.0
    %3527 = vmatpush.msra.mxu0 0.0
    %3528 = vmatpush.msra.mxu0 0.0
    %3529 = vmatpush.msra.mxu0 0.0
    %3530 = vmatpush.msra.mxu0 0.0
    %3531 = vmatpush.msra.mxu0 0.0
    %3532 = vmatpush.msra.mxu0 0.0
    %3533 = vmatpush.msra.mxu0 0.0
    %3534 = vmatpush.msra.mxu0 0.0
    %3535 = vmatpush.msra.mxu0 0.0
    %3536 = vmatpush.msra.mxu0 0.0
    %3537 = vmatpush.msra.mxu0 %v3522
    %3538 = vmatpush.msra.mxu0 %v3508
    %3539 = vmatpush.msra.mxu0 %v3506
    %3540 = vmatmul.f32.gmra.mxu0 %v3514
    %v3541 = vpop.f32.mrf.mxu0
    %v3542 = vadd.f32 0.0, %v3541
    %3543 = vmatmul.f32.gmra.mxu0 %v3517
    %v3544 = vpop.f32.mrf.mxu0
    %v3545 = vadd.f32 0.0, %v3544
    %3546 = vmatmul.f32.gmra.mxu0 %v3520
    %v3547 = vpop.f32.mrf.mxu0
    %v3548 = vadd.f32 0.0, %v3547
    %3549 = vdwg.mxu0
    %3550 = vrot.lane.b32.xlu0 %v3372, 120
    %v3551 = vpop.permute.xlu0 %3550
    %3552 = vrot.lane.b32.xlu0 %v3375, 120
    %v3553 = vpop.permute.xlu0 %3552
    %3554 = vrot.lane.b32.xlu0 %v3378, 120
    %v3555 = vpop.permute.xlu0 %3554
    %3556 = vrot.lane.b32.xlu0 %v2441, 120
    %v3557 = vpop.permute.xlu0 %3556
    %3558 = vrot.lane.b32.xlu0 %v2444, 120
    %v3559 = vpop.permute.xlu0 %3558
    %3560 = vrot.lane.b32.xlu0 %v2447, 120
    %v3561 = vpop.permute.xlu0 %3560
    %v3562 = vsel %vm105, %v3551, 0
    %v3564 = vsel %vm105, %v3553, 0
    %v3566 = vsel %vm105, %v3555, 0
    %v3568 = vsel %vm105, %v3557, 0
    %v3570 = vsel %vm105, %v3559, 0
    %v3572 = vsel %vm105, %v3561, 0
    %3574 = vmatpush.xpose.msra.mxu0 0.0
    %3575 = vmatpush.xpose.msra.mxu0 0.0
    %3576 = vmatpush.xpose.msra.mxu0 0.0
    %3577 = vmatpush.xpose.msra.mxu0 0.0
    %3578 = vmatpush.xpose.msra.mxu0 0.0
    %3579 = vmatpush.xpose.msra.mxu0 0.0
    %3580 = vmatpush.xpose.msra.mxu0 0.0
    %3581 = vmatpush.xpose.msra.mxu0 0.0
    %3582 = vmatpush.xpose.msra.mxu0 0.0
    %3583 = vmatpush.xpose.msra.mxu0 0.0
    %3584 = vmatpush.xpose.msra.mxu0 0.0
    %3585 = vmatpush.xpose.msra.mxu0 0.0
    %3586 = vmatpush.xpose.msra.mxu0 0.0
    %3587 = vmatpush.xpose.msra.mxu0 %v3572
    %3588 = vmatpush.xpose.msra.mxu0 %v3570
    %3589 = vmatpush.xpose.msra.mxu0 %v3568
    %3590 = vmatmul.f32.gmra.mxu0 %v3562
    %v3591 = vpop.f32.mrf.mxu0
    %v3592 = vadd.f32 %v43, %v3591
    %3593 = vmatmul.f32.gmra.mxu0 %v3564
    %v3594 = vpop.f32.mrf.mxu0
    %v3595 = vadd.f32 %v44, %v3594
    %3596 = vmatmul.f32.gmra.mxu0 %v3566
    %v3597 = vpop.f32.mrf.mxu0
    %v3598 = vadd.f32 %v45, %v3597
    %3599 = vdwg.mxu0
    %v3600 = vsel %vm144, %v3592, -inf
    %3601 = vmax.xlane.f32.xlu0 %v3600
    %v3602 = vpop.xlane.xlu0 %3601
    %v3603 = vsel %vm144, %v3595, -inf
    %3604 = vmax.xlane.f32.xlu0 %v3603
    %v3605 = vpop.xlane.xlu0 %3604
    %v3606 = vsel %vm151, %v3598, -inf
    %3607 = vmax.xlane.f32.xlu0 %v3606
    %v3608 = vpop.xlane.xlu0 %3607
    %v3609 = vsub.f32 %v3592, %v3602
    %v3610 = vsub.f32 %v3595, %v3605
    %v3611 = vsub.f32 %v3598, %v3608
    %v3612 = vmul.f32 %v3609, 1.442695
    %v3613 = vpow.pop %v3612
    %v3614 = vmul.f32 %v3610, 1.442695
    %v3615 = vpow.pop %v3614
    %v3616 = vmul.f32 %v3611, 1.442695
    %v3617 = vpow.pop %v3616
    %v3618 = vsel %vm144, %v3613, 0.0
    %3619 = vadd.xlane.f32.xlu0 %v3618
    %v3620 = vpop.xlane.xlu0 %3619
    %v3621 = vsel %vm144, %v3615, 0.0
    %3622 = vadd.xlane.f32.xlu0 %v3621
    %v3623 = vpop.xlane.xlu0 %3622
    %v3624 = vsel %vm151, %v3617, 0.0
    %3625 = vadd.xlane.f32.xlu0 %v3624
    %v3626 = vpop.xlane.xlu0 %3625
    %v3627 = vrcp.pop %v3620
    %v3628 = vmul.f32 %v3620, %v3627
    %v3629 = vsub.f32 1.0, %v3628
    %v3630 = vmul.f32 %v3627, %v3629
    %v3631 = vadd.f32 %v3627, %v3630
    %vm3632 = vweird.f32 %v3620
    %vm3633 = vweird.f32 %v3627
    %vm3634 = vmor %vm3632, %vm3633
    %v3635 = vsel %vm3634, %v3627, %v3631
    %v3636 = vand.u32 2147483647, %v3620
    %vm3637 = vcmp.eq.f32.partialorder %v3636, 8.507059e+37
    %v3638 = vand.u32 %v3620, 2147483648
    %v3639 = vor.u32 1.1754944e-38, %v3638
    %v3640 = vsel %vm3637, %v3639, %v3635
    %v3641 = vmul.f32 %v3613, %v3640
    %v3642 = vrcp.pop %v3623
    %v3643 = vmul.f32 %v3623, %v3642
    %v3644 = vsub.f32 1.0, %v3643
    %v3645 = vmul.f32 %v3642, %v3644
    %v3646 = vadd.f32 %v3642, %v3645
    %vm3647 = vweird.f32 %v3623
    %vm3648 = vweird.f32 %v3642
    %vm3649 = vmor %vm3647, %vm3648
    %v3650 = vsel %vm3649, %v3642, %v3646
    %v3651 = vand.u32 2147483647, %v3623
    %vm3652 = vcmp.eq.f32.partialorder %v3651, 8.507059e+37
    %v3653 = vand.u32 %v3623, 2147483648
    %v3654 = vor.u32 1.1754944e-38, %v3653
    %v3655 = vsel %vm3652, %v3654, %v3650
    %v3656 = vmul.f32 %v3615, %v3655
    %v3657 = vrcp.pop %v3626
    %v3658 = vmul.f32 %v3626, %v3657
    %v3659 = vsub.f32 1.0, %v3658
    %v3660 = vmul.f32 %v3657, %v3659
    %v3661 = vadd.f32 %v3657, %v3660
    %vm3662 = vweird.f32 %v3626
    %vm3663 = vweird.f32 %v3657
    %vm3664 = vmor %vm3662, %vm3663
    %v3665 = vsel %vm3664, %v3657, %v3661
    %v3666 = vand.u32 2147483647, %v3626
    %vm3667 = vcmp.eq.f32.partialorder %v3666, 8.507059e+37
    %v3668 = vand.u32 %v3626, 2147483648
    %v3669 = vor.u32 1.1754944e-38, %v3668
    %v3670 = vsel %vm3667, %v3669, %v3665
    %v3671 = vmul.f32 %v3617, %v3670
    %s3672 = scalar_lea.vmem %s5, 408
    %3673 = vst.msk [vmem:[%s3672] sm:$0xff] %vm144, %v3641
    %3674 = vst.msk [vmem:[%s3672 + $0x8] sm:$0xff] %vm144, %v3656
    %3675 = vst.msk [vmem:[%s3672 + $0x10] sm:$0x3] %vm151, %v3671
    %3676 = vrot.lane.b32.xlu0 %v2441, 88
    %v3677 = vpop.permute.xlu0 %3676
    %3678 = vrot.lane.b32.xlu0 %v2444, 88
    %v3679 = vpop.permute.xlu0 %3678
    %3680 = vrot.lane.b32.xlu0 %v2447, 88
    %v3681 = vpop.permute.xlu0 %3680
    %v3685 = vsel %vm144, %v3641, 0
    %v3688 = vsel %vm144, %v3656, 0
    %v3691 = vsel %vm144, %v3671, 0
    %v3693 = vsel %vm238, %v3681, 0
    %3695 = vmatpush.msra.mxu0 0.0
    %3696 = vmatpush.msra.mxu0 0.0
    %3697 = vmatpush.msra.mxu0 0.0
    %3698 = vmatpush.msra.mxu0 0.0
    %3699 = vmatpush.msra.mxu0 0.0
    %3700 = vmatpush.msra.mxu0 0.0
    %3701 = vmatpush.msra.mxu0 0.0
    %3702 = vmatpush.msra.mxu0 0.0
    %3703 = vmatpush.msra.mxu0 0.0
    %3704 = vmatpush.msra.mxu0 0.0
    %3705 = vmatpush.msra.mxu0 0.0
    %3706 = vmatpush.msra.mxu0 0.0
    %3707 = vmatpush.msra.mxu0 0.0
    %3708 = vmatpush.msra.mxu0 %v3693
    %3709 = vmatpush.msra.mxu0 %v3679
    %3710 = vmatpush.msra.mxu0 %v3677
    %3711 = vmatmul.f32.gmra.mxu0 %v3685
    %v3712 = vpop.f32.mrf.mxu0
    %v3713 = vadd.f32 0.0, %v3712
    %3714 = vmatmul.f32.gmra.mxu0 %v3688
    %v3715 = vpop.f32.mrf.mxu0
    %v3716 = vadd.f32 0.0, %v3715
    %3717 = vmatmul.f32.gmra.mxu0 %v3691
    %v3718 = vpop.f32.mrf.mxu0
    %v3719 = vadd.f32 0.0, %v3718
    %3720 = vdwg.mxu0
    %3721 = vrot.lane.b32.xlu0 %v3372, 112
    %v3722 = vpop.permute.xlu0 %3721
    %3723 = vrot.lane.b32.xlu0 %v3375, 112
    %v3724 = vpop.permute.xlu0 %3723
    %3725 = vrot.lane.b32.xlu0 %v3378, 112
    %v3726 = vpop.permute.xlu0 %3725
    %3727 = vrot.lane.b32.xlu0 %v2441, 112
    %v3728 = vpop.permute.xlu0 %3727
    %3729 = vrot.lane.b32.xlu0 %v2444, 112
    %v3730 = vpop.permute.xlu0 %3729
    %3731 = vrot.lane.b32.xlu0 %v2447, 112
    %v3732 = vpop.permute.xlu0 %3731
    %v3733 = vsel %vm105, %v3722, 0
    %v3735 = vsel %vm105, %v3724, 0
    %v3737 = vsel %vm105, %v3726, 0
    %v3739 = vsel %vm105, %v3728, 0
    %v3741 = vsel %vm105, %v3730, 0
    %v3743 = vsel %vm105, %v3732, 0
    %3745 = vmatpush.xpose.msra.mxu0 0.0
    %3746 = vmatpush.xpose.msra.mxu0 0.0
    %3747 = vmatpush.xpose.msra.mxu0 0.0
    %3748 = vmatpush.xpose.msra.mxu0 0.0
    %3749 = vmatpush.xpose.msra.mxu0 0.0
    %3750 = vmatpush.xpose.msra.mxu0 0.0
    %3751 = vmatpush.xpose.msra.mxu0 0.0
    %3752 = vmatpush.xpose.msra.mxu0 0.0
    %3753 = vmatpush.xpose.msra.mxu0 0.0
    %3754 = vmatpush.xpose.msra.mxu0 0.0
    %3755 = vmatpush.xpose.msra.mxu0 0.0
    %3756 = vmatpush.xpose.msra.mxu0 0.0
    %3757 = vmatpush.xpose.msra.mxu0 0.0
    %3758 = vmatpush.xpose.msra.mxu0 %v3743
    %3759 = vmatpush.xpose.msra.mxu0 %v3741
    %3760 = vmatpush.xpose.msra.mxu0 %v3739
    %3761 = vmatmul.f32.gmra.mxu0 %v3733
    %v3762 = vpop.f32.mrf.mxu0
    %v3763 = vadd.f32 %v43, %v3762
    %3764 = vmatmul.f32.gmra.mxu0 %v3735
    %v3765 = vpop.f32.mrf.mxu0
    %v3766 = vadd.f32 %v44, %v3765
    %3767 = vmatmul.f32.gmra.mxu0 %v3737
    %v3768 = vpop.f32.mrf.mxu0
    %v3769 = vadd.f32 %v45, %v3768
    %3770 = vdwg.mxu0
    %v3771 = vsel %vm144, %v3763, -inf
    %3772 = vmax.xlane.f32.xlu0 %v3771
    %v3773 = vpop.xlane.xlu0 %3772
    %v3774 = vsel %vm144, %v3766, -inf
    %3775 = vmax.xlane.f32.xlu0 %v3774
    %v3776 = vpop.xlane.xlu0 %3775
    %v3777 = vsel %vm151, %v3769, -inf
    %3778 = vmax.xlane.f32.xlu0 %v3777
    %v3779 = vpop.xlane.xlu0 %3778
    %v3780 = vsub.f32 %v3763, %v3773
    %v3781 = vsub.f32 %v3766, %v3776
    %v3782 = vsub.f32 %v3769, %v3779
    %v3783 = vmul.f32 %v3780, 1.442695
    %v3784 = vpow.pop %v3783
    %v3785 = vmul.f32 %v3781, 1.442695
    %v3786 = vpow.pop %v3785
    %v3787 = vmul.f32 %v3782, 1.442695
    %v3788 = vpow.pop %v3787
    %v3789 = vsel %vm144, %v3784, 0.0
    %3790 = vadd.xlane.f32.xlu0 %v3789
    %v3791 = vpop.xlane.xlu0 %3790
    %v3792 = vsel %vm144, %v3786, 0.0
    %3793 = vadd.xlane.f32.xlu0 %v3792
    %v3794 = vpop.xlane.xlu0 %3793
    %v3795 = vsel %vm151, %v3788, 0.0
    %3796 = vadd.xlane.f32.xlu0 %v3795
    %v3797 = vpop.xlane.xlu0 %3796
    %v3798 = vrcp.pop %v3791
    %v3799 = vmul.f32 %v3791, %v3798
    %v3800 = vsub.f32 1.0, %v3799
    %v3801 = vmul.f32 %v3798, %v3800
    %v3802 = vadd.f32 %v3798, %v3801
    %vm3803 = vweird.f32 %v3791
    %vm3804 = vweird.f32 %v3798
    %vm3805 = vmor %vm3803, %vm3804
    %v3806 = vsel %vm3805, %v3798, %v3802
    %v3807 = vand.u32 2147483647, %v3791
    %vm3808 = vcmp.eq.f32.partialorder %v3807, 8.507059e+37
    %v3809 = vand.u32 %v3791, 2147483648
    %v3810 = vor.u32 1.1754944e-38, %v3809
    %v3811 = vsel %vm3808, %v3810, %v3806
    %v3812 = vmul.f32 %v3784, %v3811
    %v3813 = vrcp.pop %v3794
    %v3814 = vmul.f32 %v3794, %v3813
    %v3815 = vsub.f32 1.0, %v3814
    %v3816 = vmul.f32 %v3813, %v3815
    %v3817 = vadd.f32 %v3813, %v3816
    %vm3818 = vweird.f32 %v3794
    %vm3819 = vweird.f32 %v3813
    %vm3820 = vmor %vm3818, %vm3819
    %v3821 = vsel %vm3820, %v3813, %v3817
    %v3822 = vand.u32 2147483647, %v3794
    %vm3823 = vcmp.eq.f32.partialorder %v3822, 8.507059e+37
    %v3824 = vand.u32 %v3794, 2147483648
    %v3825 = vor.u32 1.1754944e-38, %v3824
    %v3826 = vsel %vm3823, %v3825, %v3821
    %v3827 = vmul.f32 %v3786, %v3826
    %v3828 = vrcp.pop %v3797
    %v3829 = vmul.f32 %v3797, %v3828
    %v3830 = vsub.f32 1.0, %v3829
    %v3831 = vmul.f32 %v3828, %v3830
    %v3832 = vadd.f32 %v3828, %v3831
    %vm3833 = vweird.f32 %v3797
    %vm3834 = vweird.f32 %v3828
    %vm3835 = vmor %vm3833, %vm3834
    %v3836 = vsel %vm3835, %v3828, %v3832
    %v3837 = vand.u32 2147483647, %v3797
    %vm3838 = vcmp.eq.f32.partialorder %v3837, 8.507059e+37
    %v3839 = vand.u32 %v3797, 2147483648
    %v3840 = vor.u32 1.1754944e-38, %v3839
    %v3841 = vsel %vm3838, %v3840, %v3836
    %v3842 = vmul.f32 %v3788, %v3841
    %s3843 = scalar_lea.vmem %s5, 432
    %3844 = vst.msk [vmem:[%s3843] sm:$0xff] %vm144, %v3812
    %3845 = vst.msk [vmem:[%s3843 + $0x8] sm:$0xff] %vm144, %v3827
    %3846 = vst.msk [vmem:[%s3843 + $0x10] sm:$0x3] %vm151, %v3842
    %3847 = vrot.lane.b32.xlu0 %v2441, 80
    %v3848 = vpop.permute.xlu0 %3847
    %3849 = vrot.lane.b32.xlu0 %v2444, 80
    %v3850 = vpop.permute.xlu0 %3849
    %3851 = vrot.lane.b32.xlu0 %v2447, 80
    %v3852 = vpop.permute.xlu0 %3851
    %v3856 = vsel %vm144, %v3812, 0
    %v3859 = vsel %vm144, %v3827, 0
    %v3862 = vsel %vm144, %v3842, 0
    %v3864 = vsel %vm238, %v3852, 0
    %3866 = vmatpush.msra.mxu0 0.0
    %3867 = vmatpush.msra.mxu0 0.0
    %3868 = vmatpush.msra.mxu0 0.0
    %3869 = vmatpush.msra.mxu0 0.0
    %3870 = vmatpush.msra.mxu0 0.0
    %3871 = vmatpush.msra.mxu0 0.0
    %3872 = vmatpush.msra.mxu0 0.0
    %3873 = vmatpush.msra.mxu0 0.0
    %3874 = vmatpush.msra.mxu0 0.0
    %3875 = vmatpush.msra.mxu0 0.0
    %3876 = vmatpush.msra.mxu0 0.0
    %3877 = vmatpush.msra.mxu0 0.0
    %3878 = vmatpush.msra.mxu0 0.0
    %3879 = vmatpush.msra.mxu0 %v3864
    %3880 = vmatpush.msra.mxu0 %v3850
    %3881 = vmatpush.msra.mxu0 %v3848
    %3882 = vmatmul.f32.gmra.mxu0 %v3856
    %v3883 = vpop.f32.mrf.mxu0
    %v3884 = vadd.f32 0.0, %v3883
    %3885 = vmatmul.f32.gmra.mxu0 %v3859
    %v3886 = vpop.f32.mrf.mxu0
    %v3887 = vadd.f32 0.0, %v3886
    %3888 = vmatmul.f32.gmra.mxu0 %v3862
    %v3889 = vpop.f32.mrf.mxu0
    %v3890 = vadd.f32 0.0, %v3889
    %3891 = vdwg.mxu0
    %3892 = vrot.lane.b32.xlu0 %v3372, 104
    %v3893 = vpop.permute.xlu0 %3892
    %3894 = vrot.lane.b32.xlu0 %v3375, 104
    %v3895 = vpop.permute.xlu0 %3894
    %3896 = vrot.lane.b32.xlu0 %v3378, 104
    %v3897 = vpop.permute.xlu0 %3896
    %3898 = vrot.lane.b32.xlu0 %v2441, 104
    %v3899 = vpop.permute.xlu0 %3898
    %3900 = vrot.lane.b32.xlu0 %v2444, 104
    %v3901 = vpop.permute.xlu0 %3900
    %3902 = vrot.lane.b32.xlu0 %v2447, 104
    %v3903 = vpop.permute.xlu0 %3902
    %v3904 = vsel %vm105, %v3893, 0
    %v3906 = vsel %vm105, %v3895, 0
    %v3908 = vsel %vm105, %v3897, 0
    %v3910 = vsel %vm105, %v3899, 0
    %v3912 = vsel %vm105, %v3901, 0
    %v3914 = vsel %vm105, %v3903, 0
    %3916 = vmatpush.xpose.msra.mxu0 0.0
    %3917 = vmatpush.xpose.msra.mxu0 0.0
    %3918 = vmatpush.xpose.msra.mxu0 0.0
    %3919 = vmatpush.xpose.msra.mxu0 0.0
    %3920 = vmatpush.xpose.msra.mxu0 0.0
    %3921 = vmatpush.xpose.msra.mxu0 0.0
    %3922 = vmatpush.xpose.msra.mxu0 0.0
    %3923 = vmatpush.xpose.msra.mxu0 0.0
    %3924 = vmatpush.xpose.msra.mxu0 0.0
    %3925 = vmatpush.xpose.msra.mxu0 0.0
    %3926 = vmatpush.xpose.msra.mxu0 0.0
    %3927 = vmatpush.xpose.msra.mxu0 0.0
    %3928 = vmatpush.xpose.msra.mxu0 0.0
    %3929 = vmatpush.xpose.msra.mxu0 %v3914
    %3930 = vmatpush.xpose.msra.mxu0 %v3912
    %3931 = vmatpush.xpose.msra.mxu0 %v3910
    %3932 = vmatmul.f32.gmra.mxu0 %v3904
    %v3933 = vpop.f32.mrf.mxu0
    %v3934 = vadd.f32 %v43, %v3933
    %3935 = vmatmul.f32.gmra.mxu0 %v3906
    %v3936 = vpop.f32.mrf.mxu0
    %v3937 = vadd.f32 %v44, %v3936
    %3938 = vmatmul.f32.gmra.mxu0 %v3908
    %v3939 = vpop.f32.mrf.mxu0
    %v3940 = vadd.f32 %v45, %v3939
    %3941 = vdwg.mxu0
    %v3942 = vsel %vm144, %v3934, -inf
    %3943 = vmax.xlane.f32.xlu0 %v3942
    %v3944 = vpop.xlane.xlu0 %3943
    %v3945 = vsel %vm144, %v3937, -inf
    %3946 = vmax.xlane.f32.xlu0 %v3945
    %v3947 = vpop.xlane.xlu0 %3946
    %v3948 = vsel %vm151, %v3940, -inf
    %3949 = vmax.xlane.f32.xlu0 %v3948
    %v3950 = vpop.xlane.xlu0 %3949
    %v3951 = vsub.f32 %v3934, %v3944
    %v3952 = vsub.f32 %v3937, %v3947
    %v3953 = vsub.f32 %v3940, %v3950
    %v3954 = vmul.f32 %v3951, 1.442695
    %v3955 = vpow.pop %v3954
    %v3956 = vmul.f32 %v3952, 1.442695
    %v3957 = vpow.pop %v3956
    %v3958 = vmul.f32 %v3953, 1.442695
    %v3959 = vpow.pop %v3958
    %v3960 = vsel %vm144, %v3955, 0.0
    %3961 = vadd.xlane.f32.xlu0 %v3960
    %v3962 = vpop.xlane.xlu0 %3961
    %v3963 = vsel %vm144, %v3957, 0.0
    %3964 = vadd.xlane.f32.xlu0 %v3963
    %v3965 = vpop.xlane.xlu0 %3964
    %v3966 = vsel %vm151, %v3959, 0.0
    %3967 = vadd.xlane.f32.xlu0 %v3966
    %v3968 = vpop.xlane.xlu0 %3967
    %v3969 = vrcp.pop %v3962
    %v3970 = vmul.f32 %v3962, %v3969
    %v3971 = vsub.f32 1.0, %v3970
    %v3972 = vmul.f32 %v3969, %v3971
    %v3973 = vadd.f32 %v3969, %v3972
    %vm3974 = vweird.f32 %v3962
    %vm3975 = vweird.f32 %v3969
    %vm3976 = vmor %vm3974, %vm3975
    %v3977 = vsel %vm3976, %v3969, %v3973
    %v3978 = vand.u32 2147483647, %v3962
    %vm3979 = vcmp.eq.f32.partialorder %v3978, 8.507059e+37
    %v3980 = vand.u32 %v3962, 2147483648
    %v3981 = vor.u32 1.1754944e-38, %v3980
    %v3982 = vsel %vm3979, %v3981, %v3977
    %v3983 = vmul.f32 %v3955, %v3982
    %v3984 = vrcp.pop %v3965
    %v3985 = vmul.f32 %v3965, %v3984
    %v3986 = vsub.f32 1.0, %v3985
    %v3987 = vmul.f32 %v3984, %v3986
    %v3988 = vadd.f32 %v3984, %v3987
    %vm3989 = vweird.f32 %v3965
    %vm3990 = vweird.f32 %v3984
    %vm3991 = vmor %vm3989, %vm3990
    %v3992 = vsel %vm3991, %v3984, %v3988
    %v3993 = vand.u32 2147483647, %v3965
    %vm3994 = vcmp.eq.f32.partialorder %v3993, 8.507059e+37
    %v3995 = vand.u32 %v3965, 2147483648
    %v3996 = vor.u32 1.1754944e-38, %v3995
    %v3997 = vsel %vm3994, %v3996, %v3992
    %v3998 = vmul.f32 %v3957, %v3997
    %v3999 = vrcp.pop %v3968
    %v4000 = vmul.f32 %v3968, %v3999
    %v4001 = vsub.f32 1.0, %v4000
    %v4002 = vmul.f32 %v3999, %v4001
    %v4003 = vadd.f32 %v3999, %v4002
    %vm4004 = vweird.f32 %v3968
    %vm4005 = vweird.f32 %v3999
    %vm4006 = vmor %vm4004, %vm4005
    %v4007 = vsel %vm4006, %v3999, %v4003
    %v4008 = vand.u32 2147483647, %v3968
    %vm4009 = vcmp.eq.f32.partialorder %v4008, 8.507059e+37
    %v4010 = vand.u32 %v3968, 2147483648
    %v4011 = vor.u32 1.1754944e-38, %v4010
    %v4012 = vsel %vm4009, %v4011, %v4007
    %v4013 = vmul.f32 %v3959, %v4012
    %s4014 = scalar_lea.vmem %s5, 456
    %4015 = vst.msk [vmem:[%s4014] sm:$0xff] %vm144, %v3983
    %4016 = vst.msk [vmem:[%s4014 + $0x8] sm:$0xff] %vm144, %v3998
    %4017 = vst.msk [vmem:[%s4014 + $0x10] sm:$0x3] %vm151, %v4013
    %4018 = vrot.lane.b32.xlu0 %v2441, 72
    %v4019 = vpop.permute.xlu0 %4018
    %4020 = vrot.lane.b32.xlu0 %v2444, 72
    %v4021 = vpop.permute.xlu0 %4020
    %4022 = vrot.lane.b32.xlu0 %v2447, 72
    %v4023 = vpop.permute.xlu0 %4022
    %v4027 = vsel %vm144, %v3983, 0
    %v4030 = vsel %vm144, %v3998, 0
    %v4033 = vsel %vm144, %v4013, 0
    %v4035 = vsel %vm238, %v4023, 0
    %4037 = vmatpush.msra.mxu0 0.0
    %4038 = vmatpush.msra.mxu0 0.0
    %4039 = vmatpush.msra.mxu0 0.0
    %4040 = vmatpush.msra.mxu0 0.0
    %4041 = vmatpush.msra.mxu0 0.0
    %4042 = vmatpush.msra.mxu0 0.0
    %4043 = vmatpush.msra.mxu0 0.0
    %4044 = vmatpush.msra.mxu0 0.0
    %4045 = vmatpush.msra.mxu0 0.0
    %4046 = vmatpush.msra.mxu0 0.0
    %4047 = vmatpush.msra.mxu0 0.0
    %4048 = vmatpush.msra.mxu0 0.0
    %4049 = vmatpush.msra.mxu0 0.0
    %4050 = vmatpush.msra.mxu0 %v4035
    %4051 = vmatpush.msra.mxu0 %v4021
    %4052 = vmatpush.msra.mxu0 %v4019
    %4053 = vmatmul.f32.gmra.mxu0 %v4027
    %v4054 = vpop.f32.mrf.mxu0
    %v4055 = vadd.f32 0.0, %v4054
    %4056 = vmatmul.f32.gmra.mxu0 %v4030
    %v4057 = vpop.f32.mrf.mxu0
    %v4058 = vadd.f32 0.0, %v4057
    %4059 = vmatmul.f32.gmra.mxu0 %v4033
    %v4060 = vpop.f32.mrf.mxu0
    %v4061 = vadd.f32 0.0, %v4060
    %4062 = vdwg.mxu0
    %4066 = vrot.lane.b32.xlu0 %v3713, 8
    %v4067 = vpop.permute.xlu0 %4066
    %4068 = vrot.lane.b32.xlu0 %v3716, 8
    %v4069 = vpop.permute.xlu0 %4068
    %4070 = vrot.lane.b32.xlu0 %v3719, 8
    %v4071 = vpop.permute.xlu0 %4070
    %4078 = vrot.lane.b32.xlu0 %v3884, 16
    %v4079 = vpop.permute.xlu0 %4078
    %4080 = vrot.lane.b32.xlu0 %v3887, 16
    %v4081 = vpop.permute.xlu0 %4080
    %4082 = vrot.lane.b32.xlu0 %v3890, 16
    %v4083 = vpop.permute.xlu0 %4082
    %4090 = vrot.lane.b32.xlu0 %v4055, 24
    %v4091 = vpop.permute.xlu0 %4090
    %4092 = vrot.lane.b32.xlu0 %v4058, 24
    %v4093 = vpop.permute.xlu0 %4092
    %4094 = vrot.lane.b32.xlu0 %v4061, 24
    %v4095 = vpop.permute.xlu0 %4094
    %v4099 = vsel %vm105, %v3542, %v4067
    %v4100 = vsel %vm105, %v3545, %v4069
    %v4101 = vsel %vm105, %v3548, %v4071
    %v4102 = vsel %vm819, %v4099, %v4079
    %v4103 = vsel %vm819, %v4100, %v4081
    %v4104 = vsel %vm819, %v4101, %v4083
    %v4105 = vsel %vm823, %v4102, %v4091
    %v4106 = vsel %vm823, %v4103, %v4093
    %v4107 = vsel %vm823, %v4104, %v4095
    %v4108 = vperm.slane %v3384, 0
    %v4110 = vsel %vm55, %v4105, 0
    %v4113 = vsel %vm55, %v4106, 0
    %v4116 = vsel %vm55, %v4107, 0
    %4118 = vmatpush.msra.mxu0 0.0
    %4119 = vmatpush.msra.mxu0 0.0
    %4120 = vmatpush.msra.mxu0 0.0
    %4121 = vmatpush.msra.mxu0 0.0
    %4122 = vmatpush.msra.mxu0 0.0
    %4123 = vmatpush.msra.mxu0 0.0
    %4124 = vmatpush.msra.mxu0 0.0
    %4125 = vmatpush.msra.mxu0 0.0
    %4126 = vmatpush.msra.mxu0 0.0
    %4127 = vmatpush.msra.mxu0 0.0
    %4128 = vmatpush.msra.mxu0 0.0
    %4129 = vmatpush.msra.mxu0 0.0
    %4130 = vmatpush.msra.mxu0 %v3383
    %4131 = vmatpush.msra.mxu0 %v3382
    %4132 = vmatpush.msra.mxu0 %v3381
    %4133 = vmatpush.msra.mxu0 %v3380
    %4134 = vmatmul.f32.gmra.mxu0 %v4110
    %v4135 = vpop.f32.mrf.mxu0
    %v4136 = vadd.f32 %v4108, %v4135
    %4137 = vmatmul.f32.gmra.mxu0 %v4113
    %v4138 = vpop.f32.mrf.mxu0
    %v4139 = vadd.f32 %v4108, %v4138
    %4140 = vmatmul.f32.gmra.mxu0 %v4116
    %v4141 = vpop.f32.mrf.mxu0
    %v4142 = vadd.f32 %v4108, %v4141
    %4143 = vdwg.mxu0
    %v4144 = vadd.f32 %v3336, %v4136
    %v4145 = vadd.f32 %v3337, %v4139
    %v4146 = vadd.f32 %v3338, %v4142
    %v4147 = vld [vmem:[#allocation2 + $0x298] sm:$0x1]
    %v4148 = vld [vmem:[#allocation2 + $0x2a0] sm:$0x1]
    %v4149 = vsel %vm55, %v4144, 0.0
    %4150 = vadd.xlane.f32.xlu0 %v4149
    %v4151 = vpop.xlane.xlu0 %4150
    %v4152 = vsel %vm55, %v4145, 0.0
    %4153 = vadd.xlane.f32.xlu0 %v4152
    %v4154 = vpop.xlane.xlu0 %4153
    %v4155 = vsel %vm874, %v4146, 0.0
    %4156 = vadd.xlane.f32.xlu0 %v4155
    %v4157 = vpop.xlane.xlu0 %4156
    %v4158 = vmul.f32 %v4151, %v884
    %v4159 = vmul.f32 %v4154, %v884
    %v4160 = vmul.f32 %v4157, %v884
    %v4161 = vsub.f32 %v4144, %v4158
    %v4162 = vsub.f32 %v4145, %v4159
    %v4163 = vsub.f32 %v4146, %v4160
    %v4164 = vmul.f32 %v4161, %v4161
    %v4165 = vmul.f32 %v4162, %v4162
    %v4166 = vmul.f32 %v4163, %v4163
    %v4167 = vsel %vm55, %v4164, 0.0
    %4168 = vadd.xlane.f32.xlu0 %v4167
    %v4169 = vpop.xlane.xlu0 %4168
    %v4170 = vsel %vm55, %v4165, 0.0
    %4171 = vadd.xlane.f32.xlu0 %v4170
    %v4172 = vpop.xlane.xlu0 %4171
    %v4173 = vsel %vm874, %v4166, 0.0
    %4174 = vadd.xlane.f32.xlu0 %v4173
    %v4175 = vpop.xlane.xlu0 %4174
    %v4176 = vmul.f32 %v4169, %v884
    %v4177 = vmul.f32 %v4172, %v884
    %v4178 = vmul.f32 %v4175, %v884
    %v4179 = vadd.f32 %v4176, 1e-12
    %v4180 = vadd.f32 %v4177, 1e-12
    %v4181 = vadd.f32 %v4178, 1e-12
    %v4182 = vrsqrt.pop %v4179
    %v4183 = vmul.f32 %v4182, %v4179
    %v4184 = vmul.f32 %v4183, %v4182
    %v4185 = vmul.f32 0.5, %v4184
    %v4186 = vsub.f32 1.5, %v4185
    %v4187 = vmul.f32 %v4182, %v4186
    %vm4188 = vweird.f32 %v4179
    %vm4189 = vweird.f32 %v4182
    %vm4190 = vmor %vm4188, %vm4189
    %v4191 = vsel %vm4190, %v4182, %v4187
    %v4192 = vrsqrt.pop %v4180
    %v4193 = vmul.f32 %v4192, %v4180
    %v4194 = vmul.f32 %v4193, %v4192
    %v4195 = vmul.f32 0.5, %v4194
    %v4196 = vsub.f32 1.5, %v4195
    %v4197 = vmul.f32 %v4192, %v4196
    %vm4198 = vweird.f32 %v4180
    %vm4199 = vweird.f32 %v4192
    %vm4200 = vmor %vm4198, %vm4199
    %v4201 = vsel %vm4200, %v4192, %v4197
    %v4202 = vrsqrt.pop %v4181
    %v4203 = vmul.f32 %v4202, %v4181
    %v4204 = vmul.f32 %v4203, %v4202
    %v4205 = vmul.f32 0.5, %v4204
    %v4206 = vsub.f32 1.5, %v4205
    %v4207 = vmul.f32 %v4202, %v4206
    %vm4208 = vweird.f32 %v4181
    %vm4209 = vweird.f32 %v4202
    %vm4210 = vmor %vm4208, %vm4209
    %v4211 = vsel %vm4210, %v4202, %v4207
    %v4212 = vmul.f32 %v4161, %v4191
    %v4213 = vmul.f32 %v4162, %v4201
    %v4214 = vmul.f32 %v4163, %v4211
    %v4215 = vperm.slane %v4147, 0
    %v4216 = vmul.f32 %v4212, %v4215
    %v4217 = vmul.f32 %v4213, %v4215
    %v4218 = vmul.f32 %v4214, %v4215
    %v4219 = vperm.slane %v4148, 0
    %v4220 = vadd.f32 %v4216, %v4219
    %v4221 = vadd.f32 %v4217, %v4219
    %v4222 = vadd.f32 %v4218, %v4219
    %v4223 = vld [vmem:[#allocation2 + $0x2a8] sm:$0xff]
    %v4224 = vld [vmem:[#allocation2 + $0x2b0] sm:$0xff]
    %v4225 = vld [vmem:[#allocation2 + $0x2b8] sm:$0xff]
    %v4226 = vld [vmem:[#allocation2 + $0x2c0] sm:$0xff]
    %v4227 = vld [vmem:[#allocation2 + $0x2c8] sm:$0x1]
    %v4228 = vld [vmem:[#allocation2 + $0x2d0] sm:$0xff]
    %v4229 = vld [vmem:[#allocation2 + $0x2d8] sm:$0xff]
    %v4230 = vld [vmem:[#allocation2 + $0x2e0] sm:$0xff]
    %v4231 = vld [vmem:[#allocation2 + $0x2e8] sm:$0xff]
    %v4232 = vld [vmem:[#allocation2 + $0x2f0] sm:$0xff]
    %v4233 = vld [vmem:[#allocation2 + $0x2f8] sm:$0xff]
    %v4234 = vld [vmem:[#allocation2 + $0x300] sm:$0xff]
    %v4235 = vld [vmem:[#allocation2 + $0x308] sm:$0xff]
    %v4236 = vld [vmem:[#allocation2 + $0x310] sm:$0x1]
    %v4237 = vperm.slane %v4227, 0
    %v4239 = vsel %vm55, %v4220, 0
    %v4242 = vsel %vm55, %v4221, 0
    %v4245 = vsel %vm55, %v4222, 0
    %4247 = vmatpush.msra.mxu0 0.0
    %4248 = vmatpush.msra.mxu0 0.0
    %4249 = vmatpush.msra.mxu0 0.0
    %4250 = vmatpush.msra.mxu0 0.0
    %4251 = vmatpush.msra.mxu0 0.0
    %4252 = vmatpush.msra.mxu0 0.0
    %4253 = vmatpush.msra.mxu0 0.0
    %4254 = vmatpush.msra.mxu0 0.0
    %4255 = vmatpush.msra.mxu0 0.0
    %4256 = vmatpush.msra.mxu0 0.0
    %4257 = vmatpush.msra.mxu0 0.0
    %4258 = vmatpush.msra.mxu0 0.0
    %4259 = vmatpush.msra.mxu0 %v4226
    %4260 = vmatpush.msra.mxu0 %v4225
    %4261 = vmatpush.msra.mxu0 %v4224
    %4262 = vmatpush.msra.mxu0 %v4223
    %4263 = vmatmul.f32.gmra.mxu0 %v4239
    %v4264 = vpop.f32.mrf.mxu0
    %v4265 = vadd.f32 %v4237, %v4264
    %4266 = vmatmul.f32.gmra.mxu0 %v4242
    %v4267 = vpop.f32.mrf.mxu0
    %v4268 = vadd.f32 %v4237, %v4267
    %4269 = vmatmul.f32.gmra.mxu0 %v4245
    %v4270 = vpop.f32.mrf.mxu0
    %v4271 = vadd.f32 %v4237, %v4270
    %4272 = vdwg.mxu0
    %v4273 = vmul.f32 %v4265, 0.5
    %v4274 = vmul.f32 %v4268, 0.5
    %v4275 = vmul.f32 %v4271, 0.5
    %v4276 = vmul.f32 %v4265, 0.70710677
    %v4277 = vmul.f32 %v4268, 0.70710677
    %v4278 = vmul.f32 %v4271, 0.70710677
    %vm4279 = vcmp.ge.f32.partialorder %v4276, 0.0
    %vm4280 = vcmp.ge.f32.partialorder %v4277, 0.0
    %vm4281 = vcmp.ge.f32.partialorder %v4278, 0.0
    %v4282 = vsel %vm4279, 1.0, -1.0
    %v4283 = vsel %vm4280, 1.0, -1.0
    %v4284 = vsel %vm4281, 1.0, -1.0
    %v4285 = vand.u32 2147483647, %v4276
    %v4286 = vand.u32 2147483647, %v4277
    %v4287 = vand.u32 2147483647, %v4278
    %v4288 = vmul.f32 %v4285, 0.3275911
    %v4289 = vmul.f32 %v4286, 0.3275911
    %v4290 = vmul.f32 %v4287, 0.3275911
    %v4291 = vadd.f32 %v4288, 1.0
    %v4292 = vadd.f32 %v4289, 1.0
    %v4293 = vadd.f32 %v4290, 1.0
    %v4294 = vrcp.pop %v4291
    %v4295 = vmul.f32 %v4291, %v4294
    %v4296 = vsub.f32 1.0, %v4295
    %v4297 = vmul.f32 %v4294, %v4296
    %v4298 = vadd.f32 %v4294, %v4297
    %vm4299 = vweird.f32 %v4291
    %vm4300 = vweird.f32 %v4294
    %vm4301 = vmor %vm4299, %vm4300
    %v4302 = vsel %vm4301, %v4294, %v4298
    %v4303 = vand.u32 2147483647, %v4291
    %vm4304 = vcmp.eq.f32.partialorder %v4303, 8.507059e+37
    %v4305 = vand.u32 %v4291, 2147483648
    %v4306 = vor.u32 1.1754944e-38, %v4305
    %v4307 = vsel %vm4304, %v4306, %v4302
    %v4308 = vmul.f32 1.0, %v4307
    %v4309 = vrcp.pop %v4292
    %v4310 = vmul.f32 %v4292, %v4309
    %v4311 = vsub.f32 1.0, %v4310
    %v4312 = vmul.f32 %v4309, %v4311
    %v4313 = vadd.f32 %v4309, %v4312
    %vm4314 = vweird.f32 %v4292
    %vm4315 = vweird.f32 %v4309
    %vm4316 = vmor %vm4314, %vm4315
    %v4317 = vsel %vm4316, %v4309, %v4313
    %v4318 = vand.u32 2147483647, %v4292
    %vm4319 = vcmp.eq.f32.partialorder %v4318, 8.507059e+37
    %v4320 = vand.u32 %v4292, 2147483648
    %v4321 = vor.u32 1.1754944e-38, %v4320
    %v4322 = vsel %vm4319, %v4321, %v4317
    %v4323 = vmul.f32 1.0, %v4322
    %v4324 = vrcp.pop %v4293
    %v4325 = vmul.f32 %v4293, %v4324
    %v4326 = vsub.f32 1.0, %v4325
    %v4327 = vmul.f32 %v4324, %v4326
    %v4328 = vadd.f32 %v4324, %v4327
    %vm4329 = vweird.f32 %v4293
    %vm4330 = vweird.f32 %v4324
    %vm4331 = vmor %vm4329, %vm4330
    %v4332 = vsel %vm4331, %v4324, %v4328
    %v4333 = vand.u32 2147483647, %v4293
    %vm4334 = vcmp.eq.f32.partialorder %v4333, 8.507059e+37
    %v4335 = vand.u32 %v4293, 2147483648
    %v4336 = vor.u32 1.1754944e-38, %v4335
    %v4337 = vsel %vm4334, %v4336, %v4332
    %v4338 = vmul.f32 1.0, %v4337
    %v4339 = vmul.f32 %v4308, 1.0614054
    %v4340 = vmul.f32 %v4323, 1.0614054
    %v4341 = vmul.f32 %v4338, 1.0614054
    %v4342 = vadd.f32 %v4339, -1.4531521
    %v4343 = vadd.f32 %v4340, -1.4531521
    %v4344 = vadd.f32 %v4341, -1.4531521
    %v4345 = vmul.f32 %v4342, %v4308
    %v4346 = vmul.f32 %v4343, %v4323
    %v4347 = vmul.f32 %v4344, %v4338
    %v4348 = vadd.f32 %v4345, 1.4214138
    %v4349 = vadd.f32 %v4346, 1.4214138
    %v4350 = vadd.f32 %v4347, 1.4214138
    %v4351 = vmul.f32 %v4348, %v4308
    %v4352 = vmul.f32 %v4349, %v4323
    %v4353 = vmul.f32 %v4350, %v4338
    %v4354 = vadd.f32 %v4351, -0.28449672
    %v4355 = vadd.f32 %v4352, -0.28449672
    %v4356 = vadd.f32 %v4353, -0.28449672
    %v4357 = vmul.f32 %v4354, %v4308
    %v4358 = vmul.f32 %v4355, %v4323
    %v4359 = vmul.f32 %v4356, %v4338
    %v4360 = vadd.f32 %v4357, 0.2548296
    %v4361 = vadd.f32 %v4358, 0.2548296
    %v4362 = vadd.f32 %v4359, 0.2548296
    %v4363 = vmul.f32 %v4360, %v4308
    %v4364 = vmul.f32 %v4361, %v4323
    %v4365 = vmul.f32 %v4362, %v4338
    %v4366 = vsub.f32 0.0, %v4285
    %v4367 = vsub.f32 0.0, %v4286
    %v4368 = vsub.f32 0.0, %v4287
    %v4369 = vmul.f32 %v4366, %v4285
    %v4370 = vmul.f32 %v4367, %v4286
    %v4371 = vmul.f32 %v4368, %v4287
    %v4372 = vmul.f32 %v4369, 1.442695
    %v4373 = vpow.pop %v4372
    %v4374 = vmul.f32 %v4370, 1.442695
    %v4375 = vpow.pop %v4374
    %v4376 = vmul.f32 %v4371, 1.442695
    %v4377 = vpow.pop %v4376
    %v4378 = vmul.f32 %v4363, %v4373
    %v4379 = vmul.f32 %v4364, %v4375
    %v4380 = vmul.f32 %v4365, %v4377
    %v4381 = vsub.f32 1.0, %v4378
    %v4382 = vsub.f32 1.0, %v4379
    %v4383 = vsub.f32 1.0, %v4380
    %v4384 = vmul.f32 %v4282, %v4381
    %v4385 = vmul.f32 %v4283, %v4382
    %v4386 = vmul.f32 %v4284, %v4383
    %v4387 = vadd.f32 %v4384, 1.0
    %v4388 = vadd.f32 %v4385, 1.0
    %v4389 = vadd.f32 %v4386, 1.0
    %v4390 = vmul.f32 %v4273, %v4387
    %v4391 = vmul.f32 %v4274, %v4388
    %v4392 = vmul.f32 %v4275, %v4389
    %v4393 = vperm.slane %v4236, 0
    %v4395 = vsel %vm1121, %v4390, 0
    %v4398 = vsel %vm1121, %v4391, 0
    %v4401 = vsel %vm1121, %v4392, 0
    %4403 = vmatpush.msra.mxu0 0.0
    %4404 = vmatpush.msra.mxu0 0.0
    %4405 = vmatpush.msra.mxu0 0.0
    %4406 = vmatpush.msra.mxu0 0.0
    %4407 = vmatpush.msra.mxu0 0.0
    %4408 = vmatpush.msra.mxu0 0.0
    %4409 = vmatpush.msra.mxu0 0.0
    %4410 = vmatpush.msra.mxu0 0.0
    %4411 = vmatpush.msra.mxu0 %v4235
    %4412 = vmatpush.msra.mxu0 %v4234
    %4413 = vmatpush.msra.mxu0 %v4233
    %4414 = vmatpush.msra.mxu0 %v4232
    %4415 = vmatpush.msra.mxu0 %v4231
    %4416 = vmatpush.msra.mxu0 %v4230
    %4417 = vmatpush.msra.mxu0 %v4229
    %4418 = vmatpush.msra.mxu0 %v4228
    %4419 = vmatmul.f32.gmra.mxu0 %v4395
    %v4420 = vpop.f32.mrf.mxu0
    %v4421 = vadd.f32 %v4393, %v4420
    %4422 = vmatmul.f32.gmra.mxu0 %v4398
    %v4423 = vpop.f32.mrf.mxu0
    %v4424 = vadd.f32 %v4393, %v4423
    %4425 = vmatmul.f32.gmra.mxu0 %v4401
    %v4426 = vpop.f32.mrf.mxu0
    %v4427 = vadd.f32 %v4393, %v4426
    %4428 = vdwg.mxu0
    %v4429 = vadd.f32 %v4220, %v4421
    %v4430 = vadd.f32 %v4221, %v4424
    %v4431 = vadd.f32 %v4222, %v4427
    %v4432 = vld [vmem:[#allocation2 + $0x318] sm:$0x1]
    %v4433 = vld [vmem:[#allocation2 + $0x320] sm:$0x1]
    %v4434 = vsel %vm55, %v4429, 0.0
    %4435 = vadd.xlane.f32.xlu0 %v4434
    %v4436 = vpop.xlane.xlu0 %4435
    %v4437 = vsel %vm55, %v4430, 0.0
    %4438 = vadd.xlane.f32.xlu0 %v4437
    %v4439 = vpop.xlane.xlu0 %4438
    %v4440 = vsel %vm874, %v4431, 0.0
    %4441 = vadd.xlane.f32.xlu0 %v4440
    %v4442 = vpop.xlane.xlu0 %4441
    %v4443 = vmul.f32 %v4436, %v884
    %v4444 = vmul.f32 %v4439, %v884
    %v4445 = vmul.f32 %v4442, %v884
    %v4446 = vsub.f32 %v4429, %v4443
    %v4447 = vsub.f32 %v4430, %v4444
    %v4448 = vsub.f32 %v4431, %v4445
    %v4449 = vmul.f32 %v4446, %v4446
    %v4450 = vmul.f32 %v4447, %v4447
    %v4451 = vmul.f32 %v4448, %v4448
    %v4452 = vsel %vm55, %v4449, 0.0
    %4453 = vadd.xlane.f32.xlu0 %v4452
    %v4454 = vpop.xlane.xlu0 %4453
    %v4455 = vsel %vm55, %v4450, 0.0
    %4456 = vadd.xlane.f32.xlu0 %v4455
    %v4457 = vpop.xlane.xlu0 %4456
    %v4458 = vsel %vm874, %v4451, 0.0
    %4459 = vadd.xlane.f32.xlu0 %v4458
    %v4460 = vpop.xlane.xlu0 %4459
    %v4461 = vmul.f32 %v4454, %v884
    %v4462 = vmul.f32 %v4457, %v884
    %v4463 = vmul.f32 %v4460, %v884
    %v4464 = vadd.f32 %v4461, 1e-12
    %v4465 = vadd.f32 %v4462, 1e-12
    %v4466 = vadd.f32 %v4463, 1e-12
    %v4467 = vrsqrt.pop %v4464
    %v4468 = vmul.f32 %v4467, %v4464
    %v4469 = vmul.f32 %v4468, %v4467
    %v4470 = vmul.f32 0.5, %v4469
    %v4471 = vsub.f32 1.5, %v4470
    %v4472 = vmul.f32 %v4467, %v4471
    %vm4473 = vweird.f32 %v4464
    %vm4474 = vweird.f32 %v4467
    %vm4475 = vmor %vm4473, %vm4474
    %v4476 = vsel %vm4475, %v4467, %v4472
    %v4477 = vrsqrt.pop %v4465
    %v4478 = vmul.f32 %v4477, %v4465
    %v4479 = vmul.f32 %v4478, %v4477
    %v4480 = vmul.f32 0.5, %v4479
    %v4481 = vsub.f32 1.5, %v4480
    %v4482 = vmul.f32 %v4477, %v4481
    %vm4483 = vweird.f32 %v4465
    %vm4484 = vweird.f32 %v4477
    %vm4485 = vmor %vm4483, %vm4484
    %v4486 = vsel %vm4485, %v4477, %v4482
    %v4487 = vrsqrt.pop %v4466
    %v4488 = vmul.f32 %v4487, %v4466
    %v4489 = vmul.f32 %v4488, %v4487
    %v4490 = vmul.f32 0.5, %v4489
    %v4491 = vsub.f32 1.5, %v4490
    %v4492 = vmul.f32 %v4487, %v4491
    %vm4493 = vweird.f32 %v4466
    %vm4494 = vweird.f32 %v4487
    %vm4495 = vmor %vm4493, %vm4494
    %v4496 = vsel %vm4495, %v4487, %v4492
    %v4497 = vmul.f32 %v4446, %v4476
    %v4498 = vmul.f32 %v4447, %v4486
    %v4499 = vmul.f32 %v4448, %v4496
    %v4500 = vperm.slane %v4432, 0
    %v4501 = vmul.f32 %v4497, %v4500
    %v4502 = vmul.f32 %v4498, %v4500
    %v4503 = vmul.f32 %v4499, %v4500
    %v4504 = vperm.slane %v4433, 0
    %v4505 = vadd.f32 %v4501, %v4504
    %v4506 = vadd.f32 %v4502, %v4504
    %v4507 = vadd.f32 %v4503, %v4504
    %v4508 = vld [vmem:[#allocation2 + $0x328] sm:$0xff]
    %v4509 = vld [vmem:[#allocation2 + $0x330] sm:$0xff]
    %v4510 = vld [vmem:[#allocation2 + $0x338] sm:$0xff]
    %v4511 = vld [vmem:[#allocation2 + $0x340] sm:$0xff]
    %v4512 = vld [vmem:[#allocation2 + $0x348] sm:$0x1]
    %v4513 = vperm.slane %v4512, 0
    %v4515 = vsel %vm55, %v4505, 0
    %v4518 = vsel %vm55, %v4506, 0
    %v4521 = vsel %vm55, %v4507, 0
    %4523 = vmatpush.msra.mxu0 0.0
    %4524 = vmatpush.msra.mxu0 0.0
    %4525 = vmatpush.msra.mxu0 0.0
    %4526 = vmatpush.msra.mxu0 0.0
    %4527 = vmatpush.msra.mxu0 0.0
    %4528 = vmatpush.msra.mxu0 0.0
    %4529 = vmatpush.msra.mxu0 0.0
    %4530 = vmatpush.msra.mxu0 0.0
    %4531 = vmatpush.msra.mxu0 0.0
    %4532 = vmatpush.msra.mxu0 0.0
    %4533 = vmatpush.msra.mxu0 0.0
    %4534 = vmatpush.msra.mxu0 0.0
    %4535 = vmatpush.msra.mxu0 %v4511
    %4536 = vmatpush.msra.mxu0 %v4510
    %4537 = vmatpush.msra.mxu0 %v4509
    %4538 = vmatpush.msra.mxu0 %v4508
    %4539 = vmatmul.f32.gmra.mxu0 %v4515
    %v4540 = vpop.f32.mrf.mxu0
    %v4541 = vadd.f32 %v4513, %v4540
    %4542 = vmatmul.f32.gmra.mxu0 %v4518
    %v4543 = vpop.f32.mrf.mxu0
    %v4544 = vadd.f32 %v4513, %v4543
    %4545 = vmatmul.f32.gmra.mxu0 %v4521
    %v4546 = vpop.f32.mrf.mxu0
    %v4547 = vadd.f32 %v4513, %v4546
    %4548 = vdwg.mxu0
    %v4549 = vld [vmem:[#allocation2 + $0x350] sm:$0xff]
    %v4550 = vld [vmem:[#allocation2 + $0x358] sm:$0xff]
    %v4551 = vld [vmem:[#allocation2 + $0x360] sm:$0xff]
    %v4552 = vld [vmem:[#allocation2 + $0x368] sm:$0xff]
    %v4553 = vld [vmem:[#allocation2 + $0x370] sm:$0x1]
    %4557 = vrot.lane.b32.xlu0 %v4541, 96
    %v4558 = vpop.permute.xlu0 %4557
    %4559 = vrot.lane.b32.xlu0 %v4544, 96
    %v4560 = vpop.permute.xlu0 %4559
    %4561 = vrot.lane.b32.xlu0 %v4547, 96
    %v4562 = vpop.permute.xlu0 %4561
    %v4563 = vsel %vm105, %v4541, 0
    %v4565 = vsel %vm105, %v4544, 0
    %v4567 = vsel %vm105, %v4547, 0
    %v4569 = vsel %vm105, %v4558, 0
    %v4571 = vsel %vm105, %v4560, 0
    %v4573 = vsel %vm105, %v4562, 0
    %4575 = vmatpush.xpose.msra.mxu0 0.0
    %4576 = vmatpush.xpose.msra.mxu0 0.0
    %4577 = vmatpush.xpose.msra.mxu0 0.0
    %4578 = vmatpush.xpose.msra.mxu0 0.0
    %4579 = vmatpush.xpose.msra.mxu0 0.0
    %4580 = vmatpush.xpose.msra.mxu0 0.0
    %4581 = vmatpush.xpose.msra.mxu0 0.0
    %4582 = vmatpush.xpose.msra.mxu0 0.0
    %4583 = vmatpush.xpose.msra.mxu0 0.0
    %4584 = vmatpush.xpose.msra.mxu0 0.0
    %4585 = vmatpush.xpose.msra.mxu0 0.0
    %4586 = vmatpush.xpose.msra.mxu0 0.0
    %4587 = vmatpush.xpose.msra.mxu0 0.0
    %4588 = vmatpush.xpose.msra.mxu0 %v4573
    %4589 = vmatpush.xpose.msra.mxu0 %v4571
    %4590 = vmatpush.xpose.msra.mxu0 %v4569
    %4591 = vmatmul.f32.gmra.mxu0 %v4563
    %v4592 = vpop.f32.mrf.mxu0
    %v4593 = vadd.f32 %v39, %v4592
    %4594 = vmatmul.f32.gmra.mxu0 %v4565
    %v4595 = vpop.f32.mrf.mxu0
    %v4596 = vadd.f32 %v40, %v4595
    %4597 = vmatmul.f32.gmra.mxu0 %v4567
    %v4598 = vpop.f32.mrf.mxu0
    %v4599 = vadd.f32 %v41, %v4598
    %4600 = vdwg.mxu0
    %v4601 = vsel %vm144, %v4593, -inf
    %4602 = vmax.xlane.f32.xlu0 %v4601
    %v4603 = vpop.xlane.xlu0 %4602
    %v4604 = vsel %vm144, %v4596, -inf
    %4605 = vmax.xlane.f32.xlu0 %v4604
    %v4606 = vpop.xlane.xlu0 %4605
    %v4607 = vsel %vm151, %v4599, -inf
    %4608 = vmax.xlane.f32.xlu0 %v4607
    %v4609 = vpop.xlane.xlu0 %4608
    %v4610 = vsub.f32 %v4593, %v4603
    %v4611 = vsub.f32 %v4596, %v4606
    %v4612 = vsub.f32 %v4599, %v4609
    %v4613 = vmul.f32 %v4610, 1.442695
    %v4614 = vpow.pop %v4613
    %v4615 = vmul.f32 %v4611, 1.442695
    %v4616 = vpow.pop %v4615
    %v4617 = vmul.f32 %v4612, 1.442695
    %v4618 = vpow.pop %v4617
    %v4619 = vsel %vm144, %v4614, 0.0
    %4620 = vadd.xlane.f32.xlu0 %v4619
    %v4621 = vpop.xlane.xlu0 %4620
    %v4622 = vsel %vm144, %v4616, 0.0
    %4623 = vadd.xlane.f32.xlu0 %v4622
    %v4624 = vpop.xlane.xlu0 %4623
    %v4625 = vsel %vm151, %v4618, 0.0
    %4626 = vadd.xlane.f32.xlu0 %v4625
    %v4627 = vpop.xlane.xlu0 %4626
    %v4628 = vrcp.pop %v4621
    %v4629 = vmul.f32 %v4621, %v4628
    %v4630 = vsub.f32 1.0, %v4629
    %v4631 = vmul.f32 %v4628, %v4630
    %v4632 = vadd.f32 %v4628, %v4631
    %vm4633 = vweird.f32 %v4621
    %vm4634 = vweird.f32 %v4628
    %vm4635 = vmor %vm4633, %vm4634
    %v4636 = vsel %vm4635, %v4628, %v4632
    %v4637 = vand.u32 2147483647, %v4621
    %vm4638 = vcmp.eq.f32.partialorder %v4637, 8.507059e+37
    %v4639 = vand.u32 %v4621, 2147483648
    %v4640 = vor.u32 1.1754944e-38, %v4639
    %v4641 = vsel %vm4638, %v4640, %v4636
    %v4642 = vmul.f32 %v4614, %v4641
    %v4643 = vrcp.pop %v4624
    %v4644 = vmul.f32 %v4624, %v4643
    %v4645 = vsub.f32 1.0, %v4644
    %v4646 = vmul.f32 %v4643, %v4645
    %v4647 = vadd.f32 %v4643, %v4646
    %vm4648 = vweird.f32 %v4624
    %vm4649 = vweird.f32 %v4643
    %vm4650 = vmor %vm4648, %vm4649
    %v4651 = vsel %vm4650, %v4643, %v4647
    %v4652 = vand.u32 2147483647, %v4624
    %vm4653 = vcmp.eq.f32.partialorder %v4652, 8.507059e+37
    %v4654 = vand.u32 %v4624, 2147483648
    %v4655 = vor.u32 1.1754944e-38, %v4654
    %v4656 = vsel %vm4653, %v4655, %v4651
    %v4657 = vmul.f32 %v4616, %v4656
    %v4658 = vrcp.pop %v4627
    %v4659 = vmul.f32 %v4627, %v4658
    %v4660 = vsub.f32 1.0, %v4659
    %v4661 = vmul.f32 %v4658, %v4660
    %v4662 = vadd.f32 %v4658, %v4661
    %vm4663 = vweird.f32 %v4627
    %vm4664 = vweird.f32 %v4658
    %vm4665 = vmor %vm4663, %vm4664
    %v4666 = vsel %vm4665, %v4658, %v4662
    %v4667 = vand.u32 2147483647, %v4627
    %vm4668 = vcmp.eq.f32.partialorder %v4667, 8.507059e+37
    %v4669 = vand.u32 %v4627, 2147483648
    %v4670 = vor.u32 1.1754944e-38, %v4669
    %v4671 = vsel %vm4668, %v4670, %v4666
    %v4672 = vmul.f32 %v4618, %v4671
    %s4673 = scalar_lea.vmem %s5, 288
    %4674 = vst.msk [vmem:[%s4673] sm:$0xff] %vm144, %v4642
    %4675 = vst.msk [vmem:[%s4673 + $0x8] sm:$0xff] %vm144, %v4657
    %4676 = vst.msk [vmem:[%s4673 + $0x10] sm:$0x3] %vm151, %v4672
    %4677 = vrot.lane.b32.xlu0 %v4541, 64
    %v4678 = vpop.permute.xlu0 %4677
    %4679 = vrot.lane.b32.xlu0 %v4544, 64
    %v4680 = vpop.permute.xlu0 %4679
    %4681 = vrot.lane.b32.xlu0 %v4547, 64
    %v4682 = vpop.permute.xlu0 %4681
    %v4686 = vsel %vm144, %v4642, 0
    %v4689 = vsel %vm144, %v4657, 0
    %v4692 = vsel %vm144, %v4672, 0
    %v4694 = vsel %vm238, %v4682, 0
    %4696 = vmatpush.msra.mxu0 0.0
    %4697 = vmatpush.msra.mxu0 0.0
    %4698 = vmatpush.msra.mxu0 0.0
    %4699 = vmatpush.msra.mxu0 0.0
    %4700 = vmatpush.msra.mxu0 0.0
    %4701 = vmatpush.msra.mxu0 0.0
    %4702 = vmatpush.msra.mxu0 0.0
    %4703 = vmatpush.msra.mxu0 0.0
    %4704 = vmatpush.msra.mxu0 0.0
    %4705 = vmatpush.msra.mxu0 0.0
    %4706 = vmatpush.msra.mxu0 0.0
    %4707 = vmatpush.msra.mxu0 0.0
    %4708 = vmatpush.msra.mxu0 0.0
    %4709 = vmatpush.msra.mxu0 %v4694
    %4710 = vmatpush.msra.mxu0 %v4680
    %4711 = vmatpush.msra.mxu0 %v4678
    %4712 = vmatmul.f32.gmra.mxu0 %v4686
    %v4713 = vpop.f32.mrf.mxu0
    %v4714 = vadd.f32 0.0, %v4713
    %4715 = vmatmul.f32.gmra.mxu0 %v4689
    %v4716 = vpop.f32.mrf.mxu0
    %v4717 = vadd.f32 0.0, %v4716
    %4718 = vmatmul.f32.gmra.mxu0 %v4692
    %v4719 = vpop.f32.mrf.mxu0
    %v4720 = vadd.f32 0.0, %v4719
    %4721 = vdwg.mxu0
    %4722 = vrot.lane.b32.xlu0 %v4541, 120
    %v4723 = vpop.permute.xlu0 %4722
    %4724 = vrot.lane.b32.xlu0 %v4544, 120
    %v4725 = vpop.permute.xlu0 %4724
    %4726 = vrot.lane.b32.xlu0 %v4547, 120
    %v4727 = vpop.permute.xlu0 %4726
    %4728 = vrot.lane.b32.xlu0 %v4541, 88
    %v4729 = vpop.permute.xlu0 %4728
    %4730 = vrot.lane.b32.xlu0 %v4544, 88
    %v4731 = vpop.permute.xlu0 %4730
    %4732 = vrot.lane.b32.xlu0 %v4547, 88
    %v4733 = vpop.permute.xlu0 %4732
    %v4734 = vsel %vm105, %v4723, 0
    %v4736 = vsel %vm105, %v4725, 0
    %v4738 = vsel %vm105, %v4727, 0
    %v4740 = vsel %vm105, %v4729, 0
    %v4742 = vsel %vm105, %v4731, 0
    %v4744 = vsel %vm105, %v4733, 0
    %4746 = vmatpush.xpose.msra.mxu0 0.0
    %4747 = vmatpush.xpose.msra.mxu0 0.0
    %4748 = vmatpush.xpose.msra.mxu0 0.0
    %4749 = vmatpush.xpose.msra.mxu0 0.0
    %4750 = vmatpush.xpose.msra.mxu0 0.0
    %4751 = vmatpush.xpose.msra.mxu0 0.0
    %4752 = vmatpush.xpose.msra.mxu0 0.0
    %4753 = vmatpush.xpose.msra.mxu0 0.0
    %4754 = vmatpush.xpose.msra.mxu0 0.0
    %4755 = vmatpush.xpose.msra.mxu0 0.0
    %4756 = vmatpush.xpose.msra.mxu0 0.0
    %4757 = vmatpush.xpose.msra.mxu0 0.0
    %4758 = vmatpush.xpose.msra.mxu0 0.0
    %4759 = vmatpush.xpose.msra.mxu0 %v4744
    %4760 = vmatpush.xpose.msra.mxu0 %v4742
    %4761 = vmatpush.xpose.msra.mxu0 %v4740
    %4762 = vmatmul.f32.gmra.mxu0 %v4734
    %v4763 = vpop.f32.mrf.mxu0
    %v4764 = vadd.f32 %v39, %v4763
    %4765 = vmatmul.f32.gmra.mxu0 %v4736
    %v4766 = vpop.f32.mrf.mxu0
    %v4767 = vadd.f32 %v40, %v4766
    %4768 = vmatmul.f32.gmra.mxu0 %v4738
    %v4769 = vpop.f32.mrf.mxu0
    %v4770 = vadd.f32 %v41, %v4769
    %4771 = vdwg.mxu0
    %v4772 = vsel %vm144, %v4764, -inf
    %4773 = vmax.xlane.f32.xlu0 %v4772
    %v4774 = vpop.xlane.xlu0 %4773
    %v4775 = vsel %vm144, %v4767, -inf
    %4776 = vmax.xlane.f32.xlu0 %v4775
    %v4777 = vpop.xlane.xlu0 %4776
    %v4778 = vsel %vm151, %v4770, -inf
    %4779 = vmax.xlane.f32.xlu0 %v4778
    %v4780 = vpop.xlane.xlu0 %4779
    %v4781 = vsub.f32 %v4764, %v4774
    %v4782 = vsub.f32 %v4767, %v4777
    %v4783 = vsub.f32 %v4770, %v4780
    %v4784 = vmul.f32 %v4781, 1.442695
    %v4785 = vpow.pop %v4784
    %v4786 = vmul.f32 %v4782, 1.442695
    %v4787 = vpow.pop %v4786
    %v4788 = vmul.f32 %v4783, 1.442695
    %v4789 = vpow.pop %v4788
    %v4790 = vsel %vm144, %v4785, 0.0
    %4791 = vadd.xlane.f32.xlu0 %v4790
    %v4792 = vpop.xlane.xlu0 %4791
    %v4793 = vsel %vm144, %v4787, 0.0
    %4794 = vadd.xlane.f32.xlu0 %v4793
    %v4795 = vpop.xlane.xlu0 %4794
    %v4796 = vsel %vm151, %v4789, 0.0
    %4797 = vadd.xlane.f32.xlu0 %v4796
    %v4798 = vpop.xlane.xlu0 %4797
    %v4799 = vrcp.pop %v4792
    %v4800 = vmul.f32 %v4792, %v4799
    %v4801 = vsub.f32 1.0, %v4800
    %v4802 = vmul.f32 %v4799, %v4801
    %v4803 = vadd.f32 %v4799, %v4802
    %vm4804 = vweird.f32 %v4792
    %vm4805 = vweird.f32 %v4799
    %vm4806 = vmor %vm4804, %vm4805
    %v4807 = vsel %vm4806, %v4799, %v4803
    %v4808 = vand.u32 2147483647, %v4792
    %vm4809 = vcmp.eq.f32.partialorder %v4808, 8.507059e+37
    %v4810 = vand.u32 %v4792, 2147483648
    %v4811 = vor.u32 1.1754944e-38, %v4810
    %v4812 = vsel %vm4809, %v4811, %v4807
    %v4813 = vmul.f32 %v4785, %v4812
    %v4814 = vrcp.pop %v4795
    %v4815 = vmul.f32 %v4795, %v4814
    %v4816 = vsub.f32 1.0, %v4815
    %v4817 = vmul.f32 %v4814, %v4816
    %v4818 = vadd.f32 %v4814, %v4817
    %vm4819 = vweird.f32 %v4795
    %vm4820 = vweird.f32 %v4814
    %vm4821 = vmor %vm4819, %vm4820
    %v4822 = vsel %vm4821, %v4814, %v4818
    %v4823 = vand.u32 2147483647, %v4795
    %vm4824 = vcmp.eq.f32.partialorder %v4823, 8.507059e+37
    %v4825 = vand.u32 %v4795, 2147483648
    %v4826 = vor.u32 1.1754944e-38, %v4825
    %v4827 = vsel %vm4824, %v4826, %v4822
    %v4828 = vmul.f32 %v4787, %v4827
    %v4829 = vrcp.pop %v4798
    %v4830 = vmul.f32 %v4798, %v4829
    %v4831 = vsub.f32 1.0, %v4830
    %v4832 = vmul.f32 %v4829, %v4831
    %v4833 = vadd.f32 %v4829, %v4832
    %vm4834 = vweird.f32 %v4798
    %vm4835 = vweird.f32 %v4829
    %vm4836 = vmor %vm4834, %vm4835
    %v4837 = vsel %vm4836, %v4829, %v4833
    %v4838 = vand.u32 2147483647, %v4798
    %vm4839 = vcmp.eq.f32.partialorder %v4838, 8.507059e+37
    %v4840 = vand.u32 %v4798, 2147483648
    %v4841 = vor.u32 1.1754944e-38, %v4840
    %v4842 = vsel %vm4839, %v4841, %v4837
    %v4843 = vmul.f32 %v4789, %v4842
    %s4844 = scalar_lea.vmem %s5, 312
    %4845 = vst.msk [vmem:[%s4844] sm:$0xff] %vm144, %v4813
    %4846 = vst.msk [vmem:[%s4844 + $0x8] sm:$0xff] %vm144, %v4828
    %4847 = vst.msk [vmem:[%s4844 + $0x10] sm:$0x3] %vm151, %v4843
    %4848 = vrot.lane.b32.xlu0 %v4541, 56
    %v4849 = vpop.permute.xlu0 %4848
    %4850 = vrot.lane.b32.xlu0 %v4544, 56
    %v4851 = vpop.permute.xlu0 %4850
    %4852 = vrot.lane.b32.xlu0 %v4547, 56
    %v4853 = vpop.permute.xlu0 %4852
    %v4857 = vsel %vm144, %v4813, 0
    %v4860 = vsel %vm144, %v4828, 0
    %v4863 = vsel %vm144, %v4843, 0
    %v4865 = vsel %vm238, %v4853, 0
    %4867 = vmatpush.msra.mxu0 0.0
    %4868 = vmatpush.msra.mxu0 0.0
    %4869 = vmatpush.msra.mxu0 0.0
    %4870 = vmatpush.msra.mxu0 0.0
    %4871 = vmatpush.msra.mxu0 0.0
    %4872 = vmatpush.msra.mxu0 0.0
    %4873 = vmatpush.msra.mxu0 0.0
    %4874 = vmatpush.msra.mxu0 0.0
    %4875 = vmatpush.msra.mxu0 0.0
    %4876 = vmatpush.msra.mxu0 0.0
    %4877 = vmatpush.msra.mxu0 0.0
    %4878 = vmatpush.msra.mxu0 0.0
    %4879 = vmatpush.msra.mxu0 0.0
    %4880 = vmatpush.msra.mxu0 %v4865
    %4881 = vmatpush.msra.mxu0 %v4851
    %4882 = vmatpush.msra.mxu0 %v4849
    %4883 = vmatmul.f32.gmra.mxu0 %v4857
    %v4884 = vpop.f32.mrf.mxu0
    %v4885 = vadd.f32 0.0, %v4884
    %4886 = vmatmul.f32.gmra.mxu0 %v4860
    %v4887 = vpop.f32.mrf.mxu0
    %v4888 = vadd.f32 0.0, %v4887
    %4889 = vmatmul.f32.gmra.mxu0 %v4863
    %v4890 = vpop.f32.mrf.mxu0
    %v4891 = vadd.f32 0.0, %v4890
    %4892 = vdwg.mxu0
    %4893 = vrot.lane.b32.xlu0 %v4541, 112
    %v4894 = vpop.permute.xlu0 %4893
    %4895 = vrot.lane.b32.xlu0 %v4544, 112
    %v4896 = vpop.permute.xlu0 %4895
    %4897 = vrot.lane.b32.xlu0 %v4547, 112
    %v4898 = vpop.permute.xlu0 %4897
    %4899 = vrot.lane.b32.xlu0 %v4541, 80
    %v4900 = vpop.permute.xlu0 %4899
    %4901 = vrot.lane.b32.xlu0 %v4544, 80
    %v4902 = vpop.permute.xlu0 %4901
    %4903 = vrot.lane.b32.xlu0 %v4547, 80
    %v4904 = vpop.permute.xlu0 %4903
    %v4905 = vsel %vm105, %v4894, 0
    %v4907 = vsel %vm105, %v4896, 0
    %v4909 = vsel %vm105, %v4898, 0
    %v4911 = vsel %vm105, %v4900, 0
    %v4913 = vsel %vm105, %v4902, 0
    %v4915 = vsel %vm105, %v4904, 0
    %4917 = vmatpush.xpose.msra.mxu0 0.0
    %4918 = vmatpush.xpose.msra.mxu0 0.0
    %4919 = vmatpush.xpose.msra.mxu0 0.0
    %4920 = vmatpush.xpose.msra.mxu0 0.0
    %4921 = vmatpush.xpose.msra.mxu0 0.0
    %4922 = vmatpush.xpose.msra.mxu0 0.0
    %4923 = vmatpush.xpose.msra.mxu0 0.0
    %4924 = vmatpush.xpose.msra.mxu0 0.0
    %4925 = vmatpush.xpose.msra.mxu0 0.0
    %4926 = vmatpush.xpose.msra.mxu0 0.0
    %4927 = vmatpush.xpose.msra.mxu0 0.0
    %4928 = vmatpush.xpose.msra.mxu0 0.0
    %4929 = vmatpush.xpose.msra.mxu0 0.0
    %4930 = vmatpush.xpose.msra.mxu0 %v4915
    %4931 = vmatpush.xpose.msra.mxu0 %v4913
    %4932 = vmatpush.xpose.msra.mxu0 %v4911
    %4933 = vmatmul.f32.gmra.mxu0 %v4905
    %v4934 = vpop.f32.mrf.mxu0
    %v4935 = vadd.f32 %v39, %v4934
    %4936 = vmatmul.f32.gmra.mxu0 %v4907
    %v4937 = vpop.f32.mrf.mxu0
    %v4938 = vadd.f32 %v40, %v4937
    %4939 = vmatmul.f32.gmra.mxu0 %v4909
    %v4940 = vpop.f32.mrf.mxu0
    %v4941 = vadd.f32 %v41, %v4940
    %4942 = vdwg.mxu0
    %v4943 = vsel %vm144, %v4935, -inf
    %4944 = vmax.xlane.f32.xlu0 %v4943
    %v4945 = vpop.xlane.xlu0 %4944
    %v4946 = vsel %vm144, %v4938, -inf
    %4947 = vmax.xlane.f32.xlu0 %v4946
    %v4948 = vpop.xlane.xlu0 %4947
    %v4949 = vsel %vm151, %v4941, -inf
    %4950 = vmax.xlane.f32.xlu0 %v4949
    %v4951 = vpop.xlane.xlu0 %4950
    %v4952 = vsub.f32 %v4935, %v4945
    %v4953 = vsub.f32 %v4938, %v4948
    %v4954 = vsub.f32 %v4941, %v4951
    %v4955 = vmul.f32 %v4952, 1.442695
    %v4956 = vpow.pop %v4955
    %v4957 = vmul.f32 %v4953, 1.442695
    %v4958 = vpow.pop %v4957
    %v4959 = vmul.f32 %v4954, 1.442695
    %v4960 = vpow.pop %v4959
    %v4961 = vsel %vm144, %v4956, 0.0
    %4962 = vadd.xlane.f32.xlu0 %v4961
    %v4963 = vpop.xlane.xlu0 %4962
    %v4964 = vsel %vm144, %v4958, 0.0
    %4965 = vadd.xlane.f32.xlu0 %v4964
    %v4966 = vpop.xlane.xlu0 %4965
    %v4967 = vsel %vm151, %v4960, 0.0
    %4968 = vadd.xlane.f32.xlu0 %v4967
    %v4969 = vpop.xlane.xlu0 %4968
    %v4970 = vrcp.pop %v4963
    %v4971 = vmul.f32 %v4963, %v4970
    %v4972 = vsub.f32 1.0, %v4971
    %v4973 = vmul.f32 %v4970, %v4972
    %v4974 = vadd.f32 %v4970, %v4973
    %vm4975 = vweird.f32 %v4963
    %vm4976 = vweird.f32 %v4970
    %vm4977 = vmor %vm4975, %vm4976
    %v4978 = vsel %vm4977, %v4970, %v4974
    %v4979 = vand.u32 2147483647, %v4963
    %vm4980 = vcmp.eq.f32.partialorder %v4979, 8.507059e+37
    %v4981 = vand.u32 %v4963, 2147483648
    %v4982 = vor.u32 1.1754944e-38, %v4981
    %v4983 = vsel %vm4980, %v4982, %v4978
    %v4984 = vmul.f32 %v4956, %v4983
    %v4985 = vrcp.pop %v4966
    %v4986 = vmul.f32 %v4966, %v4985
    %v4987 = vsub.f32 1.0, %v4986
    %v4988 = vmul.f32 %v4985, %v4987
    %v4989 = vadd.f32 %v4985, %v4988
    %vm4990 = vweird.f32 %v4966
    %vm4991 = vweird.f32 %v4985
    %vm4992 = vmor %vm4990, %vm4991
    %v4993 = vsel %vm4992, %v4985, %v4989
    %v4994 = vand.u32 2147483647, %v4966
    %vm4995 = vcmp.eq.f32.partialorder %v4994, 8.507059e+37
    %v4996 = vand.u32 %v4966, 2147483648
    %v4997 = vor.u32 1.1754944e-38, %v4996
    %v4998 = vsel %vm4995, %v4997, %v4993
    %v4999 = vmul.f32 %v4958, %v4998
    %v5000 = vrcp.pop %v4969
    %v5001 = vmul.f32 %v4969, %v5000
    %v5002 = vsub.f32 1.0, %v5001
    %v5003 = vmul.f32 %v5000, %v5002
    %v5004 = vadd.f32 %v5000, %v5003
    %vm5005 = vweird.f32 %v4969
    %vm5006 = vweird.f32 %v5000
    %vm5007 = vmor %vm5005, %vm5006
    %v5008 = vsel %vm5007, %v5000, %v5004
    %v5009 = vand.u32 2147483647, %v4969
    %vm5010 = vcmp.eq.f32.partialorder %v5009, 8.507059e+37
    %v5011 = vand.u32 %v4969, 2147483648
    %v5012 = vor.u32 1.1754944e-38, %v5011
    %v5013 = vsel %vm5010, %v5012, %v5008
    %v5014 = vmul.f32 %v4960, %v5013
    %s5015 = scalar_lea.vmem %s5, 336
    %5016 = vst.msk [vmem:[%s5015] sm:$0xff] %vm144, %v4984
    %5017 = vst.msk [vmem:[%s5015 + $0x8] sm:$0xff] %vm144, %v4999
    %5018 = vst.msk [vmem:[%s5015 + $0x10] sm:$0x3] %vm151, %v5014
    %5019 = vrot.lane.b32.xlu0 %v4541, 48
    %v5020 = vpop.permute.xlu0 %5019
    %5021 = vrot.lane.b32.xlu0 %v4544, 48
    %v5022 = vpop.permute.xlu0 %5021
    %5023 = vrot.lane.b32.xlu0 %v4547, 48
    %v5024 = vpop.permute.xlu0 %5023
    %v5028 = vsel %vm144, %v4984, 0
    %v5031 = vsel %vm144, %v4999, 0
    %v5034 = vsel %vm144, %v5014, 0
    %v5036 = vsel %vm238, %v5024, 0
    %5038 = vmatpush.msra.mxu0 0.0
    %5039 = vmatpush.msra.mxu0 0.0
    %5040 = vmatpush.msra.mxu0 0.0
    %5041 = vmatpush.msra.mxu0 0.0
    %5042 = vmatpush.msra.mxu0 0.0
    %5043 = vmatpush.msra.mxu0 0.0
    %5044 = vmatpush.msra.mxu0 0.0
    %5045 = vmatpush.msra.mxu0 0.0
    %5046 = vmatpush.msra.mxu0 0.0
    %5047 = vmatpush.msra.mxu0 0.0
    %5048 = vmatpush.msra.mxu0 0.0
    %5049 = vmatpush.msra.mxu0 0.0
    %5050 = vmatpush.msra.mxu0 0.0
    %5051 = vmatpush.msra.mxu0 %v5036
    %5052 = vmatpush.msra.mxu0 %v5022
    %5053 = vmatpush.msra.mxu0 %v5020
    %5054 = vmatmul.f32.gmra.mxu0 %v5028
    %v5055 = vpop.f32.mrf.mxu0
    %v5056 = vadd.f32 0.0, %v5055
    %5057 = vmatmul.f32.gmra.mxu0 %v5031
    %v5058 = vpop.f32.mrf.mxu0
    %v5059 = vadd.f32 0.0, %v5058
    %5060 = vmatmul.f32.gmra.mxu0 %v5034
    %v5061 = vpop.f32.mrf.mxu0
    %v5062 = vadd.f32 0.0, %v5061
    %5063 = vdwg.mxu0
    %5064 = vrot.lane.b32.xlu0 %v4541, 104
    %v5065 = vpop.permute.xlu0 %5064
    %5066 = vrot.lane.b32.xlu0 %v4544, 104
    %v5067 = vpop.permute.xlu0 %5066
    %5068 = vrot.lane.b32.xlu0 %v4547, 104
    %v5069 = vpop.permute.xlu0 %5068
    %5070 = vrot.lane.b32.xlu0 %v4541, 72
    %v5071 = vpop.permute.xlu0 %5070
    %5072 = vrot.lane.b32.xlu0 %v4544, 72
    %v5073 = vpop.permute.xlu0 %5072
    %5074 = vrot.lane.b32.xlu0 %v4547, 72
    %v5075 = vpop.permute.xlu0 %5074
    %v5076 = vsel %vm105, %v5065, 0
    %v5078 = vsel %vm105, %v5067, 0
    %v5080 = vsel %vm105, %v5069, 0
    %v5082 = vsel %vm105, %v5071, 0
    %v5084 = vsel %vm105, %v5073, 0
    %v5086 = vsel %vm105, %v5075, 0
    %5088 = vmatpush.xpose.msra.mxu0 0.0
    %5089 = vmatpush.xpose.msra.mxu0 0.0
    %5090 = vmatpush.xpose.msra.mxu0 0.0
    %5091 = vmatpush.xpose.msra.mxu0 0.0
    %5092 = vmatpush.xpose.msra.mxu0 0.0
    %5093 = vmatpush.xpose.msra.mxu0 0.0
    %5094 = vmatpush.xpose.msra.mxu0 0.0
    %5095 = vmatpush.xpose.msra.mxu0 0.0
    %5096 = vmatpush.xpose.msra.mxu0 0.0
    %5097 = vmatpush.xpose.msra.mxu0 0.0
    %5098 = vmatpush.xpose.msra.mxu0 0.0
    %5099 = vmatpush.xpose.msra.mxu0 0.0
    %5100 = vmatpush.xpose.msra.mxu0 0.0
    %5101 = vmatpush.xpose.msra.mxu0 %v5086
    %5102 = vmatpush.xpose.msra.mxu0 %v5084
    %5103 = vmatpush.xpose.msra.mxu0 %v5082
    %5104 = vmatmul.f32.gmra.mxu0 %v5076
    %v5105 = vpop.f32.mrf.mxu0
    %v5106 = vadd.f32 %v39, %v5105
    %5107 = vmatmul.f32.gmra.mxu0 %v5078
    %v5108 = vpop.f32.mrf.mxu0
    %v5109 = vadd.f32 %v40, %v5108
    %5110 = vmatmul.f32.gmra.mxu0 %v5080
    %v5111 = vpop.f32.mrf.mxu0
    %v5112 = vadd.f32 %v41, %v5111
    %5113 = vdwg.mxu0
    %v5114 = vsel %vm144, %v5106, -inf
    %5115 = vmax.xlane.f32.xlu0 %v5114
    %v5116 = vpop.xlane.xlu0 %5115
    %v5117 = vsel %vm144, %v5109, -inf
    %5118 = vmax.xlane.f32.xlu0 %v5117
    %v5119 = vpop.xlane.xlu0 %5118
    %v5120 = vsel %vm151, %v5112, -inf
    %5121 = vmax.xlane.f32.xlu0 %v5120
    %v5122 = vpop.xlane.xlu0 %5121
    %v5123 = vsub.f32 %v5106, %v5116
    %v5124 = vsub.f32 %v5109, %v5119
    %v5125 = vsub.f32 %v5112, %v5122
    %v5126 = vmul.f32 %v5123, 1.442695
    %v5127 = vpow.pop %v5126
    %v5128 = vmul.f32 %v5124, 1.442695
    %v5129 = vpow.pop %v5128
    %v5130 = vmul.f32 %v5125, 1.442695
    %v5131 = vpow.pop %v5130
    %v5132 = vsel %vm144, %v5127, 0.0
    %5133 = vadd.xlane.f32.xlu0 %v5132
    %v5134 = vpop.xlane.xlu0 %5133
    %v5135 = vsel %vm144, %v5129, 0.0
    %5136 = vadd.xlane.f32.xlu0 %v5135
    %v5137 = vpop.xlane.xlu0 %5136
    %v5138 = vsel %vm151, %v5131, 0.0
    %5139 = vadd.xlane.f32.xlu0 %v5138
    %v5140 = vpop.xlane.xlu0 %5139
    %v5141 = vrcp.pop %v5134
    %v5142 = vmul.f32 %v5134, %v5141
    %v5143 = vsub.f32 1.0, %v5142
    %v5144 = vmul.f32 %v5141, %v5143
    %v5145 = vadd.f32 %v5141, %v5144
    %vm5146 = vweird.f32 %v5134
    %vm5147 = vweird.f32 %v5141
    %vm5148 = vmor %vm5146, %vm5147
    %v5149 = vsel %vm5148, %v5141, %v5145
    %v5150 = vand.u32 2147483647, %v5134
    %vm5151 = vcmp.eq.f32.partialorder %v5150, 8.507059e+37
    %v5152 = vand.u32 %v5134, 2147483648
    %v5153 = vor.u32 1.1754944e-38, %v5152
    %v5154 = vsel %vm5151, %v5153, %v5149
    %v5155 = vmul.f32 %v5127, %v5154
    %v5156 = vrcp.pop %v5137
    %v5157 = vmul.f32 %v5137, %v5156
    %v5158 = vsub.f32 1.0, %v5157
    %v5159 = vmul.f32 %v5156, %v5158
    %v5160 = vadd.f32 %v5156, %v5159
    %vm5161 = vweird.f32 %v5137
    %vm5162 = vweird.f32 %v5156
    %vm5163 = vmor %vm5161, %vm5162
    %v5164 = vsel %vm5163, %v5156, %v5160
    %v5165 = vand.u32 2147483647, %v5137
    %vm5166 = vcmp.eq.f32.partialorder %v5165, 8.507059e+37
    %v5167 = vand.u32 %v5137, 2147483648
    %v5168 = vor.u32 1.1754944e-38, %v5167
    %v5169 = vsel %vm5166, %v5168, %v5164
    %v5170 = vmul.f32 %v5129, %v5169
    %v5171 = vrcp.pop %v5140
    %v5172 = vmul.f32 %v5140, %v5171
    %v5173 = vsub.f32 1.0, %v5172
    %v5174 = vmul.f32 %v5171, %v5173
    %v5175 = vadd.f32 %v5171, %v5174
    %vm5176 = vweird.f32 %v5140
    %vm5177 = vweird.f32 %v5171
    %vm5178 = vmor %vm5176, %vm5177
    %v5179 = vsel %vm5178, %v5171, %v5175
    %v5180 = vand.u32 2147483647, %v5140
    %vm5181 = vcmp.eq.f32.partialorder %v5180, 8.507059e+37
    %v5182 = vand.u32 %v5140, 2147483648
    %v5183 = vor.u32 1.1754944e-38, %v5182
    %v5184 = vsel %vm5181, %v5183, %v5179
    %v5185 = vmul.f32 %v5131, %v5184
    %s5186 = scalar_lea.vmem %s5, 360
    %5187 = vst.msk [vmem:[%s5186] sm:$0xff] %vm144, %v5155
    %5188 = vst.msk [vmem:[%s5186 + $0x8] sm:$0xff] %vm144, %v5170
    %5189 = vst.msk [vmem:[%s5186 + $0x10] sm:$0x3] %vm151, %v5185
    %5190 = vrot.lane.b32.xlu0 %v4541, 40
    %v5191 = vpop.permute.xlu0 %5190
    %5192 = vrot.lane.b32.xlu0 %v4544, 40
    %v5193 = vpop.permute.xlu0 %5192
    %5194 = vrot.lane.b32.xlu0 %v4547, 40
    %v5195 = vpop.permute.xlu0 %5194
    %v5199 = vsel %vm144, %v5155, 0
    %v5202 = vsel %vm144, %v5170, 0
    %v5205 = vsel %vm144, %v5185, 0
    %v5207 = vsel %vm238, %v5195, 0
    %5209 = vmatpush.msra.mxu0 0.0
    %5210 = vmatpush.msra.mxu0 0.0
    %5211 = vmatpush.msra.mxu0 0.0
    %5212 = vmatpush.msra.mxu0 0.0
    %5213 = vmatpush.msra.mxu0 0.0
    %5214 = vmatpush.msra.mxu0 0.0
    %5215 = vmatpush.msra.mxu0 0.0
    %5216 = vmatpush.msra.mxu0 0.0
    %5217 = vmatpush.msra.mxu0 0.0
    %5218 = vmatpush.msra.mxu0 0.0
    %5219 = vmatpush.msra.mxu0 0.0
    %5220 = vmatpush.msra.mxu0 0.0
    %5221 = vmatpush.msra.mxu0 0.0
    %5222 = vmatpush.msra.mxu0 %v5207
    %5223 = vmatpush.msra.mxu0 %v5193
    %5224 = vmatpush.msra.mxu0 %v5191
    %5225 = vmatmul.f32.gmra.mxu0 %v5199
    %v5226 = vpop.f32.mrf.mxu0
    %v5227 = vadd.f32 0.0, %v5226
    %5228 = vmatmul.f32.gmra.mxu0 %v5202
    %v5229 = vpop.f32.mrf.mxu0
    %v5230 = vadd.f32 0.0, %v5229
    %5231 = vmatmul.f32.gmra.mxu0 %v5205
    %v5232 = vpop.f32.mrf.mxu0
    %v5233 = vadd.f32 0.0, %v5232
    %5234 = vdwg.mxu0
    %5238 = vrot.lane.b32.xlu0 %v4885, 8
    %v5239 = vpop.permute.xlu0 %5238
    %5240 = vrot.lane.b32.xlu0 %v4888, 8
    %v5241 = vpop.permute.xlu0 %5240
    %5242 = vrot.lane.b32.xlu0 %v4891, 8
    %v5243 = vpop.permute.xlu0 %5242
    %5250 = vrot.lane.b32.xlu0 %v5056, 16
    %v5251 = vpop.permute.xlu0 %5250
    %5252 = vrot.lane.b32.xlu0 %v5059, 16
    %v5253 = vpop.permute.xlu0 %5252
    %5254 = vrot.lane.b32.xlu0 %v5062, 16
    %v5255 = vpop.permute.xlu0 %5254
    %5262 = vrot.lane.b32.xlu0 %v5227, 24
    %v5263 = vpop.permute.xlu0 %5262
    %5264 = vrot.lane.b32.xlu0 %v5230, 24
    %v5265 = vpop.permute.xlu0 %5264
    %5266 = vrot.lane.b32.xlu0 %v5233, 24
    %v5267 = vpop.permute.xlu0 %5266
    %v5271 = vsel %vm105, %v4714, %v5239
    %v5272 = vsel %vm105, %v4717, %v5241
    %v5273 = vsel %vm105, %v4720, %v5243
    %v5274 = vsel %vm819, %v5271, %v5251
    %v5275 = vsel %vm819, %v5272, %v5253
    %v5276 = vsel %vm819, %v5273, %v5255
    %v5277 = vsel %vm823, %v5274, %v5263
    %v5278 = vsel %vm823, %v5275, %v5265
    %v5279 = vsel %vm823, %v5276, %v5267
    %v5280 = vperm.slane %v4553, 0
    %v5282 = vsel %vm55, %v5277, 0
    %v5285 = vsel %vm55, %v5278, 0
    %v5288 = vsel %vm55, %v5279, 0
    %5290 = vmatpush.msra.mxu0 0.0
    %5291 = vmatpush.msra.mxu0 0.0
    %5292 = vmatpush.msra.mxu0 0.0
    %5293 = vmatpush.msra.mxu0 0.0
    %5294 = vmatpush.msra.mxu0 0.0
    %5295 = vmatpush.msra.mxu0 0.0
    %5296 = vmatpush.msra.mxu0 0.0
    %5297 = vmatpush.msra.mxu0 0.0
    %5298 = vmatpush.msra.mxu0 0.0
    %5299 = vmatpush.msra.mxu0 0.0
    %5300 = vmatpush.msra.mxu0 0.0
    %5301 = vmatpush.msra.mxu0 0.0
    %5302 = vmatpush.msra.mxu0 %v4552
    %5303 = vmatpush.msra.mxu0 %v4551
    %5304 = vmatpush.msra.mxu0 %v4550
    %5305 = vmatpush.msra.mxu0 %v4549
    %5306 = vmatmul.f32.gmra.mxu0 %v5282
    %v5307 = vpop.f32.mrf.mxu0
    %v5308 = vadd.f32 %v5280, %v5307
    %5309 = vmatmul.f32.gmra.mxu0 %v5285
    %v5310 = vpop.f32.mrf.mxu0
    %v5311 = vadd.f32 %v5280, %v5310
    %5312 = vmatmul.f32.gmra.mxu0 %v5288
    %v5313 = vpop.f32.mrf.mxu0
    %v5314 = vadd.f32 %v5280, %v5313
    %5315 = vdwg.mxu0
    %v5316 = vadd.f32 %v4505, %v5308
    %v5317 = vadd.f32 %v4506, %v5311
    %v5318 = vadd.f32 %v4507, %v5314
    %v5319 = vld [vmem:[#allocation2 + $0x378] sm:$0x1]
    %v5320 = vld [vmem:[#allocation2 + $0x380] sm:$0x1]
    %v5321 = vsel %vm55, %v5316, 0.0
    %5322 = vadd.xlane.f32.xlu0 %v5321
    %v5323 = vpop.xlane.xlu0 %5322
    %v5324 = vsel %vm55, %v5317, 0.0
    %5325 = vadd.xlane.f32.xlu0 %v5324
    %v5326 = vpop.xlane.xlu0 %5325
    %v5327 = vsel %vm874, %v5318, 0.0
    %5328 = vadd.xlane.f32.xlu0 %v5327
    %v5329 = vpop.xlane.xlu0 %5328
    %v5330 = vmul.f32 %v5323, %v884
    %v5331 = vmul.f32 %v5326, %v884
    %v5332 = vmul.f32 %v5329, %v884
    %v5333 = vsub.f32 %v5316, %v5330
    %v5334 = vsub.f32 %v5317, %v5331
    %v5335 = vsub.f32 %v5318, %v5332
    %v5336 = vmul.f32 %v5333, %v5333
    %v5337 = vmul.f32 %v5334, %v5334
    %v5338 = vmul.f32 %v5335, %v5335
    %v5339 = vsel %vm55, %v5336, 0.0
    %5340 = vadd.xlane.f32.xlu0 %v5339
    %v5341 = vpop.xlane.xlu0 %5340
    %v5342 = vsel %vm55, %v5337, 0.0
    %5343 = vadd.xlane.f32.xlu0 %v5342
    %v5344 = vpop.xlane.xlu0 %5343
    %v5345 = vsel %vm874, %v5338, 0.0
    %5346 = vadd.xlane.f32.xlu0 %v5345
    %v5347 = vpop.xlane.xlu0 %5346
    %v5348 = vmul.f32 %v5341, %v884
    %v5349 = vmul.f32 %v5344, %v884
    %v5350 = vmul.f32 %v5347, %v884
    %v5351 = vadd.f32 %v5348, 1e-12
    %v5352 = vadd.f32 %v5349, 1e-12
    %v5353 = vadd.f32 %v5350, 1e-12
    %v5354 = vrsqrt.pop %v5351
    %v5355 = vmul.f32 %v5354, %v5351
    %v5356 = vmul.f32 %v5355, %v5354
    %v5357 = vmul.f32 0.5, %v5356
    %v5358 = vsub.f32 1.5, %v5357
    %v5359 = vmul.f32 %v5354, %v5358
    %vm5360 = vweird.f32 %v5351
    %vm5361 = vweird.f32 %v5354
    %vm5362 = vmor %vm5360, %vm5361
    %v5363 = vsel %vm5362, %v5354, %v5359
    %v5364 = vrsqrt.pop %v5352
    %v5365 = vmul.f32 %v5364, %v5352
    %v5366 = vmul.f32 %v5365, %v5364
    %v5367 = vmul.f32 0.5, %v5366
    %v5368 = vsub.f32 1.5, %v5367
    %v5369 = vmul.f32 %v5364, %v5368
    %vm5370 = vweird.f32 %v5352
    %vm5371 = vweird.f32 %v5364
    %vm5372 = vmor %vm5370, %vm5371
    %v5373 = vsel %vm5372, %v5364, %v5369
    %v5374 = vrsqrt.pop %v5353
    %v5375 = vmul.f32 %v5374, %v5353
    %v5376 = vmul.f32 %v5375, %v5374
    %v5377 = vmul.f32 0.5, %v5376
    %v5378 = vsub.f32 1.5, %v5377
    %v5379 = vmul.f32 %v5374, %v5378
    %vm5380 = vweird.f32 %v5353
    %vm5381 = vweird.f32 %v5374
    %vm5382 = vmor %vm5380, %vm5381
    %v5383 = vsel %vm5382, %v5374, %v5379
    %v5384 = vmul.f32 %v5333, %v5363
    %v5385 = vmul.f32 %v5334, %v5373
    %v5386 = vmul.f32 %v5335, %v5383
    %v5387 = vperm.slane %v5319, 0
    %v5388 = vmul.f32 %v5384, %v5387
    %v5389 = vmul.f32 %v5385, %v5387
    %v5390 = vmul.f32 %v5386, %v5387
    %v5391 = vperm.slane %v5320, 0
    %v5392 = vadd.f32 %v5388, %v5391
    %v5393 = vadd.f32 %v5389, %v5391
    %v5394 = vadd.f32 %v5390, %v5391
    %v5395 = vld [vmem:[#allocation2 + $0x388] sm:$0xff]
    %v5396 = vld [vmem:[#allocation2 + $0x390] sm:$0xff]
    %v5397 = vld [vmem:[#allocation2 + $0x398] sm:$0xff]
    %v5398 = vld [vmem:[#allocation2 + $0x3a0] sm:$0xff]
    %v5399 = vld [vmem:[#allocation2 + $0x3a8] sm:$0x1]
    %v5400 = vperm.slane %v5399, 0
    %v5402 = vsel %vm55, %v5392, 0
    %v5405 = vsel %vm55, %v5393, 0
    %v5408 = vsel %vm55, %v5394, 0
    %5410 = vmatpush.msra.mxu0 0.0
    %5411 = vmatpush.msra.mxu0 0.0
    %5412 = vmatpush.msra.mxu0 0.0
    %5413 = vmatpush.msra.mxu0 0.0
    %5414 = vmatpush.msra.mxu0 0.0
    %5415 = vmatpush.msra.mxu0 0.0
    %5416 = vmatpush.msra.mxu0 0.0
    %5417 = vmatpush.msra.mxu0 0.0
    %5418 = vmatpush.msra.mxu0 0.0
    %5419 = vmatpush.msra.mxu0 0.0
    %5420 = vmatpush.msra.mxu0 0.0
    %5421 = vmatpush.msra.mxu0 0.0
    %5422 = vmatpush.msra.mxu0 %v5398
    %5423 = vmatpush.msra.mxu0 %v5397
    %5424 = vmatpush.msra.mxu0 %v5396
    %5425 = vmatpush.msra.mxu0 %v5395
    %5426 = vmatmul.f32.gmra.mxu0 %v5402
    %v5427 = vpop.f32.mrf.mxu0
    %v5428 = vadd.f32 %v5400, %v5427
    %5429 = vmatmul.f32.gmra.mxu0 %v5405
    %v5430 = vpop.f32.mrf.mxu0
    %v5431 = vadd.f32 %v5400, %v5430
    %5432 = vmatmul.f32.gmra.mxu0 %v5408
    %v5433 = vpop.f32.mrf.mxu0
    %v5434 = vadd.f32 %v5400, %v5433
    %5435 = vdwg.mxu0
    %v5436 = vld [vmem:[#allocation2 + $0x3b0] sm:$0xff]
    %v5437 = vld [vmem:[#allocation2 + $0x3b8] sm:$0xff]
    %v5438 = vld [vmem:[#allocation2 + $0x3c0] sm:$0xff]
    %v5439 = vld [vmem:[#allocation2 + $0x3c8] sm:$0xff]
    %v5440 = vld [vmem:[#allocation2 + $0x3d0] sm:$0x1]
    %5441 = vrot.lane.b32.xlu0 %v2441, 64
    %v5442 = vpop.permute.xlu0 %5441
    %5443 = vrot.lane.b32.xlu0 %v2444, 64
    %v5444 = vpop.permute.xlu0 %5443
    %5445 = vrot.lane.b32.xlu0 %v2447, 64
    %v5446 = vpop.permute.xlu0 %5445
    %v5448 = vsel %vm105, %v5428, 0
    %v5451 = vsel %vm105, %v5431, 0
    %v5454 = vsel %vm105, %v5434, 0
    %v5456 = vsel %vm105, %v5442, 0
    %v5458 = vsel %vm105, %v5444, 0
    %v5460 = vsel %vm105, %v5446, 0
    %5462 = vmatpush.xpose.msra.mxu0 0.0
    %5463 = vmatpush.xpose.msra.mxu0 0.0
    %5464 = vmatpush.xpose.msra.mxu0 0.0
    %5465 = vmatpush.xpose.msra.mxu0 0.0
    %5466 = vmatpush.xpose.msra.mxu0 0.0
    %5467 = vmatpush.xpose.msra.mxu0 0.0
    %5468 = vmatpush.xpose.msra.mxu0 0.0
    %5469 = vmatpush.xpose.msra.mxu0 0.0
    %5470 = vmatpush.xpose.msra.mxu0 0.0
    %5471 = vmatpush.xpose.msra.mxu0 0.0
    %5472 = vmatpush.xpose.msra.mxu0 0.0
    %5473 = vmatpush.xpose.msra.mxu0 0.0
    %5474 = vmatpush.xpose.msra.mxu0 0.0
    %5475 = vmatpush.xpose.msra.mxu0 %v5460
    %5476 = vmatpush.xpose.msra.mxu0 %v5458
    %5477 = vmatpush.xpose.msra.mxu0 %v5456
    %5478 = vmatmul.f32.gmra.mxu0 %v5448
    %v5479 = vpop.f32.mrf.mxu0
    %v5480 = vadd.f32 %v43, %v5479
    %5481 = vmatmul.f32.gmra.mxu0 %v5451
    %v5482 = vpop.f32.mrf.mxu0
    %v5483 = vadd.f32 %v44, %v5482
    %5484 = vmatmul.f32.gmra.mxu0 %v5454
    %v5485 = vpop.f32.mrf.mxu0
    %v5486 = vadd.f32 %v45, %v5485
    %5487 = vdwg.mxu0
    %v5488 = vsel %vm144, %v5480, -inf
    %5489 = vmax.xlane.f32.xlu0 %v5488
    %v5490 = vpop.xlane.xlu0 %5489
    %v5491 = vsel %vm144, %v5483, -inf
    %5492 = vmax.xlane.f32.xlu0 %v5491
    %v5493 = vpop.xlane.xlu0 %5492
    %v5494 = vsel %vm151, %v5486, -inf
    %5495 = vmax.xlane.f32.xlu0 %v5494
    %v5496 = vpop.xlane.xlu0 %5495
    %v5497 = vsub.f32 %v5480, %v5490
    %v5498 = vsub.f32 %v5483, %v5493
    %v5499 = vsub.f32 %v5486, %v5496
    %v5500 = vmul.f32 %v5497, 1.442695
    %v5501 = vpow.pop %v5500
    %v5502 = vmul.f32 %v5498, 1.442695
    %v5503 = vpow.pop %v5502
    %v5504 = vmul.f32 %v5499, 1.442695
    %v5505 = vpow.pop %v5504
    %v5506 = vsel %vm144, %v5501, 0.0
    %5507 = vadd.xlane.f32.xlu0 %v5506
    %v5508 = vpop.xlane.xlu0 %5507
    %v5509 = vsel %vm144, %v5503, 0.0
    %5510 = vadd.xlane.f32.xlu0 %v5509
    %v5511 = vpop.xlane.xlu0 %5510
    %v5512 = vsel %vm151, %v5505, 0.0
    %5513 = vadd.xlane.f32.xlu0 %v5512
    %v5514 = vpop.xlane.xlu0 %5513
    %v5515 = vrcp.pop %v5508
    %v5516 = vmul.f32 %v5508, %v5515
    %v5517 = vsub.f32 1.0, %v5516
    %v5518 = vmul.f32 %v5515, %v5517
    %v5519 = vadd.f32 %v5515, %v5518
    %vm5520 = vweird.f32 %v5508
    %vm5521 = vweird.f32 %v5515
    %vm5522 = vmor %vm5520, %vm5521
    %v5523 = vsel %vm5522, %v5515, %v5519
    %v5524 = vand.u32 2147483647, %v5508
    %vm5525 = vcmp.eq.f32.partialorder %v5524, 8.507059e+37
    %v5526 = vand.u32 %v5508, 2147483648
    %v5527 = vor.u32 1.1754944e-38, %v5526
    %v5528 = vsel %vm5525, %v5527, %v5523
    %v5529 = vmul.f32 %v5501, %v5528
    %v5530 = vrcp.pop %v5511
    %v5531 = vmul.f32 %v5511, %v5530
    %v5532 = vsub.f32 1.0, %v5531
    %v5533 = vmul.f32 %v5530, %v5532
    %v5534 = vadd.f32 %v5530, %v5533
    %vm5535 = vweird.f32 %v5511
    %vm5536 = vweird.f32 %v5530
    %vm5537 = vmor %vm5535, %vm5536
    %v5538 = vsel %vm5537, %v5530, %v5534
    %v5539 = vand.u32 2147483647, %v5511
    %vm5540 = vcmp.eq.f32.partialorder %v5539, 8.507059e+37
    %v5541 = vand.u32 %v5511, 2147483648
    %v5542 = vor.u32 1.1754944e-38, %v5541
    %v5543 = vsel %vm5540, %v5542, %v5538
    %v5544 = vmul.f32 %v5503, %v5543
    %v5545 = vrcp.pop %v5514
    %v5546 = vmul.f32 %v5514, %v5545
    %v5547 = vsub.f32 1.0, %v5546
    %v5548 = vmul.f32 %v5545, %v5547
    %v5549 = vadd.f32 %v5545, %v5548
    %vm5550 = vweird.f32 %v5514
    %vm5551 = vweird.f32 %v5545
    %vm5552 = vmor %vm5550, %vm5551
    %v5553 = vsel %vm5552, %v5545, %v5549
    %v5554 = vand.u32 2147483647, %v5514
    %vm5555 = vcmp.eq.f32.partialorder %v5554, 8.507059e+37
    %v5556 = vand.u32 %v5514, 2147483648
    %v5557 = vor.u32 1.1754944e-38, %v5556
    %v5558 = vsel %vm5555, %v5557, %v5553
    %v5559 = vmul.f32 %v5505, %v5558
    %s5560 = scalar_lea.vmem %s5, 480
    %5561 = vst.msk [vmem:[%s5560] sm:$0xff] %vm144, %v5529
    %5562 = vst.msk [vmem:[%s5560 + $0x8] sm:$0xff] %vm144, %v5544
    %5563 = vst.msk [vmem:[%s5560 + $0x10] sm:$0x3] %vm151, %v5559
    %5564 = vrot.lane.b32.xlu0 %v2441, 32
    %v5565 = vpop.permute.xlu0 %5564
    %5566 = vrot.lane.b32.xlu0 %v2444, 32
    %v5567 = vpop.permute.xlu0 %5566
    %5568 = vrot.lane.b32.xlu0 %v2447, 32
    %v5569 = vpop.permute.xlu0 %5568
    %v5573 = vsel %vm144, %v5529, 0
    %v5576 = vsel %vm144, %v5544, 0
    %v5579 = vsel %vm144, %v5559, 0
    %v5581 = vsel %vm238, %v5569, 0
    %5583 = vmatpush.msra.mxu0 0.0
    %5584 = vmatpush.msra.mxu0 0.0
    %5585 = vmatpush.msra.mxu0 0.0
    %5586 = vmatpush.msra.mxu0 0.0
    %5587 = vmatpush.msra.mxu0 0.0
    %5588 = vmatpush.msra.mxu0 0.0
    %5589 = vmatpush.msra.mxu0 0.0
    %5590 = vmatpush.msra.mxu0 0.0
    %5591 = vmatpush.msra.mxu0 0.0
    %5592 = vmatpush.msra.mxu0 0.0
    %5593 = vmatpush.msra.mxu0 0.0
    %5594 = vmatpush.msra.mxu0 0.0
    %5595 = vmatpush.msra.mxu0 0.0
    %5596 = vmatpush.msra.mxu0 %v5581
    %5597 = vmatpush.msra.mxu0 %v5567
    %5598 = vmatpush.msra.mxu0 %v5565
    %5599 = vmatmul.f32.gmra.mxu0 %v5573
    %v5600 = vpop.f32.mrf.mxu0
    %v5601 = vadd.f32 0.0, %v5600
    %5602 = vmatmul.f32.gmra.mxu0 %v5576
    %v5603 = vpop.f32.mrf.mxu0
    %v5604 = vadd.f32 0.0, %v5603
    %5605 = vmatmul.f32.gmra.mxu0 %v5579
    %v5606 = vpop.f32.mrf.mxu0
    %v5607 = vadd.f32 0.0, %v5606
    %5608 = vdwg.mxu0
    %5609 = vrot.lane.b32.xlu0 %v5428, 120
    %v5610 = vpop.permute.xlu0 %5609
    %5611 = vrot.lane.b32.xlu0 %v5431, 120
    %v5612 = vpop.permute.xlu0 %5611
    %5613 = vrot.lane.b32.xlu0 %v5434, 120
    %v5614 = vpop.permute.xlu0 %5613
    %5615 = vrot.lane.b32.xlu0 %v2441, 56
    %v5616 = vpop.permute.xlu0 %5615
    %5617 = vrot.lane.b32.xlu0 %v2444, 56
    %v5618 = vpop.permute.xlu0 %5617
    %5619 = vrot.lane.b32.xlu0 %v2447, 56
    %v5620 = vpop.permute.xlu0 %5619
    %v5621 = vsel %vm105, %v5610, 0
    %v5623 = vsel %vm105, %v5612, 0
    %v5625 = vsel %vm105, %v5614, 0
    %v5627 = vsel %vm105, %v5616, 0
    %v5629 = vsel %vm105, %v5618, 0
    %v5631 = vsel %vm105, %v5620, 0
    %5633 = vmatpush.xpose.msra.mxu0 0.0
    %5634 = vmatpush.xpose.msra.mxu0 0.0
    %5635 = vmatpush.xpose.msra.mxu0 0.0
    %5636 = vmatpush.xpose.msra.mxu0 0.0
    %5637 = vmatpush.xpose.msra.mxu0 0.0
    %5638 = vmatpush.xpose.msra.mxu0 0.0
    %5639 = vmatpush.xpose.msra.mxu0 0.0
    %5640 = vmatpush.xpose.msra.mxu0 0.0
    %5641 = vmatpush.xpose.msra.mxu0 0.0
    %5642 = vmatpush.xpose.msra.mxu0 0.0
    %5643 = vmatpush.xpose.msra.mxu0 0.0
    %5644 = vmatpush.xpose.msra.mxu0 0.0
    %5645 = vmatpush.xpose.msra.mxu0 0.0
    %5646 = vmatpush.xpose.msra.mxu0 %v5631
    %5647 = vmatpush.xpose.msra.mxu0 %v5629
    %5648 = vmatpush.xpose.msra.mxu0 %v5627
    %5649 = vmatmul.f32.gmra.mxu0 %v5621
    %v5650 = vpop.f32.mrf.mxu0
    %v5651 = vadd.f32 %v43, %v5650
    %5652 = vmatmul.f32.gmra.mxu0 %v5623
    %v5653 = vpop.f32.mrf.mxu0
    %v5654 = vadd.f32 %v44, %v5653
    %5655 = vmatmul.f32.gmra.mxu0 %v5625
    %v5656 = vpop.f32.mrf.mxu0
    %v5657 = vadd.f32 %v45, %v5656
    %5658 = vdwg.mxu0
    %v5659 = vsel %vm144, %v5651, -inf
    %5660 = vmax.xlane.f32.xlu0 %v5659
    %v5661 = vpop.xlane.xlu0 %5660
    %v5662 = vsel %vm144, %v5654, -inf
    %5663 = vmax.xlane.f32.xlu0 %v5662
    %v5664 = vpop.xlane.xlu0 %5663
    %v5665 = vsel %vm151, %v5657, -inf
    %5666 = vmax.xlane.f32.xlu0 %v5665
    %v5667 = vpop.xlane.xlu0 %5666
    %v5668 = vsub.f32 %v5651, %v5661
    %v5669 = vsub.f32 %v5654, %v5664
    %v5670 = vsub.f32 %v5657, %v5667
    %v5671 = vmul.f32 %v5668, 1.442695
    %v5672 = vpow.pop %v5671
    %v5673 = vmul.f32 %v5669, 1.442695
    %v5674 = vpow.pop %v5673
    %v5675 = vmul.f32 %v5670, 1.442695
    %v5676 = vpow.pop %v5675
    %v5677 = vsel %vm144, %v5672, 0.0
    %5678 = vadd.xlane.f32.xlu0 %v5677
    %v5679 = vpop.xlane.xlu0 %5678
    %v5680 = vsel %vm144, %v5674, 0.0
    %5681 = vadd.xlane.f32.xlu0 %v5680
    %v5682 = vpop.xlane.xlu0 %5681
    %v5683 = vsel %vm151, %v5676, 0.0
    %5684 = vadd.xlane.f32.xlu0 %v5683
    %v5685 = vpop.xlane.xlu0 %5684
    %v5686 = vrcp.pop %v5679
    %v5687 = vmul.f32 %v5679, %v5686
    %v5688 = vsub.f32 1.0, %v5687
    %v5689 = vmul.f32 %v5686, %v5688
    %v5690 = vadd.f32 %v5686, %v5689
    %vm5691 = vweird.f32 %v5679
    %vm5692 = vweird.f32 %v5686
    %vm5693 = vmor %vm5691, %vm5692
    %v5694 = vsel %vm5693, %v5686, %v5690
    %v5695 = vand.u32 2147483647, %v5679
    %vm5696 = vcmp.eq.f32.partialorder %v5695, 8.507059e+37
    %v5697 = vand.u32 %v5679, 2147483648
    %v5698 = vor.u32 1.1754944e-38, %v5697
    %v5699 = vsel %vm5696, %v5698, %v5694
    %v5700 = vmul.f32 %v5672, %v5699
    %v5701 = vrcp.pop %v5682
    %v5702 = vmul.f32 %v5682, %v5701
    %v5703 = vsub.f32 1.0, %v5702
    %v5704 = vmul.f32 %v5701, %v5703
    %v5705 = vadd.f32 %v5701, %v5704
    %vm5706 = vweird.f32 %v5682
    %vm5707 = vweird.f32 %v5701
    %vm5708 = vmor %vm5706, %vm5707
    %v5709 = vsel %vm5708, %v5701, %v5705
    %v5710 = vand.u32 2147483647, %v5682
    %vm5711 = vcmp.eq.f32.partialorder %v5710, 8.507059e+37
    %v5712 = vand.u32 %v5682, 2147483648
    %v5713 = vor.u32 1.1754944e-38, %v5712
    %v5714 = vsel %vm5711, %v5713, %v5709
    %v5715 = vmul.f32 %v5674, %v5714
    %v5716 = vrcp.pop %v5685
    %v5717 = vmul.f32 %v5685, %v5716
    %v5718 = vsub.f32 1.0, %v5717
    %v5719 = vmul.f32 %v5716, %v5718
    %v5720 = vadd.f32 %v5716, %v5719
    %vm5721 = vweird.f32 %v5685
    %vm5722 = vweird.f32 %v5716
    %vm5723 = vmor %vm5721, %vm5722
    %v5724 = vsel %vm5723, %v5716, %v5720
    %v5725 = vand.u32 2147483647, %v5685
    %vm5726 = vcmp.eq.f32.partialorder %v5725, 8.507059e+37
    %v5727 = vand.u32 %v5685, 2147483648
    %v5728 = vor.u32 1.1754944e-38, %v5727
    %v5729 = vsel %vm5726, %v5728, %v5724
    %v5730 = vmul.f32 %v5676, %v5729
    %s5731 = scalar_lea.vmem %s5, 504
    %5732 = vst.msk [vmem:[%s5731] sm:$0xff] %vm144, %v5700
    %5733 = vst.msk [vmem:[%s5731 + $0x8] sm:$0xff] %vm144, %v5715
    %5734 = vst.msk [vmem:[%s5731 + $0x10] sm:$0x3] %vm151, %v5730
    %5735 = vrot.lane.b32.xlu0 %v2441, 24
    %v5736 = vpop.permute.xlu0 %5735
    %5737 = vrot.lane.b32.xlu0 %v2444, 24
    %v5738 = vpop.permute.xlu0 %5737
    %5739 = vrot.lane.b32.xlu0 %v2447, 24
    %v5740 = vpop.permute.xlu0 %5739
    %v5744 = vsel %vm144, %v5700, 0
    %v5747 = vsel %vm144, %v5715, 0
    %v5750 = vsel %vm144, %v5730, 0
    %v5752 = vsel %vm238, %v5740, 0
    %5754 = vmatpush.msra.mxu0 0.0
    %5755 = vmatpush.msra.mxu0 0.0
    %5756 = vmatpush.msra.mxu0 0.0
    %5757 = vmatpush.msra.mxu0 0.0
    %5758 = vmatpush.msra.mxu0 0.0
    %5759 = vmatpush.msra.mxu0 0.0
    %5760 = vmatpush.msra.mxu0 0.0
    %5761 = vmatpush.msra.mxu0 0.0
    %5762 = vmatpush.msra.mxu0 0.0
    %5763 = vmatpush.msra.mxu0 0.0
    %5764 = vmatpush.msra.mxu0 0.0
    %5765 = vmatpush.msra.mxu0 0.0
    %5766 = vmatpush.msra.mxu0 0.0
    %5767 = vmatpush.msra.mxu0 %v5752
    %5768 = vmatpush.msra.mxu0 %v5738
    %5769 = vmatpush.msra.mxu0 %v5736
    %5770 = vmatmul.f32.gmra.mxu0 %v5744
    %v5771 = vpop.f32.mrf.mxu0
    %v5772 = vadd.f32 0.0, %v5771
    %5773 = vmatmul.f32.gmra.mxu0 %v5747
    %v5774 = vpop.f32.mrf.mxu0
    %v5775 = vadd.f32 0.0, %v5774
    %5776 = vmatmul.f32.gmra.mxu0 %v5750
    %v5777 = vpop.f32.mrf.mxu0
    %v5778 = vadd.f32 0.0, %v5777
    %5779 = vdwg.mxu0
    %5780 = vrot.lane.b32.xlu0 %v5428, 112
    %v5781 = vpop.permute.xlu0 %5780
    %5782 = vrot.lane.b32.xlu0 %v5431, 112
    %v5783 = vpop.permute.xlu0 %5782
    %5784 = vrot.lane.b32.xlu0 %v5434, 112
    %v5785 = vpop.permute.xlu0 %5784
    %5786 = vrot.lane.b32.xlu0 %v2441, 48
    %v5787 = vpop.permute.xlu0 %5786
    %5788 = vrot.lane.b32.xlu0 %v2444, 48
    %v5789 = vpop.permute.xlu0 %5788
    %5790 = vrot.lane.b32.xlu0 %v2447, 48
    %v5791 = vpop.permute.xlu0 %5790
    %v5792 = vsel %vm105, %v5781, 0
    %v5794 = vsel %vm105, %v5783, 0
    %v5796 = vsel %vm105, %v5785, 0
    %v5798 = vsel %vm105, %v5787, 0
    %v5800 = vsel %vm105, %v5789, 0
    %v5802 = vsel %vm105, %v5791, 0
    %5804 = vmatpush.xpose.msra.mxu0 0.0
    %5805 = vmatpush.xpose.msra.mxu0 0.0
    %5806 = vmatpush.xpose.msra.mxu0 0.0
    %5807 = vmatpush.xpose.msra.mxu0 0.0
    %5808 = vmatpush.xpose.msra.mxu0 0.0
    %5809 = vmatpush.xpose.msra.mxu0 0.0
    %5810 = vmatpush.xpose.msra.mxu0 0.0
    %5811 = vmatpush.xpose.msra.mxu0 0.0
    %5812 = vmatpush.xpose.msra.mxu0 0.0
    %5813 = vmatpush.xpose.msra.mxu0 0.0
    %5814 = vmatpush.xpose.msra.mxu0 0.0
    %5815 = vmatpush.xpose.msra.mxu0 0.0
    %5816 = vmatpush.xpose.msra.mxu0 0.0
    %5817 = vmatpush.xpose.msra.mxu0 %v5802
    %5818 = vmatpush.xpose.msra.mxu0 %v5800
    %5819 = vmatpush.xpose.msra.mxu0 %v5798
    %5820 = vmatmul.f32.gmra.mxu0 %v5792
    %v5821 = vpop.f32.mrf.mxu0
    %v5822 = vadd.f32 %v43, %v5821
    %5823 = vmatmul.f32.gmra.mxu0 %v5794
    %v5824 = vpop.f32.mrf.mxu0
    %v5825 = vadd.f32 %v44, %v5824
    %5826 = vmatmul.f32.gmra.mxu0 %v5796
    %v5827 = vpop.f32.mrf.mxu0
    %v5828 = vadd.f32 %v45, %v5827
    %5829 = vdwg.mxu0
    %v5830 = vsel %vm144, %v5822, -inf
    %5831 = vmax.xlane.f32.xlu0 %v5830
    %v5832 = vpop.xlane.xlu0 %5831
    %v5833 = vsel %vm144, %v5825, -inf
    %5834 = vmax.xlane.f32.xlu0 %v5833
    %v5835 = vpop.xlane.xlu0 %5834
    %v5836 = vsel %vm151, %v5828, -inf
    %5837 = vmax.xlane.f32.xlu0 %v5836
    %v5838 = vpop.xlane.xlu0 %5837
    %v5839 = vsub.f32 %v5822, %v5832
    %v5840 = vsub.f32 %v5825, %v5835
    %v5841 = vsub.f32 %v5828, %v5838
    %v5842 = vmul.f32 %v5839, 1.442695
    %v5843 = vpow.pop %v5842
    %v5844 = vmul.f32 %v5840, 1.442695
    %v5845 = vpow.pop %v5844
    %v5846 = vmul.f32 %v5841, 1.442695
    %v5847 = vpow.pop %v5846
    %v5848 = vsel %vm144, %v5843, 0.0
    %5849 = vadd.xlane.f32.xlu0 %v5848
    %v5850 = vpop.xlane.xlu0 %5849
    %v5851 = vsel %vm144, %v5845, 0.0
    %5852 = vadd.xlane.f32.xlu0 %v5851
    %v5853 = vpop.xlane.xlu0 %5852
    %v5854 = vsel %vm151, %v5847, 0.0
    %5855 = vadd.xlane.f32.xlu0 %v5854
    %v5856 = vpop.xlane.xlu0 %5855
    %v5857 = vrcp.pop %v5850
    %v5858 = vmul.f32 %v5850, %v5857
    %v5859 = vsub.f32 1.0, %v5858
    %v5860 = vmul.f32 %v5857, %v5859
    %v5861 = vadd.f32 %v5857, %v5860
    %vm5862 = vweird.f32 %v5850
    %vm5863 = vweird.f32 %v5857
    %vm5864 = vmor %vm5862, %vm5863
    %v5865 = vsel %vm5864, %v5857, %v5861
    %v5866 = vand.u32 2147483647, %v5850
    %vm5867 = vcmp.eq.f32.partialorder %v5866, 8.507059e+37
    %v5868 = vand.u32 %v5850, 2147483648
    %v5869 = vor.u32 1.1754944e-38, %v5868
    %v5870 = vsel %vm5867, %v5869, %v5865
    %v5871 = vmul.f32 %v5843, %v5870
    %v5872 = vrcp.pop %v5853
    %v5873 = vmul.f32 %v5853, %v5872
    %v5874 = vsub.f32 1.0, %v5873
    %v5875 = vmul.f32 %v5872, %v5874
    %v5876 = vadd.f32 %v5872, %v5875
    %vm5877 = vweird.f32 %v5853
    %vm5878 = vweird.f32 %v5872
    %vm5879 = vmor %vm5877, %vm5878
    %v5880 = vsel %vm5879, %v5872, %v5876
    %v5881 = vand.u32 2147483647, %v5853
    %vm5882 = vcmp.eq.f32.partialorder %v5881, 8.507059e+37
    %v5883 = vand.u32 %v5853, 2147483648
    %v5884 = vor.u32 1.1754944e-38, %v5883
    %v5885 = vsel %vm5882, %v5884, %v5880
    %v5886 = vmul.f32 %v5845, %v5885
    %v5887 = vrcp.pop %v5856
    %v5888 = vmul.f32 %v5856, %v5887
    %v5889 = vsub.f32 1.0, %v5888
    %v5890 = vmul.f32 %v5887, %v5889
    %v5891 = vadd.f32 %v5887, %v5890
    %vm5892 = vweird.f32 %v5856
    %vm5893 = vweird.f32 %v5887
    %vm5894 = vmor %vm5892, %vm5893
    %v5895 = vsel %vm5894, %v5887, %v5891
    %v5896 = vand.u32 2147483647, %v5856
    %vm5897 = vcmp.eq.f32.partialorder %v5896, 8.507059e+37
    %v5898 = vand.u32 %v5856, 2147483648
    %v5899 = vor.u32 1.1754944e-38, %v5898
    %v5900 = vsel %vm5897, %v5899, %v5895
    %v5901 = vmul.f32 %v5847, %v5900
    %s5902 = scalar_lea.vmem %s5, 528
    %5903 = vst.msk [vmem:[%s5902] sm:$0xff] %vm144, %v5871
    %5904 = vst.msk [vmem:[%s5902 + $0x8] sm:$0xff] %vm144, %v5886
    %5905 = vst.msk [vmem:[%s5902 + $0x10] sm:$0x3] %vm151, %v5901
    %5906 = vrot.lane.b32.xlu0 %v2441, 16
    %v5907 = vpop.permute.xlu0 %5906
    %5908 = vrot.lane.b32.xlu0 %v2444, 16
    %v5909 = vpop.permute.xlu0 %5908
    %5910 = vrot.lane.b32.xlu0 %v2447, 16
    %v5911 = vpop.permute.xlu0 %5910
    %v5915 = vsel %vm144, %v5871, 0
    %v5918 = vsel %vm144, %v5886, 0
    %v5921 = vsel %vm144, %v5901, 0
    %v5923 = vsel %vm238, %v5911, 0
    %5925 = vmatpush.msra.mxu0 0.0
    %5926 = vmatpush.msra.mxu0 0.0
    %5927 = vmatpush.msra.mxu0 0.0
    %5928 = vmatpush.msra.mxu0 0.0
    %5929 = vmatpush.msra.mxu0 0.0
    %5930 = vmatpush.msra.mxu0 0.0
    %5931 = vmatpush.msra.mxu0 0.0
    %5932 = vmatpush.msra.mxu0 0.0
    %5933 = vmatpush.msra.mxu0 0.0
    %5934 = vmatpush.msra.mxu0 0.0
    %5935 = vmatpush.msra.mxu0 0.0
    %5936 = vmatpush.msra.mxu0 0.0
    %5937 = vmatpush.msra.mxu0 0.0
    %5938 = vmatpush.msra.mxu0 %v5923
    %5939 = vmatpush.msra.mxu0 %v5909
    %5940 = vmatpush.msra.mxu0 %v5907
    %5941 = vmatmul.f32.gmra.mxu0 %v5915
    %v5942 = vpop.f32.mrf.mxu0
    %v5943 = vadd.f32 0.0, %v5942
    %5944 = vmatmul.f32.gmra.mxu0 %v5918
    %v5945 = vpop.f32.mrf.mxu0
    %v5946 = vadd.f32 0.0, %v5945
    %5947 = vmatmul.f32.gmra.mxu0 %v5921
    %v5948 = vpop.f32.mrf.mxu0
    %v5949 = vadd.f32 0.0, %v5948
    %5950 = vdwg.mxu0
    %5951 = vrot.lane.b32.xlu0 %v5428, 104
    %v5952 = vpop.permute.xlu0 %5951
    %5953 = vrot.lane.b32.xlu0 %v5431, 104
    %v5954 = vpop.permute.xlu0 %5953
    %5955 = vrot.lane.b32.xlu0 %v5434, 104
    %v5956 = vpop.permute.xlu0 %5955
    %5957 = vrot.lane.b32.xlu0 %v2441, 40
    %v5958 = vpop.permute.xlu0 %5957
    %5959 = vrot.lane.b32.xlu0 %v2444, 40
    %v5960 = vpop.permute.xlu0 %5959
    %5961 = vrot.lane.b32.xlu0 %v2447, 40
    %v5962 = vpop.permute.xlu0 %5961
    %v5963 = vsel %vm105, %v5952, 0
    %v5965 = vsel %vm105, %v5954, 0
    %v5967 = vsel %vm105, %v5956, 0
    %v5969 = vsel %vm105, %v5958, 0
    %v5971 = vsel %vm105, %v5960, 0
    %v5973 = vsel %vm105, %v5962, 0
    %5975 = vmatpush.xpose.msra.mxu0 0.0
    %5976 = vmatpush.xpose.msra.mxu0 0.0
    %5977 = vmatpush.xpose.msra.mxu0 0.0
    %5978 = vmatpush.xpose.msra.mxu0 0.0
    %5979 = vmatpush.xpose.msra.mxu0 0.0
    %5980 = vmatpush.xpose.msra.mxu0 0.0
    %5981 = vmatpush.xpose.msra.mxu0 0.0
    %5982 = vmatpush.xpose.msra.mxu0 0.0
    %5983 = vmatpush.xpose.msra.mxu0 0.0
    %5984 = vmatpush.xpose.msra.mxu0 0.0
    %5985 = vmatpush.xpose.msra.mxu0 0.0
    %5986 = vmatpush.xpose.msra.mxu0 0.0
    %5987 = vmatpush.xpose.msra.mxu0 0.0
    %5988 = vmatpush.xpose.msra.mxu0 %v5973
    %5989 = vmatpush.xpose.msra.mxu0 %v5971
    %5990 = vmatpush.xpose.msra.mxu0 %v5969
    %5991 = vmatmul.f32.gmra.mxu0 %v5963
    %v5992 = vpop.f32.mrf.mxu0
    %v5993 = vadd.f32 %v43, %v5992
    %5994 = vmatmul.f32.gmra.mxu0 %v5965
    %v5995 = vpop.f32.mrf.mxu0
    %v5996 = vadd.f32 %v44, %v5995
    %5997 = vmatmul.f32.gmra.mxu0 %v5967
    %v5998 = vpop.f32.mrf.mxu0
    %v5999 = vadd.f32 %v45, %v5998
    %6000 = vdwg.mxu0
    %v6001 = vsel %vm144, %v5993, -inf
    %6002 = vmax.xlane.f32.xlu0 %v6001
    %v6003 = vpop.xlane.xlu0 %6002
    %v6004 = vsel %vm144, %v5996, -inf
    %6005 = vmax.xlane.f32.xlu0 %v6004
    %v6006 = vpop.xlane.xlu0 %6005
    %v6007 = vsel %vm151, %v5999, -inf
    %6008 = vmax.xlane.f32.xlu0 %v6007
    %v6009 = vpop.xlane.xlu0 %6008
    %v6010 = vsub.f32 %v5993, %v6003
    %v6011 = vsub.f32 %v5996, %v6006
    %v6012 = vsub.f32 %v5999, %v6009
    %v6013 = vmul.f32 %v6010, 1.442695
    %v6014 = vpow.pop %v6013
    %v6015 = vmul.f32 %v6011, 1.442695
    %v6016 = vpow.pop %v6015
    %v6017 = vmul.f32 %v6012, 1.442695
    %v6018 = vpow.pop %v6017
    %v6019 = vsel %vm144, %v6014, 0.0
    %6020 = vadd.xlane.f32.xlu0 %v6019
    %v6021 = vpop.xlane.xlu0 %6020
    %v6022 = vsel %vm144, %v6016, 0.0
    %6023 = vadd.xlane.f32.xlu0 %v6022
    %v6024 = vpop.xlane.xlu0 %6023
    %v6025 = vsel %vm151, %v6018, 0.0
    %6026 = vadd.xlane.f32.xlu0 %v6025
    %v6027 = vpop.xlane.xlu0 %6026
    %v6028 = vrcp.pop %v6021
    %v6029 = vmul.f32 %v6021, %v6028
    %v6030 = vsub.f32 1.0, %v6029
    %v6031 = vmul.f32 %v6028, %v6030
    %v6032 = vadd.f32 %v6028, %v6031
    %vm6033 = vweird.f32 %v6021
    %vm6034 = vweird.f32 %v6028
    %vm6035 = vmor %vm6033, %vm6034
    %v6036 = vsel %vm6035, %v6028, %v6032
    %v6037 = vand.u32 2147483647, %v6021
    %vm6038 = vcmp.eq.f32.partialorder %v6037, 8.507059e+37
    %v6039 = vand.u32 %v6021, 2147483648
    %v6040 = vor.u32 1.1754944e-38, %v6039
    %v6041 = vsel %vm6038, %v6040, %v6036
    %v6042 = vmul.f32 %v6014, %v6041
    %v6043 = vrcp.pop %v6024
    %v6044 = vmul.f32 %v6024, %v6043
    %v6045 = vsub.f32 1.0, %v6044
    %v6046 = vmul.f32 %v6043, %v6045
    %v6047 = vadd.f32 %v6043, %v6046
    %vm6048 = vweird.f32 %v6024
    %vm6049 = vweird.f32 %v6043
    %vm6050 = vmor %vm6048, %vm6049
    %v6051 = vsel %vm6050, %v6043, %v6047
    %v6052 = vand.u32 2147483647, %v6024
    %vm6053 = vcmp.eq.f32.partialorder %v6052, 8.507059e+37
    %v6054 = vand.u32 %v6024, 2147483648
    %v6055 = vor.u32 1.1754944e-38, %v6054
    %v6056 = vsel %vm6053, %v6055, %v6051
    %v6057 = vmul.f32 %v6016, %v6056
    %v6058 = vrcp.pop %v6027
    %v6059 = vmul.f32 %v6027, %v6058
    %v6060 = vsub.f32 1.0, %v6059
    %v6061 = vmul.f32 %v6058, %v6060
    %v6062 = vadd.f32 %v6058, %v6061
    %vm6063 = vweird.f32 %v6027
    %vm6064 = vweird.f32 %v6058
    %vm6065 = vmor %vm6063, %vm6064
    %v6066 = vsel %vm6065, %v6058, %v6062
    %v6067 = vand.u32 2147483647, %v6027
    %vm6068 = vcmp.eq.f32.partialorder %v6067, 8.507059e+37
    %v6069 = vand.u32 %v6027, 2147483648
    %v6070 = vor.u32 1.1754944e-38, %v6069
    %v6071 = vsel %vm6068, %v6070, %v6066
    %v6072 = vmul.f32 %v6018, %v6071
    %s6073 = scalar_lea.vmem %s5, 552
    %6074 = vst.msk [vmem:[%s6073] sm:$0xff] %vm144, %v6042
    %6075 = vst.msk [vmem:[%s6073 + $0x8] sm:$0xff] %vm144, %v6057
    %6076 = vst.msk [vmem:[%s6073 + $0x10] sm:$0x3] %vm151, %v6072
    %6077 = vrot.lane.b32.xlu0 %v2441, 8
    %v6078 = vpop.permute.xlu0 %6077
    %6079 = vrot.lane.b32.xlu0 %v2444, 8
    %v6080 = vpop.permute.xlu0 %6079
    %6081 = vrot.lane.b32.xlu0 %v2447, 8
    %v6082 = vpop.permute.xlu0 %6081
    %v6086 = vsel %vm144, %v6042, 0
    %v6089 = vsel %vm144, %v6057, 0
    %v6092 = vsel %vm144, %v6072, 0
    %v6094 = vsel %vm238, %v6082, 0
    %6096 = vmatpush.msra.mxu0 0.0
    %6097 = vmatpush.msra.mxu0 0.0
    %6098 = vmatpush.msra.mxu0 0.0
    %6099 = vmatpush.msra.mxu0 0.0
    %6100 = vmatpush.msra.mxu0 0.0
    %6101 = vmatpush.msra.mxu0 0.0
    %6102 = vmatpush.msra.mxu0 0.0
    %6103 = vmatpush.msra.mxu0 0.0
    %6104 = vmatpush.msra.mxu0 0.0
    %6105 = vmatpush.msra.mxu0 0.0
    %6106 = vmatpush.msra.mxu0 0.0
    %6107 = vmatpush.msra.mxu0 0.0
    %6108 = vmatpush.msra.mxu0 0.0
    %6109 = vmatpush.msra.mxu0 %v6094
    %6110 = vmatpush.msra.mxu0 %v6080
    %6111 = vmatpush.msra.mxu0 %v6078
    %6112 = vmatmul.f32.gmra.mxu0 %v6086
    %v6113 = vpop.f32.mrf.mxu0
    %v6114 = vadd.f32 0.0, %v6113
    %6115 = vmatmul.f32.gmra.mxu0 %v6089
    %v6116 = vpop.f32.mrf.mxu0
    %v6117 = vadd.f32 0.0, %v6116
    %6118 = vmatmul.f32.gmra.mxu0 %v6092
    %v6119 = vpop.f32.mrf.mxu0
    %v6120 = vadd.f32 0.0, %v6119
    %6121 = vdwg.mxu0
    %6125 = vrot.lane.b32.xlu0 %v5772, 8
    %v6126 = vpop.permute.xlu0 %6125
    %6127 = vrot.lane.b32.xlu0 %v5775, 8
    %v6128 = vpop.permute.xlu0 %6127
    %6129 = vrot.lane.b32.xlu0 %v5778, 8
    %v6130 = vpop.permute.xlu0 %6129
    %6137 = vrot.lane.b32.xlu0 %v5943, 16
    %v6138 = vpop.permute.xlu0 %6137
    %6139 = vrot.lane.b32.xlu0 %v5946, 16
    %v6140 = vpop.permute.xlu0 %6139
    %6141 = vrot.lane.b32.xlu0 %v5949, 16
    %v6142 = vpop.permute.xlu0 %6141
    %6149 = vrot.lane.b32.xlu0 %v6114, 24
    %v6150 = vpop.permute.xlu0 %6149
    %6151 = vrot.lane.b32.xlu0 %v6117, 24
    %v6152 = vpop.permute.xlu0 %6151
    %6153 = vrot.lane.b32.xlu0 %v6120, 24
    %v6154 = vpop.permute.xlu0 %6153
    %v6158 = vsel %vm105, %v5601, %v6126
    %v6159 = vsel %vm105, %v5604, %v6128
    %v6160 = vsel %vm105, %v5607, %v6130
    %v6161 = vsel %vm819, %v6158, %v6138
    %v6162 = vsel %vm819, %v6159, %v6140
    %v6163 = vsel %vm819, %v6160, %v6142
    %v6164 = vsel %vm823, %v6161, %v6150
    %v6165 = vsel %vm823, %v6162, %v6152
    %v6166 = vsel %vm823, %v6163, %v6154
    %v6167 = vperm.slane %v5440, 0
    %v6169 = vsel %vm55, %v6164, 0
    %v6172 = vsel %vm55, %v6165, 0
    %v6175 = vsel %vm55, %v6166, 0
    %6177 = vmatpush.msra.mxu0 0.0
    %6178 = vmatpush.msra.mxu0 0.0
    %6179 = vmatpush.msra.mxu0 0.0
    %6180 = vmatpush.msra.mxu0 0.0
    %6181 = vmatpush.msra.mxu0 0.0
    %6182 = vmatpush.msra.mxu0 0.0
    %6183 = vmatpush.msra.mxu0 0.0
    %6184 = vmatpush.msra.mxu0 0.0
    %6185 = vmatpush.msra.mxu0 0.0
    %6186 = vmatpush.msra.mxu0 0.0
    %6187 = vmatpush.msra.mxu0 0.0
    %6188 = vmatpush.msra.mxu0 0.0
    %6189 = vmatpush.msra.mxu0 %v5439
    %6190 = vmatpush.msra.mxu0 %v5438
    %6191 = vmatpush.msra.mxu0 %v5437
    %6192 = vmatpush.msra.mxu0 %v5436
    %6193 = vmatmul.f32.gmra.mxu0 %v6169
    %v6194 = vpop.f32.mrf.mxu0
    %v6195 = vadd.f32 %v6167, %v6194
    %6196 = vmatmul.f32.gmra.mxu0 %v6172
    %v6197 = vpop.f32.mrf.mxu0
    %v6198 = vadd.f32 %v6167, %v6197
    %6199 = vmatmul.f32.gmra.mxu0 %v6175
    %v6200 = vpop.f32.mrf.mxu0
    %v6201 = vadd.f32 %v6167, %v6200
    %6202 = vdwg.mxu0
    %v6203 = vadd.f32 %v5392, %v6195
    %v6204 = vadd.f32 %v5393, %v6198
    %v6205 = vadd.f32 %v5394, %v6201
    %v6206 = vld [vmem:[#allocation2 + $0x3d8] sm:$0x1]
    %v6207 = vld [vmem:[#allocation2 + $0x3e0] sm:$0x1]
    %v6208 = vsel %vm55, %v6203, 0.0
    %6209 = vadd.xlane.f32.xlu0 %v6208
    %v6210 = vpop.xlane.xlu0 %6209
    %v6211 = vsel %vm55, %v6204, 0.0
    %6212 = vadd.xlane.f32.xlu0 %v6211
    %v6213 = vpop.xlane.xlu0 %6212
    %v6214 = vsel %vm874, %v6205, 0.0
    %6215 = vadd.xlane.f32.xlu0 %v6214
    %v6216 = vpop.xlane.xlu0 %6215
    %v6217 = vmul.f32 %v6210, %v884
    %v6218 = vmul.f32 %v6213, %v884
    %v6219 = vmul.f32 %v6216, %v884
    %v6220 = vsub.f32 %v6203, %v6217
    %v6221 = vsub.f32 %v6204, %v6218
    %v6222 = vsub.f32 %v6205, %v6219
    %v6223 = vmul.f32 %v6220, %v6220
    %v6224 = vmul.f32 %v6221, %v6221
    %v6225 = vmul.f32 %v6222, %v6222
    %v6226 = vsel %vm55, %v6223, 0.0
    %6227 = vadd.xlane.f32.xlu0 %v6226
    %v6228 = vpop.xlane.xlu0 %6227
    %v6229 = vsel %vm55, %v6224, 0.0
    %6230 = vadd.xlane.f32.xlu0 %v6229
    %v6231 = vpop.xlane.xlu0 %6230
    %v6232 = vsel %vm874, %v6225, 0.0
    %6233 = vadd.xlane.f32.xlu0 %v6232
    %v6234 = vpop.xlane.xlu0 %6233
    %v6235 = vmul.f32 %v6228, %v884
    %v6236 = vmul.f32 %v6231, %v884
    %v6237 = vmul.f32 %v6234, %v884
    %v6238 = vadd.f32 %v6235, 1e-12
    %v6239 = vadd.f32 %v6236, 1e-12
    %v6240 = vadd.f32 %v6237, 1e-12
    %v6241 = vrsqrt.pop %v6238
    %v6242 = vmul.f32 %v6241, %v6238
    %v6243 = vmul.f32 %v6242, %v6241
    %v6244 = vmul.f32 0.5, %v6243
    %v6245 = vsub.f32 1.5, %v6244
    %v6246 = vmul.f32 %v6241, %v6245
    %vm6247 = vweird.f32 %v6238
    %vm6248 = vweird.f32 %v6241
    %vm6249 = vmor %vm6247, %vm6248
    %v6250 = vsel %vm6249, %v6241, %v6246
    %v6251 = vrsqrt.pop %v6239
    %v6252 = vmul.f32 %v6251, %v6239
    %v6253 = vmul.f32 %v6252, %v6251
    %v6254 = vmul.f32 0.5, %v6253
    %v6255 = vsub.f32 1.5, %v6254
    %v6256 = vmul.f32 %v6251, %v6255
    %vm6257 = vweird.f32 %v6239
    %vm6258 = vweird.f32 %v6251
    %vm6259 = vmor %vm6257, %vm6258
    %v6260 = vsel %vm6259, %v6251, %v6256
    %v6261 = vrsqrt.pop %v6240
    %v6262 = vmul.f32 %v6261, %v6240
    %v6263 = vmul.f32 %v6262, %v6261
    %v6264 = vmul.f32 0.5, %v6263
    %v6265 = vsub.f32 1.5, %v6264
    %v6266 = vmul.f32 %v6261, %v6265
    %vm6267 = vweird.f32 %v6240
    %vm6268 = vweird.f32 %v6261
    %vm6269 = vmor %vm6267, %vm6268
    %v6270 = vsel %vm6269, %v6261, %v6266
    %v6271 = vmul.f32 %v6220, %v6250
    %v6272 = vmul.f32 %v6221, %v6260
    %v6273 = vmul.f32 %v6222, %v6270
    %v6274 = vperm.slane %v6206, 0
    %v6275 = vmul.f32 %v6271, %v6274
    %v6276 = vmul.f32 %v6272, %v6274
    %v6277 = vmul.f32 %v6273, %v6274
    %v6278 = vperm.slane %v6207, 0
    %v6279 = vadd.f32 %v6275, %v6278
    %v6280 = vadd.f32 %v6276, %v6278
    %v6281 = vadd.f32 %v6277, %v6278
    %v6282 = vld [vmem:[#allocation2 + $0x3e8] sm:$0xff]
    %v6283 = vld [vmem:[#allocation2 + $0x3f0] sm:$0xff]
    %v6284 = vld [vmem:[#allocation2 + $0x3f8] sm:$0xff]
    %v6285 = vld [vmem:[#allocation2 + $0x400] sm:$0xff]
    %v6286 = vld [vmem:[#allocation2 + $0x408] sm:$0x1]
    %v6287 = vld [vmem:[#allocation2 + $0x410] sm:$0xff]
    %v6288 = vld [vmem:[#allocation2 + $0x418] sm:$0xff]
    %v6289 = vld [vmem:[#allocation2 + $0x420] sm:$0xff]
    %v6290 = vld [vmem:[#allocation2 + $0x428] sm:$0xff]
    %v6291 = vld [vmem:[#allocation2 + $0x430] sm:$0xff]
    %v6292 = vld [vmem:[#allocation2 + $0x438] sm:$0xff]
    %v6293 = vld [vmem:[#allocation2 + $0x440] sm:$0xff]
    %v6294 = vld [vmem:[#allocation2 + $0x448] sm:$0xff]
    %v6295 = vld [vmem:[#allocation2 + $0x450] sm:$0x1]
    %v6296 = vperm.slane %v6286, 0
    %v6298 = vsel %vm55, %v6279, 0
    %v6301 = vsel %vm55, %v6280, 0
    %v6304 = vsel %vm55, %v6281, 0
    %6306 = vmatpush.msra.mxu0 0.0
    %6307 = vmatpush.msra.mxu0 0.0
    %6308 = vmatpush.msra.mxu0 0.0
    %6309 = vmatpush.msra.mxu0 0.0
    %6310 = vmatpush.msra.mxu0 0.0
    %6311 = vmatpush.msra.mxu0 0.0
    %6312 = vmatpush.msra.mxu0 0.0
    %6313 = vmatpush.msra.mxu0 0.0
    %6314 = vmatpush.msra.mxu0 0.0
    %6315 = vmatpush.msra.mxu0 0.0
    %6316 = vmatpush.msra.mxu0 0.0
    %6317 = vmatpush.msra.mxu0 0.0
    %6318 = vmatpush.msra.mxu0 %v6285
    %6319 = vmatpush.msra.mxu0 %v6284
    %6320 = vmatpush.msra.mxu0 %v6283
    %6321 = vmatpush.msra.mxu0 %v6282
    %6322 = vmatmul.f32.gmra.mxu0 %v6298
    %v6323 = vpop.f32.mrf.mxu0
    %v6324 = vadd.f32 %v6296, %v6323
    %6325 = vmatmul.f32.gmra.mxu0 %v6301
    %v6326 = vpop.f32.mrf.mxu0
    %v6327 = vadd.f32 %v6296, %v6326
    %6328 = vmatmul.f32.gmra.mxu0 %v6304
    %v6329 = vpop.f32.mrf.mxu0
    %v6330 = vadd.f32 %v6296, %v6329
    %6331 = vdwg.mxu0
    %v6332 = vmul.f32 %v6324, 0.5
    %v6333 = vmul.f32 %v6327, 0.5
    %v6334 = vmul.f32 %v6330, 0.5
    %v6335 = vmul.f32 %v6324, 0.70710677
    %v6336 = vmul.f32 %v6327, 0.70710677
    %v6337 = vmul.f32 %v6330, 0.70710677
    %vm6338 = vcmp.ge.f32.partialorder %v6335, 0.0
    %vm6339 = vcmp.ge.f32.partialorder %v6336, 0.0
    %vm6340 = vcmp.ge.f32.partialorder %v6337, 0.0
    %v6341 = vsel %vm6338, 1.0, -1.0
    %v6342 = vsel %vm6339, 1.0, -1.0
    %v6343 = vsel %vm6340, 1.0, -1.0
    %v6344 = vand.u32 2147483647, %v6335
    %v6345 = vand.u32 2147483647, %v6336
    %v6346 = vand.u32 2147483647, %v6337
    %v6347 = vmul.f32 %v6344, 0.3275911
    %v6348 = vmul.f32 %v6345, 0.3275911
    %v6349 = vmul.f32 %v6346, 0.3275911
    %v6350 = vadd.f32 %v6347, 1.0
    %v6351 = vadd.f32 %v6348, 1.0
    %v6352 = vadd.f32 %v6349, 1.0
    %v6353 = vrcp.pop %v6350
    %v6354 = vmul.f32 %v6350, %v6353
    %v6355 = vsub.f32 1.0, %v6354
    %v6356 = vmul.f32 %v6353, %v6355
    %v6357 = vadd.f32 %v6353, %v6356
    %vm6358 = vweird.f32 %v6350
    %vm6359 = vweird.f32 %v6353
    %vm6360 = vmor %vm6358, %vm6359
    %v6361 = vsel %vm6360, %v6353, %v6357
    %v6362 = vand.u32 2147483647, %v6350
    %vm6363 = vcmp.eq.f32.partialorder %v6362, 8.507059e+37
    %v6364 = vand.u32 %v6350, 2147483648
    %v6365 = vor.u32 1.1754944e-38, %v6364
    %v6366 = vsel %vm6363, %v6365, %v6361
    %v6367 = vmul.f32 1.0, %v6366
    %v6368 = vrcp.pop %v6351
    %v6369 = vmul.f32 %v6351, %v6368
    %v6370 = vsub.f32 1.0, %v6369
    %v6371 = vmul.f32 %v6368, %v6370
    %v6372 = vadd.f32 %v6368, %v6371
    %vm6373 = vweird.f32 %v6351
    %vm6374 = vweird.f32 %v6368
    %vm6375 = vmor %vm6373, %vm6374
    %v6376 = vsel %vm6375, %v6368, %v6372
    %v6377 = vand.u32 2147483647, %v6351
    %vm6378 = vcmp.eq.f32.partialorder %v6377, 8.507059e+37
    %v6379 = vand.u32 %v6351, 2147483648
    %v6380 = vor.u32 1.1754944e-38, %v6379
    %v6381 = vsel %vm6378, %v6380, %v6376
    %v6382 = vmul.f32 1.0, %v6381
    %v6383 = vrcp.pop %v6352
    %v6384 = vmul.f32 %v6352, %v6383
    %v6385 = vsub.f32 1.0, %v6384
    %v6386 = vmul.f32 %v6383, %v6385
    %v6387 = vadd.f32 %v6383, %v6386
    %vm6388 = vweird.f32 %v6352
    %vm6389 = vweird.f32 %v6383
    %vm6390 = vmor %vm6388, %vm6389
    %v6391 = vsel %vm6390, %v6383, %v6387
    %v6392 = vand.u32 2147483647, %v6352
    %vm6393 = vcmp.eq.f32.partialorder %v6392, 8.507059e+37
    %v6394 = vand.u32 %v6352, 2147483648
    %v6395 = vor.u32 1.1754944e-38, %v6394
    %v6396 = vsel %vm6393, %v6395, %v6391
    %v6397 = vmul.f32 1.0, %v6396
    %v6398 = vmul.f32 %v6367, 1.0614054
    %v6399 = vmul.f32 %v6382, 1.0614054
    %v6400 = vmul.f32 %v6397, 1.0614054
    %v6401 = vadd.f32 %v6398, -1.4531521
    %v6402 = vadd.f32 %v6399, -1.4531521
    %v6403 = vadd.f32 %v6400, -1.4531521
    %v6404 = vmul.f32 %v6401, %v6367
    %v6405 = vmul.f32 %v6402, %v6382
    %v6406 = vmul.f32 %v6403, %v6397
    %v6407 = vadd.f32 %v6404, 1.4214138
    %v6408 = vadd.f32 %v6405, 1.4214138
    %v6409 = vadd.f32 %v6406, 1.4214138
    %v6410 = vmul.f32 %v6407, %v6367
    %v6411 = vmul.f32 %v6408, %v6382
    %v6412 = vmul.f32 %v6409, %v6397
    %v6413 = vadd.f32 %v6410, -0.28449672
    %v6414 = vadd.f32 %v6411, -0.28449672
    %v6415 = vadd.f32 %v6412, -0.28449672
    %v6416 = vmul.f32 %v6413, %v6367
    %v6417 = vmul.f32 %v6414, %v6382
    %v6418 = vmul.f32 %v6415, %v6397
    %v6419 = vadd.f32 %v6416, 0.2548296
    %v6420 = vadd.f32 %v6417, 0.2548296
    %v6421 = vadd.f32 %v6418, 0.2548296
    %v6422 = vmul.f32 %v6419, %v6367
    %v6423 = vmul.f32 %v6420, %v6382
    %v6424 = vmul.f32 %v6421, %v6397
    %v6425 = vsub.f32 0.0, %v6344
    %v6426 = vsub.f32 0.0, %v6345
    %v6427 = vsub.f32 0.0, %v6346
    %v6428 = vmul.f32 %v6425, %v6344
    %v6429 = vmul.f32 %v6426, %v6345
    %v6430 = vmul.f32 %v6427, %v6346
    %v6431 = vmul.f32 %v6428, 1.442695
    %v6432 = vpow.pop %v6431
    %v6433 = vmul.f32 %v6429, 1.442695
    %v6434 = vpow.pop %v6433
    %v6435 = vmul.f32 %v6430, 1.442695
    %v6436 = vpow.pop %v6435
    %v6437 = vmul.f32 %v6422, %v6432
    %v6438 = vmul.f32 %v6423, %v6434
    %v6439 = vmul.f32 %v6424, %v6436
    %v6440 = vsub.f32 1.0, %v6437
    %v6441 = vsub.f32 1.0, %v6438
    %v6442 = vsub.f32 1.0, %v6439
    %v6443 = vmul.f32 %v6341, %v6440
    %v6444 = vmul.f32 %v6342, %v6441
    %v6445 = vmul.f32 %v6343, %v6442
    %v6446 = vadd.f32 %v6443, 1.0
    %v6447 = vadd.f32 %v6444, 1.0
    %v6448 = vadd.f32 %v6445, 1.0
    %v6449 = vmul.f32 %v6332, %v6446
    %v6450 = vmul.f32 %v6333, %v6447
    %v6451 = vmul.f32 %v6334, %v6448
    %v6452 = vperm.slane %v6295, 0
    %v6454 = vsel %vm1121, %v6449, 0
    %v6457 = vsel %vm1121, %v6450, 0
    %v6460 = vsel %vm1121, %v6451, 0
    %6462 = vmatpush.msra.mxu0 0.0
    %6463 = vmatpush.msra.mxu0 0.0
    %6464 = vmatpush.msra.mxu0 0.0
    %6465 = vmatpush.msra.mxu0 0.0
    %6466 = vmatpush.msra.mxu0 0.0
    %6467 = vmatpush.msra.mxu0 0.0
    %6468 = vmatpush.msra.mxu0 0.0
    %6469 = vmatpush.msra.mxu0 0.0
    %6470 = vmatpush.msra.mxu0 %v6294
    %6471 = vmatpush.msra.mxu0 %v6293
    %6472 = vmatpush.msra.mxu0 %v6292
    %6473 = vmatpush.msra.mxu0 %v6291
    %6474 = vmatpush.msra.mxu0 %v6290
    %6475 = vmatpush.msra.mxu0 %v6289
    %6476 = vmatpush.msra.mxu0 %v6288
    %6477 = vmatpush.msra.mxu0 %v6287
    %6478 = vmatmul.f32.gmra.mxu0 %v6454
    %v6479 = vpop.f32.mrf.mxu0
    %v6480 = vadd.f32 %v6452, %v6479
    %6481 = vmatmul.f32.gmra.mxu0 %v6457
    %v6482 = vpop.f32.mrf.mxu0
    %v6483 = vadd.f32 %v6452, %v6482
    %6484 = vmatmul.f32.gmra.mxu0 %v6460
    %v6485 = vpop.f32.mrf.mxu0
    %v6486 = vadd.f32 %v6452, %v6485
    %6487 = vdwg.mxu0
    %v6488 = vadd.f32 %v6279, %v6480
    %v6489 = vadd.f32 %v6280, %v6483
    %v6490 = vadd.f32 %v6281, %v6486
    %v6491 = vld [vmem:[#allocation2 + $0x458] sm:$0x1]
    %v6492 = vld [vmem:[#allocation2 + $0x460] sm:$0x1]
    %v6493 = vsel %vm55, %v6488, 0.0
    %6494 = vadd.xlane.f32.xlu0 %v6493
    %v6495 = vpop.xlane.xlu0 %6494
    %v6496 = vsel %vm55, %v6489, 0.0
    %6497 = vadd.xlane.f32.xlu0 %v6496
    %v6498 = vpop.xlane.xlu0 %6497
    %v6499 = vsel %vm874, %v6490, 0.0
    %6500 = vadd.xlane.f32.xlu0 %v6499
    %v6501 = vpop.xlane.xlu0 %6500
    %v6502 = vmul.f32 %v6495, %v884
    %v6503 = vmul.f32 %v6498, %v884
    %v6504 = vmul.f32 %v6501, %v884
    %v6505 = vsub.f32 %v6488, %v6502
    %v6506 = vsub.f32 %v6489, %v6503
    %v6507 = vsub.f32 %v6490, %v6504
    %v6508 = vmul.f32 %v6505, %v6505
    %v6509 = vmul.f32 %v6506, %v6506
    %v6510 = vmul.f32 %v6507, %v6507
    %v6511 = vsel %vm55, %v6508, 0.0
    %6512 = vadd.xlane.f32.xlu0 %v6511
    %v6513 = vpop.xlane.xlu0 %6512
    %v6514 = vsel %vm55, %v6509, 0.0
    %6515 = vadd.xlane.f32.xlu0 %v6514
    %v6516 = vpop.xlane.xlu0 %6515
    %v6517 = vsel %vm874, %v6510, 0.0
    %6518 = vadd.xlane.f32.xlu0 %v6517
    %v6519 = vpop.xlane.xlu0 %6518
    %v6520 = vmul.f32 %v6513, %v884
    %v6521 = vmul.f32 %v6516, %v884
    %v6522 = vmul.f32 %v6519, %v884
    %v6523 = vadd.f32 %v6520, 1e-12
    %v6524 = vadd.f32 %v6521, 1e-12
    %v6525 = vadd.f32 %v6522, 1e-12
    %v6526 = vrsqrt.pop %v6523
    %v6527 = vmul.f32 %v6526, %v6523
    %v6528 = vmul.f32 %v6527, %v6526
    %v6529 = vmul.f32 0.5, %v6528
    %v6530 = vsub.f32 1.5, %v6529
    %v6531 = vmul.f32 %v6526, %v6530
    %vm6532 = vweird.f32 %v6523
    %vm6533 = vweird.f32 %v6526
    %vm6534 = vmor %vm6532, %vm6533
    %v6535 = vsel %vm6534, %v6526, %v6531
    %v6536 = vrsqrt.pop %v6524
    %v6537 = vmul.f32 %v6536, %v6524
    %v6538 = vmul.f32 %v6537, %v6536
    %v6539 = vmul.f32 0.5, %v6538
    %v6540 = vsub.f32 1.5, %v6539
    %v6541 = vmul.f32 %v6536, %v6540
    %vm6542 = vweird.f32 %v6524
    %vm6543 = vweird.f32 %v6536
    %vm6544 = vmor %vm6542, %vm6543
    %v6545 = vsel %vm6544, %v6536, %v6541
    %v6546 = vrsqrt.pop %v6525
    %v6547 = vmul.f32 %v6546, %v6525
    %v6548 = vmul.f32 %v6547, %v6546
    %v6549 = vmul.f32 0.5, %v6548
    %v6550 = vsub.f32 1.5, %v6549
    %v6551 = vmul.f32 %v6546, %v6550
    %vm6552 = vweird.f32 %v6525
    %vm6553 = vweird.f32 %v6546
    %vm6554 = vmor %vm6552, %vm6553
    %v6555 = vsel %vm6554, %v6546, %v6551
    %v6556 = vmul.f32 %v6505, %v6535
    %v6557 = vmul.f32 %v6506, %v6545
    %v6558 = vmul.f32 %v6507, %v6555
    %v6559 = vperm.slane %v6491, 0
    %v6560 = vmul.f32 %v6556, %v6559
    %v6561 = vmul.f32 %v6557, %v6559
    %v6562 = vmul.f32 %v6558, %v6559
    %v6563 = vperm.slane %v6492, 0
    %v6564 = vadd.f32 %v6560, %v6563
    %v6565 = vadd.f32 %v6561, %v6563
    %v6566 = vadd.f32 %v6562, %v6563
    %6567 = vst.msk [vmem:[%s4] sm:$0xff] %vm55, %v6564
    %6568 = vst.msk [vmem:[%s4 + $0x8] sm:$0xff] %vm55, %v6565
    %6569 = vst.msk [vmem:[%s4 + $0x10] sm:$0x3] %vm874, %v6566
    // Predicated region
    $region22: #{transformer_forward.1} parent=1 // pred_check
      _
    $region23: #{transformer_forward.1} parent=1 // pred_check_branch
      %6571 = sbr.rel (0) target = $region25
    $region24: #{transformer_forward.1} parent=1 // pred_region
      _
    $region25: #{transformer_forward.1} parent=1 // pred_fallthru
      _
    // Predicated region
    $region26: #{transformer_forward.1} parent=1 // pred_check
      _
    $region27: #{transformer_forward.1} parent=1 // pred_check_branch
      %6573 = sbr.rel (0) target = $region29
    $region28: #{transformer_forward.1} parent=1 // pred_region
      _
    $region29: #{transformer_forward.1} parent=1 // pred_fallthru
      _
    // Predicated region
    $region30: #{transformer_forward.1} parent=1 // pred_check
      _
    $region31: #{transformer_forward.1} parent=1 // pred_check_branch
      %6575 = sbr.rel (0) target = $region33
    $region32: #{transformer_forward.1} parent=1 // pred_region
      _
    $region33: #{transformer_forward.1} parent=1 // pred_fallthru
      _
    // Predicated region
    $region34: #{transformer_forward.1} parent=1 // pred_check
      _
    $region35: #{transformer_forward.1} parent=1 // pred_check_branch
      %6577 = sbr.rel (0) target = $region37
    $region36: #{transformer_forward.1} parent=1 // pred_region
      _
    $region37: #{transformer_forward.1} parent=1 // pred_fallthru
      _
    %6578 = vsyncpa [#allocation3], 1

</llo_original>
